<compile_context>
chip_gen: v7x
topology: tpu7x:2x2x1
jax: 0.10.0
libtpu: 0.0.40
codegen_flags: <defaults>
</compile_context>

<pallas_src>
from functools import partial

import numpy as np
import jax
import jax.numpy as jnp
from jax import lax
from jax.experimental import pallas as pl
from jax.experimental.pallas import tpu as pltpu

_INV_SQRT2 = 0.7071067811865476
_EPS = 1e-5


def _gelu_exact(x):
    # PyTorch nn.GELU() default (exact, erf-based).
    return 0.5 * x * (1.0 + lax.erf(x * _INV_SQRT2))


# ----------------------------------------------------------------------------
# The single fused kernel (one batch element per grid step, everything in VMEM)
# ----------------------------------------------------------------------------
def _fused_forward_kernel(
    # inputs
    x_ref,       # (Lp0, C_in)  zero-padded input, channels-last (leading dim squeezed)
    w0_ref,      # (3, C_in, H)       encoder layer 0 per-tap weights
    wr_ref,      # (5, 3, H, H)       encoder layers 1..5 per-tap weights
    b_ref,       # (6, H)             encoder conv biases
    g_ref,       # (6, H)             GroupNorm gammas
    bt_ref,      # (6, H)             GroupNorm betas
    gmat_ref,    # (H, H)             group-membership matrix (groups of 2 ch)
    rpE_ref,     # (H, H)             selector: col c -> in-ch 2*(c//2)
    rpO_ref,     # (H, H)             selector: col c -> in-ch 2*(c//2)+1
    rpA_ref,     # (25, H)            rel-pos tap weights (first in-ch of group)
    rpB_ref,     # (25, H)            rel-pos tap weights (second in-ch of group)
    rpb_ref,     # (1, H)             rel-pos conv bias
    lng_ref,     # (1, H)             LayerNorm gamma
    lnb_ref,     # (1, H)             LayerNorm beta
    w1_ref,      # (H, 3H)            1x1 conv H -> 3H
    b1_ref,      # (1, 3H)
    p1_ref,      # (P, L_enc)         AdaptiveAvgPool1d(P) over time
    T_ref,       # (P, 3H, HP)        flatten-reorder composed with 3HP->HP pool
    bns_ref,     # (1, HP)            BatchNorm eval scale
    bnb_ref,     # (1, HP)            BatchNorm eval shift
    wp_ref,      # (HP, HP//2)
    bp_ref,      # (1, HP//2)
    wc_ref,      # (HP//2, n_targets)
    bc_ref,      # (1, n_targets)
    # outputs
    logit_ref,   # (1, 1, n_targets)
    feat_ref,    # (1, 1, HP)
    # scratch
    buf_a,       # (16 + L0, H)
    buf_b,       # (16 + L1, H)
    rp_buf,      # (2*rp_lead + L_enc, H)
    *,
    strides, l_outs, H, rp_k, rp_lead,
):
    f32 = jnp.float32

    def conv3(load_tap, tap_w, bias_row):
        # K=3 "same" conv as 3 accumulated MXU dots over strided slices.
        y = jnp.dot(load_tap(0), tap_w(0), preferred_element_type=f32)
        y = y + jnp.dot(load_tap(1), tap_w(1), preferred_element_type=f32)
        y = y + jnp.dot(load_tap(2), tap_w(2), preferred_element_type=f32)
        return y + bias_row

    def group_norm_gelu(y, layer, n_rows):
        # GroupNorm(H//2 groups of 2 channels) via group-membership matmuls.
        n = float(n_rows * 2)
        s1 = jnp.sum(y, axis=0, keepdims=True)                            # (1, H)
        mean = jnp.dot(s1, gmat_ref[...], preferred_element_type=f32) / n
        yc = y - mean
        s2 = jnp.sum(yc * yc, axis=0, keepdims=True)
        var = jnp.dot(s2, gmat_ref[...], preferred_element_type=f32) / n  # two-pass
        yn = yc * lax.rsqrt(var + _EPS)
        return _gelu_exact(yn * g_ref[layer:layer + 1, :] + bt_ref[layer:layer + 1, :])

    # ---- encoder layer 0 (reads the zero-padded input block: 8-row lead pad) ----
    L0, s0 = l_outs[0], strides[0]
    act = conv3(
        lambda k: x_ref[pl.ds(7 + k, L0, stride=s0), :],
        lambda k: w0_ref[k],
        b_ref[0:1, :],
    )
    act = group_norm_gelu(act, 0, L0)

    # ---- encoder layers 1..5, ping-ponging padded activations between scratch ----
    bufs = (buf_a, buf_b)
    zeros8 = jnp.zeros((8, H), f32)
    for i in range(1, len(l_outs)):
        src = bufs[(i - 1) % 2]
        L_in, L_out, s = l_outs[i - 1], l_outs[i], strides[i]
        src[0:8, :] = zeros8                       # lead zero pad (row 7 is "pad" col)
        src[8:8 + L_in, :] = act
        src[8 + L_in:16 + L_in, :] = zeros8        # trailing zero pad
        act = conv3(
            lambda k, _src=src, _L=L_out, _s=s: _src[pl.ds(7 + k, _L, stride=_s), :],
            lambda k, _i=i: wr_ref[_i - 1, k],
            b_ref[i:i + 1, :],
        )
        act = group_norm_gelu(act, i, L_out)

    z = act                                         # (L_enc, H)
    L_enc = l_outs[-1]

    # ---- relative-position grouped conv (16 groups x 2 ch, K=25) + GELU + residual
    # Block-diagonal conv done as per-tap VPU FMAs; even/odd in-channel selection
    # is two tiny MXU dots (no 16x zero-FLOP dense contraction).
    rp_buf[...] = jnp.zeros(rp_buf.shape, f32)
    rp_buf[rp_lead:rp_lead + L_enc, :] = z
    xv = rp_buf[...]
    x_e = jnp.dot(xv, rpE_ref[...], preferred_element_type=f32)   # col c -> x[:, 2*(c//2)]
    x_o = jnp.dot(xv, rpO_ref[...], preferred_element_type=f32)   # col c -> x[:, 2*(c//2)+1]
    off = rp_lead - rp_k // 2
    acc = jnp.zeros((L_enc, H), f32) + rpb_ref[...]
    for k in range(rp_k):
        r0 = off + k
        acc = (acc
               + x_e[r0:r0 + L_enc, :] * rpA_ref[k:k + 1, :]
               + x_o[r0:r0 + L_enc, :] * rpB_ref[k:k + 1, :])
    h = z + _gelu_exact(acc)

    # ---- LayerNorm over channels + 1x1 conv to 3H ----
    mu = jnp.mean(h, axis=-1, keepdims=True)
    var = jnp.mean((h - mu) ** 2, axis=-1, keepdims=True)
    zn = (h - mu) * lax.rsqrt(var + _EPS) * lng_ref[...] + lnb_ref[...]
    y1 = jnp.dot(zn, w1_ref[...], preferred_element_type=f32) + b1_ref[...]   # (L_enc, 3H)

    # ---- AdaptiveAvgPool1d(P) over time, then (flatten-reorder o 3HP->HP pool) ----
    zp = jnp.dot(p1_ref[...], y1, preferred_element_type=f32)                 # (P, 3H)
    P = zp.shape[0]
    HP = bns_ref.shape[1]
    fpre = jnp.zeros((1, HP), f32)
    for p_ in range(P):
        fpre = fpre + jnp.dot(zp[p_:p_ + 1, :], T_ref[p_], preferred_element_type=f32)

    # ---- ReLU + BatchNorm1d(eval) folded to one FMA ----
    f = jnp.maximum(fpre, 0.0) * bns_ref[...] + bnb_ref[...]
    feat_ref[0] = f

    # ---- classifier: Linear(HP, HP//2) -> Linear(HP//2, n_targets) ----
    h1 = jnp.dot(f, wp_ref[...], preferred_element_type=f32) + bp_ref[...]
    logit_ref[0] = jnp.dot(h1, wc_ref[...], preferred_element_type=f32) + bc_ref[...]


# ----------------------------------------------------------------------------
# Parameter construction + wrapper
# ----------------------------------------------------------------------------
def adaptive_avg_pool_matrix(L_in, L_out):
    """Matches nn.AdaptiveAvgPool1d binning. Returns (L_out, L_in) numpy array."""
    m = np.zeros((L_out, L_in), dtype=np.float32)
    for i in range(L_out):
        s = (i * L_in) // L_out
        e = -(-((i + 1) * L_in) // L_out)
        m[i, s:e] = 1.0 / (e - s)
    return m


def init_params(key, n_chn, H, n_targets, pool_length, samples_len):
    downs = (3, 2, 2, 2, 2, 2)          # enc_downsample
    keys = iter(jax.random.split(key, 32))
    p = {"downs": downs, "n_chn": n_chn, "H": H, "n_targets": n_targets,
         "pool_length": pool_length, "samples_len": samples_len}

    # Encoder conv weights: PyTorch (C_out, C_in, K) -> per-tap (K, C_in, C_out).
    w0 = 0.1 * jax.random.normal(next(keys), (H, n_chn, 3), jnp.float32)
    p["w0"] = jnp.transpose(w0, (2, 1, 0))                           # (3, C_in, H)
    wr = 0.1 * jax.random.normal(next(keys), (5, H, H, 3), jnp.float32)
    p["wr"] = jnp.transpose(wr, (0, 3, 2, 1))                        # (5, 3, H, H)
    p["b_enc"] = 0.05 * jax.random.normal(next(keys), (6, H), jnp.float32)
    p["g_enc"] = jnp.ones((6, H), jnp.float32)
    p["bt_enc"] = jnp.zeros((6, H), jnp.float32)
    gidx = np.arange(H) // 2
    p["gmat"] = jnp.asarray((gidx[:, None] == gidx[None, :]).astype(np.float32))

    # Rel-pos grouped conv Conv1d(H, H, 25, groups=16): weight (H, H//16=2, 25),
    # normal(0, 2/(3H)), bias 0; weight_norm(dim=2) is identity at fresh init.
    rp_w = (2.0 / (3 * H)) * jax.random.normal(next(keys), (H, 2, 25), jnp.float32)
    p["rpA"] = jnp.transpose(rp_w[:, 0, :])                          # (25, H)
    p["rpB"] = jnp.transpose(rp_w[:, 1, :])                          # (25, H)
    p["rp_b"] = jnp.zeros((1, H), jnp.float32)
    cols = np.arange(H)
    E = np.zeros((H, H), np.float32); E[2 * (cols // 2), cols] = 1.0
    O = np.zeros((H, H), np.float32); O[2 * (cols // 2) + 1, cols] = 1.0
    p["rpE"], p["rpO"] = jnp.asarray(E), jnp.asarray(O)

    # Input conditioning: LayerNorm(H) + Conv1d(H, 3H, 1).
    p["ln_g"] = jnp.ones((1, H), jnp.float32)
    p["ln_b"] = jnp.zeros((1, H), jnp.float32)
    w1 = 0.1 * jax.random.normal(next(keys), (3 * H, H), jnp.float32)
    p["w1"] = jnp.transpose(w1)                                       # (H, 3H)
    p["b1"] = 0.05 * jax.random.normal(next(keys), (1, 3 * H), jnp.float32)

    # Time lengths through the encoder (K=3, pad=1 => L_out = ceil(L/stride)).
    l_outs, L = [], samples_len
    for d in downs:
        L = (L - 1) // d + 1
        l_outs.append(L)
    p["l_outs"] = tuple(l_outs)
    L_enc = l_outs[-1]

    P = pool_length
    HP = H * P
    p["pmat1"] = jnp.asarray(adaptive_avg_pool_matrix(L_enc, P))      # (P, L_enc)
    W2 = adaptive_avg_pool_matrix(3 * HP, HP)                         # (HP, 3HP)
    # T[p, c, i] = W2[i, c*P + p]  (torch channel-major Flatten + 3HP->HP pool)
    p["T"] = jnp.asarray(np.ascontiguousarray(
        W2.reshape(HP, 3 * H, P).transpose(2, 1, 0)))                 # (P, 3H, HP)

    # BatchNorm1d(HP) eval-mode default stats folded to scale/shift.
    rm = np.zeros(HP, np.float32); rv = np.ones(HP, np.float32)
    g = np.ones(HP, np.float32); b = np.zeros(HP, np.float32)
    scale = g / np.sqrt(rv + _EPS)
    shift = b - rm * scale
    p["bn_scale"] = jnp.asarray(scale.reshape(1, HP))
    p["bn_shift"] = jnp.asarray(shift.reshape(1, HP))

    # Classifier: Linear(HP, HP//2) -> Linear(HP//2, n_targets).
    wp = 0.1 * jax.random.normal(next(keys), (HP // 2, HP), jnp.float32)
    p["wp"] = jnp.transpose(wp)
    p["bp"] = 0.05 * jax.random.normal(next(keys), (1, HP // 2), jnp.float32)
    wc = 0.1 * jax.random.normal(next(keys), (n_targets, HP // 2), jnp.float32)
    p["wc"] = jnp.transpose(wc)
    p["bc"] = 0.05 * jax.random.normal(next(keys), (1, n_targets), jnp.float32)
    return p


def long_linear_head_bendr_forward(x_ncl, p):
    """x_ncl: (B, n_chn, samples_len), PyTorch NCL layout. Returns (logits, features)."""
    B, C, L = x_ncl.shape
    H, P, n_t = p["H"], p["pool_length"], p["n_targets"]
    HP, TH = H * P, 3 * H
    l_outs, downs = p["l_outs"], p["downs"]
    L_enc = l_outs[-1]

    x = jnp.transpose(x_ncl, (0, 2, 1)).astype(jnp.float32)           # (B, L, C)
    xpad = jnp.pad(x, ((0, 0), (8, 8), (0, 0)))                        # 8-row zero lead/tail
    Lp0 = L + 16

    rows_a = 16 + l_outs[0]
    rows_b = 16 + l_outs[1]
    rp_lead = 16
    rows_rp = 2 * rp_lead + L_enc

    kern = partial(_fused_forward_kernel,
                   strides=tuple(downs), l_outs=tuple(l_outs),
                   H=H, rp_k=25, rp_lead=rp_lead)

    def wspec(shape):
        return pl.BlockSpec(shape, lambda i, _r=len(shape): (0,) * _r)

    logits, features = pl.pallas_call(
        kern,
        out_shape=(jax.ShapeDtypeStruct((B, 1, n_t), jnp.float32),
                   jax.ShapeDtypeStruct((B, 1, HP), jnp.float32)),
        grid=(B,),
        in_specs=[
            pl.BlockSpec((None, Lp0, C), lambda i: (i, 0, 0)),         # x (squeezed batch)
            wspec((3, C, H)),          # w0
            wspec((5, 3, H, H)),       # wr
            wspec((6, H)),             # b_enc
            wspec((6, H)),             # g_enc
            wspec((6, H)),             # bt_enc
            wspec((H, H)),             # gmat
            wspec((H, H)),             # rpE
            wspec((H, H)),             # rpO
            wspec((25, H)),            # rpA
            wspec((25, H)),            # rpB
            wspec((1, H)),             # rp_b
            wspec((1, H)),             # ln_g
            wspec((1, H)),             # ln_b
            wspec((H, TH)),            # w1
            wspec((1, TH)),            # b1
            wspec((P, L_enc)),         # pmat1
            wspec((P, TH, HP)),        # T
            wspec((1, HP)),            # bn_scale
            wspec((1, HP)),            # bn_shift
            wspec((HP, HP // 2)),      # wp
            wspec((1, HP // 2)),       # bp
            wspec((HP // 2, n_t)),     # wc
            wspec((1, n_t)),           # bc
        ],
        out_specs=(pl.BlockSpec((1, 1, n_t), lambda i: (i, 0, 0)),
                   pl.BlockSpec((1, 1, HP), lambda i: (i, 0, 0))),
        scratch_shapes=[
            pltpu.VMEM((rows_a, H), jnp.float32),
            pltpu.VMEM((rows_b, H), jnp.float32),
            pltpu.VMEM((rows_rp, H), jnp.float32),
        ],
        compiler_params=pltpu.CompilerParams(
            dimension_semantics=("parallel",),
            vmem_limit_bytes=32 * 1024 * 1024,
        ),
    )(xpad, p["w0"], p["wr"], p["b_enc"], p["g_enc"], p["bt_enc"], p["gmat"],
      p["rpE"], p["rpO"], p["rpA"], p["rpB"], p["rp_b"],
      p["ln_g"], p["ln_b"], p["w1"], p["b1"], p["pmat1"], p["T"],
      p["bn_scale"], p["bn_shift"], p["wp"], p["bp"], p["wc"], p["bc"])

    return logits[:, 0, :], features[:, 0, :]


if __name__ == "__main__":
    B, n_chn, samples_len = 2, 4, 768
    encoder_h, pool_length, n_targets = 32, 4, 3

    key = jax.random.PRNGKey(0)
    k_param, k_x = jax.random.split(key)
    params = init_params(k_param, n_chn, encoder_h, n_targets, pool_length, samples_len)
    x = jax.random.normal(k_x, (B, n_chn, samples_len), jnp.float32)

    logits, features = long_linear_head_bendr_forward(x, params)
    logits = jax.block_until_ready(logits)
    features = jax.block_until_ready(features)

    assert logits.shape == (B, n_targets)
    assert features.shape == (B, encoder_h * pool_length)
    assert bool(jnp.all(jnp.isfinite(logits))) and bool(jnp.all(jnp.isfinite(features)))
    print("KERNEL_OK")
</pallas_src>

<mosaic_0001>
module attributes {stable_mosaic.version = 11 : i64} {
  func.func @_fused_forward_kernel(%arg0: i32, %arg1: memref<1x784x4xf32, #tpu.memory_space<vmem>>, %arg2: memref<3x4x32xf32, #tpu.memory_space<vmem>>, %arg3: memref<5x3x32x32xf32, #tpu.memory_space<vmem>>, %arg4: memref<6x32xf32, #tpu.memory_space<vmem>>, %arg5: memref<6x32xf32, #tpu.memory_space<vmem>>, %arg6: memref<6x32xf32, #tpu.memory_space<vmem>>, %arg7: memref<32x32xf32, #tpu.memory_space<vmem>>, %arg8: memref<32x32xf32, #tpu.memory_space<vmem>>, %arg9: memref<32x32xf32, #tpu.memory_space<vmem>>, %arg10: memref<25x32xf32, #tpu.memory_space<vmem>>, %arg11: memref<25x32xf32, #tpu.memory_space<vmem>>, %arg12: memref<1x32xf32, #tpu.memory_space<vmem>>, %arg13: memref<1x32xf32, #tpu.memory_space<vmem>>, %arg14: memref<1x32xf32, #tpu.memory_space<vmem>>, %arg15: memref<32x96xf32, #tpu.memory_space<vmem>>, %arg16: memref<1x96xf32, #tpu.memory_space<vmem>>, %arg17: memref<4x8xf32, #tpu.memory_space<vmem>>, %arg18: memref<4x96x128xf32, #tpu.memory_space<vmem>>, %arg19: memref<1x128xf32, #tpu.memory_space<vmem>>, %arg20: memref<1x128xf32, #tpu.memory_space<vmem>>, %arg21: memref<128x64xf32, #tpu.memory_space<vmem>>, %arg22: memref<1x64xf32, #tpu.memory_space<vmem>>, %arg23: memref<64x3xf32, #tpu.memory_space<vmem>>, %arg24: memref<1x3xf32, #tpu.memory_space<vmem>>, %arg25: memref<1x1x3xf32, #tpu.memory_space<vmem>>, %arg26: memref<1x1x128xf32, #tpu.memory_space<vmem>>, %arg27: memref<272x32xf32, #tpu.memory_space<vmem>>, %arg28: memref<144x32xf32, #tpu.memory_space<vmem>>, %arg29: memref<40x32xf32, #tpu.memory_space<vmem>>) attributes {dimension_semantics = [#tpu.dimension_semantics<parallel>], iteration_bounds = array<i64: 2>, scalar_prefetch = 0 : i64, scratch_operands = 3 : i64, tpu.core_type = #tpu.core_type<tc>, window_params = [{transform_indices = @transform_0, window_bounds = array<i64: 1, 784, 4>}, {pipeline_mode = #tpu.pipeline_mode<synchronous>, transform_indices = @transform_1, window_bounds = array<i64: 3, 4, 32>}, {pipeline_mode = #tpu.pipeline_mode<synchronous>, transform_indices = @transform_2, window_bounds = array<i64: 5, 3, 32, 32>}, {pipeline_mode = #tpu.pipeline_mode<synchronous>, transform_indices = @transform_3, window_bounds = array<i64: 6, 32>}, {pipeline_mode = #tpu.pipeline_mode<synchronous>, transform_indices = @transform_4, window_bounds = array<i64: 6, 32>}, {pipeline_mode = #tpu.pipeline_mode<synchronous>, transform_indices = @transform_5, window_bounds = array<i64: 6, 32>}, {pipeline_mode = #tpu.pipeline_mode<synchronous>, transform_indices = @transform_6, window_bounds = array<i64: 32, 32>}, {pipeline_mode = #tpu.pipeline_mode<synchronous>, transform_indices = @transform_7, window_bounds = array<i64: 32, 32>}, {pipeline_mode = #tpu.pipeline_mode<synchronous>, transform_indices = @transform_8, window_bounds = array<i64: 32, 32>}, {pipeline_mode = #tpu.pipeline_mode<synchronous>, transform_indices = @transform_9, window_bounds = array<i64: 25, 32>}, {pipeline_mode = #tpu.pipeline_mode<synchronous>, transform_indices = @transform_10, window_bounds = array<i64: 25, 32>}, {pipeline_mode = #tpu.pipeline_mode<synchronous>, transform_indices = @transform_11, window_bounds = array<i64: 1, 32>}, {pipeline_mode = #tpu.pipeline_mode<synchronous>, transform_indices = @transform_12, window_bounds = array<i64: 1, 32>}, {pipeline_mode = #tpu.pipeline_mode<synchronous>, transform_indices = @transform_13, window_bounds = array<i64: 1, 32>}, {pipeline_mode = #tpu.pipeline_mode<synchronous>, transform_indices = @transform_14, window_bounds = array<i64: 32, 96>}, {pipeline_mode = #tpu.pipeline_mode<synchronous>, transform_indices = @transform_15, window_bounds = array<i64: 1, 96>}, {pipeline_mode = #tpu.pipeline_mode<synchronous>, transform_indices = @transform_16, window_bounds = array<i64: 4, 8>}, {pipeline_mode = #tpu.pipeline_mode<synchronous>, transform_indices = @transform_17, window_bounds = array<i64: 4, 96, 128>}, {pipeline_mode = #tpu.pipeline_mode<synchronous>, transform_indices = @transform_18, window_bounds = array<i64: 1, 128>}, {pipeline_mode = #tpu.pipeline_mode<synchronous>, transform_indices = @transform_19, window_bounds = array<i64: 1, 128>}, {pipeline_mode = #tpu.pipeline_mode<synchronous>, transform_indices = @transform_20, window_bounds = array<i64: 128, 64>}, {pipeline_mode = #tpu.pipeline_mode<synchronous>, transform_indices = @transform_21, window_bounds = array<i64: 1, 64>}, {pipeline_mode = #tpu.pipeline_mode<synchronous>, transform_indices = @transform_22, window_bounds = array<i64: 64, 3>}, {pipeline_mode = #tpu.pipeline_mode<synchronous>, transform_indices = @transform_23, window_bounds = array<i64: 1, 3>}, {transform_indices = @transform_24, window_bounds = array<i64: 1, 1, 3>}, {transform_indices = @transform_25, window_bounds = array<i64: 1, 1, 128>}]} {
    %c0 = arith.constant 0 : index
    %c0_0 = arith.constant 0 : index
    %0 = vector.load %arg4[%c0, %c0_0] : memref<6x32xf32, #tpu.memory_space<vmem>>, vector<1x32xf32>
    %c0_1 = arith.constant 0 : index
    %c7 = arith.constant 7 : index
    %c0_2 = arith.constant 0 : index
    %1 = tpu.strided_load %arg1[%c0_1, %c7, %c0_2] {strides = array<i32: 1, 3, 1>} : memref<1x784x4xf32, #tpu.memory_space<vmem>>, vector<1x256x4xf32>
    %2 = vector.shape_cast %1 : vector<1x256x4xf32> to vector<256x4xf32>
    %c0_3 = arith.constant 0 : index
    %c0_4 = arith.constant 0 : index
    %c0_5 = arith.constant 0 : index
    %3 = vector.load %arg2[%c0_3, %c0_4, %c0_5] : memref<3x4x32xf32, #tpu.memory_space<vmem>>, vector<1x4x32xf32>
    %4 = vector.shape_cast %3 : vector<1x4x32xf32> to vector<4x32xf32>
    %cst = arith.constant dense<0.000000e+00> : vector<256x32xf32>
    %5 = tpu.matmul %2, %4, %cst {dimension_numbers = #tpu.dot_dimension_numbers<[1], [0], [0], [1], [0, 0, 1, 1], [], []>} : vector<256x4xf32>, vector<4x32xf32>, vector<256x32xf32> -> vector<256x32xf32>
    %c0_6 = arith.constant 0 : index
    %c8 = arith.constant 8 : index
    %c0_7 = arith.constant 0 : index
    %6 = tpu.strided_load %arg1[%c0_6, %c8, %c0_7] {strides = array<i32: 1, 3, 1>} : memref<1x784x4xf32, #tpu.memory_space<vmem>>, vector<1x256x4xf32>
    %7 = vector.shape_cast %6 : vector<1x256x4xf32> to vector<256x4xf32>
    %c1 = arith.constant 1 : index
    %c0_8 = arith.constant 0 : index
    %c0_9 = arith.constant 0 : index
    %8 = vector.load %arg2[%c1, %c0_8, %c0_9] : memref<3x4x32xf32, #tpu.memory_space<vmem>>, vector<1x4x32xf32>
    %9 = vector.shape_cast %8 : vector<1x4x32xf32> to vector<4x32xf32>
    %cst_10 = arith.constant dense<0.000000e+00> : vector<256x32xf32>
    %10 = tpu.matmul %7, %9, %cst_10 {dimension_numbers = #tpu.dot_dimension_numbers<[1], [0], [0], [1], [0, 0, 1, 1], [], []>} : vector<256x4xf32>, vector<4x32xf32>, vector<256x32xf32> -> vector<256x32xf32>
    %11 = arith.addf %5, %10 : vector<256x32xf32>
    %c0_11 = arith.constant 0 : index
    %c9 = arith.constant 9 : index
    %c0_12 = arith.constant 0 : index
    %12 = tpu.strided_load %arg1[%c0_11, %c9, %c0_12] {strides = array<i32: 1, 3, 1>} : memref<1x784x4xf32, #tpu.memory_space<vmem>>, vector<1x256x4xf32>
    %13 = vector.shape_cast %12 : vector<1x256x4xf32> to vector<256x4xf32>
    %c2 = arith.constant 2 : index
    %c0_13 = arith.constant 0 : index
    %c0_14 = arith.constant 0 : index
    %14 = vector.load %arg2[%c2, %c0_13, %c0_14] : memref<3x4x32xf32, #tpu.memory_space<vmem>>, vector<1x4x32xf32>
    %15 = vector.shape_cast %14 : vector<1x4x32xf32> to vector<4x32xf32>
    %cst_15 = arith.constant dense<0.000000e+00> : vector<256x32xf32>
    %16 = tpu.matmul %13, %15, %cst_15 {dimension_numbers = #tpu.dot_dimension_numbers<[1], [0], [0], [1], [0, 0, 1, 1], [], []>} : vector<256x4xf32>, vector<4x32xf32>, vector<256x32xf32> -> vector<256x32xf32>
    %17 = arith.addf %11, %16 : vector<256x32xf32>
    %18 = vector.broadcast %0 : vector<1x32xf32> to vector<256x32xf32>
    %19 = arith.addf %17, %18 : vector<256x32xf32>
    %cst_16 = arith.constant dense<0.000000e+00> : vector<32xf32>
    %20 = vector.multi_reduction <add>, %19, %cst_16 [0] : vector<256x32xf32> to vector<32xf32>
    %21 = vector.shape_cast %20 : vector<32xf32> to vector<1x32xf32>
    %c0_17 = arith.constant 0 : index
    %c0_18 = arith.constant 0 : index
    %22 = vector.load %arg7[%c0_17, %c0_18] : memref<32x32xf32, #tpu.memory_space<vmem>>, vector<32x32xf32>
    %cst_19 = arith.constant dense<0.000000e+00> : vector<1x32xf32>
    %23 = tpu.matmul %21, %22, %cst_19 {dimension_numbers = #tpu.dot_dimension_numbers<[1], [0], [0], [1], [0, 0, 1, 1], [], []>} : vector<1x32xf32>, vector<32x32xf32>, vector<1x32xf32> -> vector<1x32xf32>
    %cst_20 = arith.constant 5.120000e+02 : f32
    %24 = vector.broadcast %cst_20 : f32 to vector<1x32xf32>
    %25 = arith.divf %23, %24 : vector<1x32xf32>
    %26 = vector.broadcast %25 : vector<1x32xf32> to vector<256x32xf32>
    %27 = arith.subf %19, %26 : vector<256x32xf32>
    %28 = arith.mulf %27, %27 : vector<256x32xf32>
    %cst_21 = arith.constant dense<0.000000e+00> : vector<32xf32>
    %29 = vector.multi_reduction <add>, %28, %cst_21 [0] : vector<256x32xf32> to vector<32xf32>
    %30 = vector.shape_cast %29 : vector<32xf32> to vector<1x32xf32>
    %c0_22 = arith.constant 0 : index
    %c0_23 = arith.constant 0 : index
    %31 = vector.load %arg7[%c0_22, %c0_23] : memref<32x32xf32, #tpu.memory_space<vmem>>, vector<32x32xf32>
    %cst_24 = arith.constant dense<0.000000e+00> : vector<1x32xf32>
    %32 = tpu.matmul %30, %31, %cst_24 {dimension_numbers = #tpu.dot_dimension_numbers<[1], [0], [0], [1], [0, 0, 1, 1], [], []>} : vector<1x32xf32>, vector<32x32xf32>, vector<1x32xf32> -> vector<1x32xf32>
    %cst_25 = arith.constant 5.120000e+02 : f32
    %33 = vector.broadcast %cst_25 : f32 to vector<1x32xf32>
    %34 = arith.divf %32, %33 : vector<1x32xf32>
    %cst_26 = arith.constant 9.99999974E-6 : f32
    %35 = vector.broadcast %cst_26 : f32 to vector<1x32xf32>
    %36 = arith.addf %34, %35 : vector<1x32xf32>
    %37 = math.rsqrt %36 : vector<1x32xf32>
    %38 = vector.broadcast %37 : vector<1x32xf32> to vector<256x32xf32>
    %39 = arith.mulf %27, %38 : vector<256x32xf32>
    %c0_27 = arith.constant 0 : index
    %c0_28 = arith.constant 0 : index
    %40 = vector.load %arg5[%c0_27, %c0_28] : memref<6x32xf32, #tpu.memory_space<vmem>>, vector<1x32xf32>
    %41 = vector.broadcast %40 : vector<1x32xf32> to vector<256x32xf32>
    %42 = arith.mulf %39, %41 : vector<256x32xf32>
    %c0_29 = arith.constant 0 : index
    %c0_30 = arith.constant 0 : index
    %43 = vector.load %arg6[%c0_29, %c0_30] : memref<6x32xf32, #tpu.memory_space<vmem>>, vector<1x32xf32>
    %44 = vector.broadcast %43 : vector<1x32xf32> to vector<256x32xf32>
    %45 = arith.addf %42, %44 : vector<256x32xf32>
    %cst_31 = arith.constant 5.000000e-01 : f32
    %46 = vector.broadcast %cst_31 : f32 to vector<256x32xf32>
    %47 = arith.mulf %46, %45 : vector<256x32xf32>
    %cst_32 = arith.constant 0.707106769 : f32
    %48 = vector.broadcast %cst_32 : f32 to vector<256x32xf32>
    %49 = arith.mulf %45, %48 : vector<256x32xf32>
    %50 = math.erf %49 : vector<256x32xf32>
    %cst_33 = arith.constant 1.000000e+00 : f32
    %51 = vector.broadcast %cst_33 : f32 to vector<256x32xf32>
    %52 = arith.addf %51, %50 : vector<256x32xf32>
    %53 = arith.mulf %47, %52 : vector<256x32xf32>
    %cst_34 = arith.constant 0.000000e+00 : f32
    %54 = vector.broadcast %cst_34 : f32 to vector<8x32xf32>
    %c0_35 = arith.constant 0 : index
    %c0_36 = arith.constant 0 : index
    %55 = vector.load %arg27[%c0_35, %c0_36] : memref<272x32xf32, #tpu.memory_space<vmem>>, vector<8x32xf32>
    tpu.vector_store %arg27[%c0_35, %c0_36], %54 {strides = array<i32>} : memref<272x32xf32, #tpu.memory_space<vmem>>, vector<8x32xf32>,
    %c8_37 = arith.constant 8 : index
    %c0_38 = arith.constant 0 : index
    %56 = vector.load %arg27[%c8_37, %c0_38] : memref<272x32xf32, #tpu.memory_space<vmem>>, vector<256x32xf32>
    tpu.vector_store %arg27[%c8_37, %c0_38], %53 {strides = array<i32>} : memref<272x32xf32, #tpu.memory_space<vmem>>, vector<256x32xf32>,
    %c264 = arith.constant 264 : index
    %c0_39 = arith.constant 0 : index
    %57 = vector.load %arg27[%c264, %c0_39] : memref<272x32xf32, #tpu.memory_space<vmem>>, vector<8x32xf32>
    tpu.vector_store %arg27[%c264, %c0_39], %54 {strides = array<i32>} : memref<272x32xf32, #tpu.memory_space<vmem>>, vector<8x32xf32>,
    %c1_40 = arith.constant 1 : index
    %c0_41 = arith.constant 0 : index
    %58 = vector.load %arg4[%c1_40, %c0_41] : memref<6x32xf32, #tpu.memory_space<vmem>>, vector<1x32xf32>
    %c7_42 = arith.constant 7 : index
    %c0_43 = arith.constant 0 : index
    %59 = tpu.strided_load %arg27[%c7_42, %c0_43] {strides = array<i32: 2, 1>} : memref<272x32xf32, #tpu.memory_space<vmem>>, vector<128x32xf32>
    %c0_44 = arith.constant 0 : index
    %c0_45 = arith.constant 0 : index
    %c0_46 = arith.constant 0 : index
    %c0_47 = arith.constant 0 : index
    %60 = vector.load %arg3[%c0_44, %c0_45, %c0_46, %c0_47] : memref<5x3x32x32xf32, #tpu.memory_space<vmem>>, vector<1x1x32x32xf32>
    %61 = vector.shape_cast %60 : vector<1x1x32x32xf32> to vector<32x32xf32>
    %cst_48 = arith.constant dense<0.000000e+00> : vector<128x32xf32>
    %62 = tpu.matmul %59, %61, %cst_48 {dimension_numbers = #tpu.dot_dimension_numbers<[1], [0], [0], [1], [0, 0, 1, 1], [], []>} : vector<128x32xf32>, vector<32x32xf32>, vector<128x32xf32> -> vector<128x32xf32>
    %c8_49 = arith.constant 8 : index
    %c0_50 = arith.constant 0 : index
    %63 = tpu.strided_load %arg27[%c8_49, %c0_50] {strides = array<i32: 2, 1>} : memref<272x32xf32, #tpu.memory_space<vmem>>, vector<128x32xf32>
    %c0_51 = arith.constant 0 : index
    %c1_52 = arith.constant 1 : index
    %c0_53 = arith.constant 0 : index
    %c0_54 = arith.constant 0 : index
    %64 = vector.load %arg3[%c0_51, %c1_52, %c0_53, %c0_54] : memref<5x3x32x32xf32, #tpu.memory_space<vmem>>, vector<1x1x32x32xf32>
    %65 = vector.shape_cast %64 : vector<1x1x32x32xf32> to vector<32x32xf32>
    %cst_55 = arith.constant dense<0.000000e+00> : vector<128x32xf32>
    %66 = tpu.matmul %63, %65, %cst_55 {dimension_numbers = #tpu.dot_dimension_numbers<[1], [0], [0], [1], [0, 0, 1, 1], [], []>} : vector<128x32xf32>, vector<32x32xf32>, vector<128x32xf32> -> vector<128x32xf32>
    %67 = arith.addf %62, %66 : vector<128x32xf32>
    %c9_56 = arith.constant 9 : index
    %c0_57 = arith.constant 0 : index
    %68 = tpu.strided_load %arg27[%c9_56, %c0_57] {strides = array<i32: 2, 1>} : memref<272x32xf32, #tpu.memory_space<vmem>>, vector<128x32xf32>
    %c0_58 = arith.constant 0 : index
    %c2_59 = arith.constant 2 : index
    %c0_60 = arith.constant 0 : index
    %c0_61 = arith.constant 0 : index
    %69 = vector.load %arg3[%c0_58, %c2_59, %c0_60, %c0_61] : memref<5x3x32x32xf32, #tpu.memory_space<vmem>>, vector<1x1x32x32xf32>
    %70 = vector.shape_cast %69 : vector<1x1x32x32xf32> to vector<32x32xf32>
    %cst_62 = arith.constant dense<0.000000e+00> : vector<128x32xf32>
    %71 = tpu.matmul %68, %70, %cst_62 {dimension_numbers = #tpu.dot_dimension_numbers<[1], [0], [0], [1], [0, 0, 1, 1], [], []>} : vector<128x32xf32>, vector<32x32xf32>, vector<128x32xf32> -> vector<128x32xf32>
    %72 = arith.addf %67, %71 : vector<128x32xf32>
    %73 = vector.broadcast %58 : vector<1x32xf32> to vector<128x32xf32>
    %74 = arith.addf %72, %73 : vector<128x32xf32>
    %cst_63 = arith.constant dense<0.000000e+00> : vector<32xf32>
    %75 = vector.multi_reduction <add>, %74, %cst_63 [0] : vector<128x32xf32> to vector<32xf32>
    %76 = vector.shape_cast %75 : vector<32xf32> to vector<1x32xf32>
    %c0_64 = arith.constant 0 : index
    %c0_65 = arith.constant 0 : index
    %77 = vector.load %arg7[%c0_64, %c0_65] : memref<32x32xf32, #tpu.memory_space<vmem>>, vector<32x32xf32>
    %cst_66 = arith.constant dense<0.000000e+00> : vector<1x32xf32>
    %78 = tpu.matmul %76, %77, %cst_66 {dimension_numbers = #tpu.dot_dimension_numbers<[1], [0], [0], [1], [0, 0, 1, 1], [], []>} : vector<1x32xf32>, vector<32x32xf32>, vector<1x32xf32> -> vector<1x32xf32>
    %cst_67 = arith.constant 2.560000e+02 : f32
    %79 = vector.broadcast %cst_67 : f32 to vector<1x32xf32>
    %80 = arith.divf %78, %79 : vector<1x32xf32>
    %81 = vector.broadcast %80 : vector<1x32xf32> to vector<128x32xf32>
    %82 = arith.subf %74, %81 : vector<128x32xf32>
    %83 = arith.mulf %82, %82 : vector<128x32xf32>
    %cst_68 = arith.constant dense<0.000000e+00> : vector<32xf32>
    %84 = vector.multi_reduction <add>, %83, %cst_68 [0] : vector<128x32xf32> to vector<32xf32>
    %85 = vector.shape_cast %84 : vector<32xf32> to vector<1x32xf32>
    %c0_69 = arith.constant 0 : index
    %c0_70 = arith.constant 0 : index
    %86 = vector.load %arg7[%c0_69, %c0_70] : memref<32x32xf32, #tpu.memory_space<vmem>>, vector<32x32xf32>
    %cst_71 = arith.constant dense<0.000000e+00> : vector<1x32xf32>
    %87 = tpu.matmul %85, %86, %cst_71 {dimension_numbers = #tpu.dot_dimension_numbers<[1], [0], [0], [1], [0, 0, 1, 1], [], []>} : vector<1x32xf32>, vector<32x32xf32>, vector<1x32xf32> -> vector<1x32xf32>
    %cst_72 = arith.constant 2.560000e+02 : f32
    %88 = vector.broadcast %cst_72 : f32 to vector<1x32xf32>
    %89 = arith.divf %87, %88 : vector<1x32xf32>
    %cst_73 = arith.constant 9.99999974E-6 : f32
    %90 = vector.broadcast %cst_73 : f32 to vector<1x32xf32>
    %91 = arith.addf %89, %90 : vector<1x32xf32>
    %92 = math.rsqrt %91 : vector<1x32xf32>
    %93 = vector.broadcast %92 : vector<1x32xf32> to vector<128x32xf32>
    %94 = arith.mulf %82, %93 : vector<128x32xf32>
    %c1_74 = arith.constant 1 : index
    %c0_75 = arith.constant 0 : index
    %95 = vector.load %arg5[%c1_74, %c0_75] : memref<6x32xf32, #tpu.memory_space<vmem>>, vector<1x32xf32>
    %96 = vector.broadcast %95 : vector<1x32xf32> to vector<128x32xf32>
    %97 = arith.mulf %94, %96 : vector<128x32xf32>
    %c1_76 = arith.constant 1 : index
    %c0_77 = arith.constant 0 : index
    %98 = vector.load %arg6[%c1_76, %c0_77] : memref<6x32xf32, #tpu.memory_space<vmem>>, vector<1x32xf32>
    %99 = vector.broadcast %98 : vector<1x32xf32> to vector<128x32xf32>
    %100 = arith.addf %97, %99 : vector<128x32xf32>
    %cst_78 = arith.constant 5.000000e-01 : f32
    %101 = vector.broadcast %cst_78 : f32 to vector<128x32xf32>
    %102 = arith.mulf %101, %100 : vector<128x32xf32>
    %cst_79 = arith.constant 0.707106769 : f32
    %103 = vector.broadcast %cst_79 : f32 to vector<128x32xf32>
    %104 = arith.mulf %100, %103 : vector<128x32xf32>
    %105 = math.erf %104 : vector<128x32xf32>
    %cst_80 = arith.constant 1.000000e+00 : f32
    %106 = vector.broadcast %cst_80 : f32 to vector<128x32xf32>
    %107 = arith.addf %106, %105 : vector<128x32xf32>
    %108 = arith.mulf %102, %107 : vector<128x32xf32>
    %c0_81 = arith.constant 0 : index
    %c0_82 = arith.constant 0 : index
    %109 = vector.load %arg28[%c0_81, %c0_82] : memref<144x32xf32, #tpu.memory_space<vmem>>, vector<8x32xf32>
    tpu.vector_store %arg28[%c0_81, %c0_82], %54 {strides = array<i32>} : memref<144x32xf32, #tpu.memory_space<vmem>>, vector<8x32xf32>,
    %c8_83 = arith.constant 8 : index
    %c0_84 = arith.constant 0 : index
    %110 = vector.load %arg28[%c8_83, %c0_84] : memref<144x32xf32, #tpu.memory_space<vmem>>, vector<128x32xf32>
    tpu.vector_store %arg28[%c8_83, %c0_84], %108 {strides = array<i32>} : memref<144x32xf32, #tpu.memory_space<vmem>>, vector<128x32xf32>,
    %c136 = arith.constant 136 : index
    %c0_85 = arith.constant 0 : index
    %111 = vector.load %arg28[%c136, %c0_85] : memref<144x32xf32, #tpu.memory_space<vmem>>, vector<8x32xf32>
    tpu.vector_store %arg28[%c136, %c0_85], %54 {strides = array<i32>} : memref<144x32xf32, #tpu.memory_space<vmem>>, vector<8x32xf32>,
    %c2_86 = arith.constant 2 : index
    %c0_87 = arith.constant 0 : index
    %112 = vector.load %arg4[%c2_86, %c0_87] : memref<6x32xf32, #tpu.memory_space<vmem>>, vector<1x32xf32>
    %c7_88 = arith.constant 7 : index
    %c0_89 = arith.constant 0 : index
    %113 = tpu.strided_load %arg28[%c7_88, %c0_89] {strides = array<i32: 2, 1>} : memref<144x32xf32, #tpu.memory_space<vmem>>, vector<64x32xf32>
    %c1_90 = arith.constant 1 : index
    %c0_91 = arith.constant 0 : index
    %c0_92 = arith.constant 0 : index
    %c0_93 = arith.constant 0 : index
    %114 = vector.load %arg3[%c1_90, %c0_91, %c0_92, %c0_93] : memref<5x3x32x32xf32, #tpu.memory_space<vmem>>, vector<1x1x32x32xf32>
    %115 = vector.shape_cast %114 : vector<1x1x32x32xf32> to vector<32x32xf32>
    %cst_94 = arith.constant dense<0.000000e+00> : vector<64x32xf32>
    %116 = tpu.matmul %113, %115, %cst_94 {dimension_numbers = #tpu.dot_dimension_numbers<[1], [0], [0], [1], [0, 0, 1, 1], [], []>} : vector<64x32xf32>, vector<32x32xf32>, vector<64x32xf32> -> vector<64x32xf32>
    %c8_95 = arith.constant 8 : index
    %c0_96 = arith.constant 0 : index
    %117 = tpu.strided_load %arg28[%c8_95, %c0_96] {strides = array<i32: 2, 1>} : memref<144x32xf32, #tpu.memory_space<vmem>>, vector<64x32xf32>
    %c1_97 = arith.constant 1 : index
    %c1_98 = arith.constant 1 : index
    %c0_99 = arith.constant 0 : index
    %c0_100 = arith.constant 0 : index
    %118 = vector.load %arg3[%c1_97, %c1_98, %c0_99, %c0_100] : memref<5x3x32x32xf32, #tpu.memory_space<vmem>>, vector<1x1x32x32xf32>
    %119 = vector.shape_cast %118 : vector<1x1x32x32xf32> to vector<32x32xf32>
    %cst_101 = arith.constant dense<0.000000e+00> : vector<64x32xf32>
    %120 = tpu.matmul %117, %119, %cst_101 {dimension_numbers = #tpu.dot_dimension_numbers<[1], [0], [0], [1], [0, 0, 1, 1], [], []>} : vector<64x32xf32>, vector<32x32xf32>, vector<64x32xf32> -> vector<64x32xf32>
    %121 = arith.addf %116, %120 : vector<64x32xf32>
    %c9_102 = arith.constant 9 : index
    %c0_103 = arith.constant 0 : index
    %122 = tpu.strided_load %arg28[%c9_102, %c0_103] {strides = array<i32: 2, 1>} : memref<144x32xf32, #tpu.memory_space<vmem>>, vector<64x32xf32>
    %c1_104 = arith.constant 1 : index
    %c2_105 = arith.constant 2 : index
    %c0_106 = arith.constant 0 : index
    %c0_107 = arith.constant 0 : index
    %123 = vector.load %arg3[%c1_104, %c2_105, %c0_106, %c0_107] : memref<5x3x32x32xf32, #tpu.memory_space<vmem>>, vector<1x1x32x32xf32>
    %124 = vector.shape_cast %123 : vector<1x1x32x32xf32> to vector<32x32xf32>
    %cst_108 = arith.constant dense<0.000000e+00> : vector<64x32xf32>
    %125 = tpu.matmul %122, %124, %cst_108 {dimension_numbers = #tpu.dot_dimension_numbers<[1], [0], [0], [1], [0, 0, 1, 1], [], []>} : vector<64x32xf32>, vector<32x32xf32>, vector<64x32xf32> -> vector<64x32xf32>
    %126 = arith.addf %121, %125 : vector<64x32xf32>
    %127 = vector.broadcast %112 : vector<1x32xf32> to vector<64x32xf32>
    %128 = arith.addf %126, %127 : vector<64x32xf32>
    %cst_109 = arith.constant dense<0.000000e+00> : vector<32xf32>
    %129 = vector.multi_reduction <add>, %128, %cst_109 [0] : vector<64x32xf32> to vector<32xf32>
    %130 = vector.shape_cast %129 : vector<32xf32> to vector<1x32xf32>
    %c0_110 = arith.constant 0 : index
    %c0_111 = arith.constant 0 : index
    %131 = vector.load %arg7[%c0_110, %c0_111] : memref<32x32xf32, #tpu.memory_space<vmem>>, vector<32x32xf32>
    %cst_112 = arith.constant dense<0.000000e+00> : vector<1x32xf32>
    %132 = tpu.matmul %130, %131, %cst_112 {dimension_numbers = #tpu.dot_dimension_numbers<[1], [0], [0], [1], [0, 0, 1, 1], [], []>} : vector<1x32xf32>, vector<32x32xf32>, vector<1x32xf32> -> vector<1x32xf32>
    %cst_113 = arith.constant 1.280000e+02 : f32
    %133 = vector.broadcast %cst_113 : f32 to vector<1x32xf32>
    %134 = arith.divf %132, %133 : vector<1x32xf32>
    %135 = vector.broadcast %134 : vector<1x32xf32> to vector<64x32xf32>
    %136 = arith.subf %128, %135 : vector<64x32xf32>
    %137 = arith.mulf %136, %136 : vector<64x32xf32>
    %cst_114 = arith.constant dense<0.000000e+00> : vector<32xf32>
    %138 = vector.multi_reduction <add>, %137, %cst_114 [0] : vector<64x32xf32> to vector<32xf32>
    %139 = vector.shape_cast %138 : vector<32xf32> to vector<1x32xf32>
    %c0_115 = arith.constant 0 : index
    %c0_116 = arith.constant 0 : index
    %140 = vector.load %arg7[%c0_115, %c0_116] : memref<32x32xf32, #tpu.memory_space<vmem>>, vector<32x32xf32>
    %cst_117 = arith.constant dense<0.000000e+00> : vector<1x32xf32>
    %141 = tpu.matmul %139, %140, %cst_117 {dimension_numbers = #tpu.dot_dimension_numbers<[1], [0], [0], [1], [0, 0, 1, 1], [], []>} : vector<1x32xf32>, vector<32x32xf32>, vector<1x32xf32> -> vector<1x32xf32>
    %cst_118 = arith.constant 1.280000e+02 : f32
    %142 = vector.broadcast %cst_118 : f32 to vector<1x32xf32>
    %143 = arith.divf %141, %142 : vector<1x32xf32>
    %cst_119 = arith.constant 9.99999974E-6 : f32
    %144 = vector.broadcast %cst_119 : f32 to vector<1x32xf32>
    %145 = arith.addf %143, %144 : vector<1x32xf32>
    %146 = math.rsqrt %145 : vector<1x32xf32>
    %147 = vector.broadcast %146 : vector<1x32xf32> to vector<64x32xf32>
    %148 = arith.mulf %136, %147 : vector<64x32xf32>
    %c2_120 = arith.constant 2 : index
    %c0_121 = arith.constant 0 : index
    %149 = vector.load %arg5[%c2_120, %c0_121] : memref<6x32xf32, #tpu.memory_space<vmem>>, vector<1x32xf32>
    %150 = vector.broadcast %149 : vector<1x32xf32> to vector<64x32xf32>
    %151 = arith.mulf %148, %150 : vector<64x32xf32>
    %c2_122 = arith.constant 2 : index
    %c0_123 = arith.constant 0 : index
    %152 = vector.load %arg6[%c2_122, %c0_123] : memref<6x32xf32, #tpu.memory_space<vmem>>, vector<1x32xf32>
    %153 = vector.broadcast %152 : vector<1x32xf32> to vector<64x32xf32>
    %154 = arith.addf %151, %153 : vector<64x32xf32>
    %cst_124 = arith.constant 5.000000e-01 : f32
    %155 = vector.broadcast %cst_124 : f32 to vector<64x32xf32>
    %156 = arith.mulf %155, %154 : vector<64x32xf32>
    %cst_125 = arith.constant 0.707106769 : f32
    %157 = vector.broadcast %cst_125 : f32 to vector<64x32xf32>
    %158 = arith.mulf %154, %157 : vector<64x32xf32>
    %159 = math.erf %158 : vector<64x32xf32>
    %cst_126 = arith.constant 1.000000e+00 : f32
    %160 = vector.broadcast %cst_126 : f32 to vector<64x32xf32>
    %161 = arith.addf %160, %159 : vector<64x32xf32>
    %162 = arith.mulf %156, %161 : vector<64x32xf32>
    %c0_127 = arith.constant 0 : index
    %c0_128 = arith.constant 0 : index
    %163 = vector.load %arg27[%c0_127, %c0_128] : memref<272x32xf32, #tpu.memory_space<vmem>>, vector<8x32xf32>
    tpu.vector_store %arg27[%c0_127, %c0_128], %54 {strides = array<i32>} : memref<272x32xf32, #tpu.memory_space<vmem>>, vector<8x32xf32>,
    %c8_129 = arith.constant 8 : index
    %c0_130 = arith.constant 0 : index
    %164 = vector.load %arg27[%c8_129, %c0_130] : memref<272x32xf32, #tpu.memory_space<vmem>>, vector<64x32xf32>
    tpu.vector_store %arg27[%c8_129, %c0_130], %162 {strides = array<i32>} : memref<272x32xf32, #tpu.memory_space<vmem>>, vector<64x32xf32>,
    %c72 = arith.constant 72 : index
    %c0_131 = arith.constant 0 : index
    %165 = vector.load %arg27[%c72, %c0_131] : memref<272x32xf32, #tpu.memory_space<vmem>>, vector<8x32xf32>
    tpu.vector_store %arg27[%c72, %c0_131], %54 {strides = array<i32>} : memref<272x32xf32, #tpu.memory_space<vmem>>, vector<8x32xf32>,
    %c3 = arith.constant 3 : index
    %c0_132 = arith.constant 0 : index
    %166 = vector.load %arg4[%c3, %c0_132] : memref<6x32xf32, #tpu.memory_space<vmem>>, vector<1x32xf32>
    %c7_133 = arith.constant 7 : index
    %c0_134 = arith.constant 0 : index
    %167 = tpu.strided_load %arg27[%c7_133, %c0_134] {strides = array<i32: 2, 1>} : memref<272x32xf32, #tpu.memory_space<vmem>>, vector<32x32xf32>
    %c2_135 = arith.constant 2 : index
    %c0_136 = arith.constant 0 : index
    %c0_137 = arith.constant 0 : index
    %c0_138 = arith.constant 0 : index
    %168 = vector.load %arg3[%c2_135, %c0_136, %c0_137, %c0_138] : memref<5x3x32x32xf32, #tpu.memory_space<vmem>>, vector<1x1x32x32xf32>
    %169 = vector.shape_cast %168 : vector<1x1x32x32xf32> to vector<32x32xf32>
    %cst_139 = arith.constant dense<0.000000e+00> : vector<32x32xf32>
    %170 = tpu.matmul %167, %169, %cst_139 {dimension_numbers = #tpu.dot_dimension_numbers<[1], [0], [0], [1], [0, 0, 1, 1], [], []>} : vector<32x32xf32>, vector<32x32xf32>, vector<32x32xf32> -> vector<32x32xf32>
    %c8_140 = arith.constant 8 : index
    %c0_141 = arith.constant 0 : index
    %171 = tpu.strided_load %arg27[%c8_140, %c0_141] {strides = array<i32: 2, 1>} : memref<272x32xf32, #tpu.memory_space<vmem>>, vector<32x32xf32>
    %c2_142 = arith.constant 2 : index
    %c1_143 = arith.constant 1 : index
    %c0_144 = arith.constant 0 : index
    %c0_145 = arith.constant 0 : index
    %172 = vector.load %arg3[%c2_142, %c1_143, %c0_144, %c0_145] : memref<5x3x32x32xf32, #tpu.memory_space<vmem>>, vector<1x1x32x32xf32>
    %173 = vector.shape_cast %172 : vector<1x1x32x32xf32> to vector<32x32xf32>
    %cst_146 = arith.constant dense<0.000000e+00> : vector<32x32xf32>
    %174 = tpu.matmul %171, %173, %cst_146 {dimension_numbers = #tpu.dot_dimension_numbers<[1], [0], [0], [1], [0, 0, 1, 1], [], []>} : vector<32x32xf32>, vector<32x32xf32>, vector<32x32xf32> -> vector<32x32xf32>
    %175 = arith.addf %170, %174 : vector<32x32xf32>
    %c9_147 = arith.constant 9 : index
    %c0_148 = arith.constant 0 : index
    %176 = tpu.strided_load %arg27[%c9_147, %c0_148] {strides = array<i32: 2, 1>} : memref<272x32xf32, #tpu.memory_space<vmem>>, vector<32x32xf32>
    %c2_149 = arith.constant 2 : index
    %c2_150 = arith.constant 2 : index
    %c0_151 = arith.constant 0 : index
    %c0_152 = arith.constant 0 : index
    %177 = vector.load %arg3[%c2_149, %c2_150, %c0_151, %c0_152] : memref<5x3x32x32xf32, #tpu.memory_space<vmem>>, vector<1x1x32x32xf32>
    %178 = vector.shape_cast %177 : vector<1x1x32x32xf32> to vector<32x32xf32>
    %cst_153 = arith.constant dense<0.000000e+00> : vector<32x32xf32>
    %179 = tpu.matmul %176, %178, %cst_153 {dimension_numbers = #tpu.dot_dimension_numbers<[1], [0], [0], [1], [0, 0, 1, 1], [], []>} : vector<32x32xf32>, vector<32x32xf32>, vector<32x32xf32> -> vector<32x32xf32>
    %180 = arith.addf %175, %179 : vector<32x32xf32>
    %181 = vector.broadcast %166 : vector<1x32xf32> to vector<32x32xf32>
    %182 = arith.addf %180, %181 : vector<32x32xf32>
    %cst_154 = arith.constant dense<0.000000e+00> : vector<32xf32>
    %183 = vector.multi_reduction <add>, %182, %cst_154 [0] : vector<32x32xf32> to vector<32xf32>
    %184 = vector.shape_cast %183 : vector<32xf32> to vector<1x32xf32>
    %c0_155 = arith.constant 0 : index
    %c0_156 = arith.constant 0 : index
    %185 = vector.load %arg7[%c0_155, %c0_156] : memref<32x32xf32, #tpu.memory_space<vmem>>, vector<32x32xf32>
    %cst_157 = arith.constant dense<0.000000e+00> : vector<1x32xf32>
    %186 = tpu.matmul %184, %185, %cst_157 {dimension_numbers = #tpu.dot_dimension_numbers<[1], [0], [0], [1], [0, 0, 1, 1], [], []>} : vector<1x32xf32>, vector<32x32xf32>, vector<1x32xf32> -> vector<1x32xf32>
    %cst_158 = arith.constant 6.400000e+01 : f32
    %187 = vector.broadcast %cst_158 : f32 to vector<1x32xf32>
    %188 = arith.divf %186, %187 : vector<1x32xf32>
    %189 = vector.broadcast %188 : vector<1x32xf32> to vector<32x32xf32>
    %190 = arith.subf %182, %189 : vector<32x32xf32>
    %191 = arith.mulf %190, %190 : vector<32x32xf32>
    %cst_159 = arith.constant dense<0.000000e+00> : vector<32xf32>
    %192 = vector.multi_reduction <add>, %191, %cst_159 [0] : vector<32x32xf32> to vector<32xf32>
    %193 = vector.shape_cast %192 : vector<32xf32> to vector<1x32xf32>
    %c0_160 = arith.constant 0 : index
    %c0_161 = arith.constant 0 : index
    %194 = vector.load %arg7[%c0_160, %c0_161] : memref<32x32xf32, #tpu.memory_space<vmem>>, vector<32x32xf32>
    %cst_162 = arith.constant dense<0.000000e+00> : vector<1x32xf32>
    %195 = tpu.matmul %193, %194, %cst_162 {dimension_numbers = #tpu.dot_dimension_numbers<[1], [0], [0], [1], [0, 0, 1, 1], [], []>} : vector<1x32xf32>, vector<32x32xf32>, vector<1x32xf32> -> vector<1x32xf32>
    %cst_163 = arith.constant 6.400000e+01 : f32
    %196 = vector.broadcast %cst_163 : f32 to vector<1x32xf32>
    %197 = arith.divf %195, %196 : vector<1x32xf32>
    %cst_164 = arith.constant 9.99999974E-6 : f32
    %198 = vector.broadcast %cst_164 : f32 to vector<1x32xf32>
    %199 = arith.addf %197, %198 : vector<1x32xf32>
    %200 = math.rsqrt %199 : vector<1x32xf32>
    %201 = vector.broadcast %200 : vector<1x32xf32> to vector<32x32xf32>
    %202 = arith.mulf %190, %201 : vector<32x32xf32>
    %c3_165 = arith.constant 3 : index
    %c0_166 = arith.constant 0 : index
    %203 = vector.load %arg5[%c3_165, %c0_166] : memref<6x32xf32, #tpu.memory_space<vmem>>, vector<1x32xf32>
    %204 = vector.broadcast %203 : vector<1x32xf32> to vector<32x32xf32>
    %205 = arith.mulf %202, %204 : vector<32x32xf32>
    %c3_167 = arith.constant 3 : index
    %c0_168 = arith.constant 0 : index
    %206 = vector.load %arg6[%c3_167, %c0_168] : memref<6x32xf32, #tpu.memory_space<vmem>>, vector<1x32xf32>
    %207 = vector.broadcast %206 : vector<1x32xf32> to vector<32x32xf32>
    %208 = arith.addf %205, %207 : vector<32x32xf32>
    %cst_169 = arith.constant 5.000000e-01 : f32
    %209 = vector.broadcast %cst_169 : f32 to vector<32x32xf32>
    %210 = arith.mulf %209, %208 : vector<32x32xf32>
    %cst_170 = arith.constant 0.707106769 : f32
    %211 = vector.broadcast %cst_170 : f32 to vector<32x32xf32>
    %212 = arith.mulf %208, %211 : vector<32x32xf32>
    %213 = math.erf %212 : vector<32x32xf32>
    %cst_171 = arith.constant 1.000000e+00 : f32
    %214 = vector.broadcast %cst_171 : f32 to vector<32x32xf32>
    %215 = arith.addf %214, %213 : vector<32x32xf32>
    %216 = arith.mulf %210, %215 : vector<32x32xf32>
    %c0_172 = arith.constant 0 : index
    %c0_173 = arith.constant 0 : index
    %217 = vector.load %arg28[%c0_172, %c0_173] : memref<144x32xf32, #tpu.memory_space<vmem>>, vector<8x32xf32>
    tpu.vector_store %arg28[%c0_172, %c0_173], %54 {strides = array<i32>} : memref<144x32xf32, #tpu.memory_space<vmem>>, vector<8x32xf32>,
    %c8_174 = arith.constant 8 : index
    %c0_175 = arith.constant 0 : index
    %218 = vector.load %arg28[%c8_174, %c0_175] : memref<144x32xf32, #tpu.memory_space<vmem>>, vector<32x32xf32>
    tpu.vector_store %arg28[%c8_174, %c0_175], %216 {strides = array<i32>} : memref<144x32xf32, #tpu.memory_space<vmem>>, vector<32x32xf32>,
    %c40 = arith.constant 40 : index
    %c0_176 = arith.constant 0 : index
    %219 = vector.load %arg28[%c40, %c0_176] : memref<144x32xf32, #tpu.memory_space<vmem>>, vector<8x32xf32>
    tpu.vector_store %arg28[%c40, %c0_176], %54 {strides = array<i32>} : memref<144x32xf32, #tpu.memory_space<vmem>>, vector<8x32xf32>,
    %c4 = arith.constant 4 : index
    %c0_177 = arith.constant 0 : index
    %220 = vector.load %arg4[%c4, %c0_177] : memref<6x32xf32, #tpu.memory_space<vmem>>, vector<1x32xf32>
    %c7_178 = arith.constant 7 : index
    %c0_179 = arith.constant 0 : index
    %221 = tpu.strided_load %arg28[%c7_178, %c0_179] {strides = array<i32: 2, 1>} : memref<144x32xf32, #tpu.memory_space<vmem>>, vector<16x32xf32>
    %c3_180 = arith.constant 3 : index
    %c0_181 = arith.constant 0 : index
    %c0_182 = arith.constant 0 : index
    %c0_183 = arith.constant 0 : index
    %222 = vector.load %arg3[%c3_180, %c0_181, %c0_182, %c0_183] : memref<5x3x32x32xf32, #tpu.memory_space<vmem>>, vector<1x1x32x32xf32>
    %223 = vector.shape_cast %222 : vector<1x1x32x32xf32> to vector<32x32xf32>
    %cst_184 = arith.constant dense<0.000000e+00> : vector<16x32xf32>
    %224 = tpu.matmul %221, %223, %cst_184 {dimension_numbers = #tpu.dot_dimension_numbers<[1], [0], [0], [1], [0, 0, 1, 1], [], []>} : vector<16x32xf32>, vector<32x32xf32>, vector<16x32xf32> -> vector<16x32xf32>
    %c8_185 = arith.constant 8 : index
    %c0_186 = arith.constant 0 : index
    %225 = tpu.strided_load %arg28[%c8_185, %c0_186] {strides = array<i32: 2, 1>} : memref<144x32xf32, #tpu.memory_space<vmem>>, vector<16x32xf32>
    %c3_187 = arith.constant 3 : index
    %c1_188 = arith.constant 1 : index
    %c0_189 = arith.constant 0 : index
    %c0_190 = arith.constant 0 : index
    %226 = vector.load %arg3[%c3_187, %c1_188, %c0_189, %c0_190] : memref<5x3x32x32xf32, #tpu.memory_space<vmem>>, vector<1x1x32x32xf32>
    %227 = vector.shape_cast %226 : vector<1x1x32x32xf32> to vector<32x32xf32>
    %cst_191 = arith.constant dense<0.000000e+00> : vector<16x32xf32>
    %228 = tpu.matmul %225, %227, %cst_191 {dimension_numbers = #tpu.dot_dimension_numbers<[1], [0], [0], [1], [0, 0, 1, 1], [], []>} : vector<16x32xf32>, vector<32x32xf32>, vector<16x32xf32> -> vector<16x32xf32>
    %229 = arith.addf %224, %228 : vector<16x32xf32>
    %c9_192 = arith.constant 9 : index
    %c0_193 = arith.constant 0 : index
    %230 = tpu.strided_load %arg28[%c9_192, %c0_193] {strides = array<i32: 2, 1>} : memref<144x32xf32, #tpu.memory_space<vmem>>, vector<16x32xf32>
    %c3_194 = arith.constant 3 : index
    %c2_195 = arith.constant 2 : index
    %c0_196 = arith.constant 0 : index
    %c0_197 = arith.constant 0 : index
    %231 = vector.load %arg3[%c3_194, %c2_195, %c0_196, %c0_197] : memref<5x3x32x32xf32, #tpu.memory_space<vmem>>, vector<1x1x32x32xf32>
    %232 = vector.shape_cast %231 : vector<1x1x32x32xf32> to vector<32x32xf32>
    %cst_198 = arith.constant dense<0.000000e+00> : vector<16x32xf32>
    %233 = tpu.matmul %230, %232, %cst_198 {dimension_numbers = #tpu.dot_dimension_numbers<[1], [0], [0], [1], [0, 0, 1, 1], [], []>} : vector<16x32xf32>, vector<32x32xf32>, vector<16x32xf32> -> vector<16x32xf32>
    %234 = arith.addf %229, %233 : vector<16x32xf32>
    %235 = vector.broadcast %220 : vector<1x32xf32> to vector<16x32xf32>
    %236 = arith.addf %234, %235 : vector<16x32xf32>
    %cst_199 = arith.constant dense<0.000000e+00> : vector<32xf32>
    %237 = vector.multi_reduction <add>, %236, %cst_199 [0] : vector<16x32xf32> to vector<32xf32>
    %238 = vector.shape_cast %237 : vector<32xf32> to vector<1x32xf32>
    %c0_200 = arith.constant 0 : index
    %c0_201 = arith.constant 0 : index
    %239 = vector.load %arg7[%c0_200, %c0_201] : memref<32x32xf32, #tpu.memory_space<vmem>>, vector<32x32xf32>
    %cst_202 = arith.constant dense<0.000000e+00> : vector<1x32xf32>
    %240 = tpu.matmul %238, %239, %cst_202 {dimension_numbers = #tpu.dot_dimension_numbers<[1], [0], [0], [1], [0, 0, 1, 1], [], []>} : vector<1x32xf32>, vector<32x32xf32>, vector<1x32xf32> -> vector<1x32xf32>
    %cst_203 = arith.constant 3.200000e+01 : f32
    %241 = vector.broadcast %cst_203 : f32 to vector<1x32xf32>
    %242 = arith.divf %240, %241 : vector<1x32xf32>
    %243 = vector.broadcast %242 : vector<1x32xf32> to vector<16x32xf32>
    %244 = arith.subf %236, %243 : vector<16x32xf32>
    %245 = arith.mulf %244, %244 : vector<16x32xf32>
    %cst_204 = arith.constant dense<0.000000e+00> : vector<32xf32>
    %246 = vector.multi_reduction <add>, %245, %cst_204 [0] : vector<16x32xf32> to vector<32xf32>
    %247 = vector.shape_cast %246 : vector<32xf32> to vector<1x32xf32>
    %c0_205 = arith.constant 0 : index
    %c0_206 = arith.constant 0 : index
    %248 = vector.load %arg7[%c0_205, %c0_206] : memref<32x32xf32, #tpu.memory_space<vmem>>, vector<32x32xf32>
    %cst_207 = arith.constant dense<0.000000e+00> : vector<1x32xf32>
    %249 = tpu.matmul %247, %248, %cst_207 {dimension_numbers = #tpu.dot_dimension_numbers<[1], [0], [0], [1], [0, 0, 1, 1], [], []>} : vector<1x32xf32>, vector<32x32xf32>, vector<1x32xf32> -> vector<1x32xf32>
    %cst_208 = arith.constant 3.200000e+01 : f32
    %250 = vector.broadcast %cst_208 : f32 to vector<1x32xf32>
    %251 = arith.divf %249, %250 : vector<1x32xf32>
    %cst_209 = arith.constant 9.99999974E-6 : f32
    %252 = vector.broadcast %cst_209 : f32 to vector<1x32xf32>
    %253 = arith.addf %251, %252 : vector<1x32xf32>
    %254 = math.rsqrt %253 : vector<1x32xf32>
    %255 = vector.broadcast %254 : vector<1x32xf32> to vector<16x32xf32>
    %256 = arith.mulf %244, %255 : vector<16x32xf32>
    %c4_210 = arith.constant 4 : index
    %c0_211 = arith.constant 0 : index
    %257 = vector.load %arg5[%c4_210, %c0_211] : memref<6x32xf32, #tpu.memory_space<vmem>>, vector<1x32xf32>
    %258 = vector.broadcast %257 : vector<1x32xf32> to vector<16x32xf32>
    %259 = arith.mulf %256, %258 : vector<16x32xf32>
    %c4_212 = arith.constant 4 : index
    %c0_213 = arith.constant 0 : index
    %260 = vector.load %arg6[%c4_212, %c0_213] : memref<6x32xf32, #tpu.memory_space<vmem>>, vector<1x32xf32>
    %261 = vector.broadcast %260 : vector<1x32xf32> to vector<16x32xf32>
    %262 = arith.addf %259, %261 : vector<16x32xf32>
    %cst_214 = arith.constant 5.000000e-01 : f32
    %263 = vector.broadcast %cst_214 : f32 to vector<16x32xf32>
    %264 = arith.mulf %263, %262 : vector<16x32xf32>
    %cst_215 = arith.constant 0.707106769 : f32
    %265 = vector.broadcast %cst_215 : f32 to vector<16x32xf32>
    %266 = arith.mulf %262, %265 : vector<16x32xf32>
    %267 = math.erf %266 : vector<16x32xf32>
    %cst_216 = arith.constant 1.000000e+00 : f32
    %268 = vector.broadcast %cst_216 : f32 to vector<16x32xf32>
    %269 = arith.addf %268, %267 : vector<16x32xf32>
    %270 = arith.mulf %264, %269 : vector<16x32xf32>
    %c0_217 = arith.constant 0 : index
    %c0_218 = arith.constant 0 : index
    %271 = vector.load %arg27[%c0_217, %c0_218] : memref<272x32xf32, #tpu.memory_space<vmem>>, vector<8x32xf32>
    tpu.vector_store %arg27[%c0_217, %c0_218], %54 {strides = array<i32>} : memref<272x32xf32, #tpu.memory_space<vmem>>, vector<8x32xf32>,
    %c8_219 = arith.constant 8 : index
    %c0_220 = arith.constant 0 : index
    %272 = vector.load %arg27[%c8_219, %c0_220] : memref<272x32xf32, #tpu.memory_space<vmem>>, vector<16x32xf32>
    tpu.vector_store %arg27[%c8_219, %c0_220], %270 {strides = array<i32>} : memref<272x32xf32, #tpu.memory_space<vmem>>, vector<16x32xf32>,
    %c24 = arith.constant 24 : index
    %c0_221 = arith.constant 0 : index
    %273 = vector.load %arg27[%c24, %c0_221] : memref<272x32xf32, #tpu.memory_space<vmem>>, vector<8x32xf32>
    tpu.vector_store %arg27[%c24, %c0_221], %54 {strides = array<i32>} : memref<272x32xf32, #tpu.memory_space<vmem>>, vector<8x32xf32>,
    %c5 = arith.constant 5 : index
    %c0_222 = arith.constant 0 : index
    %274 = vector.load %arg4[%c5, %c0_222] : memref<6x32xf32, #tpu.memory_space<vmem>>, vector<1x32xf32>
    %c7_223 = arith.constant 7 : index
    %c0_224 = arith.constant 0 : index
    %275 = tpu.strided_load %arg27[%c7_223, %c0_224] {strides = array<i32: 2, 1>} : memref<272x32xf32, #tpu.memory_space<vmem>>, vector<8x32xf32>
    %c4_225 = arith.constant 4 : index
    %c0_226 = arith.constant 0 : index
    %c0_227 = arith.constant 0 : index
    %c0_228 = arith.constant 0 : index
    %276 = vector.load %arg3[%c4_225, %c0_226, %c0_227, %c0_228] : memref<5x3x32x32xf32, #tpu.memory_space<vmem>>, vector<1x1x32x32xf32>
    %277 = vector.shape_cast %276 : vector<1x1x32x32xf32> to vector<32x32xf32>
    %cst_229 = arith.constant dense<0.000000e+00> : vector<8x32xf32>
    %278 = tpu.matmul %275, %277, %cst_229 {dimension_numbers = #tpu.dot_dimension_numbers<[1], [0], [0], [1], [0, 0, 1, 1], [], []>} : vector<8x32xf32>, vector<32x32xf32>, vector<8x32xf32> -> vector<8x32xf32>
    %c8_230 = arith.constant 8 : index
    %c0_231 = arith.constant 0 : index
    %279 = tpu.strided_load %arg27[%c8_230, %c0_231] {strides = array<i32: 2, 1>} : memref<272x32xf32, #tpu.memory_space<vmem>>, vector<8x32xf32>
    %c4_232 = arith.constant 4 : index
    %c1_233 = arith.constant 1 : index
    %c0_234 = arith.constant 0 : index
    %c0_235 = arith.constant 0 : index
    %280 = vector.load %arg3[%c4_232, %c1_233, %c0_234, %c0_235] : memref<5x3x32x32xf32, #tpu.memory_space<vmem>>, vector<1x1x32x32xf32>
    %281 = vector.shape_cast %280 : vector<1x1x32x32xf32> to vector<32x32xf32>
    %cst_236 = arith.constant dense<0.000000e+00> : vector<8x32xf32>
    %282 = tpu.matmul %279, %281, %cst_236 {dimension_numbers = #tpu.dot_dimension_numbers<[1], [0], [0], [1], [0, 0, 1, 1], [], []>} : vector<8x32xf32>, vector<32x32xf32>, vector<8x32xf32> -> vector<8x32xf32>
    %283 = arith.addf %278, %282 : vector<8x32xf32>
    %c9_237 = arith.constant 9 : index
    %c0_238 = arith.constant 0 : index
    %284 = tpu.strided_load %arg27[%c9_237, %c0_238] {strides = array<i32: 2, 1>} : memref<272x32xf32, #tpu.memory_space<vmem>>, vector<8x32xf32>
    %c4_239 = arith.constant 4 : index
    %c2_240 = arith.constant 2 : index
    %c0_241 = arith.constant 0 : index
    %c0_242 = arith.constant 0 : index
    %285 = vector.load %arg3[%c4_239, %c2_240, %c0_241, %c0_242] : memref<5x3x32x32xf32, #tpu.memory_space<vmem>>, vector<1x1x32x32xf32>
    %286 = vector.shape_cast %285 : vector<1x1x32x32xf32> to vector<32x32xf32>
    %cst_243 = arith.constant dense<0.000000e+00> : vector<8x32xf32>
    %287 = tpu.matmul %284, %286, %cst_243 {dimension_numbers = #tpu.dot_dimension_numbers<[1], [0], [0], [1], [0, 0, 1, 1], [], []>} : vector<8x32xf32>, vector<32x32xf32>, vector<8x32xf32> -> vector<8x32xf32>
    %288 = arith.addf %283, %287 : vector<8x32xf32>
    %289 = vector.broadcast %274 : vector<1x32xf32> to vector<8x32xf32>
    %290 = arith.addf %288, %289 : vector<8x32xf32>
    %cst_244 = arith.constant dense<0.000000e+00> : vector<32xf32>
    %291 = vector.multi_reduction <add>, %290, %cst_244 [0] : vector<8x32xf32> to vector<32xf32>
    %292 = vector.shape_cast %291 : vector<32xf32> to vector<1x32xf32>
    %c0_245 = arith.constant 0 : index
    %c0_246 = arith.constant 0 : index
    %293 = vector.load %arg7[%c0_245, %c0_246] : memref<32x32xf32, #tpu.memory_space<vmem>>, vector<32x32xf32>
    %cst_247 = arith.constant dense<0.000000e+00> : vector<1x32xf32>
    %294 = tpu.matmul %292, %293, %cst_247 {dimension_numbers = #tpu.dot_dimension_numbers<[1], [0], [0], [1], [0, 0, 1, 1], [], []>} : vector<1x32xf32>, vector<32x32xf32>, vector<1x32xf32> -> vector<1x32xf32>
    %cst_248 = arith.constant 1.600000e+01 : f32
    %295 = vector.broadcast %cst_248 : f32 to vector<1x32xf32>
    %296 = arith.divf %294, %295 : vector<1x32xf32>
    %297 = vector.broadcast %296 : vector<1x32xf32> to vector<8x32xf32>
    %298 = arith.subf %290, %297 : vector<8x32xf32>
    %299 = arith.mulf %298, %298 : vector<8x32xf32>
    %cst_249 = arith.constant dense<0.000000e+00> : vector<32xf32>
    %300 = vector.multi_reduction <add>, %299, %cst_249 [0] : vector<8x32xf32> to vector<32xf32>
    %301 = vector.shape_cast %300 : vector<32xf32> to vector<1x32xf32>
    %c0_250 = arith.constant 0 : index
    %c0_251 = arith.constant 0 : index
    %302 = vector.load %arg7[%c0_250, %c0_251] : memref<32x32xf32, #tpu.memory_space<vmem>>, vector<32x32xf32>
    %cst_252 = arith.constant dense<0.000000e+00> : vector<1x32xf32>
    %303 = tpu.matmul %301, %302, %cst_252 {dimension_numbers = #tpu.dot_dimension_numbers<[1], [0], [0], [1], [0, 0, 1, 1], [], []>} : vector<1x32xf32>, vector<32x32xf32>, vector<1x32xf32> -> vector<1x32xf32>
    %cst_253 = arith.constant 1.600000e+01 : f32
    %304 = vector.broadcast %cst_253 : f32 to vector<1x32xf32>
    %305 = arith.divf %303, %304 : vector<1x32xf32>
    %cst_254 = arith.constant 9.99999974E-6 : f32
    %306 = vector.broadcast %cst_254 : f32 to vector<1x32xf32>
    %307 = arith.addf %305, %306 : vector<1x32xf32>
    %308 = math.rsqrt %307 : vector<1x32xf32>
    %309 = vector.broadcast %308 : vector<1x32xf32> to vector<8x32xf32>
    %310 = arith.mulf %298, %309 : vector<8x32xf32>
    %c5_255 = arith.constant 5 : index
    %c0_256 = arith.constant 0 : index
    %311 = vector.load %arg5[%c5_255, %c0_256] : memref<6x32xf32, #tpu.memory_space<vmem>>, vector<1x32xf32>
    %312 = vector.broadcast %311 : vector<1x32xf32> to vector<8x32xf32>
    %313 = arith.mulf %310, %312 : vector<8x32xf32>
    %c5_257 = arith.constant 5 : index
    %c0_258 = arith.constant 0 : index
    %314 = vector.load %arg6[%c5_257, %c0_258] : memref<6x32xf32, #tpu.memory_space<vmem>>, vector<1x32xf32>
    %315 = vector.broadcast %314 : vector<1x32xf32> to vector<8x32xf32>
    %316 = arith.addf %313, %315 : vector<8x32xf32>
    %cst_259 = arith.constant 5.000000e-01 : f32
    %317 = vector.broadcast %cst_259 : f32 to vector<8x32xf32>
    %318 = arith.mulf %317, %316 : vector<8x32xf32>
    %cst_260 = arith.constant 0.707106769 : f32
    %319 = vector.broadcast %cst_260 : f32 to vector<8x32xf32>
    %320 = arith.mulf %316, %319 : vector<8x32xf32>
    %321 = math.erf %320 : vector<8x32xf32>
    %cst_261 = arith.constant 1.000000e+00 : f32
    %322 = vector.broadcast %cst_261 : f32 to vector<8x32xf32>
    %323 = arith.addf %322, %321 : vector<8x32xf32>
    %324 = arith.mulf %318, %323 : vector<8x32xf32>
    %cst_262 = arith.constant 0.000000e+00 : f32
    %325 = vector.broadcast %cst_262 : f32 to vector<40x32xf32>
    %c0_263 = arith.constant 0 : index
    %c0_264 = arith.constant 0 : index
    %326 = vector.load %arg29[%c0_263, %c0_264] : memref<40x32xf32, #tpu.memory_space<vmem>>, vector<40x32xf32>
    tpu.vector_store %arg29[%c0_263, %c0_264], %325 {strides = array<i32>} : memref<40x32xf32, #tpu.memory_space<vmem>>, vector<40x32xf32>,
    %c16 = arith.constant 16 : index
    %c0_265 = arith.constant 0 : index
    %327 = vector.load %arg29[%c16, %c0_265] : memref<40x32xf32, #tpu.memory_space<vmem>>, vector<8x32xf32>
    tpu.vector_store %arg29[%c16, %c0_265], %324 {strides = array<i32>} : memref<40x32xf32, #tpu.memory_space<vmem>>, vector<8x32xf32>,
    %c0_266 = arith.constant 0 : index
    %c0_267 = arith.constant 0 : index
    %328 = vector.load %arg29[%c0_266, %c0_267] : memref<40x32xf32, #tpu.memory_space<vmem>>, vector<40x32xf32>
    %c0_268 = arith.constant 0 : index
    %c0_269 = arith.constant 0 : index
    %329 = vector.load %arg8[%c0_268, %c0_269] : memref<32x32xf32, #tpu.memory_space<vmem>>, vector<32x32xf32>
    %cst_270 = arith.constant dense<0.000000e+00> : vector<40x32xf32>
    %330 = tpu.matmul %328, %329, %cst_270 {dimension_numbers = #tpu.dot_dimension_numbers<[1], [0], [0], [1], [0, 0, 1, 1], [], []>} : vector<40x32xf32>, vector<32x32xf32>, vector<40x32xf32> -> vector<40x32xf32>
    %c0_271 = arith.constant 0 : index
    %c0_272 = arith.constant 0 : index
    %331 = vector.load %arg9[%c0_271, %c0_272] : memref<32x32xf32, #tpu.memory_space<vmem>>, vector<32x32xf32>
    %cst_273 = arith.constant dense<0.000000e+00> : vector<40x32xf32>
    %332 = tpu.matmul %328, %331, %cst_273 {dimension_numbers = #tpu.dot_dimension_numbers<[1], [0], [0], [1], [0, 0, 1, 1], [], []>} : vector<40x32xf32>, vector<32x32xf32>, vector<40x32xf32> -> vector<40x32xf32>
    %cst_274 = arith.constant 0.000000e+00 : f32
    %333 = vector.broadcast %cst_274 : f32 to vector<8x32xf32>
    %c0_275 = arith.constant 0 : index
    %c0_276 = arith.constant 0 : index
    %334 = vector.load %arg12[%c0_275, %c0_276] : memref<1x32xf32, #tpu.memory_space<vmem>>, vector<1x32xf32>
    %335 = vector.broadcast %334 : vector<1x32xf32> to vector<8x32xf32>
    %336 = arith.addf %333, %335 : vector<8x32xf32>
    %337 = vector.extract_strided_slice %330 {offsets = [4, 0], sizes = [8, 32], strides = [1, 1]} : vector<40x32xf32> to vector<8x32xf32>
    %c0_277 = arith.constant 0 : index
    %c0_278 = arith.constant 0 : index
    %338 = vector.load %arg10[%c0_277, %c0_278] : memref<25x32xf32, #tpu.memory_space<vmem>>, vector<1x32xf32>
    %339 = vector.broadcast %338 : vector<1x32xf32> to vector<8x32xf32>
    %340 = arith.mulf %337, %339 : vector<8x32xf32>
    %341 = arith.addf %336, %340 : vector<8x32xf32>
    %342 = vector.extract_strided_slice %332 {offsets = [4, 0], sizes = [8, 32], strides = [1, 1]} : vector<40x32xf32> to vector<8x32xf32>
    %c0_279 = arith.constant 0 : index
    %c0_280 = arith.constant 0 : index
    %343 = vector.load %arg11[%c0_279, %c0_280] : memref<25x32xf32, #tpu.memory_space<vmem>>, vector<1x32xf32>
    %344 = vector.broadcast %343 : vector<1x32xf32> to vector<8x32xf32>
    %345 = arith.mulf %342, %344 : vector<8x32xf32>
    %346 = arith.addf %341, %345 : vector<8x32xf32>
    %347 = vector.extract_strided_slice %330 {offsets = [5, 0], sizes = [8, 32], strides = [1, 1]} : vector<40x32xf32> to vector<8x32xf32>
    %c1_281 = arith.constant 1 : index
    %c0_282 = arith.constant 0 : index
    %348 = vector.load %arg10[%c1_281, %c0_282] : memref<25x32xf32, #tpu.memory_space<vmem>>, vector<1x32xf32>
    %349 = vector.broadcast %348 : vector<1x32xf32> to vector<8x32xf32>
    %350 = arith.mulf %347, %349 : vector<8x32xf32>
    %351 = arith.addf %346, %350 : vector<8x32xf32>
    %352 = vector.extract_strided_slice %332 {offsets = [5, 0], sizes = [8, 32], strides = [1, 1]} : vector<40x32xf32> to vector<8x32xf32>
    %c1_283 = arith.constant 1 : index
    %c0_284 = arith.constant 0 : index
    %353 = vector.load %arg11[%c1_283, %c0_284] : memref<25x32xf32, #tpu.memory_space<vmem>>, vector<1x32xf32>
    %354 = vector.broadcast %353 : vector<1x32xf32> to vector<8x32xf32>
    %355 = arith.mulf %352, %354 : vector<8x32xf32>
    %356 = arith.addf %351, %355 : vector<8x32xf32>
    %357 = vector.extract_strided_slice %330 {offsets = [6, 0], sizes = [8, 32], strides = [1, 1]} : vector<40x32xf32> to vector<8x32xf32>
    %c2_285 = arith.constant 2 : index
    %c0_286 = arith.constant 0 : index
    %358 = vector.load %arg10[%c2_285, %c0_286] : memref<25x32xf32, #tpu.memory_space<vmem>>, vector<1x32xf32>
    %359 = vector.broadcast %358 : vector<1x32xf32> to vector<8x32xf32>
    %360 = arith.mulf %357, %359 : vector<8x32xf32>
    %361 = arith.addf %356, %360 : vector<8x32xf32>
    %362 = vector.extract_strided_slice %332 {offsets = [6, 0], sizes = [8, 32], strides = [1, 1]} : vector<40x32xf32> to vector<8x32xf32>
    %c2_287 = arith.constant 2 : index
    %c0_288 = arith.constant 0 : index
    %363 = vector.load %arg11[%c2_287, %c0_288] : memref<25x32xf32, #tpu.memory_space<vmem>>, vector<1x32xf32>
    %364 = vector.broadcast %363 : vector<1x32xf32> to vector<8x32xf32>
    %365 = arith.mulf %362, %364 : vector<8x32xf32>
    %366 = arith.addf %361, %365 : vector<8x32xf32>
    %367 = vector.extract_strided_slice %330 {offsets = [7, 0], sizes = [8, 32], strides = [1, 1]} : vector<40x32xf32> to vector<8x32xf32>
    %c3_289 = arith.constant 3 : index
    %c0_290 = arith.constant 0 : index
    %368 = vector.load %arg10[%c3_289, %c0_290] : memref<25x32xf32, #tpu.memory_space<vmem>>, vector<1x32xf32>
    %369 = vector.broadcast %368 : vector<1x32xf32> to vector<8x32xf32>
    %370 = arith.mulf %367, %369 : vector<8x32xf32>
    %371 = arith.addf %366, %370 : vector<8x32xf32>
    %372 = vector.extract_strided_slice %332 {offsets = [7, 0], sizes = [8, 32], strides = [1, 1]} : vector<40x32xf32> to vector<8x32xf32>
    %c3_291 = arith.constant 3 : index
    %c0_292 = arith.constant 0 : index
    %373 = vector.load %arg11[%c3_291, %c0_292] : memref<25x32xf32, #tpu.memory_space<vmem>>, vector<1x32xf32>
    %374 = vector.broadcast %373 : vector<1x32xf32> to vector<8x32xf32>
    %375 = arith.mulf %372, %374 : vector<8x32xf32>
    %376 = arith.addf %371, %375 : vector<8x32xf32>
    %377 = vector.extract_strided_slice %330 {offsets = [8, 0], sizes = [8, 32], strides = [1, 1]} : vector<40x32xf32> to vector<8x32xf32>
    %c4_293 = arith.constant 4 : index
    %c0_294 = arith.constant 0 : index
    %378 = vector.load %arg10[%c4_293, %c0_294] : memref<25x32xf32, #tpu.memory_space<vmem>>, vector<1x32xf32>
    %379 = vector.broadcast %378 : vector<1x32xf32> to vector<8x32xf32>
    %380 = arith.mulf %377, %379 : vector<8x32xf32>
    %381 = arith.addf %376, %380 : vector<8x32xf32>
    %382 = vector.extract_strided_slice %332 {offsets = [8, 0], sizes = [8, 32], strides = [1, 1]} : vector<40x32xf32> to vector<8x32xf32>
    %c4_295 = arith.constant 4 : index
    %c0_296 = arith.constant 0 : index
    %383 = vector.load %arg11[%c4_295, %c0_296] : memref<25x32xf32, #tpu.memory_space<vmem>>, vector<1x32xf32>
    %384 = vector.broadcast %383 : vector<1x32xf32> to vector<8x32xf32>
    %385 = arith.mulf %382, %384 : vector<8x32xf32>
    %386 = arith.addf %381, %385 : vector<8x32xf32>
    %387 = vector.extract_strided_slice %330 {offsets = [9, 0], sizes = [8, 32], strides = [1, 1]} : vector<40x32xf32> to vector<8x32xf32>
    %c5_297 = arith.constant 5 : index
    %c0_298 = arith.constant 0 : index
    %388 = vector.load %arg10[%c5_297, %c0_298] : memref<25x32xf32, #tpu.memory_space<vmem>>, vector<1x32xf32>
    %389 = vector.broadcast %388 : vector<1x32xf32> to vector<8x32xf32>
    %390 = arith.mulf %387, %389 : vector<8x32xf32>
    %391 = arith.addf %386, %390 : vector<8x32xf32>
    %392 = vector.extract_strided_slice %332 {offsets = [9, 0], sizes = [8, 32], strides = [1, 1]} : vector<40x32xf32> to vector<8x32xf32>
    %c5_299 = arith.constant 5 : index
    %c0_300 = arith.constant 0 : index
    %393 = vector.load %arg11[%c5_299, %c0_300] : memref<25x32xf32, #tpu.memory_space<vmem>>, vector<1x32xf32>
    %394 = vector.broadcast %393 : vector<1x32xf32> to vector<8x32xf32>
    %395 = arith.mulf %392, %394 : vector<8x32xf32>
    %396 = arith.addf %391, %395 : vector<8x32xf32>
    %397 = vector.extract_strided_slice %330 {offsets = [10, 0], sizes = [8, 32], strides = [1, 1]} : vector<40x32xf32> to vector<8x32xf32>
    %c6 = arith.constant 6 : index
    %c0_301 = arith.constant 0 : index
    %398 = vector.load %arg10[%c6, %c0_301] : memref<25x32xf32, #tpu.memory_space<vmem>>, vector<1x32xf32>
    %399 = vector.broadcast %398 : vector<1x32xf32> to vector<8x32xf32>
    %400 = arith.mulf %397, %399 : vector<8x32xf32>
    %401 = arith.addf %396, %400 : vector<8x32xf32>
    %402 = vector.extract_strided_slice %332 {offsets = [10, 0], sizes = [8, 32], strides = [1, 1]} : vector<40x32xf32> to vector<8x32xf32>
    %c6_302 = arith.constant 6 : index
    %c0_303 = arith.constant 0 : index
    %403 = vector.load %arg11[%c6_302, %c0_303] : memref<25x32xf32, #tpu.memory_space<vmem>>, vector<1x32xf32>
    %404 = vector.broadcast %403 : vector<1x32xf32> to vector<8x32xf32>
    %405 = arith.mulf %402, %404 : vector<8x32xf32>
    %406 = arith.addf %401, %405 : vector<8x32xf32>
    %407 = vector.extract_strided_slice %330 {offsets = [11, 0], sizes = [8, 32], strides = [1, 1]} : vector<40x32xf32> to vector<8x32xf32>
    %c7_304 = arith.constant 7 : index
    %c0_305 = arith.constant 0 : index
    %408 = vector.load %arg10[%c7_304, %c0_305] : memref<25x32xf32, #tpu.memory_space<vmem>>, vector<1x32xf32>
    %409 = vector.broadcast %408 : vector<1x32xf32> to vector<8x32xf32>
    %410 = arith.mulf %407, %409 : vector<8x32xf32>
    %411 = arith.addf %406, %410 : vector<8x32xf32>
    %412 = vector.extract_strided_slice %332 {offsets = [11, 0], sizes = [8, 32], strides = [1, 1]} : vector<40x32xf32> to vector<8x32xf32>
    %c7_306 = arith.constant 7 : index
    %c0_307 = arith.constant 0 : index
    %413 = vector.load %arg11[%c7_306, %c0_307] : memref<25x32xf32, #tpu.memory_space<vmem>>, vector<1x32xf32>
    %414 = vector.broadcast %413 : vector<1x32xf32> to vector<8x32xf32>
    %415 = arith.mulf %412, %414 : vector<8x32xf32>
    %416 = arith.addf %411, %415 : vector<8x32xf32>
    %417 = vector.extract_strided_slice %330 {offsets = [12, 0], sizes = [8, 32], strides = [1, 1]} : vector<40x32xf32> to vector<8x32xf32>
    %c8_308 = arith.constant 8 : index
    %c0_309 = arith.constant 0 : index
    %418 = vector.load %arg10[%c8_308, %c0_309] : memref<25x32xf32, #tpu.memory_space<vmem>>, vector<1x32xf32>
    %419 = vector.broadcast %418 : vector<1x32xf32> to vector<8x32xf32>
    %420 = arith.mulf %417, %419 : vector<8x32xf32>
    %421 = arith.addf %416, %420 : vector<8x32xf32>
    %422 = vector.extract_strided_slice %332 {offsets = [12, 0], sizes = [8, 32], strides = [1, 1]} : vector<40x32xf32> to vector<8x32xf32>
    %c8_310 = arith.constant 8 : index
    %c0_311 = arith.constant 0 : index
    %423 = vector.load %arg11[%c8_310, %c0_311] : memref<25x32xf32, #tpu.memory_space<vmem>>, vector<1x32xf32>
    %424 = vector.broadcast %423 : vector<1x32xf32> to vector<8x32xf32>
    %425 = arith.mulf %422, %424 : vector<8x32xf32>
    %426 = arith.addf %421, %425 : vector<8x32xf32>
    %427 = vector.extract_strided_slice %330 {offsets = [13, 0], sizes = [8, 32], strides = [1, 1]} : vector<40x32xf32> to vector<8x32xf32>
    %c9_312 = arith.constant 9 : index
    %c0_313 = arith.constant 0 : index
    %428 = vector.load %arg10[%c9_312, %c0_313] : memref<25x32xf32, #tpu.memory_space<vmem>>, vector<1x32xf32>
    %429 = vector.broadcast %428 : vector<1x32xf32> to vector<8x32xf32>
    %430 = arith.mulf %427, %429 : vector<8x32xf32>
    %431 = arith.addf %426, %430 : vector<8x32xf32>
    %432 = vector.extract_strided_slice %332 {offsets = [13, 0], sizes = [8, 32], strides = [1, 1]} : vector<40x32xf32> to vector<8x32xf32>
    %c9_314 = arith.constant 9 : index
    %c0_315 = arith.constant 0 : index
    %433 = vector.load %arg11[%c9_314, %c0_315] : memref<25x32xf32, #tpu.memory_space<vmem>>, vector<1x32xf32>
    %434 = vector.broadcast %433 : vector<1x32xf32> to vector<8x32xf32>
    %435 = arith.mulf %432, %434 : vector<8x32xf32>
    %436 = arith.addf %431, %435 : vector<8x32xf32>
    %437 = vector.extract_strided_slice %330 {offsets = [14, 0], sizes = [8, 32], strides = [1, 1]} : vector<40x32xf32> to vector<8x32xf32>
    %c10 = arith.constant 10 : index
    %c0_316 = arith.constant 0 : index
    %438 = vector.load %arg10[%c10, %c0_316] : memref<25x32xf32, #tpu.memory_space<vmem>>, vector<1x32xf32>
    %439 = vector.broadcast %438 : vector<1x32xf32> to vector<8x32xf32>
    %440 = arith.mulf %437, %439 : vector<8x32xf32>
    %441 = arith.addf %436, %440 : vector<8x32xf32>
    %442 = vector.extract_strided_slice %332 {offsets = [14, 0], sizes = [8, 32], strides = [1, 1]} : vector<40x32xf32> to vector<8x32xf32>
    %c10_317 = arith.constant 10 : index
    %c0_318 = arith.constant 0 : index
    %443 = vector.load %arg11[%c10_317, %c0_318] : memref<25x32xf32, #tpu.memory_space<vmem>>, vector<1x32xf32>
    %444 = vector.broadcast %443 : vector<1x32xf32> to vector<8x32xf32>
    %445 = arith.mulf %442, %444 : vector<8x32xf32>
    %446 = arith.addf %441, %445 : vector<8x32xf32>
    %447 = vector.extract_strided_slice %330 {offsets = [15, 0], sizes = [8, 32], strides = [1, 1]} : vector<40x32xf32> to vector<8x32xf32>
    %c11 = arith.constant 11 : index
    %c0_319 = arith.constant 0 : index
    %448 = vector.load %arg10[%c11, %c0_319] : memref<25x32xf32, #tpu.memory_space<vmem>>, vector<1x32xf32>
    %449 = vector.broadcast %448 : vector<1x32xf32> to vector<8x32xf32>
    %450 = arith.mulf %447, %449 : vector<8x32xf32>
    %451 = arith.addf %446, %450 : vector<8x32xf32>
    %452 = vector.extract_strided_slice %332 {offsets = [15, 0], sizes = [8, 32], strides = [1, 1]} : vector<40x32xf32> to vector<8x32xf32>
    %c11_320 = arith.constant 11 : index
    %c0_321 = arith.constant 0 : index
    %453 = vector.load %arg11[%c11_320, %c0_321] : memref<25x32xf32, #tpu.memory_space<vmem>>, vector<1x32xf32>
    %454 = vector.broadcast %453 : vector<1x32xf32> to vector<8x32xf32>
    %455 = arith.mulf %452, %454 : vector<8x32xf32>
    %456 = arith.addf %451, %455 : vector<8x32xf32>
    %457 = vector.extract_strided_slice %330 {offsets = [16, 0], sizes = [8, 32], strides = [1, 1]} : vector<40x32xf32> to vector<8x32xf32>
    %c12 = arith.constant 12 : index
    %c0_322 = arith.constant 0 : index
    %458 = vector.load %arg10[%c12, %c0_322] : memref<25x32xf32, #tpu.memory_space<vmem>>, vector<1x32xf32>
    %459 = vector.broadcast %458 : vector<1x32xf32> to vector<8x32xf32>
    %460 = arith.mulf %457, %459 : vector<8x32xf32>
    %461 = arith.addf %456, %460 : vector<8x32xf32>
    %462 = vector.extract_strided_slice %332 {offsets = [16, 0], sizes = [8, 32], strides = [1, 1]} : vector<40x32xf32> to vector<8x32xf32>
    %c12_323 = arith.constant 12 : index
    %c0_324 = arith.constant 0 : index
    %463 = vector.load %arg11[%c12_323, %c0_324] : memref<25x32xf32, #tpu.memory_space<vmem>>, vector<1x32xf32>
    %464 = vector.broadcast %463 : vector<1x32xf32> to vector<8x32xf32>
    %465 = arith.mulf %462, %464 : vector<8x32xf32>
    %466 = arith.addf %461, %465 : vector<8x32xf32>
    %467 = vector.extract_strided_slice %330 {offsets = [17, 0], sizes = [8, 32], strides = [1, 1]} : vector<40x32xf32> to vector<8x32xf32>
    %c13 = arith.constant 13 : index
    %c0_325 = arith.constant 0 : index
    %468 = vector.load %arg10[%c13, %c0_325] : memref<25x32xf32, #tpu.memory_space<vmem>>, vector<1x32xf32>
    %469 = vector.broadcast %468 : vector<1x32xf32> to vector<8x32xf32>
    %470 = arith.mulf %467, %469 : vector<8x32xf32>
    %471 = arith.addf %466, %470 : vector<8x32xf32>
    %472 = vector.extract_strided_slice %332 {offsets = [17, 0], sizes = [8, 32], strides = [1, 1]} : vector<40x32xf32> to vector<8x32xf32>
    %c13_326 = arith.constant 13 : index
    %c0_327 = arith.constant 0 : index
    %473 = vector.load %arg11[%c13_326, %c0_327] : memref<25x32xf32, #tpu.memory_space<vmem>>, vector<1x32xf32>
    %474 = vector.broadcast %473 : vector<1x32xf32> to vector<8x32xf32>
    %475 = arith.mulf %472, %474 : vector<8x32xf32>
    %476 = arith.addf %471, %475 : vector<8x32xf32>
    %477 = vector.extract_strided_slice %330 {offsets = [18, 0], sizes = [8, 32], strides = [1, 1]} : vector<40x32xf32> to vector<8x32xf32>
    %c14 = arith.constant 14 : index
    %c0_328 = arith.constant 0 : index
    %478 = vector.load %arg10[%c14, %c0_328] : memref<25x32xf32, #tpu.memory_space<vmem>>, vector<1x32xf32>
    %479 = vector.broadcast %478 : vector<1x32xf32> to vector<8x32xf32>
    %480 = arith.mulf %477, %479 : vector<8x32xf32>
    %481 = arith.addf %476, %480 : vector<8x32xf32>
    %482 = vector.extract_strided_slice %332 {offsets = [18, 0], sizes = [8, 32], strides = [1, 1]} : vector<40x32xf32> to vector<8x32xf32>
    %c14_329 = arith.constant 14 : index
    %c0_330 = arith.constant 0 : index
    %483 = vector.load %arg11[%c14_329, %c0_330] : memref<25x32xf32, #tpu.memory_space<vmem>>, vector<1x32xf32>
    %484 = vector.broadcast %483 : vector<1x32xf32> to vector<8x32xf32>
    %485 = arith.mulf %482, %484 : vector<8x32xf32>
    %486 = arith.addf %481, %485 : vector<8x32xf32>
    %487 = vector.extract_strided_slice %330 {offsets = [19, 0], sizes = [8, 32], strides = [1, 1]} : vector<40x32xf32> to vector<8x32xf32>
    %c15 = arith.constant 15 : index
    %c0_331 = arith.constant 0 : index
    %488 = vector.load %arg10[%c15, %c0_331] : memref<25x32xf32, #tpu.memory_space<vmem>>, vector<1x32xf32>
    %489 = vector.broadcast %488 : vector<1x32xf32> to vector<8x32xf32>
    %490 = arith.mulf %487, %489 : vector<8x32xf32>
    %491 = arith.addf %486, %490 : vector<8x32xf32>
    %492 = vector.extract_strided_slice %332 {offsets = [19, 0], sizes = [8, 32], strides = [1, 1]} : vector<40x32xf32> to vector<8x32xf32>
    %c15_332 = arith.constant 15 : index
    %c0_333 = arith.constant 0 : index
    %493 = vector.load %arg11[%c15_332, %c0_333] : memref<25x32xf32, #tpu.memory_space<vmem>>, vector<1x32xf32>
    %494 = vector.broadcast %493 : vector<1x32xf32> to vector<8x32xf32>
    %495 = arith.mulf %492, %494 : vector<8x32xf32>
    %496 = arith.addf %491, %495 : vector<8x32xf32>
    %497 = vector.extract_strided_slice %330 {offsets = [20, 0], sizes = [8, 32], strides = [1, 1]} : vector<40x32xf32> to vector<8x32xf32>
    %c16_334 = arith.constant 16 : index
    %c0_335 = arith.constant 0 : index
    %498 = vector.load %arg10[%c16_334, %c0_335] : memref<25x32xf32, #tpu.memory_space<vmem>>, vector<1x32xf32>
    %499 = vector.broadcast %498 : vector<1x32xf32> to vector<8x32xf32>
    %500 = arith.mulf %497, %499 : vector<8x32xf32>
    %501 = arith.addf %496, %500 : vector<8x32xf32>
    %502 = vector.extract_strided_slice %332 {offsets = [20, 0], sizes = [8, 32], strides = [1, 1]} : vector<40x32xf32> to vector<8x32xf32>
    %c16_336 = arith.constant 16 : index
    %c0_337 = arith.constant 0 : index
    %503 = vector.load %arg11[%c16_336, %c0_337] : memref<25x32xf32, #tpu.memory_space<vmem>>, vector<1x32xf32>
    %504 = vector.broadcast %503 : vector<1x32xf32> to vector<8x32xf32>
    %505 = arith.mulf %502, %504 : vector<8x32xf32>
    %506 = arith.addf %501, %505 : vector<8x32xf32>
    %507 = vector.extract_strided_slice %330 {offsets = [21, 0], sizes = [8, 32], strides = [1, 1]} : vector<40x32xf32> to vector<8x32xf32>
    %c17 = arith.constant 17 : index
    %c0_338 = arith.constant 0 : index
    %508 = vector.load %arg10[%c17, %c0_338] : memref<25x32xf32, #tpu.memory_space<vmem>>, vector<1x32xf32>
    %509 = vector.broadcast %508 : vector<1x32xf32> to vector<8x32xf32>
    %510 = arith.mulf %507, %509 : vector<8x32xf32>
    %511 = arith.addf %506, %510 : vector<8x32xf32>
    %512 = vector.extract_strided_slice %332 {offsets = [21, 0], sizes = [8, 32], strides = [1, 1]} : vector<40x32xf32> to vector<8x32xf32>
    %c17_339 = arith.constant 17 : index
    %c0_340 = arith.constant 0 : index
    %513 = vector.load %arg11[%c17_339, %c0_340] : memref<25x32xf32, #tpu.memory_space<vmem>>, vector<1x32xf32>
    %514 = vector.broadcast %513 : vector<1x32xf32> to vector<8x32xf32>
    %515 = arith.mulf %512, %514 : vector<8x32xf32>
    %516 = arith.addf %511, %515 : vector<8x32xf32>
    %517 = vector.extract_strided_slice %330 {offsets = [22, 0], sizes = [8, 32], strides = [1, 1]} : vector<40x32xf32> to vector<8x32xf32>
    %c18 = arith.constant 18 : index
    %c0_341 = arith.constant 0 : index
    %518 = vector.load %arg10[%c18, %c0_341] : memref<25x32xf32, #tpu.memory_space<vmem>>, vector<1x32xf32>
    %519 = vector.broadcast %518 : vector<1x32xf32> to vector<8x32xf32>
    %520 = arith.mulf %517, %519 : vector<8x32xf32>
    %521 = arith.addf %516, %520 : vector<8x32xf32>
    %522 = vector.extract_strided_slice %332 {offsets = [22, 0], sizes = [8, 32], strides = [1, 1]} : vector<40x32xf32> to vector<8x32xf32>
    %c18_342 = arith.constant 18 : index
    %c0_343 = arith.constant 0 : index
    %523 = vector.load %arg11[%c18_342, %c0_343] : memref<25x32xf32, #tpu.memory_space<vmem>>, vector<1x32xf32>
    %524 = vector.broadcast %523 : vector<1x32xf32> to vector<8x32xf32>
    %525 = arith.mulf %522, %524 : vector<8x32xf32>
    %526 = arith.addf %521, %525 : vector<8x32xf32>
    %527 = vector.extract_strided_slice %330 {offsets = [23, 0], sizes = [8, 32], strides = [1, 1]} : vector<40x32xf32> to vector<8x32xf32>
    %c19 = arith.constant 19 : index
    %c0_344 = arith.constant 0 : index
    %528 = vector.load %arg10[%c19, %c0_344] : memref<25x32xf32, #tpu.memory_space<vmem>>, vector<1x32xf32>
    %529 = vector.broadcast %528 : vector<1x32xf32> to vector<8x32xf32>
    %530 = arith.mulf %527, %529 : vector<8x32xf32>
    %531 = arith.addf %526, %530 : vector<8x32xf32>
    %532 = vector.extract_strided_slice %332 {offsets = [23, 0], sizes = [8, 32], strides = [1, 1]} : vector<40x32xf32> to vector<8x32xf32>
    %c19_345 = arith.constant 19 : index
    %c0_346 = arith.constant 0 : index
    %533 = vector.load %arg11[%c19_345, %c0_346] : memref<25x32xf32, #tpu.memory_space<vmem>>, vector<1x32xf32>
    %534 = vector.broadcast %533 : vector<1x32xf32> to vector<8x32xf32>
    %535 = arith.mulf %532, %534 : vector<8x32xf32>
    %536 = arith.addf %531, %535 : vector<8x32xf32>
    %537 = vector.extract_strided_slice %330 {offsets = [24, 0], sizes = [8, 32], strides = [1, 1]} : vector<40x32xf32> to vector<8x32xf32>
    %c20 = arith.constant 20 : index
    %c0_347 = arith.constant 0 : index
    %538 = vector.load %arg10[%c20, %c0_347] : memref<25x32xf32, #tpu.memory_space<vmem>>, vector<1x32xf32>
    %539 = vector.broadcast %538 : vector<1x32xf32> to vector<8x32xf32>
    %540 = arith.mulf %537, %539 : vector<8x32xf32>
    %541 = arith.addf %536, %540 : vector<8x32xf32>
    %542 = vector.extract_strided_slice %332 {offsets = [24, 0], sizes = [8, 32], strides = [1, 1]} : vector<40x32xf32> to vector<8x32xf32>
    %c20_348 = arith.constant 20 : index
    %c0_349 = arith.constant 0 : index
    %543 = vector.load %arg11[%c20_348, %c0_349] : memref<25x32xf32, #tpu.memory_space<vmem>>, vector<1x32xf32>
    %544 = vector.broadcast %543 : vector<1x32xf32> to vector<8x32xf32>
    %545 = arith.mulf %542, %544 : vector<8x32xf32>
    %546 = arith.addf %541, %545 : vector<8x32xf32>
    %547 = vector.extract_strided_slice %330 {offsets = [25, 0], sizes = [8, 32], strides = [1, 1]} : vector<40x32xf32> to vector<8x32xf32>
    %c21 = arith.constant 21 : index
    %c0_350 = arith.constant 0 : index
    %548 = vector.load %arg10[%c21, %c0_350] : memref<25x32xf32, #tpu.memory_space<vmem>>, vector<1x32xf32>
    %549 = vector.broadcast %548 : vector<1x32xf32> to vector<8x32xf32>
    %550 = arith.mulf %547, %549 : vector<8x32xf32>
    %551 = arith.addf %546, %550 : vector<8x32xf32>
    %552 = vector.extract_strided_slice %332 {offsets = [25, 0], sizes = [8, 32], strides = [1, 1]} : vector<40x32xf32> to vector<8x32xf32>
    %c21_351 = arith.constant 21 : index
    %c0_352 = arith.constant 0 : index
    %553 = vector.load %arg11[%c21_351, %c0_352] : memref<25x32xf32, #tpu.memory_space<vmem>>, vector<1x32xf32>
    %554 = vector.broadcast %553 : vector<1x32xf32> to vector<8x32xf32>
    %555 = arith.mulf %552, %554 : vector<8x32xf32>
    %556 = arith.addf %551, %555 : vector<8x32xf32>
    %557 = vector.extract_strided_slice %330 {offsets = [26, 0], sizes = [8, 32], strides = [1, 1]} : vector<40x32xf32> to vector<8x32xf32>
    %c22 = arith.constant 22 : index
    %c0_353 = arith.constant 0 : index
    %558 = vector.load %arg10[%c22, %c0_353] : memref<25x32xf32, #tpu.memory_space<vmem>>, vector<1x32xf32>
    %559 = vector.broadcast %558 : vector<1x32xf32> to vector<8x32xf32>
    %560 = arith.mulf %557, %559 : vector<8x32xf32>
    %561 = arith.addf %556, %560 : vector<8x32xf32>
    %562 = vector.extract_strided_slice %332 {offsets = [26, 0], sizes = [8, 32], strides = [1, 1]} : vector<40x32xf32> to vector<8x32xf32>
    %c22_354 = arith.constant 22 : index
    %c0_355 = arith.constant 0 : index
    %563 = vector.load %arg11[%c22_354, %c0_355] : memref<25x32xf32, #tpu.memory_space<vmem>>, vector<1x32xf32>
    %564 = vector.broadcast %563 : vector<1x32xf32> to vector<8x32xf32>
    %565 = arith.mulf %562, %564 : vector<8x32xf32>
    %566 = arith.addf %561, %565 : vector<8x32xf32>
    %567 = vector.extract_strided_slice %330 {offsets = [27, 0], sizes = [8, 32], strides = [1, 1]} : vector<40x32xf32> to vector<8x32xf32>
    %c23 = arith.constant 23 : index
    %c0_356 = arith.constant 0 : index
    %568 = vector.load %arg10[%c23, %c0_356] : memref<25x32xf32, #tpu.memory_space<vmem>>, vector<1x32xf32>
    %569 = vector.broadcast %568 : vector<1x32xf32> to vector<8x32xf32>
    %570 = arith.mulf %567, %569 : vector<8x32xf32>
    %571 = arith.addf %566, %570 : vector<8x32xf32>
    %572 = vector.extract_strided_slice %332 {offsets = [27, 0], sizes = [8, 32], strides = [1, 1]} : vector<40x32xf32> to vector<8x32xf32>
    %c23_357 = arith.constant 23 : index
    %c0_358 = arith.constant 0 : index
    %573 = vector.load %arg11[%c23_357, %c0_358] : memref<25x32xf32, #tpu.memory_space<vmem>>, vector<1x32xf32>
    %574 = vector.broadcast %573 : vector<1x32xf32> to vector<8x32xf32>
    %575 = arith.mulf %572, %574 : vector<8x32xf32>
    %576 = arith.addf %571, %575 : vector<8x32xf32>
    %577 = vector.extract_strided_slice %330 {offsets = [28, 0], sizes = [8, 32], strides = [1, 1]} : vector<40x32xf32> to vector<8x32xf32>
    %c24_359 = arith.constant 24 : index
    %c0_360 = arith.constant 0 : index
    %578 = vector.load %arg10[%c24_359, %c0_360] : memref<25x32xf32, #tpu.memory_space<vmem>>, vector<1x32xf32>
    %579 = vector.broadcast %578 : vector<1x32xf32> to vector<8x32xf32>
    %580 = arith.mulf %577, %579 : vector<8x32xf32>
    %581 = arith.addf %576, %580 : vector<8x32xf32>
    %582 = vector.extract_strided_slice %332 {offsets = [28, 0], sizes = [8, 32], strides = [1, 1]} : vector<40x32xf32> to vector<8x32xf32>
    %c24_361 = arith.constant 24 : index
    %c0_362 = arith.constant 0 : index
    %583 = vector.load %arg11[%c24_361, %c0_362] : memref<25x32xf32, #tpu.memory_space<vmem>>, vector<1x32xf32>
    %584 = vector.broadcast %583 : vector<1x32xf32> to vector<8x32xf32>
    %585 = arith.mulf %582, %584 : vector<8x32xf32>
    %586 = arith.addf %581, %585 : vector<8x32xf32>
    %cst_363 = arith.constant 5.000000e-01 : f32
    %587 = vector.broadcast %cst_363 : f32 to vector<8x32xf32>
    %588 = arith.mulf %587, %586 : vector<8x32xf32>
    %cst_364 = arith.constant 0.707106769 : f32
    %589 = vector.broadcast %cst_364 : f32 to vector<8x32xf32>
    %590 = arith.mulf %586, %589 : vector<8x32xf32>
    %591 = math.erf %590 : vector<8x32xf32>
    %cst_365 = arith.constant 1.000000e+00 : f32
    %592 = vector.broadcast %cst_365 : f32 to vector<8x32xf32>
    %593 = arith.addf %592, %591 : vector<8x32xf32>
    %594 = arith.mulf %588, %593 : vector<8x32xf32>
    %595 = arith.addf %324, %594 : vector<8x32xf32>
    %cst_366 = arith.constant dense<0.000000e+00> : vector<8xf32>
    %596 = vector.multi_reduction <add>, %595, %cst_366 [1] : vector<8x32xf32> to vector<8xf32>
    %597 = vector.shape_cast %596 : vector<8xf32> to vector<8x1xf32>
    %cst_367 = arith.constant 3.200000e+01 : f32
    %598 = vector.broadcast %cst_367 : f32 to vector<8x1xf32>
    %599 = arith.divf %597, %598 : vector<8x1xf32>
    %600 = vector.broadcast %599 : vector<8x1xf32> to vector<8x32xf32>
    %601 = arith.subf %595, %600 : vector<8x32xf32>
    %602 = arith.mulf %601, %601 : vector<8x32xf32>
    %cst_368 = arith.constant dense<0.000000e+00> : vector<8xf32>
    %603 = vector.multi_reduction <add>, %602, %cst_368 [1] : vector<8x32xf32> to vector<8xf32>
    %604 = vector.shape_cast %603 : vector<8xf32> to vector<8x1xf32>
    %cst_369 = arith.constant 3.200000e+01 : f32
    %605 = vector.broadcast %cst_369 : f32 to vector<8x1xf32>
    %606 = arith.divf %604, %605 : vector<8x1xf32>
    %607 = vector.broadcast %599 : vector<8x1xf32> to vector<8x32xf32>
    %608 = arith.subf %595, %607 : vector<8x32xf32>
    %cst_370 = arith.constant 9.99999974E-6 : f32
    %609 = vector.broadcast %cst_370 : f32 to vector<8x1xf32>
    %610 = arith.addf %606, %609 : vector<8x1xf32>
    %611 = math.rsqrt %610 : vector<8x1xf32>
    %612 = vector.broadcast %611 : vector<8x1xf32> to vector<8x32xf32>
    %613 = arith.mulf %608, %612 : vector<8x32xf32>
    %c0_371 = arith.constant 0 : index
    %c0_372 = arith.constant 0 : index
    %614 = vector.load %arg13[%c0_371, %c0_372] : memref<1x32xf32, #tpu.memory_space<vmem>>, vector<1x32xf32>
    %615 = vector.broadcast %614 : vector<1x32xf32> to vector<8x32xf32>
    %616 = arith.mulf %613, %615 : vector<8x32xf32>
    %c0_373 = arith.constant 0 : index
    %c0_374 = arith.constant 0 : index
    %617 = vector.load %arg14[%c0_373, %c0_374] : memref<1x32xf32, #tpu.memory_space<vmem>>, vector<1x32xf32>
    %618 = vector.broadcast %617 : vector<1x32xf32> to vector<8x32xf32>
    %619 = arith.addf %616, %618 : vector<8x32xf32>
    %c0_375 = arith.constant 0 : index
    %c0_376 = arith.constant 0 : index
    %620 = vector.load %arg15[%c0_375, %c0_376] : memref<32x96xf32, #tpu.memory_space<vmem>>, vector<32x96xf32>
    %cst_377 = arith.constant dense<0.000000e+00> : vector<8x96xf32>
    %621 = tpu.matmul %619, %620, %cst_377 {dimension_numbers = #tpu.dot_dimension_numbers<[1], [0], [0], [1], [0, 0, 1, 1], [], []>} : vector<8x32xf32>, vector<32x96xf32>, vector<8x96xf32> -> vector<8x96xf32>
    %c0_378 = arith.constant 0 : index
    %c0_379 = arith.constant 0 : index
    %622 = vector.load %arg16[%c0_378, %c0_379] : memref<1x96xf32, #tpu.memory_space<vmem>>, vector<1x96xf32>
    %623 = vector.broadcast %622 : vector<1x96xf32> to vector<8x96xf32>
    %624 = arith.addf %621, %623 : vector<8x96xf32>
    %c0_380 = arith.constant 0 : index
    %c0_381 = arith.constant 0 : index
    %625 = vector.load %arg17[%c0_380, %c0_381] : memref<4x8xf32, #tpu.memory_space<vmem>>, vector<4x8xf32>
    %cst_382 = arith.constant dense<0.000000e+00> : vector<4x96xf32>
    %626 = tpu.matmul %625, %624, %cst_382 {dimension_numbers = #tpu.dot_dimension_numbers<[1], [0], [0], [1], [0, 0, 1, 1], [], []>} : vector<4x8xf32>, vector<8x96xf32>, vector<4x96xf32> -> vector<4x96xf32>
    %cst_383 = arith.constant 0.000000e+00 : f32
    %627 = vector.broadcast %cst_383 : f32 to vector<1x128xf32>
    %628 = vector.extract_strided_slice %626 {offsets = [0, 0], sizes = [1, 96], strides = [1, 1]} : vector<4x96xf32> to vector<1x96xf32>
    %c0_384 = arith.constant 0 : index
    %c0_385 = arith.constant 0 : index
    %c0_386 = arith.constant 0 : index
    %629 = vector.load %arg18[%c0_384, %c0_385, %c0_386] : memref<4x96x128xf32, #tpu.memory_space<vmem>>, vector<1x96x128xf32>
    %630 = vector.shape_cast %629 : vector<1x96x128xf32> to vector<96x128xf32>
    %cst_387 = arith.constant dense<0.000000e+00> : vector<1x128xf32>
    %631 = tpu.matmul %628, %630, %cst_387 {dimension_numbers = #tpu.dot_dimension_numbers<[1], [0], [0], [1], [0, 0, 1, 1], [], []>} : vector<1x96xf32>, vector<96x128xf32>, vector<1x128xf32> -> vector<1x128xf32>
    %632 = arith.addf %627, %631 : vector<1x128xf32>
    %633 = vector.extract_strided_slice %626 {offsets = [1, 0], sizes = [1, 96], strides = [1, 1]} : vector<4x96xf32> to vector<1x96xf32>
    %c1_388 = arith.constant 1 : index
    %c0_389 = arith.constant 0 : index
    %c0_390 = arith.constant 0 : index
    %634 = vector.load %arg18[%c1_388, %c0_389, %c0_390] : memref<4x96x128xf32, #tpu.memory_space<vmem>>, vector<1x96x128xf32>
    %635 = vector.shape_cast %634 : vector<1x96x128xf32> to vector<96x128xf32>
    %cst_391 = arith.constant dense<0.000000e+00> : vector<1x128xf32>
    %636 = tpu.matmul %633, %635, %cst_391 {dimension_numbers = #tpu.dot_dimension_numbers<[1], [0], [0], [1], [0, 0, 1, 1], [], []>} : vector<1x96xf32>, vector<96x128xf32>, vector<1x128xf32> -> vector<1x128xf32>
    %637 = arith.addf %632, %636 : vector<1x128xf32>
    %638 = vector.extract_strided_slice %626 {offsets = [2, 0], sizes = [1, 96], strides = [1, 1]} : vector<4x96xf32> to vector<1x96xf32>
    %c2_392 = arith.constant 2 : index
    %c0_393 = arith.constant 0 : index
    %c0_394 = arith.constant 0 : index
    %639 = vector.load %arg18[%c2_392, %c0_393, %c0_394] : memref<4x96x128xf32, #tpu.memory_space<vmem>>, vector<1x96x128xf32>
    %640 = vector.shape_cast %639 : vector<1x96x128xf32> to vector<96x128xf32>
    %cst_395 = arith.constant dense<0.000000e+00> : vector<1x128xf32>
    %641 = tpu.matmul %638, %640, %cst_395 {dimension_numbers = #tpu.dot_dimension_numbers<[1], [0], [0], [1], [0, 0, 1, 1], [], []>} : vector<1x96xf32>, vector<96x128xf32>, vector<1x128xf32> -> vector<1x128xf32>
    %642 = arith.addf %637, %641 : vector<1x128xf32>
    %643 = vector.extract_strided_slice %626 {offsets = [3, 0], sizes = [1, 96], strides = [1, 1]} : vector<4x96xf32> to vector<1x96xf32>
    %c3_396 = arith.constant 3 : index
    %c0_397 = arith.constant 0 : index
    %c0_398 = arith.constant 0 : index
    %644 = vector.load %arg18[%c3_396, %c0_397, %c0_398] : memref<4x96x128xf32, #tpu.memory_space<vmem>>, vector<1x96x128xf32>
    %645 = vector.shape_cast %644 : vector<1x96x128xf32> to vector<96x128xf32>
    %cst_399 = arith.constant dense<0.000000e+00> : vector<1x128xf32>
    %646 = tpu.matmul %643, %645, %cst_399 {dimension_numbers = #tpu.dot_dimension_numbers<[1], [0], [0], [1], [0, 0, 1, 1], [], []>} : vector<1x96xf32>, vector<96x128xf32>, vector<1x128xf32> -> vector<1x128xf32>
    %647 = arith.addf %642, %646 : vector<1x128xf32>
    %cst_400 = arith.constant 0.000000e+00 : f32
    %648 = vector.broadcast %cst_400 : f32 to vector<1x128xf32>
    %649 = arith.maximumf %647, %648 : vector<1x128xf32>
    %c0_401 = arith.constant 0 : index
    %c0_402 = arith.constant 0 : index
    %650 = vector.load %arg19[%c0_401, %c0_402] : memref<1x128xf32, #tpu.memory_space<vmem>>, vector<1x128xf32>
    %651 = arith.mulf %649, %650 : vector<1x128xf32>
    %c0_403 = arith.constant 0 : index
    %c0_404 = arith.constant 0 : index
    %652 = vector.load %arg20[%c0_403, %c0_404] : memref<1x128xf32, #tpu.memory_space<vmem>>, vector<1x128xf32>
    %653 = arith.addf %651, %652 : vector<1x128xf32>
    %c0_405 = arith.constant 0 : index
    %c0_406 = arith.constant 0 : index
    %c0_407 = arith.constant 0 : index
    %654 = vector.load %arg26[%c0_405, %c0_406, %c0_407] : memref<1x1x128xf32, #tpu.memory_space<vmem>>, vector<1x1x128xf32>
    %655 = vector.shape_cast %654 : vector<1x1x128xf32> to vector<1x128xf32>
    %656 = vector.shape_cast %653 : vector<1x128xf32> to vector<1x1x128xf32>
    tpu.vector_store %arg26[%c0_405, %c0_406, %c0_407], %656 {strides = array<i32>} : memref<1x1x128xf32, #tpu.memory_space<vmem>>, vector<1x1x128xf32>,
    %c0_408 = arith.constant 0 : index
    %c0_409 = arith.constant 0 : index
    %657 = vector.load %arg21[%c0_408, %c0_409] : memref<128x64xf32, #tpu.memory_space<vmem>>, vector<128x64xf32>
    %cst_410 = arith.constant dense<0.000000e+00> : vector<1x64xf32>
    %658 = tpu.matmul %653, %657, %cst_410 {dimension_numbers = #tpu.dot_dimension_numbers<[1], [0], [0], [1], [0, 0, 1, 1], [], []>} : vector<1x128xf32>, vector<128x64xf32>, vector<1x64xf32> -> vector<1x64xf32>
    %c0_411 = arith.constant 0 : index
    %c0_412 = arith.constant 0 : index
    %659 = vector.load %arg22[%c0_411, %c0_412] : memref<1x64xf32, #tpu.memory_space<vmem>>, vector<1x64xf32>
    %660 = arith.addf %658, %659 : vector<1x64xf32>
    %c0_413 = arith.constant 0 : index
    %c0_414 = arith.constant 0 : index
    %661 = vector.load %arg23[%c0_413, %c0_414] : memref<64x3xf32, #tpu.memory_space<vmem>>, vector<64x3xf32>
    %cst_415 = arith.constant dense<0.000000e+00> : vector<1x3xf32>
    %662 = tpu.matmul %660, %661, %cst_415 {dimension_numbers = #tpu.dot_dimension_numbers<[1], [0], [0], [1], [0, 0, 1, 1], [], []>} : vector<1x64xf32>, vector<64x3xf32>, vector<1x3xf32> -> vector<1x3xf32>
    %c0_416 = arith.constant 0 : index
    %c0_417 = arith.constant 0 : index
    %663 = vector.load %arg24[%c0_416, %c0_417] : memref<1x3xf32, #tpu.memory_space<vmem>>, vector<1x3xf32>
    %664 = arith.addf %662, %663 : vector<1x3xf32>
    %c0_418 = arith.constant 0 : index
    %c0_419 = arith.constant 0 : index
    %c0_420 = arith.constant 0 : index
    %665 = vector.load %arg25[%c0_418, %c0_419, %c0_420] : memref<1x1x3xf32, #tpu.memory_space<vmem>>, vector<1x1x3xf32>
    %666 = vector.shape_cast %665 : vector<1x1x3xf32> to vector<1x3xf32>
    %667 = vector.shape_cast %664 : vector<1x3xf32> to vector<1x1x3xf32>
    tpu.vector_store %arg25[%c0_418, %c0_419, %c0_420], %667 {strides = array<i32>} : memref<1x1x3xf32, #tpu.memory_space<vmem>>, vector<1x1x3xf32>,
    return
  }
  func.func @transform_0(%arg0: i32) -> (i32, i32, i32) {
    %c0_i32 = arith.constant 0 : i32
    %c0_i32_0 = arith.constant 0 : i32
    %c0_i32_1 = arith.constant 0 : i32
    return %arg0, %c0_i32, %c0_i32_0 : i32, i32, i32
  }
  func.func @transform_1(%arg0: i32) -> (i32, i32, i32) {
    %c0_i32 = arith.constant 0 : i32
    %c0_i32_0 = arith.constant 0 : i32
    %c0_i32_1 = arith.constant 0 : i32
    %c0_i32_2 = arith.constant 0 : i32
    return %c0_i32, %c0_i32_0, %c0_i32_1 : i32, i32, i32
  }
  func.func @transform_2(%arg0: i32) -> (i32, i32, i32, i32) {
    %c0_i32 = arith.constant 0 : i32
    %c0_i32_0 = arith.constant 0 : i32
    %c0_i32_1 = arith.constant 0 : i32
    %c0_i32_2 = arith.constant 0 : i32
    %c0_i32_3 = arith.constant 0 : i32
    return %c0_i32, %c0_i32_0, %c0_i32_1, %c0_i32_2 : i32, i32, i32, i32
  }
  func.func @transform_3(%arg0: i32) -> (i32, i32) {
    %c0_i32 = arith.constant 0 : i32
    %c0_i32_0 = arith.constant 0 : i32
    %c0_i32_1 = arith.constant 0 : i32
    return %c0_i32, %c0_i32_0 : i32, i32
  }
  func.func @transform_4(%arg0: i32) -> (i32, i32) {
    %c0_i32 = arith.constant 0 : i32
    %c0_i32_0 = arith.constant 0 : i32
    %c0_i32_1 = arith.constant 0 : i32
    return %c0_i32, %c0_i32_0 : i32, i32
  }
  func.func @transform_5(%arg0: i32) -> (i32, i32) {
    %c0_i32 = arith.constant 0 : i32
    %c0_i32_0 = arith.constant 0 : i32
    %c0_i32_1 = arith.constant 0 : i32
    return %c0_i32, %c0_i32_0 : i32, i32
  }
  func.func @transform_6(%arg0: i32) -> (i32, i32) {
    %c0_i32 = arith.constant 0 : i32
    %c0_i32_0 = arith.constant 0 : i32
    %c0_i32_1 = arith.constant 0 : i32
    return %c0_i32, %c0_i32_0 : i32, i32
  }
  func.func @transform_7(%arg0: i32) -> (i32, i32) {
    %c0_i32 = arith.constant 0 : i32
    %c0_i32_0 = arith.constant 0 : i32
    %c0_i32_1 = arith.constant 0 : i32
    return %c0_i32, %c0_i32_0 : i32, i32
  }
  func.func @transform_8(%arg0: i32) -> (i32, i32) {
    %c0_i32 = arith.constant 0 : i32
    %c0_i32_0 = arith.constant 0 : i32
    %c0_i32_1 = arith.constant 0 : i32
    return %c0_i32, %c0_i32_0 : i32, i32
  }
  func.func @transform_9(%arg0: i32) -> (i32, i32) {
    %c0_i32 = arith.constant 0 : i32
    %c0_i32_0 = arith.constant 0 : i32
    %c0_i32_1 = arith.constant 0 : i32
    return %c0_i32, %c0_i32_0 : i32, i32
  }
  func.func @transform_10(%arg0: i32) -> (i32, i32) {
    %c0_i32 = arith.constant 0 : i32
    %c0_i32_0 = arith.constant 0 : i32
    %c0_i32_1 = arith.constant 0 : i32
    return %c0_i32, %c0_i32_0 : i32, i32
  }
  func.func @transform_11(%arg0: i32) -> (i32, i32) {
    %c0_i32 = arith.constant 0 : i32
    %c0_i32_0 = arith.constant 0 : i32
    %c0_i32_1 = arith.constant 0 : i32
    return %c0_i32, %c0_i32_0 : i32, i32
  }
  func.func @transform_12(%arg0: i32) -> (i32, i32) {
    %c0_i32 = arith.constant 0 : i32
    %c0_i32_0 = arith.constant 0 : i32
    %c0_i32_1 = arith.constant 0 : i32
    return %c0_i32, %c0_i32_0 : i32, i32
  }
  func.func @transform_13(%arg0: i32) -> (i32, i32) {
    %c0_i32 = arith.constant 0 : i32
    %c0_i32_0 = arith.constant 0 : i32
    %c0_i32_1 = arith.constant 0 : i32
    return %c0_i32, %c0_i32_0 : i32, i32
  }
  func.func @transform_14(%arg0: i32) -> (i32, i32) {
    %c0_i32 = arith.constant 0 : i32
    %c0_i32_0 = arith.constant 0 : i32
    %c0_i32_1 = arith.constant 0 : i32
    return %c0_i32, %c0_i32_0 : i32, i32
  }
  func.func @transform_15(%arg0: i32) -> (i32, i32) {
    %c0_i32 = arith.constant 0 : i32
    %c0_i32_0 = arith.constant 0 : i32
    %c0_i32_1 = arith.constant 0 : i32
    return %c0_i32, %c0_i32_0 : i32, i32
  }
  func.func @transform_16(%arg0: i32) -> (i32, i32) {
    %c0_i32 = arith.constant 0 : i32
    %c0_i32_0 = arith.constant 0 : i32
    %c0_i32_1 = arith.constant 0 : i32
    return %c0_i32, %c0_i32_0 : i32, i32
  }
  func.func @transform_17(%arg0: i32) -> (i32, i32, i32) {
    %c0_i32 = arith.constant 0 : i32
    %c0_i32_0 = arith.constant 0 : i32
    %c0_i32_1 = arith.constant 0 : i32
    %c0_i32_2 = arith.constant 0 : i32
    return %c0_i32, %c0_i32_0, %c0_i32_1 : i32, i32, i32
  }
  func.func @transform_18(%arg0: i32) -> (i32, i32) {
    %c0_i32 = arith.constant 0 : i32
    %c0_i32_0 = arith.constant 0 : i32
    %c0_i32_1 = arith.constant 0 : i32
    return %c0_i32, %c0_i32_0 : i32, i32
  }
  func.func @transform_19(%arg0: i32) -> (i32, i32) {
    %c0_i32 = arith.constant 0 : i32
    %c0_i32_0 = arith.constant 0 : i32
    %c0_i32_1 = arith.constant 0 : i32
    return %c0_i32, %c0_i32_0 : i32, i32
  }
  func.func @transform_20(%arg0: i32) -> (i32, i32) {
    %c0_i32 = arith.constant 0 : i32
    %c0_i32_0 = arith.constant 0 : i32
    %c0_i32_1 = arith.constant 0 : i32
    return %c0_i32, %c0_i32_0 : i32, i32
  }
  func.func @transform_21(%arg0: i32) -> (i32, i32) {
    %c0_i32 = arith.constant 0 : i32
    %c0_i32_0 = arith.constant 0 : i32
    %c0_i32_1 = arith.constant 0 : i32
    return %c0_i32, %c0_i32_0 : i32, i32
  }
  func.func @transform_22(%arg0: i32) -> (i32, i32) {
    %c0_i32 = arith.constant 0 : i32
    %c0_i32_0 = arith.constant 0 : i32
    %c0_i32_1 = arith.constant 0 : i32
    return %c0_i32, %c0_i32_0 : i32, i32
  }
  func.func @transform_23(%arg0: i32) -> (i32, i32) {
    %c0_i32 = arith.constant 0 : i32
    %c0_i32_0 = arith.constant 0 : i32
    %c0_i32_1 = arith.constant 0 : i32
    return %c0_i32, %c0_i32_0 : i32, i32
  }
  func.func @transform_24(%arg0: i32) -> (i32, i32, i32) {
    %c0_i32 = arith.constant 0 : i32
    %c0_i32_0 = arith.constant 0 : i32
    %c0_i32_1 = arith.constant 0 : i32
    return %arg0, %c0_i32, %c0_i32_0 : i32, i32, i32
  }
  func.func @transform_25(%arg0: i32) -> (i32, i32, i32) {
    %c0_i32 = arith.constant 0 : i32
    %c0_i32_0 = arith.constant 0 : i32
    %c0_i32_1 = arith.constant 0 : i32
    return %arg0, %c0_i32, %c0_i32_0 : i32, i32, i32
  }
}

</mosaic_0001>

<llo_original>
// kernel: tpu_custom_call.1
$region0: #{tpu_custom_call.1}
  #allocation0 [shape = 'u32[]', space=smem, size = 0x4, offset = 0x4, fixed_abs, tag = 'smem constant byte address 0x4 - core index']
  #allocation1 [shape = 'u32[144,128]{1,0:T(1,128)}', space=vmem, size = 0x12000, scoped, tag = 'internal scratch']
  #allocation2 [shape = 'f32[272,32]{1,0:T(8,128)}', space=vmem, size = 0x22000, scoped, tag = 'scratch operand']
  #allocation3 [shape = 'f32[144,32]{1,0:T(8,128)}', space=vmem, size = 0x12000, scoped, tag = 'scratch operand']
  #allocation4 [shape = 'f32[40,32]{1,0:T(8,128)}', space=vmem, size = 0x5000, scoped, tag = 'scratch operand']
  %s0 = inlined_call_operand.vmem [shape: f32[2,784,4], index: 0, kind: input, shape index: {}]
  %s1 = inlined_call_operand.vmem [shape: f32[3,4,32], index: 1, kind: input, shape index: {}]
  %s2 = inlined_call_operand.vmem [shape: f32[5,3,32,32], index: 2, kind: input, shape index: {}]
  %s3 = inlined_call_operand.vmem [shape: f32[6,32], index: 3, kind: input, shape index: {}]
  %s4 = inlined_call_operand.vmem [shape: f32[6,32], index: 4, kind: input, shape index: {}]
  %s5 = inlined_call_operand.vmem [shape: f32[6,32], index: 5, kind: input, shape index: {}]
  %s6 = inlined_call_operand.vmem [shape: f32[32,32], index: 6, kind: input, shape index: {}]
  %s7 = inlined_call_operand.vmem [shape: f32[32,32], index: 7, kind: input, shape index: {}]
  %s8 = inlined_call_operand.vmem [shape: f32[32,32], index: 8, kind: input, shape index: {}]
  %s9 = inlined_call_operand.vmem [shape: f32[25,32], index: 9, kind: input, shape index: {}]
  %s10 = inlined_call_operand.vmem [shape: f32[25,32], index: 10, kind: input, shape index: {}]
  %s11 = inlined_call_operand.vmem [shape: f32[1,32], index: 11, kind: input, shape index: {}]
  %s12 = inlined_call_operand.vmem [shape: f32[1,32], index: 12, kind: input, shape index: {}]
  %s13 = inlined_call_operand.vmem [shape: f32[1,32], index: 13, kind: input, shape index: {}]
  %s14 = inlined_call_operand.vmem [shape: f32[32,96], index: 14, kind: input, shape index: {}]
  %s15 = inlined_call_operand.vmem [shape: f32[1,96], index: 15, kind: input, shape index: {}]
  %s16 = inlined_call_operand.vmem [shape: f32[4,8], index: 16, kind: input, shape index: {}]
  %s17 = inlined_call_operand.vmem [shape: f32[4,96,128], index: 17, kind: input, shape index: {}]
  %s18 = inlined_call_operand.vmem [shape: f32[1,128], index: 18, kind: input, shape index: {}]
  %s19 = inlined_call_operand.vmem [shape: f32[1,128], index: 19, kind: input, shape index: {}]
  %s20 = inlined_call_operand.vmem [shape: f32[128,64], index: 20, kind: input, shape index: {}]
  %s21 = inlined_call_operand.vmem [shape: f32[1,64], index: 21, kind: input, shape index: {}]
  %s22 = inlined_call_operand.vmem [shape: f32[64,3], index: 22, kind: input, shape index: {}]
  %s23 = inlined_call_operand.vmem [shape: f32[1,3], index: 23, kind: input, shape index: {}]
  %s24 = inlined_call_operand.hbm [shape: f32[2,1,3], index: 24, kind: output, shape index: {0}]
  %s25 = inlined_call_operand.hbm [shape: f32[2,1,128], index: 25, kind: output, shape index: {1}]
  %26 = xla_tuple %s24, %s25
  %s27 = sld [smem:[#allocation0]]
  $region137: #{tpu_custom_call.1} parent=0
    _
  %s29 = ssub.s32 1, %s27
  %s30 = scalar_select 0, %s29, %s27
  $region1: #{tpu_custom_call.1} parent=0
    #allocation5 [shape = 'u8[1024]{0}', space=vmem, size = 0x400, scoped, tag = 'output window, operand 0']
    #allocation6 [shape = 's32[2]{0}', space=sflag, size = 0x8, scoped, tag = 'scoped memory for tpu_custom_call.1']
    #allocation7 [shape = 'u8[1024]{0}', space=vmem, size = 0x400, scoped, tag = 'output window, operand 1']
    #allocation8 [shape = 's32[2]{0}', space=sflag, size = 0x8, scoped, tag = 'scoped memory for tpu_custom_call.1']
    %31 = vsyncpa [#allocation6], 0
    %s32 = scalar_lea.sflag [#allocation6], 1
    %33 = vsyncpa %s32, 0
    %34 = vsyncpa [#allocation8], 0
    %s35 = scalar_lea.sflag [#allocation8], 1
    %36 = vsyncpa %s35, 0
    loop: start=0, step=1, limit=4
    $region2: #{tpu_custom_call.1} parent=1 // loop_pre_header
      _
    $region3: #{tpu_custom_call.1} parent=1 // loop_header
      %s38 = sphi 0, %s42
      %p39 = scmp.ge.s32.totalorder %s38, 4
      %s48 = sphi 0, %s50
      %s51 = sphi 0, %s48
      %s52 = sphi 0, %s51
      %s68 = sphi 0, %s52
      %s72 = sphi 0, %s72
      %s74 = sphi 0, %s72
      %s75 = sphi 0, %s74
      %s89 = sphi 0, %s75
      %s93 = sphi 0, %s93
      %s95 = sphi 0, %s93
      %s96 = sphi 0, %s95
      %s110 = sphi 0, %s96
      %s114 = sphi 0, %s114
      %s116 = sphi 0, %s114
      %s117 = sphi 0, %s116
      %s131 = sphi 0, %s117
      %s135 = sphi 0, %s135
      %s137 = sphi 0, %s135
      %s138 = sphi 0, %s137
      %s152 = sphi 0, %s138
      %s156 = sphi 0, %s156
      %s158 = sphi 0, %s156
      %s159 = sphi 0, %s158
      %s173 = sphi 0, %s159
      %s177 = sphi 0, %s177
      %s179 = sphi 0, %s177
      %s180 = sphi 0, %s179
      %s194 = sphi 0, %s180
      %s198 = sphi 0, %s198
      %s200 = sphi 0, %s198
      %s201 = sphi 0, %s200
      %s215 = sphi 0, %s201
      %s219 = sphi 0, %s219
      %s221 = sphi 0, %s219
      %s222 = sphi 0, %s221
      %s236 = sphi 0, %s222
      %s240 = sphi 0, %s240
      %s242 = sphi 0, %s240
      %s243 = sphi 0, %s242
      %s257 = sphi 0, %s243
      %s261 = sphi 0, %s261
      %s263 = sphi 0, %s261
      %s264 = sphi 0, %s263
      %s278 = sphi 0, %s264
      %s282 = sphi 0, %s282
      %s284 = sphi 0, %s282
      %s285 = sphi 0, %s284
      %s299 = sphi 0, %s285
      %s303 = sphi 0, %s303
      %s305 = sphi 0, %s303
      %s306 = sphi 0, %s305
      %s320 = sphi 0, %s306
      %s324 = sphi 0, %s324
      %s326 = sphi 0, %s324
      %s327 = sphi 0, %s326
      %s341 = sphi 0, %s327
      %s345 = sphi 0, %s345
      %s347 = sphi 0, %s345
      %s348 = sphi 0, %s347
      %s362 = sphi 0, %s348
      %s366 = sphi 0, %s366
      %s368 = sphi 0, %s366
      %s369 = sphi 0, %s368
      %s383 = sphi 0, %s369
      %s387 = sphi 0, %s387
      %s389 = sphi 0, %s387
      %s390 = sphi 0, %s389
      %s404 = sphi 0, %s390
      %s408 = sphi 0, %s408
      %s410 = sphi 0, %s408
      %s411 = sphi 0, %s410
      %s425 = sphi 0, %s411
      %s429 = sphi 0, %s429
      %s431 = sphi 0, %s429
      %s432 = sphi 0, %s431
      %s446 = sphi 0, %s432
      %s450 = sphi 0, %s450
      %s452 = sphi 0, %s450
      %s453 = sphi 0, %s452
      %s467 = sphi 0, %s453
      %s471 = sphi 0, %s471
      %s473 = sphi 0, %s471
      %s474 = sphi 0, %s473
      %s488 = sphi 0, %s474
      %s492 = sphi 0, %s492
      %s494 = sphi 0, %s492
      %s495 = sphi 0, %s494
      %s509 = sphi 0, %s495
      %s513 = sphi 0, %s513
      %s515 = sphi 0, %s513
      %s516 = sphi 0, %s515
      %s530 = sphi 0, %s516
      %s534 = sphi 0, %s534
      %s536 = sphi 0, %s534
      %s537 = sphi 0, %s536
      %s551 = sphi 0, %s537
      %s557 = sphi 0, %s559
      %s560 = sphi 0, %s557
      %s561 = sphi 0, %s560
      %s577 = sphi 0, %s561
      %s583 = sphi 0, %s585
      %s586 = sphi 0, %s583
      %s587 = sphi 0, %s586
      %s603 = sphi 0, %s587
    $region4: #{tpu_custom_call.1} parent=1 // loop_header_branch
      %41 = sbr.rel (%p39) target = $region8
    $region5: #{tpu_custom_call.1} parent=1 // loop_body
      %s43 = ssub.s32 %s38, 1
      %s44 = ssub.s32 %s38, 2
      %s45 = sadd.s32 %s38, 1
      %s46 = ssub.s32 %s38, %s45
      %p47 = scmp.eq.s32.totalorder %s46, 0
      %s49 = sadd.s32 %s48, 1
      %s50 = scalar_select %p47, %s48, %s49
      %p53 = pneg %p47
      %p54 = scmp.eq.s32.totalorder %s38, 1
      %p55 = por %p53, %p54
      %p56 = scmp.ne.s32.totalorder %s48, %s51
      %p57 = scmp.eq.s32.totalorder %s38, 0
      %p58 = por %p56, %p57
      %p59 = scmp.ne.s32.totalorder %s48, %s51
      %p60 = scmp.eq.s32.totalorder %s43, 1
      %p61 = por %p59, %p60
      %p62 = scmp.ne.s32.totalorder %s51, %s52
      %p63 = scmp.eq.s32.totalorder %s43, 0
      %p64 = por %p62, %p63
      %p65 = scmp.ne.s32.totalorder %s51, %s52
      %p66 = scmp.eq.s32.totalorder %s44, 1
      %p67 = por %p65, %p66
      %p69 = scmp.ne.s32.totalorder %s52, %s68
      %p70 = scmp.eq.s32.totalorder %s44, 0
      %p71 = por %p69, %p70
      %s73 = sadd.s32 %s72, 1
      %p76 = scmp.eq.s32.totalorder %s38, 1
      %p77 = scmp.ne.s32.totalorder %s72, %s74
      %p78 = scmp.eq.s32.totalorder %s38, 0
      %p79 = por %p77, %p78
      %p80 = scmp.ne.s32.totalorder %s72, %s74
      %p81 = scmp.eq.s32.totalorder %s43, 1
      %p82 = por %p80, %p81
      %p83 = scmp.ne.s32.totalorder %s74, %s75
      %p84 = scmp.eq.s32.totalorder %s43, 0
      %p85 = por %p83, %p84
      %p86 = scmp.ne.s32.totalorder %s74, %s75
      %p87 = scmp.eq.s32.totalorder %s44, 1
      %p88 = por %p86, %p87
      %p90 = scmp.ne.s32.totalorder %s75, %s89
      %p91 = scmp.eq.s32.totalorder %s44, 0
      %p92 = por %p90, %p91
      %s94 = sadd.s32 %s93, 1
      %p97 = scmp.eq.s32.totalorder %s38, 1
      %p98 = scmp.ne.s32.totalorder %s93, %s95
      %p99 = scmp.eq.s32.totalorder %s38, 0
      %p100 = por %p98, %p99
      %p101 = scmp.ne.s32.totalorder %s93, %s95
      %p102 = scmp.eq.s32.totalorder %s43, 1
      %p103 = por %p101, %p102
      %p104 = scmp.ne.s32.totalorder %s95, %s96
      %p105 = scmp.eq.s32.totalorder %s43, 0
      %p106 = por %p104, %p105
      %p107 = scmp.ne.s32.totalorder %s95, %s96
      %p108 = scmp.eq.s32.totalorder %s44, 1
      %p109 = por %p107, %p108
      %p111 = scmp.ne.s32.totalorder %s96, %s110
      %p112 = scmp.eq.s32.totalorder %s44, 0
      %p113 = por %p111, %p112
      %s115 = sadd.s32 %s114, 1
      %p118 = scmp.eq.s32.totalorder %s38, 1
      %p119 = scmp.ne.s32.totalorder %s114, %s116
      %p120 = scmp.eq.s32.totalorder %s38, 0
      %p121 = por %p119, %p120
      %p122 = scmp.ne.s32.totalorder %s114, %s116
      %p123 = scmp.eq.s32.totalorder %s43, 1
      %p124 = por %p122, %p123
      %p125 = scmp.ne.s32.totalorder %s116, %s117
      %p126 = scmp.eq.s32.totalorder %s43, 0
      %p127 = por %p125, %p126
      %p128 = scmp.ne.s32.totalorder %s116, %s117
      %p129 = scmp.eq.s32.totalorder %s44, 1
      %p130 = por %p128, %p129
      %p132 = scmp.ne.s32.totalorder %s117, %s131
      %p133 = scmp.eq.s32.totalorder %s44, 0
      %p134 = por %p132, %p133
      %s136 = sadd.s32 %s135, 1
      %p139 = scmp.eq.s32.totalorder %s38, 1
      %p140 = scmp.ne.s32.totalorder %s135, %s137
      %p141 = scmp.eq.s32.totalorder %s38, 0
      %p142 = por %p140, %p141
      %p143 = scmp.ne.s32.totalorder %s135, %s137
      %p144 = scmp.eq.s32.totalorder %s43, 1
      %p145 = por %p143, %p144
      %p146 = scmp.ne.s32.totalorder %s137, %s138
      %p147 = scmp.eq.s32.totalorder %s43, 0
      %p148 = por %p146, %p147
      %p149 = scmp.ne.s32.totalorder %s137, %s138
      %p150 = scmp.eq.s32.totalorder %s44, 1
      %p151 = por %p149, %p150
      %p153 = scmp.ne.s32.totalorder %s138, %s152
      %p154 = scmp.eq.s32.totalorder %s44, 0
      %p155 = por %p153, %p154
      %s157 = sadd.s32 %s156, 1
      %p160 = scmp.eq.s32.totalorder %s38, 1
      %p161 = scmp.ne.s32.totalorder %s156, %s158
      %p162 = scmp.eq.s32.totalorder %s38, 0
      %p163 = por %p161, %p162
      %p164 = scmp.ne.s32.totalorder %s156, %s158
      %p165 = scmp.eq.s32.totalorder %s43, 1
      %p166 = por %p164, %p165
      %p167 = scmp.ne.s32.totalorder %s158, %s159
      %p168 = scmp.eq.s32.totalorder %s43, 0
      %p169 = por %p167, %p168
      %p170 = scmp.ne.s32.totalorder %s158, %s159
      %p171 = scmp.eq.s32.totalorder %s44, 1
      %p172 = por %p170, %p171
      %p174 = scmp.ne.s32.totalorder %s159, %s173
      %p175 = scmp.eq.s32.totalorder %s44, 0
      %p176 = por %p174, %p175
      %s178 = sadd.s32 %s177, 1
      %p181 = scmp.eq.s32.totalorder %s38, 1
      %p182 = scmp.ne.s32.totalorder %s177, %s179
      %p183 = scmp.eq.s32.totalorder %s38, 0
      %p184 = por %p182, %p183
      %p185 = scmp.ne.s32.totalorder %s177, %s179
      %p186 = scmp.eq.s32.totalorder %s43, 1
      %p187 = por %p185, %p186
      %p188 = scmp.ne.s32.totalorder %s179, %s180
      %p189 = scmp.eq.s32.totalorder %s43, 0
      %p190 = por %p188, %p189
      %p191 = scmp.ne.s32.totalorder %s179, %s180
      %p192 = scmp.eq.s32.totalorder %s44, 1
      %p193 = por %p191, %p192
      %p195 = scmp.ne.s32.totalorder %s180, %s194
      %p196 = scmp.eq.s32.totalorder %s44, 0
      %p197 = por %p195, %p196
      %s199 = sadd.s32 %s198, 1
      %p202 = scmp.eq.s32.totalorder %s38, 1
      %p203 = scmp.ne.s32.totalorder %s198, %s200
      %p204 = scmp.eq.s32.totalorder %s38, 0
      %p205 = por %p203, %p204
      %p206 = scmp.ne.s32.totalorder %s198, %s200
      %p207 = scmp.eq.s32.totalorder %s43, 1
      %p208 = por %p206, %p207
      %p209 = scmp.ne.s32.totalorder %s200, %s201
      %p210 = scmp.eq.s32.totalorder %s43, 0
      %p211 = por %p209, %p210
      %p212 = scmp.ne.s32.totalorder %s200, %s201
      %p213 = scmp.eq.s32.totalorder %s44, 1
      %p214 = por %p212, %p213
      %p216 = scmp.ne.s32.totalorder %s201, %s215
      %p217 = scmp.eq.s32.totalorder %s44, 0
      %p218 = por %p216, %p217
      %s220 = sadd.s32 %s219, 1
      %p223 = scmp.eq.s32.totalorder %s38, 1
      %p224 = scmp.ne.s32.totalorder %s219, %s221
      %p225 = scmp.eq.s32.totalorder %s38, 0
      %p226 = por %p224, %p225
      %p227 = scmp.ne.s32.totalorder %s219, %s221
      %p228 = scmp.eq.s32.totalorder %s43, 1
      %p229 = por %p227, %p228
      %p230 = scmp.ne.s32.totalorder %s221, %s222
      %p231 = scmp.eq.s32.totalorder %s43, 0
      %p232 = por %p230, %p231
      %p233 = scmp.ne.s32.totalorder %s221, %s222
      %p234 = scmp.eq.s32.totalorder %s44, 1
      %p235 = por %p233, %p234
      %p237 = scmp.ne.s32.totalorder %s222, %s236
      %p238 = scmp.eq.s32.totalorder %s44, 0
      %p239 = por %p237, %p238
      %s241 = sadd.s32 %s240, 1
      %p244 = scmp.eq.s32.totalorder %s38, 1
      %p245 = scmp.ne.s32.totalorder %s240, %s242
      %p246 = scmp.eq.s32.totalorder %s38, 0
      %p247 = por %p245, %p246
      %p248 = scmp.ne.s32.totalorder %s240, %s242
      %p249 = scmp.eq.s32.totalorder %s43, 1
      %p250 = por %p248, %p249
      %p251 = scmp.ne.s32.totalorder %s242, %s243
      %p252 = scmp.eq.s32.totalorder %s43, 0
      %p253 = por %p251, %p252
      %p254 = scmp.ne.s32.totalorder %s242, %s243
      %p255 = scmp.eq.s32.totalorder %s44, 1
      %p256 = por %p254, %p255
      %p258 = scmp.ne.s32.totalorder %s243, %s257
      %p259 = scmp.eq.s32.totalorder %s44, 0
      %p260 = por %p258, %p259
      %s262 = sadd.s32 %s261, 1
      %p265 = scmp.eq.s32.totalorder %s38, 1
      %p266 = scmp.ne.s32.totalorder %s261, %s263
      %p267 = scmp.eq.s32.totalorder %s38, 0
      %p268 = por %p266, %p267
      %p269 = scmp.ne.s32.totalorder %s261, %s263
      %p270 = scmp.eq.s32.totalorder %s43, 1
      %p271 = por %p269, %p270
      %p272 = scmp.ne.s32.totalorder %s263, %s264
      %p273 = scmp.eq.s32.totalorder %s43, 0
      %p274 = por %p272, %p273
      %p275 = scmp.ne.s32.totalorder %s263, %s264
      %p276 = scmp.eq.s32.totalorder %s44, 1
      %p277 = por %p275, %p276
      %p279 = scmp.ne.s32.totalorder %s264, %s278
      %p280 = scmp.eq.s32.totalorder %s44, 0
      %p281 = por %p279, %p280
      %s283 = sadd.s32 %s282, 1
      %p286 = scmp.eq.s32.totalorder %s38, 1
      %p287 = scmp.ne.s32.totalorder %s282, %s284
      %p288 = scmp.eq.s32.totalorder %s38, 0
      %p289 = por %p287, %p288
      %p290 = scmp.ne.s32.totalorder %s282, %s284
      %p291 = scmp.eq.s32.totalorder %s43, 1
      %p292 = por %p290, %p291
      %p293 = scmp.ne.s32.totalorder %s284, %s285
      %p294 = scmp.eq.s32.totalorder %s43, 0
      %p295 = por %p293, %p294
      %p296 = scmp.ne.s32.totalorder %s284, %s285
      %p297 = scmp.eq.s32.totalorder %s44, 1
      %p298 = por %p296, %p297
      %p300 = scmp.ne.s32.totalorder %s285, %s299
      %p301 = scmp.eq.s32.totalorder %s44, 0
      %p302 = por %p300, %p301
      %s304 = sadd.s32 %s303, 1
      %p307 = scmp.eq.s32.totalorder %s38, 1
      %p308 = scmp.ne.s32.totalorder %s303, %s305
      %p309 = scmp.eq.s32.totalorder %s38, 0
      %p310 = por %p308, %p309
      %p311 = scmp.ne.s32.totalorder %s303, %s305
      %p312 = scmp.eq.s32.totalorder %s43, 1
      %p313 = por %p311, %p312
      %p314 = scmp.ne.s32.totalorder %s305, %s306
      %p315 = scmp.eq.s32.totalorder %s43, 0
      %p316 = por %p314, %p315
      %p317 = scmp.ne.s32.totalorder %s305, %s306
      %p318 = scmp.eq.s32.totalorder %s44, 1
      %p319 = por %p317, %p318
      %p321 = scmp.ne.s32.totalorder %s306, %s320
      %p322 = scmp.eq.s32.totalorder %s44, 0
      %p323 = por %p321, %p322
      %s325 = sadd.s32 %s324, 1
      %p328 = scmp.eq.s32.totalorder %s38, 1
      %p329 = scmp.ne.s32.totalorder %s324, %s326
      %p330 = scmp.eq.s32.totalorder %s38, 0
      %p331 = por %p329, %p330
      %p332 = scmp.ne.s32.totalorder %s324, %s326
      %p333 = scmp.eq.s32.totalorder %s43, 1
      %p334 = por %p332, %p333
      %p335 = scmp.ne.s32.totalorder %s326, %s327
      %p336 = scmp.eq.s32.totalorder %s43, 0
      %p337 = por %p335, %p336
      %p338 = scmp.ne.s32.totalorder %s326, %s327
      %p339 = scmp.eq.s32.totalorder %s44, 1
      %p340 = por %p338, %p339
      %p342 = scmp.ne.s32.totalorder %s327, %s341
      %p343 = scmp.eq.s32.totalorder %s44, 0
      %p344 = por %p342, %p343
      %s346 = sadd.s32 %s345, 1
      %p349 = scmp.eq.s32.totalorder %s38, 1
      %p350 = scmp.ne.s32.totalorder %s345, %s347
      %p351 = scmp.eq.s32.totalorder %s38, 0
      %p352 = por %p350, %p351
      %p353 = scmp.ne.s32.totalorder %s345, %s347
      %p354 = scmp.eq.s32.totalorder %s43, 1
      %p355 = por %p353, %p354
      %p356 = scmp.ne.s32.totalorder %s347, %s348
      %p357 = scmp.eq.s32.totalorder %s43, 0
      %p358 = por %p356, %p357
      %p359 = scmp.ne.s32.totalorder %s347, %s348
      %p360 = scmp.eq.s32.totalorder %s44, 1
      %p361 = por %p359, %p360
      %p363 = scmp.ne.s32.totalorder %s348, %s362
      %p364 = scmp.eq.s32.totalorder %s44, 0
      %p365 = por %p363, %p364
      %s367 = sadd.s32 %s366, 1
      %p370 = scmp.eq.s32.totalorder %s38, 1
      %p371 = scmp.ne.s32.totalorder %s366, %s368
      %p372 = scmp.eq.s32.totalorder %s38, 0
      %p373 = por %p371, %p372
      %p374 = scmp.ne.s32.totalorder %s366, %s368
      %p375 = scmp.eq.s32.totalorder %s43, 1
      %p376 = por %p374, %p375
      %p377 = scmp.ne.s32.totalorder %s368, %s369
      %p378 = scmp.eq.s32.totalorder %s43, 0
      %p379 = por %p377, %p378
      %p380 = scmp.ne.s32.totalorder %s368, %s369
      %p381 = scmp.eq.s32.totalorder %s44, 1
      %p382 = por %p380, %p381
      %p384 = scmp.ne.s32.totalorder %s369, %s383
      %p385 = scmp.eq.s32.totalorder %s44, 0
      %p386 = por %p384, %p385
      %s388 = sadd.s32 %s387, 1
      %p391 = scmp.eq.s32.totalorder %s38, 1
      %p392 = scmp.ne.s32.totalorder %s387, %s389
      %p393 = scmp.eq.s32.totalorder %s38, 0
      %p394 = por %p392, %p393
      %p395 = scmp.ne.s32.totalorder %s387, %s389
      %p396 = scmp.eq.s32.totalorder %s43, 1
      %p397 = por %p395, %p396
      %p398 = scmp.ne.s32.totalorder %s389, %s390
      %p399 = scmp.eq.s32.totalorder %s43, 0
      %p400 = por %p398, %p399
      %p401 = scmp.ne.s32.totalorder %s389, %s390
      %p402 = scmp.eq.s32.totalorder %s44, 1
      %p403 = por %p401, %p402
      %p405 = scmp.ne.s32.totalorder %s390, %s404
      %p406 = scmp.eq.s32.totalorder %s44, 0
      %p407 = por %p405, %p406
      %s409 = sadd.s32 %s408, 1
      %p412 = scmp.eq.s32.totalorder %s38, 1
      %p413 = scmp.ne.s32.totalorder %s408, %s410
      %p414 = scmp.eq.s32.totalorder %s38, 0
      %p415 = por %p413, %p414
      %p416 = scmp.ne.s32.totalorder %s408, %s410
      %p417 = scmp.eq.s32.totalorder %s43, 1
      %p418 = por %p416, %p417
      %p419 = scmp.ne.s32.totalorder %s410, %s411
      %p420 = scmp.eq.s32.totalorder %s43, 0
      %p421 = por %p419, %p420
      %p422 = scmp.ne.s32.totalorder %s410, %s411
      %p423 = scmp.eq.s32.totalorder %s44, 1
      %p424 = por %p422, %p423
      %p426 = scmp.ne.s32.totalorder %s411, %s425
      %p427 = scmp.eq.s32.totalorder %s44, 0
      %p428 = por %p426, %p427
      %s430 = sadd.s32 %s429, 1
      %p433 = scmp.eq.s32.totalorder %s38, 1
      %p434 = scmp.ne.s32.totalorder %s429, %s431
      %p435 = scmp.eq.s32.totalorder %s38, 0
      %p436 = por %p434, %p435
      %p437 = scmp.ne.s32.totalorder %s429, %s431
      %p438 = scmp.eq.s32.totalorder %s43, 1
      %p439 = por %p437, %p438
      %p440 = scmp.ne.s32.totalorder %s431, %s432
      %p441 = scmp.eq.s32.totalorder %s43, 0
      %p442 = por %p440, %p441
      %p443 = scmp.ne.s32.totalorder %s431, %s432
      %p444 = scmp.eq.s32.totalorder %s44, 1
      %p445 = por %p443, %p444
      %p447 = scmp.ne.s32.totalorder %s432, %s446
      %p448 = scmp.eq.s32.totalorder %s44, 0
      %p449 = por %p447, %p448
      %s451 = sadd.s32 %s450, 1
      %p454 = scmp.eq.s32.totalorder %s38, 1
      %p455 = scmp.ne.s32.totalorder %s450, %s452
      %p456 = scmp.eq.s32.totalorder %s38, 0
      %p457 = por %p455, %p456
      %p458 = scmp.ne.s32.totalorder %s450, %s452
      %p459 = scmp.eq.s32.totalorder %s43, 1
      %p460 = por %p458, %p459
      %p461 = scmp.ne.s32.totalorder %s452, %s453
      %p462 = scmp.eq.s32.totalorder %s43, 0
      %p463 = por %p461, %p462
      %p464 = scmp.ne.s32.totalorder %s452, %s453
      %p465 = scmp.eq.s32.totalorder %s44, 1
      %p466 = por %p464, %p465
      %p468 = scmp.ne.s32.totalorder %s453, %s467
      %p469 = scmp.eq.s32.totalorder %s44, 0
      %p470 = por %p468, %p469
      %s472 = sadd.s32 %s471, 1
      %p475 = scmp.eq.s32.totalorder %s38, 1
      %p476 = scmp.ne.s32.totalorder %s471, %s473
      %p477 = scmp.eq.s32.totalorder %s38, 0
      %p478 = por %p476, %p477
      %p479 = scmp.ne.s32.totalorder %s471, %s473
      %p480 = scmp.eq.s32.totalorder %s43, 1
      %p481 = por %p479, %p480
      %p482 = scmp.ne.s32.totalorder %s473, %s474
      %p483 = scmp.eq.s32.totalorder %s43, 0
      %p484 = por %p482, %p483
      %p485 = scmp.ne.s32.totalorder %s473, %s474
      %p486 = scmp.eq.s32.totalorder %s44, 1
      %p487 = por %p485, %p486
      %p489 = scmp.ne.s32.totalorder %s474, %s488
      %p490 = scmp.eq.s32.totalorder %s44, 0
      %p491 = por %p489, %p490
      %s493 = sadd.s32 %s492, 1
      %p496 = scmp.eq.s32.totalorder %s38, 1
      %p497 = scmp.ne.s32.totalorder %s492, %s494
      %p498 = scmp.eq.s32.totalorder %s38, 0
      %p499 = por %p497, %p498
      %p500 = scmp.ne.s32.totalorder %s492, %s494
      %p501 = scmp.eq.s32.totalorder %s43, 1
      %p502 = por %p500, %p501
      %p503 = scmp.ne.s32.totalorder %s494, %s495
      %p504 = scmp.eq.s32.totalorder %s43, 0
      %p505 = por %p503, %p504
      %p506 = scmp.ne.s32.totalorder %s494, %s495
      %p507 = scmp.eq.s32.totalorder %s44, 1
      %p508 = por %p506, %p507
      %p510 = scmp.ne.s32.totalorder %s495, %s509
      %p511 = scmp.eq.s32.totalorder %s44, 0
      %p512 = por %p510, %p511
      %s514 = sadd.s32 %s513, 1
      %p517 = scmp.eq.s32.totalorder %s38, 1
      %p518 = scmp.ne.s32.totalorder %s513, %s515
      %p519 = scmp.eq.s32.totalorder %s38, 0
      %p520 = por %p518, %p519
      %p521 = scmp.ne.s32.totalorder %s513, %s515
      %p522 = scmp.eq.s32.totalorder %s43, 1
      %p523 = por %p521, %p522
      %p524 = scmp.ne.s32.totalorder %s515, %s516
      %p525 = scmp.eq.s32.totalorder %s43, 0
      %p526 = por %p524, %p525
      %p527 = scmp.ne.s32.totalorder %s515, %s516
      %p528 = scmp.eq.s32.totalorder %s44, 1
      %p529 = por %p527, %p528
      %p531 = scmp.ne.s32.totalorder %s516, %s530
      %p532 = scmp.eq.s32.totalorder %s44, 0
      %p533 = por %p531, %p532
      %s535 = sadd.s32 %s534, 1
      %p538 = scmp.eq.s32.totalorder %s38, 1
      %p539 = scmp.ne.s32.totalorder %s534, %s536
      %p540 = scmp.eq.s32.totalorder %s38, 0
      %p541 = por %p539, %p540
      %p542 = scmp.ne.s32.totalorder %s534, %s536
      %p543 = scmp.eq.s32.totalorder %s43, 1
      %p544 = por %p542, %p543
      %p545 = scmp.ne.s32.totalorder %s536, %s537
      %p546 = scmp.eq.s32.totalorder %s43, 0
      %p547 = por %p545, %p546
      %p548 = scmp.ne.s32.totalorder %s536, %s537
      %p549 = scmp.eq.s32.totalorder %s44, 1
      %p550 = por %p548, %p549
      %p552 = scmp.ne.s32.totalorder %s537, %s551
      %p553 = scmp.eq.s32.totalorder %s44, 0
      %p554 = por %p552, %p553
      %s555 = ssub.s32 %s38, %s45
      %p556 = scmp.eq.s32.totalorder %s555, 0
      %s558 = sadd.s32 %s557, 1
      %s559 = scalar_select %p556, %s557, %s558
      %p562 = pneg %p556
      %p563 = scmp.eq.s32.totalorder %s38, 1
      %p564 = por %p562, %p563
      %p565 = scmp.ne.s32.totalorder %s557, %s560
      %p566 = scmp.eq.s32.totalorder %s38, 0
      %p567 = por %p565, %p566
      %p568 = scmp.ne.s32.totalorder %s557, %s560
      %p569 = scmp.eq.s32.totalorder %s43, 1
      %p570 = por %p568, %p569
      %p571 = scmp.ne.s32.totalorder %s560, %s561
      %p572 = scmp.eq.s32.totalorder %s43, 0
      %p573 = por %p571, %p572
      %p574 = scmp.ne.s32.totalorder %s560, %s561
      %p575 = scmp.eq.s32.totalorder %s44, 1
      %p576 = por %p574, %p575
      %p578 = scmp.ne.s32.totalorder %s561, %s577
      %p579 = scmp.eq.s32.totalorder %s44, 0
      %p580 = por %p578, %p579
      %s581 = ssub.s32 %s38, %s45
      %p582 = scmp.eq.s32.totalorder %s581, 0
      %s584 = sadd.s32 %s583, 1
      %s585 = scalar_select %p582, %s583, %s584
      %p588 = pneg %p582
      %p589 = scmp.eq.s32.totalorder %s38, 1
      %p590 = por %p588, %p589
      %p591 = scmp.ne.s32.totalorder %s583, %s586
      %p592 = scmp.eq.s32.totalorder %s38, 0
      %p593 = por %p591, %p592
      %p594 = scmp.ne.s32.totalorder %s583, %s586
      %p595 = scmp.eq.s32.totalorder %s43, 1
      %p596 = por %p594, %p595
      %p597 = scmp.ne.s32.totalorder %s586, %s587
      %p598 = scmp.eq.s32.totalorder %s43, 0
      %p599 = por %p597, %p598
      %p600 = scmp.ne.s32.totalorder %s586, %s587
      %p601 = scmp.eq.s32.totalorder %s44, 1
      %p602 = por %p600, %p601
      %p604 = scmp.ne.s32.totalorder %s587, %s603
      %p605 = scmp.eq.s32.totalorder %s44, 0
      %p606 = por %p604, %p605
      %p607 = scmp.le.s32.totalorder 1, %s38
      %p608 = scmp.lt.s32.totalorder %s38, 3
      %p609 = pnand %p607, %p608
      %p610 = pneg %p609
      // Predicated region
      $region9: #{tpu_custom_call.1} parent=5 // pred_check
        _
      $region10: #{tpu_custom_call.1} parent=5 // pred_check_branch
        %612 = sbr.rel (%p609) target = $region12
      $region11: #{tpu_custom_call.1} parent=5 // pred_region
        %s613 = ssub.s32 %s38, 1
        // Predicated region
        $region13: #{tpu_custom_call.1} parent=11 // pred_check
          %p614 = pneg %p85
        $region14: #{tpu_custom_call.1} parent=11 // pred_check_branch
          %616 = sbr.rel (%p614) target = $region16
        $region15: #{tpu_custom_call.1} parent=11 // pred_region
          _
        $region16: #{tpu_custom_call.1} parent=11 // pred_fallthru
          _
        // Predicated region
        $region17: #{tpu_custom_call.1} parent=11 // pred_check
          %p617 = pneg %p106
        $region18: #{tpu_custom_call.1} parent=11 // pred_check_branch
          %619 = sbr.rel (%p617) target = $region20
        $region19: #{tpu_custom_call.1} parent=11 // pred_region
          _
        $region20: #{tpu_custom_call.1} parent=11 // pred_fallthru
          _
        // Predicated region
        $region21: #{tpu_custom_call.1} parent=11 // pred_check
          %p620 = pneg %p127
        $region22: #{tpu_custom_call.1} parent=11 // pred_check_branch
          %622 = sbr.rel (%p620) target = $region24
        $region23: #{tpu_custom_call.1} parent=11 // pred_region
          _
        $region24: #{tpu_custom_call.1} parent=11 // pred_fallthru
          _
        // Predicated region
        $region25: #{tpu_custom_call.1} parent=11 // pred_check
          %p623 = pneg %p148
        $region26: #{tpu_custom_call.1} parent=11 // pred_check_branch
          %625 = sbr.rel (%p623) target = $region28
        $region27: #{tpu_custom_call.1} parent=11 // pred_region
          _
        $region28: #{tpu_custom_call.1} parent=11 // pred_fallthru
          _
        // Predicated region
        $region29: #{tpu_custom_call.1} parent=11 // pred_check
          %p626 = pneg %p169
        $region30: #{tpu_custom_call.1} parent=11 // pred_check_branch
          %628 = sbr.rel (%p626) target = $region32
        $region31: #{tpu_custom_call.1} parent=11 // pred_region
          _
        $region32: #{tpu_custom_call.1} parent=11 // pred_fallthru
          _
        // Predicated region
        $region33: #{tpu_custom_call.1} parent=11 // pred_check
          %p629 = pneg %p190
        $region34: #{tpu_custom_call.1} parent=11 // pred_check_branch
          %631 = sbr.rel (%p629) target = $region36
        $region35: #{tpu_custom_call.1} parent=11 // pred_region
          _
        $region36: #{tpu_custom_call.1} parent=11 // pred_fallthru
          _
        // Predicated region
        $region37: #{tpu_custom_call.1} parent=11 // pred_check
          %p632 = pneg %p211
        $region38: #{tpu_custom_call.1} parent=11 // pred_check_branch
          %634 = sbr.rel (%p632) target = $region40
        $region39: #{tpu_custom_call.1} parent=11 // pred_region
          _
        $region40: #{tpu_custom_call.1} parent=11 // pred_fallthru
          _
        // Predicated region
        $region41: #{tpu_custom_call.1} parent=11 // pred_check
          %p635 = pneg %p232
        $region42: #{tpu_custom_call.1} parent=11 // pred_check_branch
          %637 = sbr.rel (%p635) target = $region44
        $region43: #{tpu_custom_call.1} parent=11 // pred_region
          _
        $region44: #{tpu_custom_call.1} parent=11 // pred_fallthru
          _
        // Predicated region
        $region45: #{tpu_custom_call.1} parent=11 // pred_check
          %p638 = pneg %p253
        $region46: #{tpu_custom_call.1} parent=11 // pred_check_branch
          %640 = sbr.rel (%p638) target = $region48
        $region47: #{tpu_custom_call.1} parent=11 // pred_region
          _
        $region48: #{tpu_custom_call.1} parent=11 // pred_fallthru
          _
        // Predicated region
        $region49: #{tpu_custom_call.1} parent=11 // pred_check
          %p641 = pneg %p274
        $region50: #{tpu_custom_call.1} parent=11 // pred_check_branch
          %643 = sbr.rel (%p641) target = $region52
        $region51: #{tpu_custom_call.1} parent=11 // pred_region
          _
        $region52: #{tpu_custom_call.1} parent=11 // pred_fallthru
          _
        // Predicated region
        $region53: #{tpu_custom_call.1} parent=11 // pred_check
          %p644 = pneg %p295
        $region54: #{tpu_custom_call.1} parent=11 // pred_check_branch
          %646 = sbr.rel (%p644) target = $region56
        $region55: #{tpu_custom_call.1} parent=11 // pred_region
          _
        $region56: #{tpu_custom_call.1} parent=11 // pred_fallthru
          _
        // Predicated region
        $region57: #{tpu_custom_call.1} parent=11 // pred_check
          %p647 = pneg %p316
        $region58: #{tpu_custom_call.1} parent=11 // pred_check_branch
          %649 = sbr.rel (%p647) target = $region60
        $region59: #{tpu_custom_call.1} parent=11 // pred_region
          _
        $region60: #{tpu_custom_call.1} parent=11 // pred_fallthru
          _
        // Predicated region
        $region61: #{tpu_custom_call.1} parent=11 // pred_check
          %p650 = pneg %p337
        $region62: #{tpu_custom_call.1} parent=11 // pred_check_branch
          %652 = sbr.rel (%p650) target = $region64
        $region63: #{tpu_custom_call.1} parent=11 // pred_region
          _
        $region64: #{tpu_custom_call.1} parent=11 // pred_fallthru
          _
        // Predicated region
        $region65: #{tpu_custom_call.1} parent=11 // pred_check
          %p653 = pneg %p358
        $region66: #{tpu_custom_call.1} parent=11 // pred_check_branch
          %655 = sbr.rel (%p653) target = $region68
        $region67: #{tpu_custom_call.1} parent=11 // pred_region
          _
        $region68: #{tpu_custom_call.1} parent=11 // pred_fallthru
          _
        // Predicated region
        $region69: #{tpu_custom_call.1} parent=11 // pred_check
          %p656 = pneg %p379
        $region70: #{tpu_custom_call.1} parent=11 // pred_check_branch
          %658 = sbr.rel (%p656) target = $region72
        $region71: #{tpu_custom_call.1} parent=11 // pred_region
          _
        $region72: #{tpu_custom_call.1} parent=11 // pred_fallthru
          _
        // Predicated region
        $region73: #{tpu_custom_call.1} parent=11 // pred_check
          %p659 = pneg %p400
        $region74: #{tpu_custom_call.1} parent=11 // pred_check_branch
          %661 = sbr.rel (%p659) target = $region76
        $region75: #{tpu_custom_call.1} parent=11 // pred_region
          _
        $region76: #{tpu_custom_call.1} parent=11 // pred_fallthru
          _
        // Predicated region
        $region77: #{tpu_custom_call.1} parent=11 // pred_check
          %p662 = pneg %p421
        $region78: #{tpu_custom_call.1} parent=11 // pred_check_branch
          %664 = sbr.rel (%p662) target = $region80
        $region79: #{tpu_custom_call.1} parent=11 // pred_region
          _
        $region80: #{tpu_custom_call.1} parent=11 // pred_fallthru
          _
        // Predicated region
        $region81: #{tpu_custom_call.1} parent=11 // pred_check
          %p665 = pneg %p442
        $region82: #{tpu_custom_call.1} parent=11 // pred_check_branch
          %667 = sbr.rel (%p665) target = $region84
        $region83: #{tpu_custom_call.1} parent=11 // pred_region
          _
        $region84: #{tpu_custom_call.1} parent=11 // pred_fallthru
          _
        // Predicated region
        $region85: #{tpu_custom_call.1} parent=11 // pred_check
          %p668 = pneg %p463
        $region86: #{tpu_custom_call.1} parent=11 // pred_check_branch
          %670 = sbr.rel (%p668) target = $region88
        $region87: #{tpu_custom_call.1} parent=11 // pred_region
          _
        $region88: #{tpu_custom_call.1} parent=11 // pred_fallthru
          _
        // Predicated region
        $region89: #{tpu_custom_call.1} parent=11 // pred_check
          %p671 = pneg %p484
        $region90: #{tpu_custom_call.1} parent=11 // pred_check_branch
          %673 = sbr.rel (%p671) target = $region92
        $region91: #{tpu_custom_call.1} parent=11 // pred_region
          _
        $region92: #{tpu_custom_call.1} parent=11 // pred_fallthru
          _
        // Predicated region
        $region93: #{tpu_custom_call.1} parent=11 // pred_check
          %p674 = pneg %p505
        $region94: #{tpu_custom_call.1} parent=11 // pred_check_branch
          %676 = sbr.rel (%p674) target = $region96
        $region95: #{tpu_custom_call.1} parent=11 // pred_region
          _
        $region96: #{tpu_custom_call.1} parent=11 // pred_fallthru
          _
        // Predicated region
        $region97: #{tpu_custom_call.1} parent=11 // pred_check
          %p677 = pneg %p526
        $region98: #{tpu_custom_call.1} parent=11 // pred_check_branch
          %679 = sbr.rel (%p677) target = $region100
        $region99: #{tpu_custom_call.1} parent=11 // pred_region
          _
        $region100: #{tpu_custom_call.1} parent=11 // pred_fallthru
          _
        // Predicated region
        $region101: #{tpu_custom_call.1} parent=11 // pred_check
          %p680 = pneg %p547
        $region102: #{tpu_custom_call.1} parent=11 // pred_check_branch
          %682 = sbr.rel (%p680) target = $region104
        $region103: #{tpu_custom_call.1} parent=11 // pred_region
          _
        $region104: #{tpu_custom_call.1} parent=11 // pred_fallthru
          _
      $region12: #{tpu_custom_call.1} parent=5 // pred_fallthru
        _
      %p683 = scmp.lt.s32.totalorder %s38, 2
      // Predicated region
      $region105: #{tpu_custom_call.1} parent=5 // pred_check
        %p684 = pneg %p683
      $region106: #{tpu_custom_call.1} parent=5 // pred_check_branch
        %686 = sbr.rel (%p684) target = $region108
      $region107: #{tpu_custom_call.1} parent=5 // pred_region
        // Predicated region
        $region109: #{tpu_custom_call.1} parent=107 // pred_check
          %p687 = pneg %p58
        $region110: #{tpu_custom_call.1} parent=107 // pred_check_branch
          %689 = sbr.rel (%p687) target = $region112
        $region111: #{tpu_custom_call.1} parent=107 // pred_region
          %p690 = scmp.lt.s32.totalorder %s38, 1
          %s691 = scalar_select %p690, %s38, 1
          %s692 = smul.addr %s691, 98
          %s693 = smul.addr %s692, 8
          %s694 = scalar_lea.vmem %s0, %s693
        $region112: #{tpu_custom_call.1} parent=107 // pred_fallthru
          _
      $region108: #{tpu_custom_call.1} parent=5 // pred_fallthru
        _
      %p695 = scmp.le.s32.totalorder 1, %s38
      %p696 = scmp.lt.s32.totalorder %s38, 3
      %p697 = pnand %p695, %p696
      %p698 = pneg %p697
      // Predicated region
      $region113: #{tpu_custom_call.1} parent=5 // pred_check
        _
      $region114: #{tpu_custom_call.1} parent=5 // pred_check_branch
        %700 = sbr.rel (%p697) target = $region116
      $region115: #{tpu_custom_call.1} parent=5 // pred_region
        %s701 = ssub.s32 %s38, 1
        %p702 = scmp.lt.s32.totalorder %s43, 1
        %s703 = scalar_select %p702, %s43, 1
        %s704 = smul.addr %s703, 98
        %s705 = smul.addr %s704, 8
        %s706 = scalar_lea.vmem %s0, %s705
        %p707 = pneg %p64
        %p708 = pneg %p61
        %p709 = pneg %p85
        %p710 = pneg %p82
        %p711 = pneg %p106
        %p712 = pneg %p103
        %p713 = pneg %p127
        %p714 = pneg %p124
        %p715 = pneg %p148
        %p716 = pneg %p145
        %p717 = pneg %p169
        %p718 = pneg %p166
        %p719 = pneg %p190
        %p720 = pneg %p187
        %p721 = pneg %p211
        %p722 = pneg %p208
        %p723 = pneg %p232
        %p724 = pneg %p229
        %p725 = pneg %p253
        %p726 = pneg %p250
        %p727 = pneg %p274
        %p728 = pneg %p271
        %p729 = pneg %p295
        %p730 = pneg %p292
        %p731 = pneg %p316
        %p732 = pneg %p313
        %p733 = pneg %p337
        %p734 = pneg %p334
        %p735 = pneg %p358
        %p736 = pneg %p355
        %p737 = pneg %p379
        %p738 = pneg %p376
        %p739 = pneg %p400
        %p740 = pneg %p397
        %p741 = pneg %p421
        %p742 = pneg %p418
        %p743 = pneg %p442
        %p744 = pneg %p439
        %p745 = pneg %p463
        %p746 = pneg %p460
        %p747 = pneg %p484
        %p748 = pneg %p481
        %p749 = pneg %p505
        %p750 = pneg %p502
        %p751 = pneg %p526
        %p752 = pneg %p523
        %p753 = pneg %p547
        %p754 = pneg %p544
        %p755 = pneg %p573
        %p756 = pneg %p570
        %s757 = sand.u32 %s560, 1
        %s758 = scalar_lea.sflag [#allocation6], %s757
        %s759 = sand.u32 %s560, 1
        %s760 = scalar_lea.vmem [#allocation5], %s759
        %p761 = pneg %p599
        %p762 = pneg %p596
        %s763 = sand.u32 %s586, 1
        %s764 = scalar_lea.sflag [#allocation8], %s763
        %s765 = sand.u32 %s586, 1
        %s766 = scalar_lea.vmem [#allocation7], %s765
        %p767 = scmp.lt.s32.totalorder %s43, 1
        %s768 = scalar_select %p767, %s43, 1
        %s769 = smul.addr %s768, 98
        %s770 = smul.addr %s769, 8
        %s771 = scalar_lea.vmem %s0, %s770
        %v772 = vld [vmem:[%s3] sm:$0x1]
        %s773 = scalar_lea.vmem %s771, 7
        %v774 = vld [vmem:[%s773] ss:$3 sm:$0xff]
        %s775 = scalar_lea.vmem %s771, 31
        %v776 = vld [vmem:[%s775] ss:$3 sm:$0xff]
        %s777 = scalar_lea.vmem %s771, 55
        %v778 = vld [vmem:[%s777] ss:$3 sm:$0xff]
        %s779 = scalar_lea.vmem %s771, 79
        %v780 = vld [vmem:[%s779] ss:$3 sm:$0xff]
        %s781 = scalar_lea.vmem %s771, 103
        %v782 = vld [vmem:[%s781] ss:$3 sm:$0xff]
        %s783 = scalar_lea.vmem %s771, 127
        %v784 = vld [vmem:[%s783] ss:$3 sm:$0xff]
        %s785 = scalar_lea.vmem %s771, 151
        %v786 = vld [vmem:[%s785] ss:$3 sm:$0xff]
        %s787 = scalar_lea.vmem %s771, 175
        %v788 = vld [vmem:[%s787] ss:$3 sm:$0xff]
        %s789 = scalar_lea.vmem %s771, 199
        %v790 = vld [vmem:[%s789] ss:$3 sm:$0xff]
        %s791 = scalar_lea.vmem %s771, 223
        %v792 = vld [vmem:[%s791] ss:$3 sm:$0xff]
        %s793 = scalar_lea.vmem %s771, 247
        %v794 = vld [vmem:[%s793] ss:$3 sm:$0xff]
        %s795 = scalar_lea.vmem %s771, 271
        %v796 = vld [vmem:[%s795] ss:$3 sm:$0xff]
        %s797 = scalar_lea.vmem %s771, 295
        %v798 = vld [vmem:[%s797] ss:$3 sm:$0xff]
        %s799 = scalar_lea.vmem %s771, 319
        %v800 = vld [vmem:[%s799] ss:$3 sm:$0xff]
        %s801 = scalar_lea.vmem %s771, 343
        %v802 = vld [vmem:[%s801] ss:$3 sm:$0xff]
        %s803 = scalar_lea.vmem %s771, 367
        %v804 = vld [vmem:[%s803] ss:$3 sm:$0xff]
        %s805 = scalar_lea.vmem %s771, 391
        %v806 = vld [vmem:[%s805] ss:$3 sm:$0xff]
        %s807 = scalar_lea.vmem %s771, 415
        %v808 = vld [vmem:[%s807] ss:$3 sm:$0xff]
        %s809 = scalar_lea.vmem %s771, 439
        %v810 = vld [vmem:[%s809] ss:$3 sm:$0xff]
        %s811 = scalar_lea.vmem %s771, 463
        %v812 = vld [vmem:[%s811] ss:$3 sm:$0xff]
        %s813 = scalar_lea.vmem %s771, 487
        %v814 = vld [vmem:[%s813] ss:$3 sm:$0xff]
        %s815 = scalar_lea.vmem %s771, 511
        %v816 = vld [vmem:[%s815] ss:$3 sm:$0xff]
        %s817 = scalar_lea.vmem %s771, 535
        %v818 = vld [vmem:[%s817] ss:$3 sm:$0xff]
        %s819 = scalar_lea.vmem %s771, 559
        %v820 = vld [vmem:[%s819] ss:$3 sm:$0xff]
        %s821 = scalar_lea.vmem %s771, 583
        %v822 = vld [vmem:[%s821] ss:$3 sm:$0xff]
        %s823 = scalar_lea.vmem %s771, 607
        %v824 = vld [vmem:[%s823] ss:$3 sm:$0xff]
        %s825 = scalar_lea.vmem %s771, 631
        %v826 = vld [vmem:[%s825] ss:$3 sm:$0xff]
        %s827 = scalar_lea.vmem %s771, 655
        %v828 = vld [vmem:[%s827] ss:$3 sm:$0xff]
        %s829 = scalar_lea.vmem %s771, 679
        %v830 = vld [vmem:[%s829] ss:$3 sm:$0xff]
        %s831 = scalar_lea.vmem %s771, 703
        %v832 = vld [vmem:[%s831] ss:$3 sm:$0xff]
        %s833 = scalar_lea.vmem %s771, 727
        %v834 = vld [vmem:[%s833] ss:$3 sm:$0xff]
        %s835 = scalar_lea.vmem %s771, 751
        %v836 = vld [vmem:[%s835] ss:$3 sm:$0xff]
        %v837 = vld [vmem:[%s1] sm:$0xf]
        %s838 = scalar_lea.vmem %s771, 8
        %v839 = vld [vmem:[%s838] ss:$3 sm:$0xff]
        %s840 = scalar_lea.vmem %s771, 32
        %v841 = vld [vmem:[%s840] ss:$3 sm:$0xff]
        %s842 = scalar_lea.vmem %s771, 56
        %v843 = vld [vmem:[%s842] ss:$3 sm:$0xff]
        %s844 = scalar_lea.vmem %s771, 80
        %v845 = vld [vmem:[%s844] ss:$3 sm:$0xff]
        %s846 = scalar_lea.vmem %s771, 104
        %v847 = vld [vmem:[%s846] ss:$3 sm:$0xff]
        %s848 = scalar_lea.vmem %s771, 128
        %v849 = vld [vmem:[%s848] ss:$3 sm:$0xff]
        %s850 = scalar_lea.vmem %s771, 152
        %v851 = vld [vmem:[%s850] ss:$3 sm:$0xff]
        %s852 = scalar_lea.vmem %s771, 176
        %v853 = vld [vmem:[%s852] ss:$3 sm:$0xff]
        %s854 = scalar_lea.vmem %s771, 200
        %v855 = vld [vmem:[%s854] ss:$3 sm:$0xff]
        %s856 = scalar_lea.vmem %s771, 224
        %v857 = vld [vmem:[%s856] ss:$3 sm:$0xff]
        %s858 = scalar_lea.vmem %s771, 248
        %v859 = vld [vmem:[%s858] ss:$3 sm:$0xff]
        %s860 = scalar_lea.vmem %s771, 272
        %v861 = vld [vmem:[%s860] ss:$3 sm:$0xff]
        %s862 = scalar_lea.vmem %s771, 296
        %v863 = vld [vmem:[%s862] ss:$3 sm:$0xff]
        %s864 = scalar_lea.vmem %s771, 320
        %v865 = vld [vmem:[%s864] ss:$3 sm:$0xff]
        %s866 = scalar_lea.vmem %s771, 344
        %v867 = vld [vmem:[%s866] ss:$3 sm:$0xff]
        %s868 = scalar_lea.vmem %s771, 368
        %v869 = vld [vmem:[%s868] ss:$3 sm:$0xff]
        %s870 = scalar_lea.vmem %s771, 392
        %v871 = vld [vmem:[%s870] ss:$3 sm:$0xff]
        %s872 = scalar_lea.vmem %s771, 416
        %v873 = vld [vmem:[%s872] ss:$3 sm:$0xff]
        %s874 = scalar_lea.vmem %s771, 440
        %v875 = vld [vmem:[%s874] ss:$3 sm:$0xff]
        %s876 = scalar_lea.vmem %s771, 464
        %v877 = vld [vmem:[%s876] ss:$3 sm:$0xff]
        %s878 = scalar_lea.vmem %s771, 488
        %v879 = vld [vmem:[%s878] ss:$3 sm:$0xff]
        %s880 = scalar_lea.vmem %s771, 512
        %v881 = vld [vmem:[%s880] ss:$3 sm:$0xff]
        %s882 = scalar_lea.vmem %s771, 536
        %v883 = vld [vmem:[%s882] ss:$3 sm:$0xff]
        %s884 = scalar_lea.vmem %s771, 560
        %v885 = vld [vmem:[%s884] ss:$3 sm:$0xff]
        %s886 = scalar_lea.vmem %s771, 584
        %v887 = vld [vmem:[%s886] ss:$3 sm:$0xff]
        %s888 = scalar_lea.vmem %s771, 608
        %v889 = vld [vmem:[%s888] ss:$3 sm:$0xff]
        %s890 = scalar_lea.vmem %s771, 632
        %v891 = vld [vmem:[%s890] ss:$3 sm:$0xff]
        %s892 = scalar_lea.vmem %s771, 656
        %v893 = vld [vmem:[%s892] ss:$3 sm:$0xff]
        %s894 = scalar_lea.vmem %s771, 680
        %v895 = vld [vmem:[%s894] ss:$3 sm:$0xff]
        %s896 = scalar_lea.vmem %s771, 704
        %v897 = vld [vmem:[%s896] ss:$3 sm:$0xff]
        %s898 = scalar_lea.vmem %s771, 728
        %v899 = vld [vmem:[%s898] ss:$3 sm:$0xff]
        %s900 = scalar_lea.vmem %s771, 752
        %v901 = vld [vmem:[%s900] ss:$3 sm:$0xff]
        %s902 = scalar_lea.vmem %s1, 4
        %v903 = vld [vmem:[%s902] sm:$0xf]
        %vm904 = vcmask 31744
        %v906 = vsel %vm904, %v839, 0
        %v909 = vsel %vm904, %v841, 0
        %v912 = vsel %vm904, %v843, 0
        %v915 = vsel %vm904, %v845, 0
        %v918 = vsel %vm904, %v847, 0
        %v921 = vsel %vm904, %v849, 0
        %v924 = vsel %vm904, %v851, 0
        %v927 = vsel %vm904, %v853, 0
        %v930 = vsel %vm904, %v855, 0
        %v933 = vsel %vm904, %v857, 0
        %v936 = vsel %vm904, %v859, 0
        %v939 = vsel %vm904, %v861, 0
        %v942 = vsel %vm904, %v863, 0
        %v945 = vsel %vm904, %v865, 0
        %v948 = vsel %vm904, %v867, 0
        %v951 = vsel %vm904, %v869, 0
        %v954 = vsel %vm904, %v871, 0
        %v957 = vsel %vm904, %v873, 0
        %v960 = vsel %vm904, %v875, 0
        %v963 = vsel %vm904, %v877, 0
        %v966 = vsel %vm904, %v879, 0
        %v969 = vsel %vm904, %v881, 0
        %v972 = vsel %vm904, %v883, 0
        %v975 = vsel %vm904, %v885, 0
        %v978 = vsel %vm904, %v887, 0
        %v981 = vsel %vm904, %v889, 0
        %v984 = vsel %vm904, %v891, 0
        %v987 = vsel %vm904, %v893, 0
        %v990 = vsel %vm904, %v895, 0
        %v993 = vsel %vm904, %v897, 0
        %v996 = vsel %vm904, %v899, 0
        %v999 = vsel %vm904, %v901, 0
        %vm1001 = vcmask 1043456
        %v1003 = vsel %vm1001, %v903, 0
        %1005 = vmatprep.subr.mxu0 0.0
        %1006 = vmatpush1.msra.mxu0 %v1003
        %1007 = vmatprep.subr.mxu0 0.0
        %1008 = vmatpush1.msra.mxu0 0.0
        %1009 = vmatprep.subr.mxu0 0.0
        %1010 = vmatpush1.msra.mxu0 0.0
        %1011 = vmatprep.subr.mxu0 0.0
        %1012 = vmatpush1.msra.mxu0 0.0
        %1013 = vmatprep.subr.mxu0 0.0
        %1014 = vmatpush1.msra.mxu0 0.0
        %1015 = vmatprep.subr.mxu0 0.0
        %1016 = vmatpush1.msra.mxu0 0.0
        %1017 = vmatprep.subr.mxu0 0.0
        %1018 = vmatpush1.msra.mxu0 0.0
        %1019 = vmatprep.subr.mxu0 0.0
        %1020 = vmatpush1.msra.mxu0 0.0
        %1021 = vmatprep.subr.mxu0 0.0
        %1022 = vmatpush1.msra.mxu0 0.0
        %1023 = vmatprep.subr.mxu0 0.0
        %1024 = vmatpush1.msra.mxu0 0.0
        %1025 = vmatprep.subr.mxu0 0.0
        %1026 = vmatpush1.msra.mxu0 0.0
        %1027 = vmatprep.subr.mxu0 0.0
        %1028 = vmatpush1.msra.mxu0 0.0
        %1029 = vmatprep.subr.mxu0 0.0
        %1030 = vmatpush1.msra.mxu0 0.0
        %1031 = vmatprep.subr.mxu0 0.0
        %1032 = vmatpush1.msra.mxu0 0.0
        %1033 = vmatprep.subr.mxu0 0.0
        %1034 = vmatpush1.msra.mxu0 0.0
        %1035 = vmatprep.subr.mxu0 0.0
        %1036 = vmatpush1.msra.mxu0 0.0
        %1037 = vmatprep.subr.mxu0 0.0
        %1038 = vmatpush1.msra.mxu0 0.0
        %1039 = vmatprep.subr.mxu0 0.0
        %1040 = vmatpush1.msra.mxu0 0.0
        %1041 = vmatprep.subr.mxu0 0.0
        %1042 = vmatpush1.msra.mxu0 0.0
        %1043 = vmatprep.subr.mxu0 0.0
        %1044 = vmatpush1.msra.mxu0 0.0
        %1045 = vmatprep.subr.mxu0 0.0
        %1046 = vmatpush1.msra.mxu0 0.0
        %1047 = vmatprep.subr.mxu0 0.0
        %1048 = vmatpush1.msra.mxu0 0.0
        %1049 = vmatprep.subr.mxu0 0.0
        %1050 = vmatpush1.msra.mxu0 0.0
        %1051 = vmatprep.subr.mxu0 0.0
        %1052 = vmatpush1.msra.mxu0 0.0
        %1053 = vmatprep.subr.mxu0 0.0
        %1054 = vmatpush1.msra.mxu0 0.0
        %1055 = vmatprep.subr.mxu0 0.0
        %1056 = vmatpush1.msra.mxu0 0.0
        %1057 = vmatprep.subr.mxu0 0.0
        %1058 = vmatpush1.msra.mxu0 0.0
        %1059 = vmatprep.subr.mxu0 0.0
        %1060 = vmatpush1.msra.mxu0 0.0
        %1061 = vmatprep.subr.mxu0 0.0
        %1062 = vmatpush1.msra.mxu0 0.0
        %1063 = vmatprep.subr.mxu0 0.0
        %1064 = vmatpush1.msra.mxu0 0.0
        %1065 = vmatprep.subr.mxu0 0.0
        %1066 = vmatpush1.msra.mxu0 0.0
        %1067 = vmatprep.subr.mxu0 0.0
        %1068 = vmatpush1.msra.mxu0 0.0
        %1069 = vmatprep.mubr.f32.mxu0 0.0
        %1070 = vmatmul.mubr.f32.gmra.mrb[0].mxu0 %v906
        %v1071 = vpop.f32.mrb[0].mxu0
        %v1072 = vadd.f32 0.0, %v1071
        %v1073 = vpop.f32.mrb[0].mxu0
        %1074 = vmatprep.mubr.f32.mxu0 0.0
        %1075 = vmatmul.mubr.f32.gmra.mrb[0].mxu0 %v909
        %v1076 = vpop.f32.mrb[0].mxu0
        %v1077 = vadd.f32 0.0, %v1076
        %v1078 = vpop.f32.mrb[0].mxu0
        %1079 = vmatprep.mubr.f32.mxu0 0.0
        %1080 = vmatmul.mubr.f32.gmra.mrb[0].mxu0 %v912
        %v1081 = vpop.f32.mrb[0].mxu0
        %v1082 = vadd.f32 0.0, %v1081
        %v1083 = vpop.f32.mrb[0].mxu0
        %1084 = vmatprep.mubr.f32.mxu0 0.0
        %1085 = vmatmul.mubr.f32.gmra.mrb[0].mxu0 %v915
        %v1086 = vpop.f32.mrb[0].mxu0
        %v1087 = vadd.f32 0.0, %v1086
        %v1088 = vpop.f32.mrb[0].mxu0
        %1089 = vmatprep.mubr.f32.mxu0 0.0
        %1090 = vmatmul.mubr.f32.gmra.mrb[0].mxu0 %v918
        %v1091 = vpop.f32.mrb[0].mxu0
        %v1092 = vadd.f32 0.0, %v1091
        %v1093 = vpop.f32.mrb[0].mxu0
        %1094 = vmatprep.mubr.f32.mxu0 0.0
        %1095 = vmatmul.mubr.f32.gmra.mrb[0].mxu0 %v921
        %v1096 = vpop.f32.mrb[0].mxu0
        %v1097 = vadd.f32 0.0, %v1096
        %v1098 = vpop.f32.mrb[0].mxu0
        %1099 = vmatprep.mubr.f32.mxu0 0.0
        %1100 = vmatmul.mubr.f32.gmra.mrb[0].mxu0 %v924
        %v1101 = vpop.f32.mrb[0].mxu0
        %v1102 = vadd.f32 0.0, %v1101
        %v1103 = vpop.f32.mrb[0].mxu0
        %1104 = vmatprep.mubr.f32.mxu0 0.0
        %1105 = vmatmul.mubr.f32.gmra.mrb[0].mxu0 %v927
        %v1106 = vpop.f32.mrb[0].mxu0
        %v1107 = vadd.f32 0.0, %v1106
        %v1108 = vpop.f32.mrb[0].mxu0
        %1109 = vmatprep.mubr.f32.mxu0 0.0
        %1110 = vmatmul.mubr.f32.gmra.mrb[0].mxu0 %v930
        %v1111 = vpop.f32.mrb[0].mxu0
        %v1112 = vadd.f32 0.0, %v1111
        %v1113 = vpop.f32.mrb[0].mxu0
        %1114 = vmatprep.mubr.f32.mxu0 0.0
        %1115 = vmatmul.mubr.f32.gmra.mrb[0].mxu0 %v933
        %v1116 = vpop.f32.mrb[0].mxu0
        %v1117 = vadd.f32 0.0, %v1116
        %v1118 = vpop.f32.mrb[0].mxu0
        %1119 = vmatprep.mubr.f32.mxu0 0.0
        %1120 = vmatmul.mubr.f32.gmra.mrb[0].mxu0 %v936
        %v1121 = vpop.f32.mrb[0].mxu0
        %v1122 = vadd.f32 0.0, %v1121
        %v1123 = vpop.f32.mrb[0].mxu0
        %1124 = vmatprep.mubr.f32.mxu0 0.0
        %1125 = vmatmul.mubr.f32.gmra.mrb[0].mxu0 %v939
        %v1126 = vpop.f32.mrb[0].mxu0
        %v1127 = vadd.f32 0.0, %v1126
        %v1128 = vpop.f32.mrb[0].mxu0
        %1129 = vmatprep.mubr.f32.mxu0 0.0
        %1130 = vmatmul.mubr.f32.gmra.mrb[0].mxu0 %v942
        %v1131 = vpop.f32.mrb[0].mxu0
        %v1132 = vadd.f32 0.0, %v1131
        %v1133 = vpop.f32.mrb[0].mxu0
        %1134 = vmatprep.mubr.f32.mxu0 0.0
        %1135 = vmatmul.mubr.f32.gmra.mrb[0].mxu0 %v945
        %v1136 = vpop.f32.mrb[0].mxu0
        %v1137 = vadd.f32 0.0, %v1136
        %v1138 = vpop.f32.mrb[0].mxu0
        %1139 = vmatprep.mubr.f32.mxu0 0.0
        %1140 = vmatmul.mubr.f32.gmra.mrb[0].mxu0 %v948
        %v1141 = vpop.f32.mrb[0].mxu0
        %v1142 = vadd.f32 0.0, %v1141
        %v1143 = vpop.f32.mrb[0].mxu0
        %1144 = vmatprep.mubr.f32.mxu0 0.0
        %1145 = vmatmul.mubr.f32.gmra.mrb[0].mxu0 %v951
        %v1146 = vpop.f32.mrb[0].mxu0
        %v1147 = vadd.f32 0.0, %v1146
        %v1148 = vpop.f32.mrb[0].mxu0
        %1149 = vmatprep.mubr.f32.mxu0 0.0
        %1150 = vmatmul.mubr.f32.gmra.mrb[0].mxu0 %v954
        %v1151 = vpop.f32.mrb[0].mxu0
        %v1152 = vadd.f32 0.0, %v1151
        %v1153 = vpop.f32.mrb[0].mxu0
        %1154 = vmatprep.mubr.f32.mxu0 0.0
        %1155 = vmatmul.mubr.f32.gmra.mrb[0].mxu0 %v957
        %v1156 = vpop.f32.mrb[0].mxu0
        %v1157 = vadd.f32 0.0, %v1156
        %v1158 = vpop.f32.mrb[0].mxu0
        %1159 = vmatprep.mubr.f32.mxu0 0.0
        %1160 = vmatmul.mubr.f32.gmra.mrb[0].mxu0 %v960
        %v1161 = vpop.f32.mrb[0].mxu0
        %v1162 = vadd.f32 0.0, %v1161
        %v1163 = vpop.f32.mrb[0].mxu0
        %1164 = vmatprep.mubr.f32.mxu0 0.0
        %1165 = vmatmul.mubr.f32.gmra.mrb[0].mxu0 %v963
        %v1166 = vpop.f32.mrb[0].mxu0
        %v1167 = vadd.f32 0.0, %v1166
        %v1168 = vpop.f32.mrb[0].mxu0
        %1169 = vmatprep.mubr.f32.mxu0 0.0
        %1170 = vmatmul.mubr.f32.gmra.mrb[0].mxu0 %v966
        %v1171 = vpop.f32.mrb[0].mxu0
        %v1172 = vadd.f32 0.0, %v1171
        %v1173 = vpop.f32.mrb[0].mxu0
        %1174 = vmatprep.mubr.f32.mxu0 0.0
        %1175 = vmatmul.mubr.f32.gmra.mrb[0].mxu0 %v969
        %v1176 = vpop.f32.mrb[0].mxu0
        %v1177 = vadd.f32 0.0, %v1176
        %v1178 = vpop.f32.mrb[0].mxu0
        %1179 = vmatprep.mubr.f32.mxu0 0.0
        %1180 = vmatmul.mubr.f32.gmra.mrb[0].mxu0 %v972
        %v1181 = vpop.f32.mrb[0].mxu0
        %v1182 = vadd.f32 0.0, %v1181
        %v1183 = vpop.f32.mrb[0].mxu0
        %1184 = vmatprep.mubr.f32.mxu0 0.0
        %1185 = vmatmul.mubr.f32.gmra.mrb[0].mxu0 %v975
        %v1186 = vpop.f32.mrb[0].mxu0
        %v1187 = vadd.f32 0.0, %v1186
        %v1188 = vpop.f32.mrb[0].mxu0
        %1189 = vmatprep.mubr.f32.mxu0 0.0
        %1190 = vmatmul.mubr.f32.gmra.mrb[0].mxu0 %v978
        %v1191 = vpop.f32.mrb[0].mxu0
        %v1192 = vadd.f32 0.0, %v1191
        %v1193 = vpop.f32.mrb[0].mxu0
        %1194 = vmatprep.mubr.f32.mxu0 0.0
        %1195 = vmatmul.mubr.f32.gmra.mrb[0].mxu0 %v981
        %v1196 = vpop.f32.mrb[0].mxu0
        %v1197 = vadd.f32 0.0, %v1196
        %v1198 = vpop.f32.mrb[0].mxu0
        %1199 = vmatprep.mubr.f32.mxu0 0.0
        %1200 = vmatmul.mubr.f32.gmra.mrb[0].mxu0 %v984
        %v1201 = vpop.f32.mrb[0].mxu0
        %v1202 = vadd.f32 0.0, %v1201
        %v1203 = vpop.f32.mrb[0].mxu0
        %1204 = vmatprep.mubr.f32.mxu0 0.0
        %1205 = vmatmul.mubr.f32.gmra.mrb[0].mxu0 %v987
        %v1206 = vpop.f32.mrb[0].mxu0
        %v1207 = vadd.f32 0.0, %v1206
        %v1208 = vpop.f32.mrb[0].mxu0
        %1209 = vmatprep.mubr.f32.mxu0 0.0
        %1210 = vmatmul.mubr.f32.gmra.mrb[0].mxu0 %v990
        %v1211 = vpop.f32.mrb[0].mxu0
        %v1212 = vadd.f32 0.0, %v1211
        %v1213 = vpop.f32.mrb[0].mxu0
        %1214 = vmatprep.mubr.f32.mxu0 0.0
        %1215 = vmatmul.mubr.f32.gmra.mrb[0].mxu0 %v993
        %v1216 = vpop.f32.mrb[0].mxu0
        %v1217 = vadd.f32 0.0, %v1216
        %v1218 = vpop.f32.mrb[0].mxu0
        %1219 = vmatprep.mubr.f32.mxu0 0.0
        %1220 = vmatmul.mubr.f32.gmra.mrb[0].mxu0 %v996
        %v1221 = vpop.f32.mrb[0].mxu0
        %v1222 = vadd.f32 0.0, %v1221
        %v1223 = vpop.f32.mrb[0].mxu0
        %1224 = vmatprep.mubr.f32.mxu0 0.0
        %1225 = vmatmul.mubr.f32.gmra.mrb[0].mxu0 %v999
        %v1226 = vpop.f32.mrb[0].mxu0
        %v1227 = vadd.f32 0.0, %v1226
        %v1228 = vpop.f32.mrb[0].mxu0
        %1229 = vdwg.mxu0
        %v1231 = vsel %vm904, %v774, 0
        %v1234 = vsel %vm904, %v776, 0
        %v1237 = vsel %vm904, %v778, 0
        %v1240 = vsel %vm904, %v780, 0
        %v1243 = vsel %vm904, %v782, 0
        %v1246 = vsel %vm904, %v784, 0
        %v1249 = vsel %vm904, %v786, 0
        %v1252 = vsel %vm904, %v788, 0
        %v1255 = vsel %vm904, %v790, 0
        %v1258 = vsel %vm904, %v792, 0
        %v1261 = vsel %vm904, %v794, 0
        %v1264 = vsel %vm904, %v796, 0
        %v1267 = vsel %vm904, %v798, 0
        %v1270 = vsel %vm904, %v800, 0
        %v1273 = vsel %vm904, %v802, 0
        %v1276 = vsel %vm904, %v804, 0
        %v1279 = vsel %vm904, %v806, 0
        %v1282 = vsel %vm904, %v808, 0
        %v1285 = vsel %vm904, %v810, 0
        %v1288 = vsel %vm904, %v812, 0
        %v1291 = vsel %vm904, %v814, 0
        %v1294 = vsel %vm904, %v816, 0
        %v1297 = vsel %vm904, %v818, 0
        %v1300 = vsel %vm904, %v820, 0
        %v1303 = vsel %vm904, %v822, 0
        %v1306 = vsel %vm904, %v824, 0
        %v1309 = vsel %vm904, %v826, 0
        %v1312 = vsel %vm904, %v828, 0
        %v1315 = vsel %vm904, %v830, 0
        %v1318 = vsel %vm904, %v832, 0
        %v1321 = vsel %vm904, %v834, 0
        %v1324 = vsel %vm904, %v836, 0
        %v1327 = vsel %vm1001, %v837, 0
        %1329 = vmatprep.subr.mxu0 0.0
        %1330 = vmatpush1.msra.mxu0 %v1327
        %1331 = vmatprep.subr.mxu0 0.0
        %1332 = vmatpush1.msra.mxu0 0.0
        %1333 = vmatprep.subr.mxu0 0.0
        %1334 = vmatpush1.msra.mxu0 0.0
        %1335 = vmatprep.subr.mxu0 0.0
        %1336 = vmatpush1.msra.mxu0 0.0
        %1337 = vmatprep.subr.mxu0 0.0
        %1338 = vmatpush1.msra.mxu0 0.0
        %1339 = vmatprep.subr.mxu0 0.0
        %1340 = vmatpush1.msra.mxu0 0.0
        %1341 = vmatprep.subr.mxu0 0.0
        %1342 = vmatpush1.msra.mxu0 0.0
        %1343 = vmatprep.subr.mxu0 0.0
        %1344 = vmatpush1.msra.mxu0 0.0
        %1345 = vmatprep.subr.mxu0 0.0
        %1346 = vmatpush1.msra.mxu0 0.0
        %1347 = vmatprep.subr.mxu0 0.0
        %1348 = vmatpush1.msra.mxu0 0.0
        %1349 = vmatprep.subr.mxu0 0.0
        %1350 = vmatpush1.msra.mxu0 0.0
        %1351 = vmatprep.subr.mxu0 0.0
        %1352 = vmatpush1.msra.mxu0 0.0
        %1353 = vmatprep.subr.mxu0 0.0
        %1354 = vmatpush1.msra.mxu0 0.0
        %1355 = vmatprep.subr.mxu0 0.0
        %1356 = vmatpush1.msra.mxu0 0.0
        %1357 = vmatprep.subr.mxu0 0.0
        %1358 = vmatpush1.msra.mxu0 0.0
        %1359 = vmatprep.subr.mxu0 0.0
        %1360 = vmatpush1.msra.mxu0 0.0
        %1361 = vmatprep.subr.mxu0 0.0
        %1362 = vmatpush1.msra.mxu0 0.0
        %1363 = vmatprep.subr.mxu0 0.0
        %1364 = vmatpush1.msra.mxu0 0.0
        %1365 = vmatprep.subr.mxu0 0.0
        %1366 = vmatpush1.msra.mxu0 0.0
        %1367 = vmatprep.subr.mxu0 0.0
        %1368 = vmatpush1.msra.mxu0 0.0
        %1369 = vmatprep.subr.mxu0 0.0
        %1370 = vmatpush1.msra.mxu0 0.0
        %1371 = vmatprep.subr.mxu0 0.0
        %1372 = vmatpush1.msra.mxu0 0.0
        %1373 = vmatprep.subr.mxu0 0.0
        %1374 = vmatpush1.msra.mxu0 0.0
        %1375 = vmatprep.subr.mxu0 0.0
        %1376 = vmatpush1.msra.mxu0 0.0
        %1377 = vmatprep.subr.mxu0 0.0
        %1378 = vmatpush1.msra.mxu0 0.0
        %1379 = vmatprep.subr.mxu0 0.0
        %1380 = vmatpush1.msra.mxu0 0.0
        %1381 = vmatprep.subr.mxu0 0.0
        %1382 = vmatpush1.msra.mxu0 0.0
        %1383 = vmatprep.subr.mxu0 0.0
        %1384 = vmatpush1.msra.mxu0 0.0
        %1385 = vmatprep.subr.mxu0 0.0
        %1386 = vmatpush1.msra.mxu0 0.0
        %1387 = vmatprep.subr.mxu0 0.0
        %1388 = vmatpush1.msra.mxu0 0.0
        %1389 = vmatprep.subr.mxu0 0.0
        %1390 = vmatpush1.msra.mxu0 0.0
        %1391 = vmatprep.subr.mxu0 0.0
        %1392 = vmatpush1.msra.mxu0 0.0
        %1393 = vmatprep.mubr.f32.mxu0 0.0
        %1394 = vmatmul.mubr.f32.gmra.mrb[0].mxu0 %v1231
        %v1395 = vpop.f32.mrb[0].mxu0
        %v1396 = vadd.f32 %v1072, %v1395
        %v1397 = vpop.f32.mrb[0].mxu0
        %1398 = vmatprep.mubr.f32.mxu0 0.0
        %1399 = vmatmul.mubr.f32.gmra.mrb[0].mxu0 %v1234
        %v1400 = vpop.f32.mrb[0].mxu0
        %v1401 = vadd.f32 %v1077, %v1400
        %v1402 = vpop.f32.mrb[0].mxu0
        %1403 = vmatprep.mubr.f32.mxu0 0.0
        %1404 = vmatmul.mubr.f32.gmra.mrb[0].mxu0 %v1237
        %v1405 = vpop.f32.mrb[0].mxu0
        %v1406 = vadd.f32 %v1082, %v1405
        %v1407 = vpop.f32.mrb[0].mxu0
        %1408 = vmatprep.mubr.f32.mxu0 0.0
        %1409 = vmatmul.mubr.f32.gmra.mrb[0].mxu0 %v1240
        %v1410 = vpop.f32.mrb[0].mxu0
        %v1411 = vadd.f32 %v1087, %v1410
        %v1412 = vpop.f32.mrb[0].mxu0
        %1413 = vmatprep.mubr.f32.mxu0 0.0
        %1414 = vmatmul.mubr.f32.gmra.mrb[0].mxu0 %v1243
        %v1415 = vpop.f32.mrb[0].mxu0
        %v1416 = vadd.f32 %v1092, %v1415
        %v1417 = vpop.f32.mrb[0].mxu0
        %1418 = vmatprep.mubr.f32.mxu0 0.0
        %1419 = vmatmul.mubr.f32.gmra.mrb[0].mxu0 %v1246
        %v1420 = vpop.f32.mrb[0].mxu0
        %v1421 = vadd.f32 %v1097, %v1420
        %v1422 = vpop.f32.mrb[0].mxu0
        %1423 = vmatprep.mubr.f32.mxu0 0.0
        %1424 = vmatmul.mubr.f32.gmra.mrb[0].mxu0 %v1249
        %v1425 = vpop.f32.mrb[0].mxu0
        %v1426 = vadd.f32 %v1102, %v1425
        %v1427 = vpop.f32.mrb[0].mxu0
        %1428 = vmatprep.mubr.f32.mxu0 0.0
        %1429 = vmatmul.mubr.f32.gmra.mrb[0].mxu0 %v1252
        %v1430 = vpop.f32.mrb[0].mxu0
        %v1431 = vadd.f32 %v1107, %v1430
        %v1432 = vpop.f32.mrb[0].mxu0
        %1433 = vmatprep.mubr.f32.mxu0 0.0
        %1434 = vmatmul.mubr.f32.gmra.mrb[0].mxu0 %v1255
        %v1435 = vpop.f32.mrb[0].mxu0
        %v1436 = vadd.f32 %v1112, %v1435
        %v1437 = vpop.f32.mrb[0].mxu0
        %1438 = vmatprep.mubr.f32.mxu0 0.0
        %1439 = vmatmul.mubr.f32.gmra.mrb[0].mxu0 %v1258
        %v1440 = vpop.f32.mrb[0].mxu0
        %v1441 = vadd.f32 %v1117, %v1440
        %v1442 = vpop.f32.mrb[0].mxu0
        %1443 = vmatprep.mubr.f32.mxu0 0.0
        %1444 = vmatmul.mubr.f32.gmra.mrb[0].mxu0 %v1261
        %v1445 = vpop.f32.mrb[0].mxu0
        %v1446 = vadd.f32 %v1122, %v1445
        %v1447 = vpop.f32.mrb[0].mxu0
        %1448 = vmatprep.mubr.f32.mxu0 0.0
        %1449 = vmatmul.mubr.f32.gmra.mrb[0].mxu0 %v1264
        %v1450 = vpop.f32.mrb[0].mxu0
        %v1451 = vadd.f32 %v1127, %v1450
        %v1452 = vpop.f32.mrb[0].mxu0
        %1453 = vmatprep.mubr.f32.mxu0 0.0
        %1454 = vmatmul.mubr.f32.gmra.mrb[0].mxu0 %v1267
        %v1455 = vpop.f32.mrb[0].mxu0
        %v1456 = vadd.f32 %v1132, %v1455
        %v1457 = vpop.f32.mrb[0].mxu0
        %1458 = vmatprep.mubr.f32.mxu0 0.0
        %1459 = vmatmul.mubr.f32.gmra.mrb[0].mxu0 %v1270
        %v1460 = vpop.f32.mrb[0].mxu0
        %v1461 = vadd.f32 %v1137, %v1460
        %v1462 = vpop.f32.mrb[0].mxu0
        %1463 = vmatprep.mubr.f32.mxu0 0.0
        %1464 = vmatmul.mubr.f32.gmra.mrb[0].mxu0 %v1273
        %v1465 = vpop.f32.mrb[0].mxu0
        %v1466 = vadd.f32 %v1142, %v1465
        %v1467 = vpop.f32.mrb[0].mxu0
        %1468 = vmatprep.mubr.f32.mxu0 0.0
        %1469 = vmatmul.mubr.f32.gmra.mrb[0].mxu0 %v1276
        %v1470 = vpop.f32.mrb[0].mxu0
        %v1471 = vadd.f32 %v1147, %v1470
        %v1472 = vpop.f32.mrb[0].mxu0
        %1473 = vmatprep.mubr.f32.mxu0 0.0
        %1474 = vmatmul.mubr.f32.gmra.mrb[0].mxu0 %v1279
        %v1475 = vpop.f32.mrb[0].mxu0
        %v1476 = vadd.f32 %v1152, %v1475
        %v1477 = vpop.f32.mrb[0].mxu0
        %1478 = vmatprep.mubr.f32.mxu0 0.0
        %1479 = vmatmul.mubr.f32.gmra.mrb[0].mxu0 %v1282
        %v1480 = vpop.f32.mrb[0].mxu0
        %v1481 = vadd.f32 %v1157, %v1480
        %v1482 = vpop.f32.mrb[0].mxu0
        %1483 = vmatprep.mubr.f32.mxu0 0.0
        %1484 = vmatmul.mubr.f32.gmra.mrb[0].mxu0 %v1285
        %v1485 = vpop.f32.mrb[0].mxu0
        %v1486 = vadd.f32 %v1162, %v1485
        %v1487 = vpop.f32.mrb[0].mxu0
        %1488 = vmatprep.mubr.f32.mxu0 0.0
        %1489 = vmatmul.mubr.f32.gmra.mrb[0].mxu0 %v1288
        %v1490 = vpop.f32.mrb[0].mxu0
        %v1491 = vadd.f32 %v1167, %v1490
        %v1492 = vpop.f32.mrb[0].mxu0
        %1493 = vmatprep.mubr.f32.mxu0 0.0
        %1494 = vmatmul.mubr.f32.gmra.mrb[0].mxu0 %v1291
        %v1495 = vpop.f32.mrb[0].mxu0
        %v1496 = vadd.f32 %v1172, %v1495
        %v1497 = vpop.f32.mrb[0].mxu0
        %1498 = vmatprep.mubr.f32.mxu0 0.0
        %1499 = vmatmul.mubr.f32.gmra.mrb[0].mxu0 %v1294
        %v1500 = vpop.f32.mrb[0].mxu0
        %v1501 = vadd.f32 %v1177, %v1500
        %v1502 = vpop.f32.mrb[0].mxu0
        %1503 = vmatprep.mubr.f32.mxu0 0.0
        %1504 = vmatmul.mubr.f32.gmra.mrb[0].mxu0 %v1297
        %v1505 = vpop.f32.mrb[0].mxu0
        %v1506 = vadd.f32 %v1182, %v1505
        %v1507 = vpop.f32.mrb[0].mxu0
        %1508 = vmatprep.mubr.f32.mxu0 0.0
        %1509 = vmatmul.mubr.f32.gmra.mrb[0].mxu0 %v1300
        %v1510 = vpop.f32.mrb[0].mxu0
        %v1511 = vadd.f32 %v1187, %v1510
        %v1512 = vpop.f32.mrb[0].mxu0
        %1513 = vmatprep.mubr.f32.mxu0 0.0
        %1514 = vmatmul.mubr.f32.gmra.mrb[0].mxu0 %v1303
        %v1515 = vpop.f32.mrb[0].mxu0
        %v1516 = vadd.f32 %v1192, %v1515
        %v1517 = vpop.f32.mrb[0].mxu0
        %1518 = vmatprep.mubr.f32.mxu0 0.0
        %1519 = vmatmul.mubr.f32.gmra.mrb[0].mxu0 %v1306
        %v1520 = vpop.f32.mrb[0].mxu0
        %v1521 = vadd.f32 %v1197, %v1520
        %v1522 = vpop.f32.mrb[0].mxu0
        %1523 = vmatprep.mubr.f32.mxu0 0.0
        %1524 = vmatmul.mubr.f32.gmra.mrb[0].mxu0 %v1309
        %v1525 = vpop.f32.mrb[0].mxu0
        %v1526 = vadd.f32 %v1202, %v1525
        %v1527 = vpop.f32.mrb[0].mxu0
        %1528 = vmatprep.mubr.f32.mxu0 0.0
        %1529 = vmatmul.mubr.f32.gmra.mrb[0].mxu0 %v1312
        %v1530 = vpop.f32.mrb[0].mxu0
        %v1531 = vadd.f32 %v1207, %v1530
        %v1532 = vpop.f32.mrb[0].mxu0
        %1533 = vmatprep.mubr.f32.mxu0 0.0
        %1534 = vmatmul.mubr.f32.gmra.mrb[0].mxu0 %v1315
        %v1535 = vpop.f32.mrb[0].mxu0
        %v1536 = vadd.f32 %v1212, %v1535
        %v1537 = vpop.f32.mrb[0].mxu0
        %1538 = vmatprep.mubr.f32.mxu0 0.0
        %1539 = vmatmul.mubr.f32.gmra.mrb[0].mxu0 %v1318
        %v1540 = vpop.f32.mrb[0].mxu0
        %v1541 = vadd.f32 %v1217, %v1540
        %v1542 = vpop.f32.mrb[0].mxu0
        %1543 = vmatprep.mubr.f32.mxu0 0.0
        %1544 = vmatmul.mubr.f32.gmra.mrb[0].mxu0 %v1321
        %v1545 = vpop.f32.mrb[0].mxu0
        %v1546 = vadd.f32 %v1222, %v1545
        %v1547 = vpop.f32.mrb[0].mxu0
        %1548 = vmatprep.mubr.f32.mxu0 0.0
        %1549 = vmatmul.mubr.f32.gmra.mrb[0].mxu0 %v1324
        %v1550 = vpop.f32.mrb[0].mxu0
        %v1551 = vadd.f32 %v1227, %v1550
        %v1552 = vpop.f32.mrb[0].mxu0
        %1553 = vdwg.mxu0
        %s1554 = scalar_lea.vmem %s771, 9
        %v1555 = vld [vmem:[%s1554] ss:$3 sm:$0xff]
        %s1556 = scalar_lea.vmem %s771, 33
        %v1557 = vld [vmem:[%s1556] ss:$3 sm:$0xff]
        %s1558 = scalar_lea.vmem %s771, 57
        %v1559 = vld [vmem:[%s1558] ss:$3 sm:$0xff]
        %s1560 = scalar_lea.vmem %s771, 81
        %v1561 = vld [vmem:[%s1560] ss:$3 sm:$0xff]
        %s1562 = scalar_lea.vmem %s771, 105
        %v1563 = vld [vmem:[%s1562] ss:$3 sm:$0xff]
        %s1564 = scalar_lea.vmem %s771, 129
        %v1565 = vld [vmem:[%s1564] ss:$3 sm:$0xff]
        %s1566 = scalar_lea.vmem %s771, 153
        %v1567 = vld [vmem:[%s1566] ss:$3 sm:$0xff]
        %s1568 = scalar_lea.vmem %s771, 177
        %v1569 = vld [vmem:[%s1568] ss:$3 sm:$0xff]
        %s1570 = scalar_lea.vmem %s771, 201
        %v1571 = vld [vmem:[%s1570] ss:$3 sm:$0xff]
        %s1572 = scalar_lea.vmem %s771, 225
        %v1573 = vld [vmem:[%s1572] ss:$3 sm:$0xff]
        %s1574 = scalar_lea.vmem %s771, 249
        %v1575 = vld [vmem:[%s1574] ss:$3 sm:$0xff]
        %s1576 = scalar_lea.vmem %s771, 273
        %v1577 = vld [vmem:[%s1576] ss:$3 sm:$0xff]
        %s1578 = scalar_lea.vmem %s771, 297
        %v1579 = vld [vmem:[%s1578] ss:$3 sm:$0xff]
        %s1580 = scalar_lea.vmem %s771, 321
        %v1581 = vld [vmem:[%s1580] ss:$3 sm:$0xff]
        %s1582 = scalar_lea.vmem %s771, 345
        %v1583 = vld [vmem:[%s1582] ss:$3 sm:$0xff]
        %s1584 = scalar_lea.vmem %s771, 369
        %v1585 = vld [vmem:[%s1584] ss:$3 sm:$0xff]
        %s1586 = scalar_lea.vmem %s771, 393
        %v1587 = vld [vmem:[%s1586] ss:$3 sm:$0xff]
        %s1588 = scalar_lea.vmem %s771, 417
        %v1589 = vld [vmem:[%s1588] ss:$3 sm:$0xff]
        %s1590 = scalar_lea.vmem %s771, 441
        %v1591 = vld [vmem:[%s1590] ss:$3 sm:$0xff]
        %s1592 = scalar_lea.vmem %s771, 465
        %v1593 = vld [vmem:[%s1592] ss:$3 sm:$0xff]
        %s1594 = scalar_lea.vmem %s771, 489
        %v1595 = vld [vmem:[%s1594] ss:$3 sm:$0xff]
        %s1596 = scalar_lea.vmem %s771, 513
        %v1597 = vld [vmem:[%s1596] ss:$3 sm:$0xff]
        %s1598 = scalar_lea.vmem %s771, 537
        %v1599 = vld [vmem:[%s1598] ss:$3 sm:$0xff]
        %s1600 = scalar_lea.vmem %s771, 561
        %v1601 = vld [vmem:[%s1600] ss:$3 sm:$0xff]
        %s1602 = scalar_lea.vmem %s771, 585
        %v1603 = vld [vmem:[%s1602] ss:$3 sm:$0xff]
        %s1604 = scalar_lea.vmem %s771, 609
        %v1605 = vld [vmem:[%s1604] ss:$3 sm:$0xff]
        %s1606 = scalar_lea.vmem %s771, 633
        %v1607 = vld [vmem:[%s1606] ss:$3 sm:$0xff]
        %s1608 = scalar_lea.vmem %s771, 657
        %v1609 = vld [vmem:[%s1608] ss:$3 sm:$0xff]
        %s1610 = scalar_lea.vmem %s771, 681
        %v1611 = vld [vmem:[%s1610] ss:$3 sm:$0xff]
        %s1612 = scalar_lea.vmem %s771, 705
        %v1613 = vld [vmem:[%s1612] ss:$3 sm:$0xff]
        %s1614 = scalar_lea.vmem %s771, 729
        %v1615 = vld [vmem:[%s1614] ss:$3 sm:$0xff]
        %s1616 = scalar_lea.vmem %s771, 753
        %v1617 = vld [vmem:[%s1616] ss:$3 sm:$0xff]
        %s1618 = scalar_lea.vmem %s1, 8
        %v1619 = vld [vmem:[%s1618] sm:$0xf]
        %v1621 = vsel %vm904, %v1555, 0
        %v1624 = vsel %vm904, %v1557, 0
        %v1627 = vsel %vm904, %v1559, 0
        %v1630 = vsel %vm904, %v1561, 0
        %v1633 = vsel %vm904, %v1563, 0
        %v1636 = vsel %vm904, %v1565, 0
        %v1639 = vsel %vm904, %v1567, 0
        %v1642 = vsel %vm904, %v1569, 0
        %v1645 = vsel %vm904, %v1571, 0
        %v1648 = vsel %vm904, %v1573, 0
        %v1651 = vsel %vm904, %v1575, 0
        %v1654 = vsel %vm904, %v1577, 0
        %v1657 = vsel %vm904, %v1579, 0
        %v1660 = vsel %vm904, %v1581, 0
        %v1663 = vsel %vm904, %v1583, 0
        %v1666 = vsel %vm904, %v1585, 0
        %v1669 = vsel %vm904, %v1587, 0
        %v1672 = vsel %vm904, %v1589, 0
        %v1675 = vsel %vm904, %v1591, 0
        %v1678 = vsel %vm904, %v1593, 0
        %v1681 = vsel %vm904, %v1595, 0
        %v1684 = vsel %vm904, %v1597, 0
        %v1687 = vsel %vm904, %v1599, 0
        %v1690 = vsel %vm904, %v1601, 0
        %v1693 = vsel %vm904, %v1603, 0
        %v1696 = vsel %vm904, %v1605, 0
        %v1699 = vsel %vm904, %v1607, 0
        %v1702 = vsel %vm904, %v1609, 0
        %v1705 = vsel %vm904, %v1611, 0
        %v1708 = vsel %vm904, %v1613, 0
        %v1711 = vsel %vm904, %v1615, 0
        %v1714 = vsel %vm904, %v1617, 0
        %v1717 = vsel %vm1001, %v1619, 0
        %1719 = vmatprep.subr.mxu0 0.0
        %1720 = vmatpush1.msra.mxu0 %v1717
        %1721 = vmatprep.subr.mxu0 0.0
        %1722 = vmatpush1.msra.mxu0 0.0
        %1723 = vmatprep.subr.mxu0 0.0
        %1724 = vmatpush1.msra.mxu0 0.0
        %1725 = vmatprep.subr.mxu0 0.0
        %1726 = vmatpush1.msra.mxu0 0.0
        %1727 = vmatprep.subr.mxu0 0.0
        %1728 = vmatpush1.msra.mxu0 0.0
        %1729 = vmatprep.subr.mxu0 0.0
        %1730 = vmatpush1.msra.mxu0 0.0
        %1731 = vmatprep.subr.mxu0 0.0
        %1732 = vmatpush1.msra.mxu0 0.0
        %1733 = vmatprep.subr.mxu0 0.0
        %1734 = vmatpush1.msra.mxu0 0.0
        %1735 = vmatprep.subr.mxu0 0.0
        %1736 = vmatpush1.msra.mxu0 0.0
        %1737 = vmatprep.subr.mxu0 0.0
        %1738 = vmatpush1.msra.mxu0 0.0
        %1739 = vmatprep.subr.mxu0 0.0
        %1740 = vmatpush1.msra.mxu0 0.0
        %1741 = vmatprep.subr.mxu0 0.0
        %1742 = vmatpush1.msra.mxu0 0.0
        %1743 = vmatprep.subr.mxu0 0.0
        %1744 = vmatpush1.msra.mxu0 0.0
        %1745 = vmatprep.subr.mxu0 0.0
        %1746 = vmatpush1.msra.mxu0 0.0
        %1747 = vmatprep.subr.mxu0 0.0
        %1748 = vmatpush1.msra.mxu0 0.0
        %1749 = vmatprep.subr.mxu0 0.0
        %1750 = vmatpush1.msra.mxu0 0.0
        %1751 = vmatprep.subr.mxu0 0.0
        %1752 = vmatpush1.msra.mxu0 0.0
        %1753 = vmatprep.subr.mxu0 0.0
        %1754 = vmatpush1.msra.mxu0 0.0
        %1755 = vmatprep.subr.mxu0 0.0
        %1756 = vmatpush1.msra.mxu0 0.0
        %1757 = vmatprep.subr.mxu0 0.0
        %1758 = vmatpush1.msra.mxu0 0.0
        %1759 = vmatprep.subr.mxu0 0.0
        %1760 = vmatpush1.msra.mxu0 0.0
        %1761 = vmatprep.subr.mxu0 0.0
        %1762 = vmatpush1.msra.mxu0 0.0
        %1763 = vmatprep.subr.mxu0 0.0
        %1764 = vmatpush1.msra.mxu0 0.0
        %1765 = vmatprep.subr.mxu0 0.0
        %1766 = vmatpush1.msra.mxu0 0.0
        %1767 = vmatprep.subr.mxu0 0.0
        %1768 = vmatpush1.msra.mxu0 0.0
        %1769 = vmatprep.subr.mxu0 0.0
        %1770 = vmatpush1.msra.mxu0 0.0
        %1771 = vmatprep.subr.mxu0 0.0
        %1772 = vmatpush1.msra.mxu0 0.0
        %1773 = vmatprep.subr.mxu0 0.0
        %1774 = vmatpush1.msra.mxu0 0.0
        %1775 = vmatprep.subr.mxu0 0.0
        %1776 = vmatpush1.msra.mxu0 0.0
        %1777 = vmatprep.subr.mxu0 0.0
        %1778 = vmatpush1.msra.mxu0 0.0
        %1779 = vmatprep.subr.mxu0 0.0
        %1780 = vmatpush1.msra.mxu0 0.0
        %1781 = vmatprep.subr.mxu0 0.0
        %1782 = vmatpush1.msra.mxu0 0.0
        %1783 = vmatprep.mubr.f32.mxu0 0.0
        %1784 = vmatmul.mubr.f32.gmra.mrb[0].mxu0 %v1621
        %v1785 = vpop.f32.mrb[0].mxu0
        %v1786 = vadd.f32 0.0, %v1785
        %v1787 = vpop.f32.mrb[0].mxu0
        %1788 = vmatprep.mubr.f32.mxu0 0.0
        %1789 = vmatmul.mubr.f32.gmra.mrb[0].mxu0 %v1624
        %v1790 = vpop.f32.mrb[0].mxu0
        %v1791 = vadd.f32 0.0, %v1790
        %v1792 = vpop.f32.mrb[0].mxu0
        %1793 = vmatprep.mubr.f32.mxu0 0.0
        %1794 = vmatmul.mubr.f32.gmra.mrb[0].mxu0 %v1627
        %v1795 = vpop.f32.mrb[0].mxu0
        %v1796 = vadd.f32 0.0, %v1795
        %v1797 = vpop.f32.mrb[0].mxu0
        %1798 = vmatprep.mubr.f32.mxu0 0.0
        %1799 = vmatmul.mubr.f32.gmra.mrb[0].mxu0 %v1630
        %v1800 = vpop.f32.mrb[0].mxu0
        %v1801 = vadd.f32 0.0, %v1800
        %v1802 = vpop.f32.mrb[0].mxu0
        %1803 = vmatprep.mubr.f32.mxu0 0.0
        %1804 = vmatmul.mubr.f32.gmra.mrb[0].mxu0 %v1633
        %v1805 = vpop.f32.mrb[0].mxu0
        %v1806 = vadd.f32 0.0, %v1805
        %v1807 = vpop.f32.mrb[0].mxu0
        %1808 = vmatprep.mubr.f32.mxu0 0.0
        %1809 = vmatmul.mubr.f32.gmra.mrb[0].mxu0 %v1636
        %v1810 = vpop.f32.mrb[0].mxu0
        %v1811 = vadd.f32 0.0, %v1810
        %v1812 = vpop.f32.mrb[0].mxu0
        %1813 = vmatprep.mubr.f32.mxu0 0.0
        %1814 = vmatmul.mubr.f32.gmra.mrb[0].mxu0 %v1639
        %v1815 = vpop.f32.mrb[0].mxu0
        %v1816 = vadd.f32 0.0, %v1815
        %v1817 = vpop.f32.mrb[0].mxu0
        %1818 = vmatprep.mubr.f32.mxu0 0.0
        %1819 = vmatmul.mubr.f32.gmra.mrb[0].mxu0 %v1642
        %v1820 = vpop.f32.mrb[0].mxu0
        %v1821 = vadd.f32 0.0, %v1820
        %v1822 = vpop.f32.mrb[0].mxu0
        %1823 = vmatprep.mubr.f32.mxu0 0.0
        %1824 = vmatmul.mubr.f32.gmra.mrb[0].mxu0 %v1645
        %v1825 = vpop.f32.mrb[0].mxu0
        %v1826 = vadd.f32 0.0, %v1825
        %v1827 = vpop.f32.mrb[0].mxu0
        %1828 = vmatprep.mubr.f32.mxu0 0.0
        %1829 = vmatmul.mubr.f32.gmra.mrb[0].mxu0 %v1648
        %v1830 = vpop.f32.mrb[0].mxu0
        %v1831 = vadd.f32 0.0, %v1830
        %v1832 = vpop.f32.mrb[0].mxu0
        %1833 = vmatprep.mubr.f32.mxu0 0.0
        %1834 = vmatmul.mubr.f32.gmra.mrb[0].mxu0 %v1651
        %v1835 = vpop.f32.mrb[0].mxu0
        %v1836 = vadd.f32 0.0, %v1835
        %v1837 = vpop.f32.mrb[0].mxu0
        %1838 = vmatprep.mubr.f32.mxu0 0.0
        %1839 = vmatmul.mubr.f32.gmra.mrb[0].mxu0 %v1654
        %v1840 = vpop.f32.mrb[0].mxu0
        %v1841 = vadd.f32 0.0, %v1840
        %v1842 = vpop.f32.mrb[0].mxu0
        %1843 = vmatprep.mubr.f32.mxu0 0.0
        %1844 = vmatmul.mubr.f32.gmra.mrb[0].mxu0 %v1657
        %v1845 = vpop.f32.mrb[0].mxu0
        %v1846 = vadd.f32 0.0, %v1845
        %v1847 = vpop.f32.mrb[0].mxu0
        %1848 = vmatprep.mubr.f32.mxu0 0.0
        %1849 = vmatmul.mubr.f32.gmra.mrb[0].mxu0 %v1660
        %v1850 = vpop.f32.mrb[0].mxu0
        %v1851 = vadd.f32 0.0, %v1850
        %v1852 = vpop.f32.mrb[0].mxu0
        %1853 = vmatprep.mubr.f32.mxu0 0.0
        %1854 = vmatmul.mubr.f32.gmra.mrb[0].mxu0 %v1663
        %v1855 = vpop.f32.mrb[0].mxu0
        %v1856 = vadd.f32 0.0, %v1855
        %v1857 = vpop.f32.mrb[0].mxu0
        %1858 = vmatprep.mubr.f32.mxu0 0.0
        %1859 = vmatmul.mubr.f32.gmra.mrb[0].mxu0 %v1666
        %v1860 = vpop.f32.mrb[0].mxu0
        %v1861 = vadd.f32 0.0, %v1860
        %v1862 = vpop.f32.mrb[0].mxu0
        %1863 = vmatprep.mubr.f32.mxu0 0.0
        %1864 = vmatmul.mubr.f32.gmra.mrb[0].mxu0 %v1669
        %v1865 = vpop.f32.mrb[0].mxu0
        %v1866 = vadd.f32 0.0, %v1865
        %v1867 = vpop.f32.mrb[0].mxu0
        %1868 = vmatprep.mubr.f32.mxu0 0.0
        %1869 = vmatmul.mubr.f32.gmra.mrb[0].mxu0 %v1672
        %v1870 = vpop.f32.mrb[0].mxu0
        %v1871 = vadd.f32 0.0, %v1870
        %v1872 = vpop.f32.mrb[0].mxu0
        %1873 = vmatprep.mubr.f32.mxu0 0.0
        %1874 = vmatmul.mubr.f32.gmra.mrb[0].mxu0 %v1675
        %v1875 = vpop.f32.mrb[0].mxu0
        %v1876 = vadd.f32 0.0, %v1875
        %v1877 = vpop.f32.mrb[0].mxu0
        %1878 = vmatprep.mubr.f32.mxu0 0.0
        %1879 = vmatmul.mubr.f32.gmra.mrb[0].mxu0 %v1678
        %v1880 = vpop.f32.mrb[0].mxu0
        %v1881 = vadd.f32 0.0, %v1880
        %v1882 = vpop.f32.mrb[0].mxu0
        %1883 = vmatprep.mubr.f32.mxu0 0.0
        %1884 = vmatmul.mubr.f32.gmra.mrb[0].mxu0 %v1681
        %v1885 = vpop.f32.mrb[0].mxu0
        %v1886 = vadd.f32 0.0, %v1885
        %v1887 = vpop.f32.mrb[0].mxu0
        %1888 = vmatprep.mubr.f32.mxu0 0.0
        %1889 = vmatmul.mubr.f32.gmra.mrb[0].mxu0 %v1684
        %v1890 = vpop.f32.mrb[0].mxu0
        %v1891 = vadd.f32 0.0, %v1890
        %v1892 = vpop.f32.mrb[0].mxu0
        %1893 = vmatprep.mubr.f32.mxu0 0.0
        %1894 = vmatmul.mubr.f32.gmra.mrb[0].mxu0 %v1687
        %v1895 = vpop.f32.mrb[0].mxu0
        %v1896 = vadd.f32 0.0, %v1895
        %v1897 = vpop.f32.mrb[0].mxu0
        %1898 = vmatprep.mubr.f32.mxu0 0.0
        %1899 = vmatmul.mubr.f32.gmra.mrb[0].mxu0 %v1690
        %v1900 = vpop.f32.mrb[0].mxu0
        %v1901 = vadd.f32 0.0, %v1900
        %v1902 = vpop.f32.mrb[0].mxu0
        %1903 = vmatprep.mubr.f32.mxu0 0.0
        %1904 = vmatmul.mubr.f32.gmra.mrb[0].mxu0 %v1693
        %v1905 = vpop.f32.mrb[0].mxu0
        %v1906 = vadd.f32 0.0, %v1905
        %v1907 = vpop.f32.mrb[0].mxu0
        %1908 = vmatprep.mubr.f32.mxu0 0.0
        %1909 = vmatmul.mubr.f32.gmra.mrb[0].mxu0 %v1696
        %v1910 = vpop.f32.mrb[0].mxu0
        %v1911 = vadd.f32 0.0, %v1910
        %v1912 = vpop.f32.mrb[0].mxu0
        %1913 = vmatprep.mubr.f32.mxu0 0.0
        %1914 = vmatmul.mubr.f32.gmra.mrb[0].mxu0 %v1699
        %v1915 = vpop.f32.mrb[0].mxu0
        %v1916 = vadd.f32 0.0, %v1915
        %v1917 = vpop.f32.mrb[0].mxu0
        %1918 = vmatprep.mubr.f32.mxu0 0.0
        %1919 = vmatmul.mubr.f32.gmra.mrb[0].mxu0 %v1702
        %v1920 = vpop.f32.mrb[0].mxu0
        %v1921 = vadd.f32 0.0, %v1920
        %v1922 = vpop.f32.mrb[0].mxu0
        %1923 = vmatprep.mubr.f32.mxu0 0.0
        %1924 = vmatmul.mubr.f32.gmra.mrb[0].mxu0 %v1705
        %v1925 = vpop.f32.mrb[0].mxu0
        %v1926 = vadd.f32 0.0, %v1925
        %v1927 = vpop.f32.mrb[0].mxu0
        %1928 = vmatprep.mubr.f32.mxu0 0.0
        %1929 = vmatmul.mubr.f32.gmra.mrb[0].mxu0 %v1708
        %v1930 = vpop.f32.mrb[0].mxu0
        %v1931 = vadd.f32 0.0, %v1930
        %v1932 = vpop.f32.mrb[0].mxu0
        %1933 = vmatprep.mubr.f32.mxu0 0.0
        %1934 = vmatmul.mubr.f32.gmra.mrb[0].mxu0 %v1711
        %v1935 = vpop.f32.mrb[0].mxu0
        %v1936 = vadd.f32 0.0, %v1935
        %v1937 = vpop.f32.mrb[0].mxu0
        %1938 = vmatprep.mubr.f32.mxu0 0.0
        %1939 = vmatmul.mubr.f32.gmra.mrb[0].mxu0 %v1714
        %v1940 = vpop.f32.mrb[0].mxu0
        %v1941 = vadd.f32 0.0, %v1940
        %v1942 = vpop.f32.mrb[0].mxu0
        %1943 = vdwg.mxu0
        %v1944 = vadd.f32 %v1396, %v1786
        %v1945 = vadd.f32 %v1401, %v1791
        %v1946 = vadd.f32 %v1406, %v1796
        %v1947 = vadd.f32 %v1411, %v1801
        %v1948 = vadd.f32 %v1416, %v1806
        %v1949 = vadd.f32 %v1421, %v1811
        %v1950 = vadd.f32 %v1426, %v1816
        %v1951 = vadd.f32 %v1431, %v1821
        %v1952 = vadd.f32 %v1436, %v1826
        %v1953 = vadd.f32 %v1441, %v1831
        %v1954 = vadd.f32 %v1446, %v1836
        %v1955 = vadd.f32 %v1451, %v1841
        %v1956 = vadd.f32 %v1456, %v1846
        %v1957 = vadd.f32 %v1461, %v1851
        %v1958 = vadd.f32 %v1466, %v1856
        %v1959 = vadd.f32 %v1471, %v1861
        %v1960 = vadd.f32 %v1476, %v1866
        %v1961 = vadd.f32 %v1481, %v1871
        %v1962 = vadd.f32 %v1486, %v1876
        %v1963 = vadd.f32 %v1491, %v1881
        %v1964 = vadd.f32 %v1496, %v1886
        %v1965 = vadd.f32 %v1501, %v1891
        %v1966 = vadd.f32 %v1506, %v1896
        %v1967 = vadd.f32 %v1511, %v1901
        %v1968 = vadd.f32 %v1516, %v1906
        %v1969 = vadd.f32 %v1521, %v1911
        %v1970 = vadd.f32 %v1526, %v1916
        %v1971 = vadd.f32 %v1531, %v1921
        %v1972 = vadd.f32 %v1536, %v1926
        %v1973 = vadd.f32 %v1541, %v1931
        %v1974 = vadd.f32 %v1546, %v1936
        %v1975 = vadd.f32 %v1551, %v1941
        %v1976 = vlaneseq
        %v1977 = vshrl.u32 %v1976, 7
        %v1978 = vsub.s32 0, %v1977
        %v1979 = vrot.slane %v772, %v1978
        %v1980 = vadd.f32 %v1944, %v1979
        %v1981 = vadd.f32 %v1945, %v1979
        %v1982 = vadd.f32 %v1946, %v1979
        %v1983 = vadd.f32 %v1947, %v1979
        %v1984 = vadd.f32 %v1948, %v1979
        %v1985 = vadd.f32 %v1949, %v1979
        %v1986 = vadd.f32 %v1950, %v1979
        %v1987 = vadd.f32 %v1951, %v1979
        %v1988 = vadd.f32 %v1952, %v1979
        %v1989 = vadd.f32 %v1953, %v1979
        %v1990 = vadd.f32 %v1954, %v1979
        %v1991 = vadd.f32 %v1955, %v1979
        %v1992 = vadd.f32 %v1956, %v1979
        %v1993 = vadd.f32 %v1957, %v1979
        %v1994 = vadd.f32 %v1958, %v1979
        %v1995 = vadd.f32 %v1959, %v1979
        %v1996 = vadd.f32 %v1960, %v1979
        %v1997 = vadd.f32 %v1961, %v1979
        %v1998 = vadd.f32 %v1962, %v1979
        %v1999 = vadd.f32 %v1963, %v1979
        %v2000 = vadd.f32 %v1964, %v1979
        %v2001 = vadd.f32 %v1965, %v1979
        %v2002 = vadd.f32 %v1966, %v1979
        %v2003 = vadd.f32 %v1967, %v1979
        %v2004 = vadd.f32 %v1968, %v1979
        %v2005 = vadd.f32 %v1969, %v1979
        %v2006 = vadd.f32 %v1970, %v1979
        %v2007 = vadd.f32 %v1971, %v1979
        %v2008 = vadd.f32 %v1972, %v1979
        %v2009 = vadd.f32 %v1973, %v1979
        %v2010 = vadd.f32 %v1974, %v1979
        %v2011 = vadd.f32 %v1975, %v1979
        %vm2012 = vcmask 261120
        %v2013 = vsel %vm2012, %v1980, 0.0
        %v2014 = vsel %vm2012, %v1981, 0.0
        %v2015 = vadd.f32 %v2013, %v2014
        %v2016 = vsel %vm2012, %v1982, 0.0
        %v2017 = vadd.f32 %v2015, %v2016
        %v2018 = vsel %vm2012, %v1983, 0.0
        %v2019 = vadd.f32 %v2017, %v2018
        %v2020 = vsel %vm2012, %v1984, 0.0
        %v2021 = vadd.f32 %v2019, %v2020
        %v2022 = vsel %vm2012, %v1985, 0.0
        %v2023 = vadd.f32 %v2021, %v2022
        %v2024 = vsel %vm2012, %v1986, 0.0
        %v2025 = vadd.f32 %v2023, %v2024
        %v2026 = vsel %vm2012, %v1987, 0.0
        %v2027 = vadd.f32 %v2025, %v2026
        %v2028 = vsel %vm2012, %v1988, 0.0
        %v2029 = vadd.f32 %v2027, %v2028
        %v2030 = vsel %vm2012, %v1989, 0.0
        %v2031 = vadd.f32 %v2029, %v2030
        %v2032 = vsel %vm2012, %v1990, 0.0
        %v2033 = vadd.f32 %v2031, %v2032
        %v2034 = vsel %vm2012, %v1991, 0.0
        %v2035 = vadd.f32 %v2033, %v2034
        %v2036 = vsel %vm2012, %v1992, 0.0
        %v2037 = vadd.f32 %v2035, %v2036
        %v2038 = vsel %vm2012, %v1993, 0.0
        %v2039 = vadd.f32 %v2037, %v2038
        %v2040 = vsel %vm2012, %v1994, 0.0
        %v2041 = vadd.f32 %v2039, %v2040
        %v2042 = vsel %vm2012, %v1995, 0.0
        %v2043 = vadd.f32 %v2041, %v2042
        %v2044 = vsel %vm2012, %v1996, 0.0
        %v2045 = vadd.f32 %v2043, %v2044
        %v2046 = vsel %vm2012, %v1997, 0.0
        %v2047 = vadd.f32 %v2045, %v2046
        %v2048 = vsel %vm2012, %v1998, 0.0
        %v2049 = vadd.f32 %v2047, %v2048
        %v2050 = vsel %vm2012, %v1999, 0.0
        %v2051 = vadd.f32 %v2049, %v2050
        %v2052 = vsel %vm2012, %v2000, 0.0
        %v2053 = vadd.f32 %v2051, %v2052
        %v2054 = vsel %vm2012, %v2001, 0.0
        %v2055 = vadd.f32 %v2053, %v2054
        %v2056 = vsel %vm2012, %v2002, 0.0
        %v2057 = vadd.f32 %v2055, %v2056
        %v2058 = vsel %vm2012, %v2003, 0.0
        %v2059 = vadd.f32 %v2057, %v2058
        %v2060 = vsel %vm2012, %v2004, 0.0
        %v2061 = vadd.f32 %v2059, %v2060
        %v2062 = vsel %vm2012, %v2005, 0.0
        %v2063 = vadd.f32 %v2061, %v2062
        %v2064 = vsel %vm2012, %v2006, 0.0
        %v2065 = vadd.f32 %v2063, %v2064
        %v2066 = vsel %vm2012, %v2007, 0.0
        %v2067 = vadd.f32 %v2065, %v2066
        %v2068 = vsel %vm2012, %v2008, 0.0
        %v2069 = vadd.f32 %v2067, %v2068
        %v2070 = vsel %vm2012, %v2009, 0.0
        %v2071 = vadd.f32 %v2069, %v2070
        %v2072 = vsel %vm2012, %v2010, 0.0
        %v2073 = vadd.f32 %v2071, %v2072
        %v2074 = vsel %vm2012, %v2011, 0.0
        %v2075 = vadd.f32 %v2073, %v2074
        %v2076 = vrot.slane %v2075, 4
        %v2077 = vadd.f32 %v2075, %v2076
        %v2078 = vrot.slane %v2077, 2
        %v2079 = vadd.f32 %v2077, %v2078
        %v2080 = vrot.slane %v2079, 1
        %v2081 = vadd.f32 %v2079, %v2080
        %v2082 = vld [vmem:[%s6] sm:$0xff]
        %v2083 = vld [vmem:[%s6 + $0x8] sm:$0xff]
        %v2084 = vld [vmem:[%s6 + $0x10] sm:$0xff]
        %v2085 = vld [vmem:[%s6 + $0x18] sm:$0xff]
        %v2087 = vsel %vm2012, %v2081, 0
        %2089 = vmatprep.subr.mxu0 0.0
        %2090 = vmatpush1.msra.mxu0 %v2082
        %2091 = vmatprep.subr.mxu0 0.0
        %2092 = vmatpush1.msra.mxu0 %v2083
        %2093 = vmatprep.subr.mxu0 0.0
        %2094 = vmatpush1.msra.mxu0 %v2084
        %2095 = vmatprep.subr.mxu0 0.0
        %2096 = vmatpush1.msra.mxu0 %v2085
        %2097 = vmatprep.subr.mxu0 0.0
        %2098 = vmatpush1.msra.mxu0 0.0
        %2099 = vmatprep.subr.mxu0 0.0
        %2100 = vmatpush1.msra.mxu0 0.0
        %2101 = vmatprep.subr.mxu0 0.0
        %2102 = vmatpush1.msra.mxu0 0.0
        %2103 = vmatprep.subr.mxu0 0.0
        %2104 = vmatpush1.msra.mxu0 0.0
        %2105 = vmatprep.subr.mxu0 0.0
        %2106 = vmatpush1.msra.mxu0 0.0
        %2107 = vmatprep.subr.mxu0 0.0
        %2108 = vmatpush1.msra.mxu0 0.0
        %2109 = vmatprep.subr.mxu0 0.0
        %2110 = vmatpush1.msra.mxu0 0.0
        %2111 = vmatprep.subr.mxu0 0.0
        %2112 = vmatpush1.msra.mxu0 0.0
        %2113 = vmatprep.subr.mxu0 0.0
        %2114 = vmatpush1.msra.mxu0 0.0
        %2115 = vmatprep.subr.mxu0 0.0
        %2116 = vmatpush1.msra.mxu0 0.0
        %2117 = vmatprep.subr.mxu0 0.0
        %2118 = vmatpush1.msra.mxu0 0.0
        %2119 = vmatprep.subr.mxu0 0.0
        %2120 = vmatpush1.msra.mxu0 0.0
        %2121 = vmatprep.subr.mxu0 0.0
        %2122 = vmatpush1.msra.mxu0 0.0
        %2123 = vmatprep.subr.mxu0 0.0
        %2124 = vmatpush1.msra.mxu0 0.0
        %2125 = vmatprep.subr.mxu0 0.0
        %2126 = vmatpush1.msra.mxu0 0.0
        %2127 = vmatprep.subr.mxu0 0.0
        %2128 = vmatpush1.msra.mxu0 0.0
        %2129 = vmatprep.subr.mxu0 0.0
        %2130 = vmatpush1.msra.mxu0 0.0
        %2131 = vmatprep.subr.mxu0 0.0
        %2132 = vmatpush1.msra.mxu0 0.0
        %2133 = vmatprep.subr.mxu0 0.0
        %2134 = vmatpush1.msra.mxu0 0.0
        %2135 = vmatprep.subr.mxu0 0.0
        %2136 = vmatpush1.msra.mxu0 0.0
        %2137 = vmatprep.subr.mxu0 0.0
        %2138 = vmatpush1.msra.mxu0 0.0
        %2139 = vmatprep.subr.mxu0 0.0
        %2140 = vmatpush1.msra.mxu0 0.0
        %2141 = vmatprep.subr.mxu0 0.0
        %2142 = vmatpush1.msra.mxu0 0.0
        %2143 = vmatprep.subr.mxu0 0.0
        %2144 = vmatpush1.msra.mxu0 0.0
        %2145 = vmatprep.subr.mxu0 0.0
        %2146 = vmatpush1.msra.mxu0 0.0
        %2147 = vmatprep.subr.mxu0 0.0
        %2148 = vmatpush1.msra.mxu0 0.0
        %2149 = vmatprep.subr.mxu0 0.0
        %2150 = vmatpush1.msra.mxu0 0.0
        %2151 = vmatprep.subr.mxu0 0.0
        %2152 = vmatpush1.msra.mxu0 0.0
        %2153 = vmatprep.mubr.f32.mxu0 0.0
        %2154 = vmatmul.mubr.f32.gmra.mrb[0].mxu0 %v2087
        %v2155 = vpop.f32.mrb[0].mxu0
        %v2156 = vadd.f32 0.0, %v2155
        %v2157 = vpop.f32.mrb[0].mxu0
        %2158 = vdwg.mxu0
        %v2159 = vrcp.pop 512.0
        %v2160 = vmul.f32 %v2156, %v2159
        %v2161 = vlaneseq
        %v2162 = vshrl.u32 %v2161, 7
        %v2163 = vsub.s32 0, %v2162
        %v2164 = vrot.slane %v2160, %v2163
        %v2165 = vsub.f32 %v1980, %v2164
        %v2166 = vsub.f32 %v1981, %v2164
        %v2167 = vsub.f32 %v1982, %v2164
        %v2168 = vsub.f32 %v1983, %v2164
        %v2169 = vsub.f32 %v1984, %v2164
        %v2170 = vsub.f32 %v1985, %v2164
        %v2171 = vsub.f32 %v1986, %v2164
        %v2172 = vsub.f32 %v1987, %v2164
        %v2173 = vsub.f32 %v1988, %v2164
        %v2174 = vsub.f32 %v1989, %v2164
        %v2175 = vsub.f32 %v1990, %v2164
        %v2176 = vsub.f32 %v1991, %v2164
        %v2177 = vsub.f32 %v1992, %v2164
        %v2178 = vsub.f32 %v1993, %v2164
        %v2179 = vsub.f32 %v1994, %v2164
        %v2180 = vsub.f32 %v1995, %v2164
        %v2181 = vsub.f32 %v1996, %v2164
        %v2182 = vsub.f32 %v1997, %v2164
        %v2183 = vsub.f32 %v1998, %v2164
        %v2184 = vsub.f32 %v1999, %v2164
        %v2185 = vsub.f32 %v2000, %v2164
        %v2186 = vsub.f32 %v2001, %v2164
        %v2187 = vsub.f32 %v2002, %v2164
        %v2188 = vsub.f32 %v2003, %v2164
        %v2189 = vsub.f32 %v2004, %v2164
        %v2190 = vsub.f32 %v2005, %v2164
        %v2191 = vsub.f32 %v2006, %v2164
        %v2192 = vsub.f32 %v2007, %v2164
        %v2193 = vsub.f32 %v2008, %v2164
        %v2194 = vsub.f32 %v2009, %v2164
        %v2195 = vsub.f32 %v2010, %v2164
        %v2196 = vsub.f32 %v2011, %v2164
        %v2197 = vmul.f32 %v2165, %v2165
        %v2198 = vmul.f32 %v2166, %v2166
        %v2199 = vmul.f32 %v2167, %v2167
        %v2200 = vmul.f32 %v2168, %v2168
        %v2201 = vmul.f32 %v2169, %v2169
        %v2202 = vmul.f32 %v2170, %v2170
        %v2203 = vmul.f32 %v2171, %v2171
        %v2204 = vmul.f32 %v2172, %v2172
        %v2205 = vmul.f32 %v2173, %v2173
        %v2206 = vmul.f32 %v2174, %v2174
        %v2207 = vmul.f32 %v2175, %v2175
        %v2208 = vmul.f32 %v2176, %v2176
        %v2209 = vmul.f32 %v2177, %v2177
        %v2210 = vmul.f32 %v2178, %v2178
        %v2211 = vmul.f32 %v2179, %v2179
        %v2212 = vmul.f32 %v2180, %v2180
        %v2213 = vmul.f32 %v2181, %v2181
        %v2214 = vmul.f32 %v2182, %v2182
        %v2215 = vmul.f32 %v2183, %v2183
        %v2216 = vmul.f32 %v2184, %v2184
        %v2217 = vmul.f32 %v2185, %v2185
        %v2218 = vmul.f32 %v2186, %v2186
        %v2219 = vmul.f32 %v2187, %v2187
        %v2220 = vmul.f32 %v2188, %v2188
        %v2221 = vmul.f32 %v2189, %v2189
        %v2222 = vmul.f32 %v2190, %v2190
        %v2223 = vmul.f32 %v2191, %v2191
        %v2224 = vmul.f32 %v2192, %v2192
        %v2225 = vmul.f32 %v2193, %v2193
        %v2226 = vmul.f32 %v2194, %v2194
        %v2227 = vmul.f32 %v2195, %v2195
        %v2228 = vmul.f32 %v2196, %v2196
        %v2229 = vsel %vm2012, %v2197, 0.0
        %v2230 = vsel %vm2012, %v2198, 0.0
        %v2231 = vadd.f32 %v2229, %v2230
        %v2232 = vsel %vm2012, %v2199, 0.0
        %v2233 = vadd.f32 %v2231, %v2232
        %v2234 = vsel %vm2012, %v2200, 0.0
        %v2235 = vadd.f32 %v2233, %v2234
        %v2236 = vsel %vm2012, %v2201, 0.0
        %v2237 = vadd.f32 %v2235, %v2236
        %v2238 = vsel %vm2012, %v2202, 0.0
        %v2239 = vadd.f32 %v2237, %v2238
        %v2240 = vsel %vm2012, %v2203, 0.0
        %v2241 = vadd.f32 %v2239, %v2240
        %v2242 = vsel %vm2012, %v2204, 0.0
        %v2243 = vadd.f32 %v2241, %v2242
        %v2244 = vsel %vm2012, %v2205, 0.0
        %v2245 = vadd.f32 %v2243, %v2244
        %v2246 = vsel %vm2012, %v2206, 0.0
        %v2247 = vadd.f32 %v2245, %v2246
        %v2248 = vsel %vm2012, %v2207, 0.0
        %v2249 = vadd.f32 %v2247, %v2248
        %v2250 = vsel %vm2012, %v2208, 0.0
        %v2251 = vadd.f32 %v2249, %v2250
        %v2252 = vsel %vm2012, %v2209, 0.0
        %v2253 = vadd.f32 %v2251, %v2252
        %v2254 = vsel %vm2012, %v2210, 0.0
        %v2255 = vadd.f32 %v2253, %v2254
        %v2256 = vsel %vm2012, %v2211, 0.0
        %v2257 = vadd.f32 %v2255, %v2256
        %v2258 = vsel %vm2012, %v2212, 0.0
        %v2259 = vadd.f32 %v2257, %v2258
        %v2260 = vsel %vm2012, %v2213, 0.0
        %v2261 = vadd.f32 %v2259, %v2260
        %v2262 = vsel %vm2012, %v2214, 0.0
        %v2263 = vadd.f32 %v2261, %v2262
        %v2264 = vsel %vm2012, %v2215, 0.0
        %v2265 = vadd.f32 %v2263, %v2264
        %v2266 = vsel %vm2012, %v2216, 0.0
        %v2267 = vadd.f32 %v2265, %v2266
        %v2268 = vsel %vm2012, %v2217, 0.0
        %v2269 = vadd.f32 %v2267, %v2268
        %v2270 = vsel %vm2012, %v2218, 0.0
        %v2271 = vadd.f32 %v2269, %v2270
        %v2272 = vsel %vm2012, %v2219, 0.0
        %v2273 = vadd.f32 %v2271, %v2272
        %v2274 = vsel %vm2012, %v2220, 0.0
        %v2275 = vadd.f32 %v2273, %v2274
        %v2276 = vsel %vm2012, %v2221, 0.0
        %v2277 = vadd.f32 %v2275, %v2276
        %v2278 = vsel %vm2012, %v2222, 0.0
        %v2279 = vadd.f32 %v2277, %v2278
        %v2280 = vsel %vm2012, %v2223, 0.0
        %v2281 = vadd.f32 %v2279, %v2280
        %v2282 = vsel %vm2012, %v2224, 0.0
        %v2283 = vadd.f32 %v2281, %v2282
        %v2284 = vsel %vm2012, %v2225, 0.0
        %v2285 = vadd.f32 %v2283, %v2284
        %v2286 = vsel %vm2012, %v2226, 0.0
        %v2287 = vadd.f32 %v2285, %v2286
        %v2288 = vsel %vm2012, %v2227, 0.0
        %v2289 = vadd.f32 %v2287, %v2288
        %v2290 = vsel %vm2012, %v2228, 0.0
        %v2291 = vadd.f32 %v2289, %v2290
        %v2292 = vrot.slane %v2291, 4
        %v2293 = vadd.f32 %v2291, %v2292
        %v2294 = vrot.slane %v2293, 2
        %v2295 = vadd.f32 %v2293, %v2294
        %v2296 = vrot.slane %v2295, 1
        %v2297 = vadd.f32 %v2295, %v2296
        %v2299 = vsel %vm2012, %v2297, 0
        %2301 = vmatprep.subr.mxu0 0.0
        %2302 = vmatpush1.msra.mxu0 %v2082
        %2303 = vmatprep.subr.mxu0 0.0
        %2304 = vmatpush1.msra.mxu0 %v2083
        %2305 = vmatprep.subr.mxu0 0.0
        %2306 = vmatpush1.msra.mxu0 %v2084
        %2307 = vmatprep.subr.mxu0 0.0
        %2308 = vmatpush1.msra.mxu0 %v2085
        %2309 = vmatprep.subr.mxu0 0.0
        %2310 = vmatpush1.msra.mxu0 0.0
        %2311 = vmatprep.subr.mxu0 0.0
        %2312 = vmatpush1.msra.mxu0 0.0
        %2313 = vmatprep.subr.mxu0 0.0
        %2314 = vmatpush1.msra.mxu0 0.0
        %2315 = vmatprep.subr.mxu0 0.0
        %2316 = vmatpush1.msra.mxu0 0.0
        %2317 = vmatprep.subr.mxu0 0.0
        %2318 = vmatpush1.msra.mxu0 0.0
        %2319 = vmatprep.subr.mxu0 0.0
        %2320 = vmatpush1.msra.mxu0 0.0
        %2321 = vmatprep.subr.mxu0 0.0
        %2322 = vmatpush1.msra.mxu0 0.0
        %2323 = vmatprep.subr.mxu0 0.0
        %2324 = vmatpush1.msra.mxu0 0.0
        %2325 = vmatprep.subr.mxu0 0.0
        %2326 = vmatpush1.msra.mxu0 0.0
        %2327 = vmatprep.subr.mxu0 0.0
        %2328 = vmatpush1.msra.mxu0 0.0
        %2329 = vmatprep.subr.mxu0 0.0
        %2330 = vmatpush1.msra.mxu0 0.0
        %2331 = vmatprep.subr.mxu0 0.0
        %2332 = vmatpush1.msra.mxu0 0.0
        %2333 = vmatprep.subr.mxu0 0.0
        %2334 = vmatpush1.msra.mxu0 0.0
        %2335 = vmatprep.subr.mxu0 0.0
        %2336 = vmatpush1.msra.mxu0 0.0
        %2337 = vmatprep.subr.mxu0 0.0
        %2338 = vmatpush1.msra.mxu0 0.0
        %2339 = vmatprep.subr.mxu0 0.0
        %2340 = vmatpush1.msra.mxu0 0.0
        %2341 = vmatprep.subr.mxu0 0.0
        %2342 = vmatpush1.msra.mxu0 0.0
        %2343 = vmatprep.subr.mxu0 0.0
        %2344 = vmatpush1.msra.mxu0 0.0
        %2345 = vmatprep.subr.mxu0 0.0
        %2346 = vmatpush1.msra.mxu0 0.0
        %2347 = vmatprep.subr.mxu0 0.0
        %2348 = vmatpush1.msra.mxu0 0.0
        %2349 = vmatprep.subr.mxu0 0.0
        %2350 = vmatpush1.msra.mxu0 0.0
        %2351 = vmatprep.subr.mxu0 0.0
        %2352 = vmatpush1.msra.mxu0 0.0
        %2353 = vmatprep.subr.mxu0 0.0
        %2354 = vmatpush1.msra.mxu0 0.0
        %2355 = vmatprep.subr.mxu0 0.0
        %2356 = vmatpush1.msra.mxu0 0.0
        %2357 = vmatprep.subr.mxu0 0.0
        %2358 = vmatpush1.msra.mxu0 0.0
        %2359 = vmatprep.subr.mxu0 0.0
        %2360 = vmatpush1.msra.mxu0 0.0
        %2361 = vmatprep.subr.mxu0 0.0
        %2362 = vmatpush1.msra.mxu0 0.0
        %2363 = vmatprep.subr.mxu0 0.0
        %2364 = vmatpush1.msra.mxu0 0.0
        %2365 = vmatprep.mubr.f32.mxu0 0.0
        %2366 = vmatmul.mubr.f32.gmra.mrb[0].mxu0 %v2299
        %v2367 = vpop.f32.mrb[0].mxu0
        %v2368 = vadd.f32 0.0, %v2367
        %v2369 = vpop.f32.mrb[0].mxu0
        %2370 = vdwg.mxu0
        %v2371 = vmul.f32 %v2368, %v2159
        %v2372 = vadd.f32 %v2371, 1e-05
        %v2373 = vrsqrt.pop %v2372
        %v2374 = vlaneseq
        %v2375 = vshrl.u32 %v2374, 7
        %v2376 = vsub.s32 0, %v2375
        %v2377 = vrot.slane %v2373, %v2376
        %v2378 = vmul.f32 %v2165, %v2377
        %v2379 = vmul.f32 %v2166, %v2377
        %v2380 = vmul.f32 %v2167, %v2377
        %v2381 = vmul.f32 %v2168, %v2377
        %v2382 = vmul.f32 %v2169, %v2377
        %v2383 = vmul.f32 %v2170, %v2377
        %v2384 = vmul.f32 %v2171, %v2377
        %v2385 = vmul.f32 %v2172, %v2377
        %v2386 = vmul.f32 %v2173, %v2377
        %v2387 = vmul.f32 %v2174, %v2377
        %v2388 = vmul.f32 %v2175, %v2377
        %v2389 = vmul.f32 %v2176, %v2377
        %v2390 = vmul.f32 %v2177, %v2377
        %v2391 = vmul.f32 %v2178, %v2377
        %v2392 = vmul.f32 %v2179, %v2377
        %v2393 = vmul.f32 %v2180, %v2377
        %v2394 = vmul.f32 %v2181, %v2377
        %v2395 = vmul.f32 %v2182, %v2377
        %v2396 = vmul.f32 %v2183, %v2377
        %v2397 = vmul.f32 %v2184, %v2377
        %v2398 = vmul.f32 %v2185, %v2377
        %v2399 = vmul.f32 %v2186, %v2377
        %v2400 = vmul.f32 %v2187, %v2377
        %v2401 = vmul.f32 %v2188, %v2377
        %v2402 = vmul.f32 %v2189, %v2377
        %v2403 = vmul.f32 %v2190, %v2377
        %v2404 = vmul.f32 %v2191, %v2377
        %v2405 = vmul.f32 %v2192, %v2377
        %v2406 = vmul.f32 %v2193, %v2377
        %v2407 = vmul.f32 %v2194, %v2377
        %v2408 = vmul.f32 %v2195, %v2377
        %v2409 = vmul.f32 %v2196, %v2377
        %v2410 = vld [vmem:[%s4] sm:$0x1]
        %v2411 = vlaneseq
        %v2412 = vshrl.u32 %v2411, 7
        %v2413 = vsub.s32 0, %v2412
        %v2414 = vrot.slane %v2410, %v2413
        %v2415 = vmul.f32 %v2378, %v2414
        %v2416 = vmul.f32 %v2379, %v2414
        %v2417 = vmul.f32 %v2380, %v2414
        %v2418 = vmul.f32 %v2381, %v2414
        %v2419 = vmul.f32 %v2382, %v2414
        %v2420 = vmul.f32 %v2383, %v2414
        %v2421 = vmul.f32 %v2384, %v2414
        %v2422 = vmul.f32 %v2385, %v2414
        %v2423 = vmul.f32 %v2386, %v2414
        %v2424 = vmul.f32 %v2387, %v2414
        %v2425 = vmul.f32 %v2388, %v2414
        %v2426 = vmul.f32 %v2389, %v2414
        %v2427 = vmul.f32 %v2390, %v2414
        %v2428 = vmul.f32 %v2391, %v2414
        %v2429 = vmul.f32 %v2392, %v2414
        %v2430 = vmul.f32 %v2393, %v2414
        %v2431 = vmul.f32 %v2394, %v2414
        %v2432 = vmul.f32 %v2395, %v2414
        %v2433 = vmul.f32 %v2396, %v2414
        %v2434 = vmul.f32 %v2397, %v2414
        %v2435 = vmul.f32 %v2398, %v2414
        %v2436 = vmul.f32 %v2399, %v2414
        %v2437 = vmul.f32 %v2400, %v2414
        %v2438 = vmul.f32 %v2401, %v2414
        %v2439 = vmul.f32 %v2402, %v2414
        %v2440 = vmul.f32 %v2403, %v2414
        %v2441 = vmul.f32 %v2404, %v2414
        %v2442 = vmul.f32 %v2405, %v2414
        %v2443 = vmul.f32 %v2406, %v2414
        %v2444 = vmul.f32 %v2407, %v2414
        %v2445 = vmul.f32 %v2408, %v2414
        %v2446 = vmul.f32 %v2409, %v2414
        %v2447 = vld [vmem:[%s5] sm:$0x1]
        %v2448 = vlaneseq
        %v2449 = vshrl.u32 %v2448, 7
        %v2450 = vsub.s32 0, %v2449
        %v2451 = vrot.slane %v2447, %v2450
        %v2452 = vadd.f32 %v2415, %v2451
        %v2453 = vadd.f32 %v2416, %v2451
        %v2454 = vadd.f32 %v2417, %v2451
        %v2455 = vadd.f32 %v2418, %v2451
        %v2456 = vadd.f32 %v2419, %v2451
        %v2457 = vadd.f32 %v2420, %v2451
        %v2458 = vadd.f32 %v2421, %v2451
        %v2459 = vadd.f32 %v2422, %v2451
        %v2460 = vadd.f32 %v2423, %v2451
        %v2461 = vadd.f32 %v2424, %v2451
        %v2462 = vadd.f32 %v2425, %v2451
        %v2463 = vadd.f32 %v2426, %v2451
        %v2464 = vadd.f32 %v2427, %v2451
        %v2465 = vadd.f32 %v2428, %v2451
        %v2466 = vadd.f32 %v2429, %v2451
        %v2467 = vadd.f32 %v2430, %v2451
        %v2468 = vadd.f32 %v2431, %v2451
        %v2469 = vadd.f32 %v2432, %v2451
        %v2470 = vadd.f32 %v2433, %v2451
        %v2471 = vadd.f32 %v2434, %v2451
        %v2472 = vadd.f32 %v2435, %v2451
        %v2473 = vadd.f32 %v2436, %v2451
        %v2474 = vadd.f32 %v2437, %v2451
        %v2475 = vadd.f32 %v2438, %v2451
        %v2476 = vadd.f32 %v2439, %v2451
        %v2477 = vadd.f32 %v2440, %v2451
        %v2478 = vadd.f32 %v2441, %v2451
        %v2479 = vadd.f32 %v2442, %v2451
        %v2480 = vadd.f32 %v2443, %v2451
        %v2481 = vadd.f32 %v2444, %v2451
        %v2482 = vadd.f32 %v2445, %v2451
        %v2483 = vadd.f32 %v2446, %v2451
        %v2484 = vmul.f32 %v2452, 0.5
        %v2485 = vmul.f32 %v2453, 0.5
        %v2486 = vmul.f32 %v2454, 0.5
        %v2487 = vmul.f32 %v2455, 0.5
        %v2488 = vmul.f32 %v2456, 0.5
        %v2489 = vmul.f32 %v2457, 0.5
        %v2490 = vmul.f32 %v2458, 0.5
        %v2491 = vmul.f32 %v2459, 0.5
        %v2492 = vmul.f32 %v2460, 0.5
        %v2493 = vmul.f32 %v2461, 0.5
        %v2494 = vmul.f32 %v2462, 0.5
        %v2495 = vmul.f32 %v2463, 0.5
        %v2496 = vmul.f32 %v2464, 0.5
        %v2497 = vmul.f32 %v2465, 0.5
        %v2498 = vmul.f32 %v2466, 0.5
        %v2499 = vmul.f32 %v2467, 0.5
        %v2500 = vmul.f32 %v2468, 0.5
        %v2501 = vmul.f32 %v2469, 0.5
        %v2502 = vmul.f32 %v2470, 0.5
        %v2503 = vmul.f32 %v2471, 0.5
        %v2504 = vmul.f32 %v2472, 0.5
        %v2505 = vmul.f32 %v2473, 0.5
        %v2506 = vmul.f32 %v2474, 0.5
        %v2507 = vmul.f32 %v2475, 0.5
        %v2508 = vmul.f32 %v2476, 0.5
        %v2509 = vmul.f32 %v2477, 0.5
        %v2510 = vmul.f32 %v2478, 0.5
        %v2511 = vmul.f32 %v2479, 0.5
        %v2512 = vmul.f32 %v2480, 0.5
        %v2513 = vmul.f32 %v2481, 0.5
        %v2514 = vmul.f32 %v2482, 0.5
        %v2515 = vmul.f32 %v2483, 0.5
        %v2516 = vmul.f32 %v2452, 0.70710677
        %v2517 = vmul.f32 %v2453, 0.70710677
        %v2518 = vmul.f32 %v2454, 0.70710677
        %v2519 = vmul.f32 %v2455, 0.70710677
        %v2520 = vmul.f32 %v2456, 0.70710677
        %v2521 = vmul.f32 %v2457, 0.70710677
        %v2522 = vmul.f32 %v2458, 0.70710677
        %v2523 = vmul.f32 %v2459, 0.70710677
        %v2524 = vmul.f32 %v2460, 0.70710677
        %v2525 = vmul.f32 %v2461, 0.70710677
        %v2526 = vmul.f32 %v2462, 0.70710677
        %v2527 = vmul.f32 %v2463, 0.70710677
        %v2528 = vmul.f32 %v2464, 0.70710677
        %v2529 = vmul.f32 %v2465, 0.70710677
        %v2530 = vmul.f32 %v2466, 0.70710677
        %v2531 = vmul.f32 %v2467, 0.70710677
        %v2532 = vmul.f32 %v2468, 0.70710677
        %v2533 = vmul.f32 %v2469, 0.70710677
        %v2534 = vmul.f32 %v2470, 0.70710677
        %v2535 = vmul.f32 %v2471, 0.70710677
        %v2536 = vmul.f32 %v2472, 0.70710677
        %v2537 = vmul.f32 %v2473, 0.70710677
        %v2538 = vmul.f32 %v2474, 0.70710677
        %v2539 = vmul.f32 %v2475, 0.70710677
        %v2540 = vmul.f32 %v2476, 0.70710677
        %v2541 = vmul.f32 %v2477, 0.70710677
        %v2542 = vmul.f32 %v2478, 0.70710677
        %v2543 = vmul.f32 %v2479, 0.70710677
        %v2544 = vmul.f32 %v2480, 0.70710677
        %v2545 = vmul.f32 %v2481, 0.70710677
        %v2546 = vmul.f32 %v2482, 0.70710677
        %v2547 = vmul.f32 %v2483, 0.70710677
        %v2548 = verf.f32.pop %v2516
        %v2549 = verf.f32.pop %v2517
        %v2550 = verf.f32.pop %v2518
        %v2551 = verf.f32.pop %v2519
        %v2552 = verf.f32.pop %v2520
        %v2553 = verf.f32.pop %v2521
        %v2554 = verf.f32.pop %v2522
        %v2555 = verf.f32.pop %v2523
        %v2556 = verf.f32.pop %v2524
        %v2557 = verf.f32.pop %v2525
        %v2558 = verf.f32.pop %v2526
        %v2559 = verf.f32.pop %v2527
        %v2560 = verf.f32.pop %v2528
        %v2561 = verf.f32.pop %v2529
        %v2562 = verf.f32.pop %v2530
        %v2563 = verf.f32.pop %v2531
        %v2564 = verf.f32.pop %v2532
        %v2565 = verf.f32.pop %v2533
        %v2566 = verf.f32.pop %v2534
        %v2567 = verf.f32.pop %v2535
        %v2568 = verf.f32.pop %v2536
        %v2569 = verf.f32.pop %v2537
        %v2570 = verf.f32.pop %v2538
        %v2571 = verf.f32.pop %v2539
        %v2572 = verf.f32.pop %v2540
        %v2573 = verf.f32.pop %v2541
        %v2574 = verf.f32.pop %v2542
        %v2575 = verf.f32.pop %v2543
        %v2576 = verf.f32.pop %v2544
        %v2577 = verf.f32.pop %v2545
        %v2578 = verf.f32.pop %v2546
        %v2579 = verf.f32.pop %v2547
        %v2580 = vadd.f32 %v2548, 1.0
        %v2581 = vadd.f32 %v2549, 1.0
        %v2582 = vadd.f32 %v2550, 1.0
        %v2583 = vadd.f32 %v2551, 1.0
        %v2584 = vadd.f32 %v2552, 1.0
        %v2585 = vadd.f32 %v2553, 1.0
        %v2586 = vadd.f32 %v2554, 1.0
        %v2587 = vadd.f32 %v2555, 1.0
        %v2588 = vadd.f32 %v2556, 1.0
        %v2589 = vadd.f32 %v2557, 1.0
        %v2590 = vadd.f32 %v2558, 1.0
        %v2591 = vadd.f32 %v2559, 1.0
        %v2592 = vadd.f32 %v2560, 1.0
        %v2593 = vadd.f32 %v2561, 1.0
        %v2594 = vadd.f32 %v2562, 1.0
        %v2595 = vadd.f32 %v2563, 1.0
        %v2596 = vadd.f32 %v2564, 1.0
        %v2597 = vadd.f32 %v2565, 1.0
        %v2598 = vadd.f32 %v2566, 1.0
        %v2599 = vadd.f32 %v2567, 1.0
        %v2600 = vadd.f32 %v2568, 1.0
        %v2601 = vadd.f32 %v2569, 1.0
        %v2602 = vadd.f32 %v2570, 1.0
        %v2603 = vadd.f32 %v2571, 1.0
        %v2604 = vadd.f32 %v2572, 1.0
        %v2605 = vadd.f32 %v2573, 1.0
        %v2606 = vadd.f32 %v2574, 1.0
        %v2607 = vadd.f32 %v2575, 1.0
        %v2608 = vadd.f32 %v2576, 1.0
        %v2609 = vadd.f32 %v2577, 1.0
        %v2610 = vadd.f32 %v2578, 1.0
        %v2611 = vadd.f32 %v2579, 1.0
        %v2612 = vmul.f32 %v2484, %v2580
        %v2613 = vmul.f32 %v2485, %v2581
        %v2614 = vmul.f32 %v2486, %v2582
        %v2615 = vmul.f32 %v2487, %v2583
        %v2616 = vmul.f32 %v2488, %v2584
        %v2617 = vmul.f32 %v2489, %v2585
        %v2618 = vmul.f32 %v2490, %v2586
        %v2619 = vmul.f32 %v2491, %v2587
        %v2620 = vmul.f32 %v2492, %v2588
        %v2621 = vmul.f32 %v2493, %v2589
        %v2622 = vmul.f32 %v2494, %v2590
        %v2623 = vmul.f32 %v2495, %v2591
        %v2624 = vmul.f32 %v2496, %v2592
        %v2625 = vmul.f32 %v2497, %v2593
        %v2626 = vmul.f32 %v2498, %v2594
        %v2627 = vmul.f32 %v2499, %v2595
        %v2628 = vmul.f32 %v2500, %v2596
        %v2629 = vmul.f32 %v2501, %v2597
        %v2630 = vmul.f32 %v2502, %v2598
        %v2631 = vmul.f32 %v2503, %v2599
        %v2632 = vmul.f32 %v2504, %v2600
        %v2633 = vmul.f32 %v2505, %v2601
        %v2634 = vmul.f32 %v2506, %v2602
        %v2635 = vmul.f32 %v2507, %v2603
        %v2636 = vmul.f32 %v2508, %v2604
        %v2637 = vmul.f32 %v2509, %v2605
        %v2638 = vmul.f32 %v2510, %v2606
        %v2639 = vmul.f32 %v2511, %v2607
        %v2640 = vmul.f32 %v2512, %v2608
        %v2641 = vmul.f32 %v2513, %v2609
        %v2642 = vmul.f32 %v2514, %v2610
        %v2643 = vmul.f32 %v2515, %v2611
        %2644 = vst.msk [vmem:[#allocation2] sm:$0xff] %vm2012, 0.0
        %2645 = vst.msk [vmem:[#allocation2 + $0x8] sm:$0xff] %vm2012, %v2612
        %2646 = vst.msk [vmem:[#allocation2 + $0x10] sm:$0xff] %vm2012, %v2613
        %2647 = vst.msk [vmem:[#allocation2 + $0x18] sm:$0xff] %vm2012, %v2614
        %2648 = vst.msk [vmem:[#allocation2 + $0x20] sm:$0xff] %vm2012, %v2615
        %2649 = vst.msk [vmem:[#allocation2 + $0x28] sm:$0xff] %vm2012, %v2616
        %2650 = vst.msk [vmem:[#allocation2 + $0x30] sm:$0xff] %vm2012, %v2617
        %2651 = vst.msk [vmem:[#allocation2 + $0x38] sm:$0xff] %vm2012, %v2618
        %2652 = vst.msk [vmem:[#allocation2 + $0x40] sm:$0xff] %vm2012, %v2619
        %2653 = vst.msk [vmem:[#allocation2 + $0x48] sm:$0xff] %vm2012, %v2620
        %2654 = vst.msk [vmem:[#allocation2 + $0x50] sm:$0xff] %vm2012, %v2621
        %2655 = vst.msk [vmem:[#allocation2 + $0x58] sm:$0xff] %vm2012, %v2622
        %2656 = vst.msk [vmem:[#allocation2 + $0x60] sm:$0xff] %vm2012, %v2623
        %2657 = vst.msk [vmem:[#allocation2 + $0x68] sm:$0xff] %vm2012, %v2624
        %2658 = vst.msk [vmem:[#allocation2 + $0x70] sm:$0xff] %vm2012, %v2625
        %2659 = vst.msk [vmem:[#allocation2 + $0x78] sm:$0xff] %vm2012, %v2626
        %2660 = vst.msk [vmem:[#allocation2 + $0x80] sm:$0xff] %vm2012, %v2627
        %2661 = vst.msk [vmem:[#allocation2 + $0x88] sm:$0xff] %vm2012, %v2628
        %2662 = vst.msk [vmem:[#allocation2 + $0x90] sm:$0xff] %vm2012, %v2629
        %2663 = vst.msk [vmem:[#allocation2 + $0x98] sm:$0xff] %vm2012, %v2630
        %2664 = vst.msk [vmem:[#allocation2 + $0xa0] sm:$0xff] %vm2012, %v2631
        %2665 = vst.msk [vmem:[#allocation2 + $0xa8] sm:$0xff] %vm2012, %v2632
        %2666 = vst.msk [vmem:[#allocation2 + $0xb0] sm:$0xff] %vm2012, %v2633
        %2667 = vst.msk [vmem:[#allocation2 + $0xb8] sm:$0xff] %vm2012, %v2634
        %2668 = vst.msk [vmem:[#allocation2 + $0xc0] sm:$0xff] %vm2012, %v2635
        %2669 = vst.msk [vmem:[#allocation2 + $0xc8] sm:$0xff] %vm2012, %v2636
        %2670 = vst.msk [vmem:[#allocation2 + $0xd0] sm:$0xff] %vm2012, %v2637
        %2671 = vst.msk [vmem:[#allocation2 + $0xd8] sm:$0xff] %vm2012, %v2638
        %2672 = vst.msk [vmem:[#allocation2 + $0xe0] sm:$0xff] %vm2012, %v2639
        %2673 = vst.msk [vmem:[#allocation2 + $0xe8] sm:$0xff] %vm2012, %v2640
        %2674 = vst.msk [vmem:[#allocation2 + $0xf0] sm:$0xff] %vm2012, %v2641
        %2675 = vst.msk [vmem:[#allocation2 + $0xf8] sm:$0xff] %vm2012, %v2642
        %2676 = vst.msk [vmem:[#allocation2 + $0x100] sm:$0xff] %vm2012, %v2643
        %2677 = vst.msk [vmem:[#allocation2 + $0x108] sm:$0xff] %vm2012, 0.0
        %v2678 = vld [vmem:[%s3 + $0x1] sm:$0x1]
        %s2679 = scalar_lea.vmem [#allocation2], 7
        %v2680 = vld [vmem:[%s2679] ss:$2 sm:$0xff]
        %s2681 = scalar_lea.vmem [#allocation2], 23
        %v2682 = vld [vmem:[%s2681] ss:$2 sm:$0xff]
        %s2683 = scalar_lea.vmem [#allocation2], 39
        %v2684 = vld [vmem:[%s2683] ss:$2 sm:$0xff]
        %s2685 = scalar_lea.vmem [#allocation2], 55
        %v2686 = vld [vmem:[%s2685] ss:$2 sm:$0xff]
        %s2687 = scalar_lea.vmem [#allocation2], 71
        %v2688 = vld [vmem:[%s2687] ss:$2 sm:$0xff]
        %s2689 = scalar_lea.vmem [#allocation2], 87
        %v2690 = vld [vmem:[%s2689] ss:$2 sm:$0xff]
        %s2691 = scalar_lea.vmem [#allocation2], 103
        %v2692 = vld [vmem:[%s2691] ss:$2 sm:$0xff]
        %s2693 = scalar_lea.vmem [#allocation2], 119
        %v2694 = vld [vmem:[%s2693] ss:$2 sm:$0xff]
        %s2695 = scalar_lea.vmem [#allocation2], 135
        %v2696 = vld [vmem:[%s2695] ss:$2 sm:$0xff]
        %s2697 = scalar_lea.vmem [#allocation2], 151
        %v2698 = vld [vmem:[%s2697] ss:$2 sm:$0xff]
        %s2699 = scalar_lea.vmem [#allocation2], 167
        %v2700 = vld [vmem:[%s2699] ss:$2 sm:$0xff]
        %s2701 = scalar_lea.vmem [#allocation2], 183
        %v2702 = vld [vmem:[%s2701] ss:$2 sm:$0xff]
        %s2703 = scalar_lea.vmem [#allocation2], 199
        %v2704 = vld [vmem:[%s2703] ss:$2 sm:$0xff]
        %s2705 = scalar_lea.vmem [#allocation2], 215
        %v2706 = vld [vmem:[%s2705] ss:$2 sm:$0xff]
        %s2707 = scalar_lea.vmem [#allocation2], 231
        %v2708 = vld [vmem:[%s2707] ss:$2 sm:$0xff]
        %s2709 = scalar_lea.vmem [#allocation2], 247
        %v2710 = vld [vmem:[%s2709] ss:$2 sm:$0xff]
        %v2711 = vld [vmem:[%s2] sm:$0xff]
        %v2712 = vld [vmem:[%s2 + $0x8] sm:$0xff]
        %v2713 = vld [vmem:[%s2 + $0x10] sm:$0xff]
        %v2714 = vld [vmem:[%s2 + $0x18] sm:$0xff]
        %s2715 = scalar_lea.vmem [#allocation2], 8
        %v2716 = vld [vmem:[%s2715] ss:$2 sm:$0xff]
        %s2717 = scalar_lea.vmem [#allocation2], 24
        %v2718 = vld [vmem:[%s2717] ss:$2 sm:$0xff]
        %s2719 = scalar_lea.vmem [#allocation2], 40
        %v2720 = vld [vmem:[%s2719] ss:$2 sm:$0xff]
        %s2721 = scalar_lea.vmem [#allocation2], 56
        %v2722 = vld [vmem:[%s2721] ss:$2 sm:$0xff]
        %s2723 = scalar_lea.vmem [#allocation2], 72
        %v2724 = vld [vmem:[%s2723] ss:$2 sm:$0xff]
        %s2725 = scalar_lea.vmem [#allocation2], 88
        %v2726 = vld [vmem:[%s2725] ss:$2 sm:$0xff]
        %s2727 = scalar_lea.vmem [#allocation2], 104
        %v2728 = vld [vmem:[%s2727] ss:$2 sm:$0xff]
        %s2729 = scalar_lea.vmem [#allocation2], 120
        %v2730 = vld [vmem:[%s2729] ss:$2 sm:$0xff]
        %s2731 = scalar_lea.vmem [#allocation2], 136
        %v2732 = vld [vmem:[%s2731] ss:$2 sm:$0xff]
        %s2733 = scalar_lea.vmem [#allocation2], 152
        %v2734 = vld [vmem:[%s2733] ss:$2 sm:$0xff]
        %s2735 = scalar_lea.vmem [#allocation2], 168
        %v2736 = vld [vmem:[%s2735] ss:$2 sm:$0xff]
        %s2737 = scalar_lea.vmem [#allocation2], 184
        %v2738 = vld [vmem:[%s2737] ss:$2 sm:$0xff]
        %s2739 = scalar_lea.vmem [#allocation2], 200
        %v2740 = vld [vmem:[%s2739] ss:$2 sm:$0xff]
        %s2741 = scalar_lea.vmem [#allocation2], 216
        %v2742 = vld [vmem:[%s2741] ss:$2 sm:$0xff]
        %s2743 = scalar_lea.vmem [#allocation2], 232
        %v2744 = vld [vmem:[%s2743] ss:$2 sm:$0xff]
        %s2745 = scalar_lea.vmem [#allocation2], 248
        %v2746 = vld [vmem:[%s2745] ss:$2 sm:$0xff]
        %s2747 = scalar_lea.vmem %s2, 32
        %v2748 = vld [vmem:[%s2747] sm:$0xff]
        %v2749 = vld [vmem:[%s2747 + $0x8] sm:$0xff]
        %v2750 = vld [vmem:[%s2747 + $0x10] sm:$0xff]
        %v2751 = vld [vmem:[%s2747 + $0x18] sm:$0xff]
        %v2753 = vsel %vm2012, %v2716, 0
        %v2756 = vsel %vm2012, %v2718, 0
        %v2759 = vsel %vm2012, %v2720, 0
        %v2762 = vsel %vm2012, %v2722, 0
        %v2765 = vsel %vm2012, %v2724, 0
        %v2768 = vsel %vm2012, %v2726, 0
        %v2771 = vsel %vm2012, %v2728, 0
        %v2774 = vsel %vm2012, %v2730, 0
        %v2777 = vsel %vm2012, %v2732, 0
        %v2780 = vsel %vm2012, %v2734, 0
        %v2783 = vsel %vm2012, %v2736, 0
        %v2786 = vsel %vm2012, %v2738, 0
        %v2789 = vsel %vm2012, %v2740, 0
        %v2792 = vsel %vm2012, %v2742, 0
        %v2795 = vsel %vm2012, %v2744, 0
        %v2798 = vsel %vm2012, %v2746, 0
        %2800 = vmatprep.subr.mxu0 0.0
        %2801 = vmatpush1.msra.mxu0 %v2748
        %2802 = vmatprep.subr.mxu0 0.0
        %2803 = vmatpush1.msra.mxu0 %v2749
        %2804 = vmatprep.subr.mxu0 0.0
        %2805 = vmatpush1.msra.mxu0 %v2750
        %2806 = vmatprep.subr.mxu0 0.0
        %2807 = vmatpush1.msra.mxu0 %v2751
        %2808 = vmatprep.subr.mxu0 0.0
        %2809 = vmatpush1.msra.mxu0 0.0
        %2810 = vmatprep.subr.mxu0 0.0
        %2811 = vmatpush1.msra.mxu0 0.0
        %2812 = vmatprep.subr.mxu0 0.0
        %2813 = vmatpush1.msra.mxu0 0.0
        %2814 = vmatprep.subr.mxu0 0.0
        %2815 = vmatpush1.msra.mxu0 0.0
        %2816 = vmatprep.subr.mxu0 0.0
        %2817 = vmatpush1.msra.mxu0 0.0
        %2818 = vmatprep.subr.mxu0 0.0
        %2819 = vmatpush1.msra.mxu0 0.0
        %2820 = vmatprep.subr.mxu0 0.0
        %2821 = vmatpush1.msra.mxu0 0.0
        %2822 = vmatprep.subr.mxu0 0.0
        %2823 = vmatpush1.msra.mxu0 0.0
        %2824 = vmatprep.subr.mxu0 0.0
        %2825 = vmatpush1.msra.mxu0 0.0
        %2826 = vmatprep.subr.mxu0 0.0
        %2827 = vmatpush1.msra.mxu0 0.0
        %2828 = vmatprep.subr.mxu0 0.0
        %2829 = vmatpush1.msra.mxu0 0.0
        %2830 = vmatprep.subr.mxu0 0.0
        %2831 = vmatpush1.msra.mxu0 0.0
        %2832 = vmatprep.subr.mxu0 0.0
        %2833 = vmatpush1.msra.mxu0 0.0
        %2834 = vmatprep.subr.mxu0 0.0
        %2835 = vmatpush1.msra.mxu0 0.0
        %2836 = vmatprep.subr.mxu0 0.0
        %2837 = vmatpush1.msra.mxu0 0.0
        %2838 = vmatprep.subr.mxu0 0.0
        %2839 = vmatpush1.msra.mxu0 0.0
        %2840 = vmatprep.subr.mxu0 0.0
        %2841 = vmatpush1.msra.mxu0 0.0
        %2842 = vmatprep.subr.mxu0 0.0
        %2843 = vmatpush1.msra.mxu0 0.0
        %2844 = vmatprep.subr.mxu0 0.0
        %2845 = vmatpush1.msra.mxu0 0.0
        %2846 = vmatprep.subr.mxu0 0.0
        %2847 = vmatpush1.msra.mxu0 0.0
        %2848 = vmatprep.subr.mxu0 0.0
        %2849 = vmatpush1.msra.mxu0 0.0
        %2850 = vmatprep.subr.mxu0 0.0
        %2851 = vmatpush1.msra.mxu0 0.0
        %2852 = vmatprep.subr.mxu0 0.0
        %2853 = vmatpush1.msra.mxu0 0.0
        %2854 = vmatprep.subr.mxu0 0.0
        %2855 = vmatpush1.msra.mxu0 0.0
        %2856 = vmatprep.subr.mxu0 0.0
        %2857 = vmatpush1.msra.mxu0 0.0
        %2858 = vmatprep.subr.mxu0 0.0
        %2859 = vmatpush1.msra.mxu0 0.0
        %2860 = vmatprep.subr.mxu0 0.0
        %2861 = vmatpush1.msra.mxu0 0.0
        %2862 = vmatprep.subr.mxu0 0.0
        %2863 = vmatpush1.msra.mxu0 0.0
        %2864 = vmatprep.mubr.f32.mxu0 0.0
        %2865 = vmatmul.mubr.f32.gmra.mrb[0].mxu0 %v2753
        %v2866 = vpop.f32.mrb[0].mxu0
        %v2867 = vadd.f32 0.0, %v2866
        %v2868 = vpop.f32.mrb[0].mxu0
        %2869 = vmatprep.mubr.f32.mxu0 0.0
        %2870 = vmatmul.mubr.f32.gmra.mrb[0].mxu0 %v2756
        %v2871 = vpop.f32.mrb[0].mxu0
        %v2872 = vadd.f32 0.0, %v2871
        %v2873 = vpop.f32.mrb[0].mxu0
        %2874 = vmatprep.mubr.f32.mxu0 0.0
        %2875 = vmatmul.mubr.f32.gmra.mrb[0].mxu0 %v2759
        %v2876 = vpop.f32.mrb[0].mxu0
        %v2877 = vadd.f32 0.0, %v2876
        %v2878 = vpop.f32.mrb[0].mxu0
        %2879 = vmatprep.mubr.f32.mxu0 0.0
        %2880 = vmatmul.mubr.f32.gmra.mrb[0].mxu0 %v2762
        %v2881 = vpop.f32.mrb[0].mxu0
        %v2882 = vadd.f32 0.0, %v2881
        %v2883 = vpop.f32.mrb[0].mxu0
        %2884 = vmatprep.mubr.f32.mxu0 0.0
        %2885 = vmatmul.mubr.f32.gmra.mrb[0].mxu0 %v2765
        %v2886 = vpop.f32.mrb[0].mxu0
        %v2887 = vadd.f32 0.0, %v2886
        %v2888 = vpop.f32.mrb[0].mxu0
        %2889 = vmatprep.mubr.f32.mxu0 0.0
        %2890 = vmatmul.mubr.f32.gmra.mrb[0].mxu0 %v2768
        %v2891 = vpop.f32.mrb[0].mxu0
        %v2892 = vadd.f32 0.0, %v2891
        %v2893 = vpop.f32.mrb[0].mxu0
        %2894 = vmatprep.mubr.f32.mxu0 0.0
        %2895 = vmatmul.mubr.f32.gmra.mrb[0].mxu0 %v2771
        %v2896 = vpop.f32.mrb[0].mxu0
        %v2897 = vadd.f32 0.0, %v2896
        %v2898 = vpop.f32.mrb[0].mxu0
        %2899 = vmatprep.mubr.f32.mxu0 0.0
        %2900 = vmatmul.mubr.f32.gmra.mrb[0].mxu0 %v2774
        %v2901 = vpop.f32.mrb[0].mxu0
        %v2902 = vadd.f32 0.0, %v2901
        %v2903 = vpop.f32.mrb[0].mxu0
        %2904 = vmatprep.mubr.f32.mxu0 0.0
        %2905 = vmatmul.mubr.f32.gmra.mrb[0].mxu0 %v2777
        %v2906 = vpop.f32.mrb[0].mxu0
        %v2907 = vadd.f32 0.0, %v2906
        %v2908 = vpop.f32.mrb[0].mxu0
        %2909 = vmatprep.mubr.f32.mxu0 0.0
        %2910 = vmatmul.mubr.f32.gmra.mrb[0].mxu0 %v2780
        %v2911 = vpop.f32.mrb[0].mxu0
        %v2912 = vadd.f32 0.0, %v2911
        %v2913 = vpop.f32.mrb[0].mxu0
        %2914 = vmatprep.mubr.f32.mxu0 0.0
        %2915 = vmatmul.mubr.f32.gmra.mrb[0].mxu0 %v2783
        %v2916 = vpop.f32.mrb[0].mxu0
        %v2917 = vadd.f32 0.0, %v2916
        %v2918 = vpop.f32.mrb[0].mxu0
        %2919 = vmatprep.mubr.f32.mxu0 0.0
        %2920 = vmatmul.mubr.f32.gmra.mrb[0].mxu0 %v2786
        %v2921 = vpop.f32.mrb[0].mxu0
        %v2922 = vadd.f32 0.0, %v2921
        %v2923 = vpop.f32.mrb[0].mxu0
        %2924 = vmatprep.mubr.f32.mxu0 0.0
        %2925 = vmatmul.mubr.f32.gmra.mrb[0].mxu0 %v2789
        %v2926 = vpop.f32.mrb[0].mxu0
        %v2927 = vadd.f32 0.0, %v2926
        %v2928 = vpop.f32.mrb[0].mxu0
        %2929 = vmatprep.mubr.f32.mxu0 0.0
        %2930 = vmatmul.mubr.f32.gmra.mrb[0].mxu0 %v2792
        %v2931 = vpop.f32.mrb[0].mxu0
        %v2932 = vadd.f32 0.0, %v2931
        %v2933 = vpop.f32.mrb[0].mxu0
        %2934 = vmatprep.mubr.f32.mxu0 0.0
        %2935 = vmatmul.mubr.f32.gmra.mrb[0].mxu0 %v2795
        %v2936 = vpop.f32.mrb[0].mxu0
        %v2937 = vadd.f32 0.0, %v2936
        %v2938 = vpop.f32.mrb[0].mxu0
        %2939 = vmatprep.mubr.f32.mxu0 0.0
        %2940 = vmatmul.mubr.f32.gmra.mrb[0].mxu0 %v2798
        %v2941 = vpop.f32.mrb[0].mxu0
        %v2942 = vadd.f32 0.0, %v2941
        %v2943 = vpop.f32.mrb[0].mxu0
        %2944 = vdwg.mxu0
        %v2946 = vsel %vm2012, %v2680, 0
        %v2949 = vsel %vm2012, %v2682, 0
        %v2952 = vsel %vm2012, %v2684, 0
        %v2955 = vsel %vm2012, %v2686, 0
        %v2958 = vsel %vm2012, %v2688, 0
        %v2961 = vsel %vm2012, %v2690, 0
        %v2964 = vsel %vm2012, %v2692, 0
        %v2967 = vsel %vm2012, %v2694, 0
        %v2970 = vsel %vm2012, %v2696, 0
        %v2973 = vsel %vm2012, %v2698, 0
        %v2976 = vsel %vm2012, %v2700, 0
        %v2979 = vsel %vm2012, %v2702, 0
        %v2982 = vsel %vm2012, %v2704, 0
        %v2985 = vsel %vm2012, %v2706, 0
        %v2988 = vsel %vm2012, %v2708, 0
        %v2991 = vsel %vm2012, %v2710, 0
        %2993 = vmatprep.subr.mxu0 0.0
        %2994 = vmatpush1.msra.mxu0 %v2711
        %2995 = vmatprep.subr.mxu0 0.0
        %2996 = vmatpush1.msra.mxu0 %v2712
        %2997 = vmatprep.subr.mxu0 0.0
        %2998 = vmatpush1.msra.mxu0 %v2713
        %2999 = vmatprep.subr.mxu0 0.0
        %3000 = vmatpush1.msra.mxu0 %v2714
        %3001 = vmatprep.subr.mxu0 0.0
        %3002 = vmatpush1.msra.mxu0 0.0
        %3003 = vmatprep.subr.mxu0 0.0
        %3004 = vmatpush1.msra.mxu0 0.0
        %3005 = vmatprep.subr.mxu0 0.0
        %3006 = vmatpush1.msra.mxu0 0.0
        %3007 = vmatprep.subr.mxu0 0.0
        %3008 = vmatpush1.msra.mxu0 0.0
        %3009 = vmatprep.subr.mxu0 0.0
        %3010 = vmatpush1.msra.mxu0 0.0
        %3011 = vmatprep.subr.mxu0 0.0
        %3012 = vmatpush1.msra.mxu0 0.0
        %3013 = vmatprep.subr.mxu0 0.0
        %3014 = vmatpush1.msra.mxu0 0.0
        %3015 = vmatprep.subr.mxu0 0.0
        %3016 = vmatpush1.msra.mxu0 0.0
        %3017 = vmatprep.subr.mxu0 0.0
        %3018 = vmatpush1.msra.mxu0 0.0
        %3019 = vmatprep.subr.mxu0 0.0
        %3020 = vmatpush1.msra.mxu0 0.0
        %3021 = vmatprep.subr.mxu0 0.0
        %3022 = vmatpush1.msra.mxu0 0.0
        %3023 = vmatprep.subr.mxu0 0.0
        %3024 = vmatpush1.msra.mxu0 0.0
        %3025 = vmatprep.subr.mxu0 0.0
        %3026 = vmatpush1.msra.mxu0 0.0
        %3027 = vmatprep.subr.mxu0 0.0
        %3028 = vmatpush1.msra.mxu0 0.0
        %3029 = vmatprep.subr.mxu0 0.0
        %3030 = vmatpush1.msra.mxu0 0.0
        %3031 = vmatprep.subr.mxu0 0.0
        %3032 = vmatpush1.msra.mxu0 0.0
        %3033 = vmatprep.subr.mxu0 0.0
        %3034 = vmatpush1.msra.mxu0 0.0
        %3035 = vmatprep.subr.mxu0 0.0
        %3036 = vmatpush1.msra.mxu0 0.0
        %3037 = vmatprep.subr.mxu0 0.0
        %3038 = vmatpush1.msra.mxu0 0.0
        %3039 = vmatprep.subr.mxu0 0.0
        %3040 = vmatpush1.msra.mxu0 0.0
        %3041 = vmatprep.subr.mxu0 0.0
        %3042 = vmatpush1.msra.mxu0 0.0
        %3043 = vmatprep.subr.mxu0 0.0
        %3044 = vmatpush1.msra.mxu0 0.0
        %3045 = vmatprep.subr.mxu0 0.0
        %3046 = vmatpush1.msra.mxu0 0.0
        %3047 = vmatprep.subr.mxu0 0.0
        %3048 = vmatpush1.msra.mxu0 0.0
        %3049 = vmatprep.subr.mxu0 0.0
        %3050 = vmatpush1.msra.mxu0 0.0
        %3051 = vmatprep.subr.mxu0 0.0
        %3052 = vmatpush1.msra.mxu0 0.0
        %3053 = vmatprep.subr.mxu0 0.0
        %3054 = vmatpush1.msra.mxu0 0.0
        %3055 = vmatprep.subr.mxu0 0.0
        %3056 = vmatpush1.msra.mxu0 0.0
        %3057 = vmatprep.mubr.f32.mxu0 0.0
        %3058 = vmatmul.mubr.f32.gmra.mrb[0].mxu0 %v2946
        %v3059 = vpop.f32.mrb[0].mxu0
        %v3060 = vadd.f32 %v2867, %v3059
        %v3061 = vpop.f32.mrb[0].mxu0
        %3062 = vmatprep.mubr.f32.mxu0 0.0
        %3063 = vmatmul.mubr.f32.gmra.mrb[0].mxu0 %v2949
        %v3064 = vpop.f32.mrb[0].mxu0
        %v3065 = vadd.f32 %v2872, %v3064
        %v3066 = vpop.f32.mrb[0].mxu0
        %3067 = vmatprep.mubr.f32.mxu0 0.0
        %3068 = vmatmul.mubr.f32.gmra.mrb[0].mxu0 %v2952
        %v3069 = vpop.f32.mrb[0].mxu0
        %v3070 = vadd.f32 %v2877, %v3069
        %v3071 = vpop.f32.mrb[0].mxu0
        %3072 = vmatprep.mubr.f32.mxu0 0.0
        %3073 = vmatmul.mubr.f32.gmra.mrb[0].mxu0 %v2955
        %v3074 = vpop.f32.mrb[0].mxu0
        %v3075 = vadd.f32 %v2882, %v3074
        %v3076 = vpop.f32.mrb[0].mxu0
        %3077 = vmatprep.mubr.f32.mxu0 0.0
        %3078 = vmatmul.mubr.f32.gmra.mrb[0].mxu0 %v2958
        %v3079 = vpop.f32.mrb[0].mxu0
        %v3080 = vadd.f32 %v2887, %v3079
        %v3081 = vpop.f32.mrb[0].mxu0
        %3082 = vmatprep.mubr.f32.mxu0 0.0
        %3083 = vmatmul.mubr.f32.gmra.mrb[0].mxu0 %v2961
        %v3084 = vpop.f32.mrb[0].mxu0
        %v3085 = vadd.f32 %v2892, %v3084
        %v3086 = vpop.f32.mrb[0].mxu0
        %3087 = vmatprep.mubr.f32.mxu0 0.0
        %3088 = vmatmul.mubr.f32.gmra.mrb[0].mxu0 %v2964
        %v3089 = vpop.f32.mrb[0].mxu0
        %v3090 = vadd.f32 %v2897, %v3089
        %v3091 = vpop.f32.mrb[0].mxu0
        %3092 = vmatprep.mubr.f32.mxu0 0.0
        %3093 = vmatmul.mubr.f32.gmra.mrb[0].mxu0 %v2967
        %v3094 = vpop.f32.mrb[0].mxu0
        %v3095 = vadd.f32 %v2902, %v3094
        %v3096 = vpop.f32.mrb[0].mxu0
        %3097 = vmatprep.mubr.f32.mxu0 0.0
        %3098 = vmatmul.mubr.f32.gmra.mrb[0].mxu0 %v2970
        %v3099 = vpop.f32.mrb[0].mxu0
        %v3100 = vadd.f32 %v2907, %v3099
        %v3101 = vpop.f32.mrb[0].mxu0
        %3102 = vmatprep.mubr.f32.mxu0 0.0
        %3103 = vmatmul.mubr.f32.gmra.mrb[0].mxu0 %v2973
        %v3104 = vpop.f32.mrb[0].mxu0
        %v3105 = vadd.f32 %v2912, %v3104
        %v3106 = vpop.f32.mrb[0].mxu0
        %3107 = vmatprep.mubr.f32.mxu0 0.0
        %3108 = vmatmul.mubr.f32.gmra.mrb[0].mxu0 %v2976
        %v3109 = vpop.f32.mrb[0].mxu0
        %v3110 = vadd.f32 %v2917, %v3109
        %v3111 = vpop.f32.mrb[0].mxu0
        %3112 = vmatprep.mubr.f32.mxu0 0.0
        %3113 = vmatmul.mubr.f32.gmra.mrb[0].mxu0 %v2979
        %v3114 = vpop.f32.mrb[0].mxu0
        %v3115 = vadd.f32 %v2922, %v3114
        %v3116 = vpop.f32.mrb[0].mxu0
        %3117 = vmatprep.mubr.f32.mxu0 0.0
        %3118 = vmatmul.mubr.f32.gmra.mrb[0].mxu0 %v2982
        %v3119 = vpop.f32.mrb[0].mxu0
        %v3120 = vadd.f32 %v2927, %v3119
        %v3121 = vpop.f32.mrb[0].mxu0
        %3122 = vmatprep.mubr.f32.mxu0 0.0
        %3123 = vmatmul.mubr.f32.gmra.mrb[0].mxu0 %v2985
        %v3124 = vpop.f32.mrb[0].mxu0
        %v3125 = vadd.f32 %v2932, %v3124
        %v3126 = vpop.f32.mrb[0].mxu0
        %3127 = vmatprep.mubr.f32.mxu0 0.0
        %3128 = vmatmul.mubr.f32.gmra.mrb[0].mxu0 %v2988
        %v3129 = vpop.f32.mrb[0].mxu0
        %v3130 = vadd.f32 %v2937, %v3129
        %v3131 = vpop.f32.mrb[0].mxu0
        %3132 = vmatprep.mubr.f32.mxu0 0.0
        %3133 = vmatmul.mubr.f32.gmra.mrb[0].mxu0 %v2991
        %v3134 = vpop.f32.mrb[0].mxu0
        %v3135 = vadd.f32 %v2942, %v3134
        %v3136 = vpop.f32.mrb[0].mxu0
        %3137 = vdwg.mxu0
        %s3138 = scalar_lea.vmem [#allocation2], 9
        %v3139 = vld [vmem:[%s3138] ss:$2 sm:$0xff]
        %s3140 = scalar_lea.vmem [#allocation2], 25
        %v3141 = vld [vmem:[%s3140] ss:$2 sm:$0xff]
        %s3142 = scalar_lea.vmem [#allocation2], 41
        %v3143 = vld [vmem:[%s3142] ss:$2 sm:$0xff]
        %s3144 = scalar_lea.vmem [#allocation2], 57
        %v3145 = vld [vmem:[%s3144] ss:$2 sm:$0xff]
        %s3146 = scalar_lea.vmem [#allocation2], 73
        %v3147 = vld [vmem:[%s3146] ss:$2 sm:$0xff]
        %s3148 = scalar_lea.vmem [#allocation2], 89
        %v3149 = vld [vmem:[%s3148] ss:$2 sm:$0xff]
        %s3150 = scalar_lea.vmem [#allocation2], 105
        %v3151 = vld [vmem:[%s3150] ss:$2 sm:$0xff]
        %s3152 = scalar_lea.vmem [#allocation2], 121
        %v3153 = vld [vmem:[%s3152] ss:$2 sm:$0xff]
        %s3154 = scalar_lea.vmem [#allocation2], 137
        %v3155 = vld [vmem:[%s3154] ss:$2 sm:$0xff]
        %s3156 = scalar_lea.vmem [#allocation2], 153
        %v3157 = vld [vmem:[%s3156] ss:$2 sm:$0xff]
        %s3158 = scalar_lea.vmem [#allocation2], 169
        %v3159 = vld [vmem:[%s3158] ss:$2 sm:$0xff]
        %s3160 = scalar_lea.vmem [#allocation2], 185
        %v3161 = vld [vmem:[%s3160] ss:$2 sm:$0xff]
        %s3162 = scalar_lea.vmem [#allocation2], 201
        %v3163 = vld [vmem:[%s3162] ss:$2 sm:$0xff]
        %s3164 = scalar_lea.vmem [#allocation2], 217
        %v3165 = vld [vmem:[%s3164] ss:$2 sm:$0xff]
        %s3166 = scalar_lea.vmem [#allocation2], 233
        %v3167 = vld [vmem:[%s3166] ss:$2 sm:$0xff]
        %s3168 = scalar_lea.vmem [#allocation2], 249
        %v3169 = vld [vmem:[%s3168] ss:$2 sm:$0xff]
        %s3170 = scalar_lea.vmem %s2, 64
        %v3171 = vld [vmem:[%s3170] sm:$0xff]
        %v3172 = vld [vmem:[%s3170 + $0x8] sm:$0xff]
        %v3173 = vld [vmem:[%s3170 + $0x10] sm:$0xff]
        %v3174 = vld [vmem:[%s3170 + $0x18] sm:$0xff]
        %v3176 = vsel %vm2012, %v3139, 0
        %v3179 = vsel %vm2012, %v3141, 0
        %v3182 = vsel %vm2012, %v3143, 0
        %v3185 = vsel %vm2012, %v3145, 0
        %v3188 = vsel %vm2012, %v3147, 0
        %v3191 = vsel %vm2012, %v3149, 0
        %v3194 = vsel %vm2012, %v3151, 0
        %v3197 = vsel %vm2012, %v3153, 0
        %v3200 = vsel %vm2012, %v3155, 0
        %v3203 = vsel %vm2012, %v3157, 0
        %v3206 = vsel %vm2012, %v3159, 0
        %v3209 = vsel %vm2012, %v3161, 0
        %v3212 = vsel %vm2012, %v3163, 0
        %v3215 = vsel %vm2012, %v3165, 0
        %v3218 = vsel %vm2012, %v3167, 0
        %v3221 = vsel %vm2012, %v3169, 0
        %3223 = vmatprep.subr.mxu0 0.0
        %3224 = vmatpush1.msra.mxu0 %v3171
        %3225 = vmatprep.subr.mxu0 0.0
        %3226 = vmatpush1.msra.mxu0 %v3172
        %3227 = vmatprep.subr.mxu0 0.0
        %3228 = vmatpush1.msra.mxu0 %v3173
        %3229 = vmatprep.subr.mxu0 0.0
        %3230 = vmatpush1.msra.mxu0 %v3174
        %3231 = vmatprep.subr.mxu0 0.0
        %3232 = vmatpush1.msra.mxu0 0.0
        %3233 = vmatprep.subr.mxu0 0.0
        %3234 = vmatpush1.msra.mxu0 0.0
        %3235 = vmatprep.subr.mxu0 0.0
        %3236 = vmatpush1.msra.mxu0 0.0
        %3237 = vmatprep.subr.mxu0 0.0
        %3238 = vmatpush1.msra.mxu0 0.0
        %3239 = vmatprep.subr.mxu0 0.0
        %3240 = vmatpush1.msra.mxu0 0.0
        %3241 = vmatprep.subr.mxu0 0.0
        %3242 = vmatpush1.msra.mxu0 0.0
        %3243 = vmatprep.subr.mxu0 0.0
        %3244 = vmatpush1.msra.mxu0 0.0
        %3245 = vmatprep.subr.mxu0 0.0
        %3246 = vmatpush1.msra.mxu0 0.0
        %3247 = vmatprep.subr.mxu0 0.0
        %3248 = vmatpush1.msra.mxu0 0.0
        %3249 = vmatprep.subr.mxu0 0.0
        %3250 = vmatpush1.msra.mxu0 0.0
        %3251 = vmatprep.subr.mxu0 0.0
        %3252 = vmatpush1.msra.mxu0 0.0
        %3253 = vmatprep.subr.mxu0 0.0
        %3254 = vmatpush1.msra.mxu0 0.0
        %3255 = vmatprep.subr.mxu0 0.0
        %3256 = vmatpush1.msra.mxu0 0.0
        %3257 = vmatprep.subr.mxu0 0.0
        %3258 = vmatpush1.msra.mxu0 0.0
        %3259 = vmatprep.subr.mxu0 0.0
        %3260 = vmatpush1.msra.mxu0 0.0
        %3261 = vmatprep.subr.mxu0 0.0
        %3262 = vmatpush1.msra.mxu0 0.0
        %3263 = vmatprep.subr.mxu0 0.0
        %3264 = vmatpush1.msra.mxu0 0.0
        %3265 = vmatprep.subr.mxu0 0.0
        %3266 = vmatpush1.msra.mxu0 0.0
        %3267 = vmatprep.subr.mxu0 0.0
        %3268 = vmatpush1.msra.mxu0 0.0
        %3269 = vmatprep.subr.mxu0 0.0
        %3270 = vmatpush1.msra.mxu0 0.0
        %3271 = vmatprep.subr.mxu0 0.0
        %3272 = vmatpush1.msra.mxu0 0.0
        %3273 = vmatprep.subr.mxu0 0.0
        %3274 = vmatpush1.msra.mxu0 0.0
        %3275 = vmatprep.subr.mxu0 0.0
        %3276 = vmatpush1.msra.mxu0 0.0
        %3277 = vmatprep.subr.mxu0 0.0
        %3278 = vmatpush1.msra.mxu0 0.0
        %3279 = vmatprep.subr.mxu0 0.0
        %3280 = vmatpush1.msra.mxu0 0.0
        %3281 = vmatprep.subr.mxu0 0.0
        %3282 = vmatpush1.msra.mxu0 0.0
        %3283 = vmatprep.subr.mxu0 0.0
        %3284 = vmatpush1.msra.mxu0 0.0
        %3285 = vmatprep.subr.mxu0 0.0
        %3286 = vmatpush1.msra.mxu0 0.0
        %3287 = vmatprep.mubr.f32.mxu0 0.0
        %3288 = vmatmul.mubr.f32.gmra.mrb[0].mxu0 %v3176
        %v3289 = vpop.f32.mrb[0].mxu0
        %v3290 = vadd.f32 0.0, %v3289
        %v3291 = vpop.f32.mrb[0].mxu0
        %3292 = vmatprep.mubr.f32.mxu0 0.0
        %3293 = vmatmul.mubr.f32.gmra.mrb[0].mxu0 %v3179
        %v3294 = vpop.f32.mrb[0].mxu0
        %v3295 = vadd.f32 0.0, %v3294
        %v3296 = vpop.f32.mrb[0].mxu0
        %3297 = vmatprep.mubr.f32.mxu0 0.0
        %3298 = vmatmul.mubr.f32.gmra.mrb[0].mxu0 %v3182
        %v3299 = vpop.f32.mrb[0].mxu0
        %v3300 = vadd.f32 0.0, %v3299
        %v3301 = vpop.f32.mrb[0].mxu0
        %3302 = vmatprep.mubr.f32.mxu0 0.0
        %3303 = vmatmul.mubr.f32.gmra.mrb[0].mxu0 %v3185
        %v3304 = vpop.f32.mrb[0].mxu0
        %v3305 = vadd.f32 0.0, %v3304
        %v3306 = vpop.f32.mrb[0].mxu0
        %3307 = vmatprep.mubr.f32.mxu0 0.0
        %3308 = vmatmul.mubr.f32.gmra.mrb[0].mxu0 %v3188
        %v3309 = vpop.f32.mrb[0].mxu0
        %v3310 = vadd.f32 0.0, %v3309
        %v3311 = vpop.f32.mrb[0].mxu0
        %3312 = vmatprep.mubr.f32.mxu0 0.0
        %3313 = vmatmul.mubr.f32.gmra.mrb[0].mxu0 %v3191
        %v3314 = vpop.f32.mrb[0].mxu0
        %v3315 = vadd.f32 0.0, %v3314
        %v3316 = vpop.f32.mrb[0].mxu0
        %3317 = vmatprep.mubr.f32.mxu0 0.0
        %3318 = vmatmul.mubr.f32.gmra.mrb[0].mxu0 %v3194
        %v3319 = vpop.f32.mrb[0].mxu0
        %v3320 = vadd.f32 0.0, %v3319
        %v3321 = vpop.f32.mrb[0].mxu0
        %3322 = vmatprep.mubr.f32.mxu0 0.0
        %3323 = vmatmul.mubr.f32.gmra.mrb[0].mxu0 %v3197
        %v3324 = vpop.f32.mrb[0].mxu0
        %v3325 = vadd.f32 0.0, %v3324
        %v3326 = vpop.f32.mrb[0].mxu0
        %3327 = vmatprep.mubr.f32.mxu0 0.0
        %3328 = vmatmul.mubr.f32.gmra.mrb[0].mxu0 %v3200
        %v3329 = vpop.f32.mrb[0].mxu0
        %v3330 = vadd.f32 0.0, %v3329
        %v3331 = vpop.f32.mrb[0].mxu0
        %3332 = vmatprep.mubr.f32.mxu0 0.0
        %3333 = vmatmul.mubr.f32.gmra.mrb[0].mxu0 %v3203
        %v3334 = vpop.f32.mrb[0].mxu0
        %v3335 = vadd.f32 0.0, %v3334
        %v3336 = vpop.f32.mrb[0].mxu0
        %3337 = vmatprep.mubr.f32.mxu0 0.0
        %3338 = vmatmul.mubr.f32.gmra.mrb[0].mxu0 %v3206
        %v3339 = vpop.f32.mrb[0].mxu0
        %v3340 = vadd.f32 0.0, %v3339
        %v3341 = vpop.f32.mrb[0].mxu0
        %3342 = vmatprep.mubr.f32.mxu0 0.0
        %3343 = vmatmul.mubr.f32.gmra.mrb[0].mxu0 %v3209
        %v3344 = vpop.f32.mrb[0].mxu0
        %v3345 = vadd.f32 0.0, %v3344
        %v3346 = vpop.f32.mrb[0].mxu0
        %3347 = vmatprep.mubr.f32.mxu0 0.0
        %3348 = vmatmul.mubr.f32.gmra.mrb[0].mxu0 %v3212
        %v3349 = vpop.f32.mrb[0].mxu0
        %v3350 = vadd.f32 0.0, %v3349
        %v3351 = vpop.f32.mrb[0].mxu0
        %3352 = vmatprep.mubr.f32.mxu0 0.0
        %3353 = vmatmul.mubr.f32.gmra.mrb[0].mxu0 %v3215
        %v3354 = vpop.f32.mrb[0].mxu0
        %v3355 = vadd.f32 0.0, %v3354
        %v3356 = vpop.f32.mrb[0].mxu0
        %3357 = vmatprep.mubr.f32.mxu0 0.0
        %3358 = vmatmul.mubr.f32.gmra.mrb[0].mxu0 %v3218
        %v3359 = vpop.f32.mrb[0].mxu0
        %v3360 = vadd.f32 0.0, %v3359
        %v3361 = vpop.f32.mrb[0].mxu0
        %3362 = vmatprep.mubr.f32.mxu0 0.0
        %3363 = vmatmul.mubr.f32.gmra.mrb[0].mxu0 %v3221
        %v3364 = vpop.f32.mrb[0].mxu0
        %v3365 = vadd.f32 0.0, %v3364
        %v3366 = vpop.f32.mrb[0].mxu0
        %3367 = vdwg.mxu0
        %v3368 = vadd.f32 %v3060, %v3290
        %v3369 = vadd.f32 %v3065, %v3295
        %v3370 = vadd.f32 %v3070, %v3300
        %v3371 = vadd.f32 %v3075, %v3305
        %v3372 = vadd.f32 %v3080, %v3310
        %v3373 = vadd.f32 %v3085, %v3315
        %v3374 = vadd.f32 %v3090, %v3320
        %v3375 = vadd.f32 %v3095, %v3325
        %v3376 = vadd.f32 %v3100, %v3330
        %v3377 = vadd.f32 %v3105, %v3335
        %v3378 = vadd.f32 %v3110, %v3340
        %v3379 = vadd.f32 %v3115, %v3345
        %v3380 = vadd.f32 %v3120, %v3350
        %v3381 = vadd.f32 %v3125, %v3355
        %v3382 = vadd.f32 %v3130, %v3360
        %v3383 = vadd.f32 %v3135, %v3365
        %v3384 = vlaneseq
        %v3385 = vshrl.u32 %v3384, 7
        %v3386 = vsub.s32 0, %v3385
        %v3387 = vrot.slane %v2678, %v3386
        %v3388 = vadd.f32 %v3368, %v3387
        %v3389 = vadd.f32 %v3369, %v3387
        %v3390 = vadd.f32 %v3370, %v3387
        %v3391 = vadd.f32 %v3371, %v3387
        %v3392 = vadd.f32 %v3372, %v3387
        %v3393 = vadd.f32 %v3373, %v3387
        %v3394 = vadd.f32 %v3374, %v3387
        %v3395 = vadd.f32 %v3375, %v3387
        %v3396 = vadd.f32 %v3376, %v3387
        %v3397 = vadd.f32 %v3377, %v3387
        %v3398 = vadd.f32 %v3378, %v3387
        %v3399 = vadd.f32 %v3379, %v3387
        %v3400 = vadd.f32 %v3380, %v3387
        %v3401 = vadd.f32 %v3381, %v3387
        %v3402 = vadd.f32 %v3382, %v3387
        %v3403 = vadd.f32 %v3383, %v3387
        %v3404 = vsel %vm2012, %v3388, 0.0
        %v3405 = vsel %vm2012, %v3389, 0.0
        %v3406 = vadd.f32 %v3404, %v3405
        %v3407 = vsel %vm2012, %v3390, 0.0
        %v3408 = vadd.f32 %v3406, %v3407
        %v3409 = vsel %vm2012, %v3391, 0.0
        %v3410 = vadd.f32 %v3408, %v3409
        %v3411 = vsel %vm2012, %v3392, 0.0
        %v3412 = vadd.f32 %v3410, %v3411
        %v3413 = vsel %vm2012, %v3393, 0.0
        %v3414 = vadd.f32 %v3412, %v3413
        %v3415 = vsel %vm2012, %v3394, 0.0
        %v3416 = vadd.f32 %v3414, %v3415
        %v3417 = vsel %vm2012, %v3395, 0.0
        %v3418 = vadd.f32 %v3416, %v3417
        %v3419 = vsel %vm2012, %v3396, 0.0
        %v3420 = vadd.f32 %v3418, %v3419
        %v3421 = vsel %vm2012, %v3397, 0.0
        %v3422 = vadd.f32 %v3420, %v3421
        %v3423 = vsel %vm2012, %v3398, 0.0
        %v3424 = vadd.f32 %v3422, %v3423
        %v3425 = vsel %vm2012, %v3399, 0.0
        %v3426 = vadd.f32 %v3424, %v3425
        %v3427 = vsel %vm2012, %v3400, 0.0
        %v3428 = vadd.f32 %v3426, %v3427
        %v3429 = vsel %vm2012, %v3401, 0.0
        %v3430 = vadd.f32 %v3428, %v3429
        %v3431 = vsel %vm2012, %v3402, 0.0
        %v3432 = vadd.f32 %v3430, %v3431
        %v3433 = vsel %vm2012, %v3403, 0.0
        %v3434 = vadd.f32 %v3432, %v3433
        %v3435 = vrot.slane %v3434, 4
        %v3436 = vadd.f32 %v3434, %v3435
        %v3437 = vrot.slane %v3436, 2
        %v3438 = vadd.f32 %v3436, %v3437
        %v3439 = vrot.slane %v3438, 1
        %v3440 = vadd.f32 %v3438, %v3439
        %v3441 = vld [vmem:[%s6] sm:$0xff]
        %v3442 = vld [vmem:[%s6 + $0x8] sm:$0xff]
        %v3443 = vld [vmem:[%s6 + $0x10] sm:$0xff]
        %v3444 = vld [vmem:[%s6 + $0x18] sm:$0xff]
        %v3446 = vsel %vm2012, %v3440, 0
        %3448 = vmatprep.subr.mxu0 0.0
        %3449 = vmatpush1.msra.mxu0 %v3441
        %3450 = vmatprep.subr.mxu0 0.0
        %3451 = vmatpush1.msra.mxu0 %v3442
        %3452 = vmatprep.subr.mxu0 0.0
        %3453 = vmatpush1.msra.mxu0 %v3443
        %3454 = vmatprep.subr.mxu0 0.0
        %3455 = vmatpush1.msra.mxu0 %v3444
        %3456 = vmatprep.subr.mxu0 0.0
        %3457 = vmatpush1.msra.mxu0 0.0
        %3458 = vmatprep.subr.mxu0 0.0
        %3459 = vmatpush1.msra.mxu0 0.0
        %3460 = vmatprep.subr.mxu0 0.0
        %3461 = vmatpush1.msra.mxu0 0.0
        %3462 = vmatprep.subr.mxu0 0.0
        %3463 = vmatpush1.msra.mxu0 0.0
        %3464 = vmatprep.subr.mxu0 0.0
        %3465 = vmatpush1.msra.mxu0 0.0
        %3466 = vmatprep.subr.mxu0 0.0
        %3467 = vmatpush1.msra.mxu0 0.0
        %3468 = vmatprep.subr.mxu0 0.0
        %3469 = vmatpush1.msra.mxu0 0.0
        %3470 = vmatprep.subr.mxu0 0.0
        %3471 = vmatpush1.msra.mxu0 0.0
        %3472 = vmatprep.subr.mxu0 0.0
        %3473 = vmatpush1.msra.mxu0 0.0
        %3474 = vmatprep.subr.mxu0 0.0
        %3475 = vmatpush1.msra.mxu0 0.0
        %3476 = vmatprep.subr.mxu0 0.0
        %3477 = vmatpush1.msra.mxu0 0.0
        %3478 = vmatprep.subr.mxu0 0.0
        %3479 = vmatpush1.msra.mxu0 0.0
        %3480 = vmatprep.subr.mxu0 0.0
        %3481 = vmatpush1.msra.mxu0 0.0
        %3482 = vmatprep.subr.mxu0 0.0
        %3483 = vmatpush1.msra.mxu0 0.0
        %3484 = vmatprep.subr.mxu0 0.0
        %3485 = vmatpush1.msra.mxu0 0.0
        %3486 = vmatprep.subr.mxu0 0.0
        %3487 = vmatpush1.msra.mxu0 0.0
        %3488 = vmatprep.subr.mxu0 0.0
        %3489 = vmatpush1.msra.mxu0 0.0
        %3490 = vmatprep.subr.mxu0 0.0
        %3491 = vmatpush1.msra.mxu0 0.0
        %3492 = vmatprep.subr.mxu0 0.0
        %3493 = vmatpush1.msra.mxu0 0.0
        %3494 = vmatprep.subr.mxu0 0.0
        %3495 = vmatpush1.msra.mxu0 0.0
        %3496 = vmatprep.subr.mxu0 0.0
        %3497 = vmatpush1.msra.mxu0 0.0
        %3498 = vmatprep.subr.mxu0 0.0
        %3499 = vmatpush1.msra.mxu0 0.0
        %3500 = vmatprep.subr.mxu0 0.0
        %3501 = vmatpush1.msra.mxu0 0.0
        %3502 = vmatprep.subr.mxu0 0.0
        %3503 = vmatpush1.msra.mxu0 0.0
        %3504 = vmatprep.subr.mxu0 0.0
        %3505 = vmatpush1.msra.mxu0 0.0
        %3506 = vmatprep.subr.mxu0 0.0
        %3507 = vmatpush1.msra.mxu0 0.0
        %3508 = vmatprep.subr.mxu0 0.0
        %3509 = vmatpush1.msra.mxu0 0.0
        %3510 = vmatprep.subr.mxu0 0.0
        %3511 = vmatpush1.msra.mxu0 0.0
        %3512 = vmatprep.mubr.f32.mxu0 0.0
        %3513 = vmatmul.mubr.f32.gmra.mrb[0].mxu0 %v3446
        %v3514 = vpop.f32.mrb[0].mxu0
        %v3515 = vadd.f32 0.0, %v3514
        %v3516 = vpop.f32.mrb[0].mxu0
        %3517 = vdwg.mxu0
        %v3518 = vrcp.pop 256.0
        %v3519 = vmul.f32 %v3515, %v3518
        %v3520 = vlaneseq
        %v3521 = vshrl.u32 %v3520, 7
        %v3522 = vsub.s32 0, %v3521
        %v3523 = vrot.slane %v3519, %v3522
        %v3524 = vsub.f32 %v3388, %v3523
        %v3525 = vsub.f32 %v3389, %v3523
        %v3526 = vsub.f32 %v3390, %v3523
        %v3527 = vsub.f32 %v3391, %v3523
        %v3528 = vsub.f32 %v3392, %v3523
        %v3529 = vsub.f32 %v3393, %v3523
        %v3530 = vsub.f32 %v3394, %v3523
        %v3531 = vsub.f32 %v3395, %v3523
        %v3532 = vsub.f32 %v3396, %v3523
        %v3533 = vsub.f32 %v3397, %v3523
        %v3534 = vsub.f32 %v3398, %v3523
        %v3535 = vsub.f32 %v3399, %v3523
        %v3536 = vsub.f32 %v3400, %v3523
        %v3537 = vsub.f32 %v3401, %v3523
        %v3538 = vsub.f32 %v3402, %v3523
        %v3539 = vsub.f32 %v3403, %v3523
        %v3540 = vmul.f32 %v3524, %v3524
        %v3541 = vmul.f32 %v3525, %v3525
        %v3542 = vmul.f32 %v3526, %v3526
        %v3543 = vmul.f32 %v3527, %v3527
        %v3544 = vmul.f32 %v3528, %v3528
        %v3545 = vmul.f32 %v3529, %v3529
        %v3546 = vmul.f32 %v3530, %v3530
        %v3547 = vmul.f32 %v3531, %v3531
        %v3548 = vmul.f32 %v3532, %v3532
        %v3549 = vmul.f32 %v3533, %v3533
        %v3550 = vmul.f32 %v3534, %v3534
        %v3551 = vmul.f32 %v3535, %v3535
        %v3552 = vmul.f32 %v3536, %v3536
        %v3553 = vmul.f32 %v3537, %v3537
        %v3554 = vmul.f32 %v3538, %v3538
        %v3555 = vmul.f32 %v3539, %v3539
        %v3556 = vsel %vm2012, %v3540, 0.0
        %v3557 = vsel %vm2012, %v3541, 0.0
        %v3558 = vadd.f32 %v3556, %v3557
        %v3559 = vsel %vm2012, %v3542, 0.0
        %v3560 = vadd.f32 %v3558, %v3559
        %v3561 = vsel %vm2012, %v3543, 0.0
        %v3562 = vadd.f32 %v3560, %v3561
        %v3563 = vsel %vm2012, %v3544, 0.0
        %v3564 = vadd.f32 %v3562, %v3563
        %v3565 = vsel %vm2012, %v3545, 0.0
        %v3566 = vadd.f32 %v3564, %v3565
        %v3567 = vsel %vm2012, %v3546, 0.0
        %v3568 = vadd.f32 %v3566, %v3567
        %v3569 = vsel %vm2012, %v3547, 0.0
        %v3570 = vadd.f32 %v3568, %v3569
        %v3571 = vsel %vm2012, %v3548, 0.0
        %v3572 = vadd.f32 %v3570, %v3571
        %v3573 = vsel %vm2012, %v3549, 0.0
        %v3574 = vadd.f32 %v3572, %v3573
        %v3575 = vsel %vm2012, %v3550, 0.0
        %v3576 = vadd.f32 %v3574, %v3575
        %v3577 = vsel %vm2012, %v3551, 0.0
        %v3578 = vadd.f32 %v3576, %v3577
        %v3579 = vsel %vm2012, %v3552, 0.0
        %v3580 = vadd.f32 %v3578, %v3579
        %v3581 = vsel %vm2012, %v3553, 0.0
        %v3582 = vadd.f32 %v3580, %v3581
        %v3583 = vsel %vm2012, %v3554, 0.0
        %v3584 = vadd.f32 %v3582, %v3583
        %v3585 = vsel %vm2012, %v3555, 0.0
        %v3586 = vadd.f32 %v3584, %v3585
        %v3587 = vrot.slane %v3586, 4
        %v3588 = vadd.f32 %v3586, %v3587
        %v3589 = vrot.slane %v3588, 2
        %v3590 = vadd.f32 %v3588, %v3589
        %v3591 = vrot.slane %v3590, 1
        %v3592 = vadd.f32 %v3590, %v3591
        %v3594 = vsel %vm2012, %v3592, 0
        %3596 = vmatprep.subr.mxu0 0.0
        %3597 = vmatpush1.msra.mxu0 %v3441
        %3598 = vmatprep.subr.mxu0 0.0
        %3599 = vmatpush1.msra.mxu0 %v3442
        %3600 = vmatprep.subr.mxu0 0.0
        %3601 = vmatpush1.msra.mxu0 %v3443
        %3602 = vmatprep.subr.mxu0 0.0
        %3603 = vmatpush1.msra.mxu0 %v3444
        %3604 = vmatprep.subr.mxu0 0.0
        %3605 = vmatpush1.msra.mxu0 0.0
        %3606 = vmatprep.subr.mxu0 0.0
        %3607 = vmatpush1.msra.mxu0 0.0
        %3608 = vmatprep.subr.mxu0 0.0
        %3609 = vmatpush1.msra.mxu0 0.0
        %3610 = vmatprep.subr.mxu0 0.0
        %3611 = vmatpush1.msra.mxu0 0.0
        %3612 = vmatprep.subr.mxu0 0.0
        %3613 = vmatpush1.msra.mxu0 0.0
        %3614 = vmatprep.subr.mxu0 0.0
        %3615 = vmatpush1.msra.mxu0 0.0
        %3616 = vmatprep.subr.mxu0 0.0
        %3617 = vmatpush1.msra.mxu0 0.0
        %3618 = vmatprep.subr.mxu0 0.0
        %3619 = vmatpush1.msra.mxu0 0.0
        %3620 = vmatprep.subr.mxu0 0.0
        %3621 = vmatpush1.msra.mxu0 0.0
        %3622 = vmatprep.subr.mxu0 0.0
        %3623 = vmatpush1.msra.mxu0 0.0
        %3624 = vmatprep.subr.mxu0 0.0
        %3625 = vmatpush1.msra.mxu0 0.0
        %3626 = vmatprep.subr.mxu0 0.0
        %3627 = vmatpush1.msra.mxu0 0.0
        %3628 = vmatprep.subr.mxu0 0.0
        %3629 = vmatpush1.msra.mxu0 0.0
        %3630 = vmatprep.subr.mxu0 0.0
        %3631 = vmatpush1.msra.mxu0 0.0
        %3632 = vmatprep.subr.mxu0 0.0
        %3633 = vmatpush1.msra.mxu0 0.0
        %3634 = vmatprep.subr.mxu0 0.0
        %3635 = vmatpush1.msra.mxu0 0.0
        %3636 = vmatprep.subr.mxu0 0.0
        %3637 = vmatpush1.msra.mxu0 0.0
        %3638 = vmatprep.subr.mxu0 0.0
        %3639 = vmatpush1.msra.mxu0 0.0
        %3640 = vmatprep.subr.mxu0 0.0
        %3641 = vmatpush1.msra.mxu0 0.0
        %3642 = vmatprep.subr.mxu0 0.0
        %3643 = vmatpush1.msra.mxu0 0.0
        %3644 = vmatprep.subr.mxu0 0.0
        %3645 = vmatpush1.msra.mxu0 0.0
        %3646 = vmatprep.subr.mxu0 0.0
        %3647 = vmatpush1.msra.mxu0 0.0
        %3648 = vmatprep.subr.mxu0 0.0
        %3649 = vmatpush1.msra.mxu0 0.0
        %3650 = vmatprep.subr.mxu0 0.0
        %3651 = vmatpush1.msra.mxu0 0.0
        %3652 = vmatprep.subr.mxu0 0.0
        %3653 = vmatpush1.msra.mxu0 0.0
        %3654 = vmatprep.subr.mxu0 0.0
        %3655 = vmatpush1.msra.mxu0 0.0
        %3656 = vmatprep.subr.mxu0 0.0
        %3657 = vmatpush1.msra.mxu0 0.0
        %3658 = vmatprep.subr.mxu0 0.0
        %3659 = vmatpush1.msra.mxu0 0.0
        %3660 = vmatprep.mubr.f32.mxu0 0.0
        %3661 = vmatmul.mubr.f32.gmra.mrb[0].mxu0 %v3594
        %v3662 = vpop.f32.mrb[0].mxu0
        %v3663 = vadd.f32 0.0, %v3662
        %v3664 = vpop.f32.mrb[0].mxu0
        %3665 = vdwg.mxu0
        %v3666 = vmul.f32 %v3663, %v3518
        %v3667 = vadd.f32 %v3666, 1e-05
        %v3668 = vrsqrt.pop %v3667
        %v3669 = vlaneseq
        %v3670 = vshrl.u32 %v3669, 7
        %v3671 = vsub.s32 0, %v3670
        %v3672 = vrot.slane %v3668, %v3671
        %v3673 = vmul.f32 %v3524, %v3672
        %v3674 = vmul.f32 %v3525, %v3672
        %v3675 = vmul.f32 %v3526, %v3672
        %v3676 = vmul.f32 %v3527, %v3672
        %v3677 = vmul.f32 %v3528, %v3672
        %v3678 = vmul.f32 %v3529, %v3672
        %v3679 = vmul.f32 %v3530, %v3672
        %v3680 = vmul.f32 %v3531, %v3672
        %v3681 = vmul.f32 %v3532, %v3672
        %v3682 = vmul.f32 %v3533, %v3672
        %v3683 = vmul.f32 %v3534, %v3672
        %v3684 = vmul.f32 %v3535, %v3672
        %v3685 = vmul.f32 %v3536, %v3672
        %v3686 = vmul.f32 %v3537, %v3672
        %v3687 = vmul.f32 %v3538, %v3672
        %v3688 = vmul.f32 %v3539, %v3672
        %v3689 = vld [vmem:[%s4 + $0x1] sm:$0x1]
        %v3690 = vlaneseq
        %v3691 = vshrl.u32 %v3690, 7
        %v3692 = vsub.s32 0, %v3691
        %v3693 = vrot.slane %v3689, %v3692
        %v3694 = vmul.f32 %v3673, %v3693
        %v3695 = vmul.f32 %v3674, %v3693
        %v3696 = vmul.f32 %v3675, %v3693
        %v3697 = vmul.f32 %v3676, %v3693
        %v3698 = vmul.f32 %v3677, %v3693
        %v3699 = vmul.f32 %v3678, %v3693
        %v3700 = vmul.f32 %v3679, %v3693
        %v3701 = vmul.f32 %v3680, %v3693
        %v3702 = vmul.f32 %v3681, %v3693
        %v3703 = vmul.f32 %v3682, %v3693
        %v3704 = vmul.f32 %v3683, %v3693
        %v3705 = vmul.f32 %v3684, %v3693
        %v3706 = vmul.f32 %v3685, %v3693
        %v3707 = vmul.f32 %v3686, %v3693
        %v3708 = vmul.f32 %v3687, %v3693
        %v3709 = vmul.f32 %v3688, %v3693
        %v3710 = vld [vmem:[%s5 + $0x1] sm:$0x1]
        %v3711 = vlaneseq
        %v3712 = vshrl.u32 %v3711, 7
        %v3713 = vsub.s32 0, %v3712
        %v3714 = vrot.slane %v3710, %v3713
        %v3715 = vadd.f32 %v3694, %v3714
        %v3716 = vadd.f32 %v3695, %v3714
        %v3717 = vadd.f32 %v3696, %v3714
        %v3718 = vadd.f32 %v3697, %v3714
        %v3719 = vadd.f32 %v3698, %v3714
        %v3720 = vadd.f32 %v3699, %v3714
        %v3721 = vadd.f32 %v3700, %v3714
        %v3722 = vadd.f32 %v3701, %v3714
        %v3723 = vadd.f32 %v3702, %v3714
        %v3724 = vadd.f32 %v3703, %v3714
        %v3725 = vadd.f32 %v3704, %v3714
        %v3726 = vadd.f32 %v3705, %v3714
        %v3727 = vadd.f32 %v3706, %v3714
        %v3728 = vadd.f32 %v3707, %v3714
        %v3729 = vadd.f32 %v3708, %v3714
        %v3730 = vadd.f32 %v3709, %v3714
        %v3731 = vmul.f32 %v3715, 0.5
        %v3732 = vmul.f32 %v3716, 0.5
        %v3733 = vmul.f32 %v3717, 0.5
        %v3734 = vmul.f32 %v3718, 0.5
        %v3735 = vmul.f32 %v3719, 0.5
        %v3736 = vmul.f32 %v3720, 0.5
        %v3737 = vmul.f32 %v3721, 0.5
        %v3738 = vmul.f32 %v3722, 0.5
        %v3739 = vmul.f32 %v3723, 0.5
        %v3740 = vmul.f32 %v3724, 0.5
        %v3741 = vmul.f32 %v3725, 0.5
        %v3742 = vmul.f32 %v3726, 0.5
        %v3743 = vmul.f32 %v3727, 0.5
        %v3744 = vmul.f32 %v3728, 0.5
        %v3745 = vmul.f32 %v3729, 0.5
        %v3746 = vmul.f32 %v3730, 0.5
        %v3747 = vmul.f32 %v3715, 0.70710677
        %v3748 = vmul.f32 %v3716, 0.70710677
        %v3749 = vmul.f32 %v3717, 0.70710677
        %v3750 = vmul.f32 %v3718, 0.70710677
        %v3751 = vmul.f32 %v3719, 0.70710677
        %v3752 = vmul.f32 %v3720, 0.70710677
        %v3753 = vmul.f32 %v3721, 0.70710677
        %v3754 = vmul.f32 %v3722, 0.70710677
        %v3755 = vmul.f32 %v3723, 0.70710677
        %v3756 = vmul.f32 %v3724, 0.70710677
        %v3757 = vmul.f32 %v3725, 0.70710677
        %v3758 = vmul.f32 %v3726, 0.70710677
        %v3759 = vmul.f32 %v3727, 0.70710677
        %v3760 = vmul.f32 %v3728, 0.70710677
        %v3761 = vmul.f32 %v3729, 0.70710677
        %v3762 = vmul.f32 %v3730, 0.70710677
        %v3763 = verf.f32.pop %v3747
        %v3764 = verf.f32.pop %v3748
        %v3765 = verf.f32.pop %v3749
        %v3766 = verf.f32.pop %v3750
        %v3767 = verf.f32.pop %v3751
        %v3768 = verf.f32.pop %v3752
        %v3769 = verf.f32.pop %v3753
        %v3770 = verf.f32.pop %v3754
        %v3771 = verf.f32.pop %v3755
        %v3772 = verf.f32.pop %v3756
        %v3773 = verf.f32.pop %v3757
        %v3774 = verf.f32.pop %v3758
        %v3775 = verf.f32.pop %v3759
        %v3776 = verf.f32.pop %v3760
        %v3777 = verf.f32.pop %v3761
        %v3778 = verf.f32.pop %v3762
        %v3779 = vadd.f32 %v3763, 1.0
        %v3780 = vadd.f32 %v3764, 1.0
        %v3781 = vadd.f32 %v3765, 1.0
        %v3782 = vadd.f32 %v3766, 1.0
        %v3783 = vadd.f32 %v3767, 1.0
        %v3784 = vadd.f32 %v3768, 1.0
        %v3785 = vadd.f32 %v3769, 1.0
        %v3786 = vadd.f32 %v3770, 1.0
        %v3787 = vadd.f32 %v3771, 1.0
        %v3788 = vadd.f32 %v3772, 1.0
        %v3789 = vadd.f32 %v3773, 1.0
        %v3790 = vadd.f32 %v3774, 1.0
        %v3791 = vadd.f32 %v3775, 1.0
        %v3792 = vadd.f32 %v3776, 1.0
        %v3793 = vadd.f32 %v3777, 1.0
        %v3794 = vadd.f32 %v3778, 1.0
        %v3795 = vmul.f32 %v3731, %v3779
        %v3796 = vmul.f32 %v3732, %v3780
        %v3797 = vmul.f32 %v3733, %v3781
        %v3798 = vmul.f32 %v3734, %v3782
        %v3799 = vmul.f32 %v3735, %v3783
        %v3800 = vmul.f32 %v3736, %v3784
        %v3801 = vmul.f32 %v3737, %v3785
        %v3802 = vmul.f32 %v3738, %v3786
        %v3803 = vmul.f32 %v3739, %v3787
        %v3804 = vmul.f32 %v3740, %v3788
        %v3805 = vmul.f32 %v3741, %v3789
        %v3806 = vmul.f32 %v3742, %v3790
        %v3807 = vmul.f32 %v3743, %v3791
        %v3808 = vmul.f32 %v3744, %v3792
        %v3809 = vmul.f32 %v3745, %v3793
        %v3810 = vmul.f32 %v3746, %v3794
        %3811 = vst.msk [vmem:[#allocation3] sm:$0xff] %vm2012, 0.0
        %3812 = vst.msk [vmem:[#allocation3 + $0x8] sm:$0xff] %vm2012, %v3795
        %3813 = vst.msk [vmem:[#allocation3 + $0x10] sm:$0xff] %vm2012, %v3796
        %3814 = vst.msk [vmem:[#allocation3 + $0x18] sm:$0xff] %vm2012, %v3797
        %3815 = vst.msk [vmem:[#allocation3 + $0x20] sm:$0xff] %vm2012, %v3798
        %3816 = vst.msk [vmem:[#allocation3 + $0x28] sm:$0xff] %vm2012, %v3799
        %3817 = vst.msk [vmem:[#allocation3 + $0x30] sm:$0xff] %vm2012, %v3800
        %3818 = vst.msk [vmem:[#allocation3 + $0x38] sm:$0xff] %vm2012, %v3801
        %3819 = vst.msk [vmem:[#allocation3 + $0x40] sm:$0xff] %vm2012, %v3802
        %3820 = vst.msk [vmem:[#allocation3 + $0x48] sm:$0xff] %vm2012, %v3803
        %3821 = vst.msk [vmem:[#allocation3 + $0x50] sm:$0xff] %vm2012, %v3804
        %3822 = vst.msk [vmem:[#allocation3 + $0x58] sm:$0xff] %vm2012, %v3805
        %3823 = vst.msk [vmem:[#allocation3 + $0x60] sm:$0xff] %vm2012, %v3806
        %3824 = vst.msk [vmem:[#allocation3 + $0x68] sm:$0xff] %vm2012, %v3807
        %3825 = vst.msk [vmem:[#allocation3 + $0x70] sm:$0xff] %vm2012, %v3808
        %3826 = vst.msk [vmem:[#allocation3 + $0x78] sm:$0xff] %vm2012, %v3809
        %3827 = vst.msk [vmem:[#allocation3 + $0x80] sm:$0xff] %vm2012, %v3810
        %3828 = vst.msk [vmem:[#allocation3 + $0x88] sm:$0xff] %vm2012, 0.0
        %v3829 = vld [vmem:[%s3 + $0x2] sm:$0x1]
        %s3830 = scalar_lea.vmem [#allocation3], 7
        %v3831 = vld [vmem:[%s3830] ss:$2 sm:$0xff]
        %s3832 = scalar_lea.vmem [#allocation3], 23
        %v3833 = vld [vmem:[%s3832] ss:$2 sm:$0xff]
        %s3834 = scalar_lea.vmem [#allocation3], 39
        %v3835 = vld [vmem:[%s3834] ss:$2 sm:$0xff]
        %s3836 = scalar_lea.vmem [#allocation3], 55
        %v3837 = vld [vmem:[%s3836] ss:$2 sm:$0xff]
        %s3838 = scalar_lea.vmem [#allocation3], 71
        %v3839 = vld [vmem:[%s3838] ss:$2 sm:$0xff]
        %s3840 = scalar_lea.vmem [#allocation3], 87
        %v3841 = vld [vmem:[%s3840] ss:$2 sm:$0xff]
        %s3842 = scalar_lea.vmem [#allocation3], 103
        %v3843 = vld [vmem:[%s3842] ss:$2 sm:$0xff]
        %s3844 = scalar_lea.vmem [#allocation3], 119
        %v3845 = vld [vmem:[%s3844] ss:$2 sm:$0xff]
        %s3846 = scalar_lea.vmem %s2, 96
        %v3847 = vld [vmem:[%s3846] sm:$0xff]
        %v3848 = vld [vmem:[%s3846 + $0x8] sm:$0xff]
        %v3849 = vld [vmem:[%s3846 + $0x10] sm:$0xff]
        %v3850 = vld [vmem:[%s3846 + $0x18] sm:$0xff]
        %s3851 = scalar_lea.vmem [#allocation3], 8
        %v3852 = vld [vmem:[%s3851] ss:$2 sm:$0xff]
        %s3853 = scalar_lea.vmem [#allocation3], 24
        %v3854 = vld [vmem:[%s3853] ss:$2 sm:$0xff]
        %s3855 = scalar_lea.vmem [#allocation3], 40
        %v3856 = vld [vmem:[%s3855] ss:$2 sm:$0xff]
        %s3857 = scalar_lea.vmem [#allocation3], 56
        %v3858 = vld [vmem:[%s3857] ss:$2 sm:$0xff]
        %s3859 = scalar_lea.vmem [#allocation3], 72
        %v3860 = vld [vmem:[%s3859] ss:$2 sm:$0xff]
        %s3861 = scalar_lea.vmem [#allocation3], 88
        %v3862 = vld [vmem:[%s3861] ss:$2 sm:$0xff]
        %s3863 = scalar_lea.vmem [#allocation3], 104
        %v3864 = vld [vmem:[%s3863] ss:$2 sm:$0xff]
        %s3865 = scalar_lea.vmem [#allocation3], 120
        %v3866 = vld [vmem:[%s3865] ss:$2 sm:$0xff]
        %s3867 = scalar_lea.vmem %s2, 128
        %v3868 = vld [vmem:[%s3867] sm:$0xff]
        %v3869 = vld [vmem:[%s3867 + $0x8] sm:$0xff]
        %v3870 = vld [vmem:[%s3867 + $0x10] sm:$0xff]
        %v3871 = vld [vmem:[%s3867 + $0x18] sm:$0xff]
        %v3873 = vsel %vm2012, %v3852, 0
        %v3876 = vsel %vm2012, %v3854, 0
        %v3879 = vsel %vm2012, %v3856, 0
        %v3882 = vsel %vm2012, %v3858, 0
        %v3885 = vsel %vm2012, %v3860, 0
        %v3888 = vsel %vm2012, %v3862, 0
        %v3891 = vsel %vm2012, %v3864, 0
        %v3894 = vsel %vm2012, %v3866, 0
        %3896 = vmatprep.subr.mxu0 0.0
        %3897 = vmatpush1.msra.mxu0 %v3868
        %3898 = vmatprep.subr.mxu0 0.0
        %3899 = vmatpush1.msra.mxu0 %v3869
        %3900 = vmatprep.subr.mxu0 0.0
        %3901 = vmatpush1.msra.mxu0 %v3870
        %3902 = vmatprep.subr.mxu0 0.0
        %3903 = vmatpush1.msra.mxu0 %v3871
        %3904 = vmatprep.subr.mxu0 0.0
        %3905 = vmatpush1.msra.mxu0 0.0
        %3906 = vmatprep.subr.mxu0 0.0
        %3907 = vmatpush1.msra.mxu0 0.0
        %3908 = vmatprep.subr.mxu0 0.0
        %3909 = vmatpush1.msra.mxu0 0.0
        %3910 = vmatprep.subr.mxu0 0.0
        %3911 = vmatpush1.msra.mxu0 0.0
        %3912 = vmatprep.subr.mxu0 0.0
        %3913 = vmatpush1.msra.mxu0 0.0
        %3914 = vmatprep.subr.mxu0 0.0
        %3915 = vmatpush1.msra.mxu0 0.0
        %3916 = vmatprep.subr.mxu0 0.0
        %3917 = vmatpush1.msra.mxu0 0.0
        %3918 = vmatprep.subr.mxu0 0.0
        %3919 = vmatpush1.msra.mxu0 0.0
        %3920 = vmatprep.subr.mxu0 0.0
        %3921 = vmatpush1.msra.mxu0 0.0
        %3922 = vmatprep.subr.mxu0 0.0
        %3923 = vmatpush1.msra.mxu0 0.0
        %3924 = vmatprep.subr.mxu0 0.0
        %3925 = vmatpush1.msra.mxu0 0.0
        %3926 = vmatprep.subr.mxu0 0.0
        %3927 = vmatpush1.msra.mxu0 0.0
        %3928 = vmatprep.subr.mxu0 0.0
        %3929 = vmatpush1.msra.mxu0 0.0
        %3930 = vmatprep.subr.mxu0 0.0
        %3931 = vmatpush1.msra.mxu0 0.0
        %3932 = vmatprep.subr.mxu0 0.0
        %3933 = vmatpush1.msra.mxu0 0.0
        %3934 = vmatprep.subr.mxu0 0.0
        %3935 = vmatpush1.msra.mxu0 0.0
        %3936 = vmatprep.subr.mxu0 0.0
        %3937 = vmatpush1.msra.mxu0 0.0
        %3938 = vmatprep.subr.mxu0 0.0
        %3939 = vmatpush1.msra.mxu0 0.0
        %3940 = vmatprep.subr.mxu0 0.0
        %3941 = vmatpush1.msra.mxu0 0.0
        %3942 = vmatprep.subr.mxu0 0.0
        %3943 = vmatpush1.msra.mxu0 0.0
        %3944 = vmatprep.subr.mxu0 0.0
        %3945 = vmatpush1.msra.mxu0 0.0
        %3946 = vmatprep.subr.mxu0 0.0
        %3947 = vmatpush1.msra.mxu0 0.0
        %3948 = vmatprep.subr.mxu0 0.0
        %3949 = vmatpush1.msra.mxu0 0.0
        %3950 = vmatprep.subr.mxu0 0.0
        %3951 = vmatpush1.msra.mxu0 0.0
        %3952 = vmatprep.subr.mxu0 0.0
        %3953 = vmatpush1.msra.mxu0 0.0
        %3954 = vmatprep.subr.mxu0 0.0
        %3955 = vmatpush1.msra.mxu0 0.0
        %3956 = vmatprep.subr.mxu0 0.0
        %3957 = vmatpush1.msra.mxu0 0.0
        %3958 = vmatprep.subr.mxu0 0.0
        %3959 = vmatpush1.msra.mxu0 0.0
        %3960 = vmatprep.mubr.f32.mxu0 0.0
        %3961 = vmatmul.mubr.f32.gmra.mrb[0].mxu0 %v3873
        %v3962 = vpop.f32.mrb[0].mxu0
        %v3963 = vadd.f32 0.0, %v3962
        %v3964 = vpop.f32.mrb[0].mxu0
        %3965 = vmatprep.mubr.f32.mxu0 0.0
        %3966 = vmatmul.mubr.f32.gmra.mrb[0].mxu0 %v3876
        %v3967 = vpop.f32.mrb[0].mxu0
        %v3968 = vadd.f32 0.0, %v3967
        %v3969 = vpop.f32.mrb[0].mxu0
        %3970 = vmatprep.mubr.f32.mxu0 0.0
        %3971 = vmatmul.mubr.f32.gmra.mrb[0].mxu0 %v3879
        %v3972 = vpop.f32.mrb[0].mxu0
        %v3973 = vadd.f32 0.0, %v3972
        %v3974 = vpop.f32.mrb[0].mxu0
        %3975 = vmatprep.mubr.f32.mxu0 0.0
        %3976 = vmatmul.mubr.f32.gmra.mrb[0].mxu0 %v3882
        %v3977 = vpop.f32.mrb[0].mxu0
        %v3978 = vadd.f32 0.0, %v3977
        %v3979 = vpop.f32.mrb[0].mxu0
        %3980 = vmatprep.mubr.f32.mxu0 0.0
        %3981 = vmatmul.mubr.f32.gmra.mrb[0].mxu0 %v3885
        %v3982 = vpop.f32.mrb[0].mxu0
        %v3983 = vadd.f32 0.0, %v3982
        %v3984 = vpop.f32.mrb[0].mxu0
        %3985 = vmatprep.mubr.f32.mxu0 0.0
        %3986 = vmatmul.mubr.f32.gmra.mrb[0].mxu0 %v3888
        %v3987 = vpop.f32.mrb[0].mxu0
        %v3988 = vadd.f32 0.0, %v3987
        %v3989 = vpop.f32.mrb[0].mxu0
        %3990 = vmatprep.mubr.f32.mxu0 0.0
        %3991 = vmatmul.mubr.f32.gmra.mrb[0].mxu0 %v3891
        %v3992 = vpop.f32.mrb[0].mxu0
        %v3993 = vadd.f32 0.0, %v3992
        %v3994 = vpop.f32.mrb[0].mxu0
        %3995 = vmatprep.mubr.f32.mxu0 0.0
        %3996 = vmatmul.mubr.f32.gmra.mrb[0].mxu0 %v3894
        %v3997 = vpop.f32.mrb[0].mxu0
        %v3998 = vadd.f32 0.0, %v3997
        %v3999 = vpop.f32.mrb[0].mxu0
        %4000 = vdwg.mxu0
        %v4002 = vsel %vm2012, %v3831, 0
        %v4005 = vsel %vm2012, %v3833, 0
        %v4008 = vsel %vm2012, %v3835, 0
        %v4011 = vsel %vm2012, %v3837, 0
        %v4014 = vsel %vm2012, %v3839, 0
        %v4017 = vsel %vm2012, %v3841, 0
        %v4020 = vsel %vm2012, %v3843, 0
        %v4023 = vsel %vm2012, %v3845, 0
        %4025 = vmatprep.subr.mxu0 0.0
        %4026 = vmatpush1.msra.mxu0 %v3847
        %4027 = vmatprep.subr.mxu0 0.0
        %4028 = vmatpush1.msra.mxu0 %v3848
        %4029 = vmatprep.subr.mxu0 0.0
        %4030 = vmatpush1.msra.mxu0 %v3849
        %4031 = vmatprep.subr.mxu0 0.0
        %4032 = vmatpush1.msra.mxu0 %v3850
        %4033 = vmatprep.subr.mxu0 0.0
        %4034 = vmatpush1.msra.mxu0 0.0
        %4035 = vmatprep.subr.mxu0 0.0
        %4036 = vmatpush1.msra.mxu0 0.0
        %4037 = vmatprep.subr.mxu0 0.0
        %4038 = vmatpush1.msra.mxu0 0.0
        %4039 = vmatprep.subr.mxu0 0.0
        %4040 = vmatpush1.msra.mxu0 0.0
        %4041 = vmatprep.subr.mxu0 0.0
        %4042 = vmatpush1.msra.mxu0 0.0
        %4043 = vmatprep.subr.mxu0 0.0
        %4044 = vmatpush1.msra.mxu0 0.0
        %4045 = vmatprep.subr.mxu0 0.0
        %4046 = vmatpush1.msra.mxu0 0.0
        %4047 = vmatprep.subr.mxu0 0.0
        %4048 = vmatpush1.msra.mxu0 0.0
        %4049 = vmatprep.subr.mxu0 0.0
        %4050 = vmatpush1.msra.mxu0 0.0
        %4051 = vmatprep.subr.mxu0 0.0
        %4052 = vmatpush1.msra.mxu0 0.0
        %4053 = vmatprep.subr.mxu0 0.0
        %4054 = vmatpush1.msra.mxu0 0.0
        %4055 = vmatprep.subr.mxu0 0.0
        %4056 = vmatpush1.msra.mxu0 0.0
        %4057 = vmatprep.subr.mxu0 0.0
        %4058 = vmatpush1.msra.mxu0 0.0
        %4059 = vmatprep.subr.mxu0 0.0
        %4060 = vmatpush1.msra.mxu0 0.0
        %4061 = vmatprep.subr.mxu0 0.0
        %4062 = vmatpush1.msra.mxu0 0.0
        %4063 = vmatprep.subr.mxu0 0.0
        %4064 = vmatpush1.msra.mxu0 0.0
        %4065 = vmatprep.subr.mxu0 0.0
        %4066 = vmatpush1.msra.mxu0 0.0
        %4067 = vmatprep.subr.mxu0 0.0
        %4068 = vmatpush1.msra.mxu0 0.0
        %4069 = vmatprep.subr.mxu0 0.0
        %4070 = vmatpush1.msra.mxu0 0.0
        %4071 = vmatprep.subr.mxu0 0.0
        %4072 = vmatpush1.msra.mxu0 0.0
        %4073 = vmatprep.subr.mxu0 0.0
        %4074 = vmatpush1.msra.mxu0 0.0
        %4075 = vmatprep.subr.mxu0 0.0
        %4076 = vmatpush1.msra.mxu0 0.0
        %4077 = vmatprep.subr.mxu0 0.0
        %4078 = vmatpush1.msra.mxu0 0.0
        %4079 = vmatprep.subr.mxu0 0.0
        %4080 = vmatpush1.msra.mxu0 0.0
        %4081 = vmatprep.subr.mxu0 0.0
        %4082 = vmatpush1.msra.mxu0 0.0
        %4083 = vmatprep.subr.mxu0 0.0
        %4084 = vmatpush1.msra.mxu0 0.0
        %4085 = vmatprep.subr.mxu0 0.0
        %4086 = vmatpush1.msra.mxu0 0.0
        %4087 = vmatprep.subr.mxu0 0.0
        %4088 = vmatpush1.msra.mxu0 0.0
        %4089 = vmatprep.mubr.f32.mxu0 0.0
        %4090 = vmatmul.mubr.f32.gmra.mrb[0].mxu0 %v4002
        %v4091 = vpop.f32.mrb[0].mxu0
        %v4092 = vadd.f32 %v3963, %v4091
        %v4093 = vpop.f32.mrb[0].mxu0
        %4094 = vmatprep.mubr.f32.mxu0 0.0
        %4095 = vmatmul.mubr.f32.gmra.mrb[0].mxu0 %v4005
        %v4096 = vpop.f32.mrb[0].mxu0
        %v4097 = vadd.f32 %v3968, %v4096
        %v4098 = vpop.f32.mrb[0].mxu0
        %4099 = vmatprep.mubr.f32.mxu0 0.0
        %4100 = vmatmul.mubr.f32.gmra.mrb[0].mxu0 %v4008
        %v4101 = vpop.f32.mrb[0].mxu0
        %v4102 = vadd.f32 %v3973, %v4101
        %v4103 = vpop.f32.mrb[0].mxu0
        %4104 = vmatprep.mubr.f32.mxu0 0.0
        %4105 = vmatmul.mubr.f32.gmra.mrb[0].mxu0 %v4011
        %v4106 = vpop.f32.mrb[0].mxu0
        %v4107 = vadd.f32 %v3978, %v4106
        %v4108 = vpop.f32.mrb[0].mxu0
        %4109 = vmatprep.mubr.f32.mxu0 0.0
        %4110 = vmatmul.mubr.f32.gmra.mrb[0].mxu0 %v4014
        %v4111 = vpop.f32.mrb[0].mxu0
        %v4112 = vadd.f32 %v3983, %v4111
        %v4113 = vpop.f32.mrb[0].mxu0
        %4114 = vmatprep.mubr.f32.mxu0 0.0
        %4115 = vmatmul.mubr.f32.gmra.mrb[0].mxu0 %v4017
        %v4116 = vpop.f32.mrb[0].mxu0
        %v4117 = vadd.f32 %v3988, %v4116
        %v4118 = vpop.f32.mrb[0].mxu0
        %4119 = vmatprep.mubr.f32.mxu0 0.0
        %4120 = vmatmul.mubr.f32.gmra.mrb[0].mxu0 %v4020
        %v4121 = vpop.f32.mrb[0].mxu0
        %v4122 = vadd.f32 %v3993, %v4121
        %v4123 = vpop.f32.mrb[0].mxu0
        %4124 = vmatprep.mubr.f32.mxu0 0.0
        %4125 = vmatmul.mubr.f32.gmra.mrb[0].mxu0 %v4023
        %v4126 = vpop.f32.mrb[0].mxu0
        %v4127 = vadd.f32 %v3998, %v4126
        %v4128 = vpop.f32.mrb[0].mxu0
        %4129 = vdwg.mxu0
        %s4130 = scalar_lea.vmem [#allocation3], 9
        %v4131 = vld [vmem:[%s4130] ss:$2 sm:$0xff]
        %s4132 = scalar_lea.vmem [#allocation3], 25
        %v4133 = vld [vmem:[%s4132] ss:$2 sm:$0xff]
        %s4134 = scalar_lea.vmem [#allocation3], 41
        %v4135 = vld [vmem:[%s4134] ss:$2 sm:$0xff]
        %s4136 = scalar_lea.vmem [#allocation3], 57
        %v4137 = vld [vmem:[%s4136] ss:$2 sm:$0xff]
        %s4138 = scalar_lea.vmem [#allocation3], 73
        %v4139 = vld [vmem:[%s4138] ss:$2 sm:$0xff]
        %s4140 = scalar_lea.vmem [#allocation3], 89
        %v4141 = vld [vmem:[%s4140] ss:$2 sm:$0xff]
        %s4142 = scalar_lea.vmem [#allocation3], 105
        %v4143 = vld [vmem:[%s4142] ss:$2 sm:$0xff]
        %s4144 = scalar_lea.vmem [#allocation3], 121
        %v4145 = vld [vmem:[%s4144] ss:$2 sm:$0xff]
        %s4146 = scalar_lea.vmem %s2, 160
        %v4147 = vld [vmem:[%s4146] sm:$0xff]
        %v4148 = vld [vmem:[%s4146 + $0x8] sm:$0xff]
        %v4149 = vld [vmem:[%s4146 + $0x10] sm:$0xff]
        %v4150 = vld [vmem:[%s4146 + $0x18] sm:$0xff]
        %v4152 = vsel %vm2012, %v4131, 0
        %v4155 = vsel %vm2012, %v4133, 0
        %v4158 = vsel %vm2012, %v4135, 0
        %v4161 = vsel %vm2012, %v4137, 0
        %v4164 = vsel %vm2012, %v4139, 0
        %v4167 = vsel %vm2012, %v4141, 0
        %v4170 = vsel %vm2012, %v4143, 0
        %v4173 = vsel %vm2012, %v4145, 0
        %4175 = vmatprep.subr.mxu0 0.0
        %4176 = vmatpush1.msra.mxu0 %v4147
        %4177 = vmatprep.subr.mxu0 0.0
        %4178 = vmatpush1.msra.mxu0 %v4148
        %4179 = vmatprep.subr.mxu0 0.0
        %4180 = vmatpush1.msra.mxu0 %v4149
        %4181 = vmatprep.subr.mxu0 0.0
        %4182 = vmatpush1.msra.mxu0 %v4150
        %4183 = vmatprep.subr.mxu0 0.0
        %4184 = vmatpush1.msra.mxu0 0.0
        %4185 = vmatprep.subr.mxu0 0.0
        %4186 = vmatpush1.msra.mxu0 0.0
        %4187 = vmatprep.subr.mxu0 0.0
        %4188 = vmatpush1.msra.mxu0 0.0
        %4189 = vmatprep.subr.mxu0 0.0
        %4190 = vmatpush1.msra.mxu0 0.0
        %4191 = vmatprep.subr.mxu0 0.0
        %4192 = vmatpush1.msra.mxu0 0.0
        %4193 = vmatprep.subr.mxu0 0.0
        %4194 = vmatpush1.msra.mxu0 0.0
        %4195 = vmatprep.subr.mxu0 0.0
        %4196 = vmatpush1.msra.mxu0 0.0
        %4197 = vmatprep.subr.mxu0 0.0
        %4198 = vmatpush1.msra.mxu0 0.0
        %4199 = vmatprep.subr.mxu0 0.0
        %4200 = vmatpush1.msra.mxu0 0.0
        %4201 = vmatprep.subr.mxu0 0.0
        %4202 = vmatpush1.msra.mxu0 0.0
        %4203 = vmatprep.subr.mxu0 0.0
        %4204 = vmatpush1.msra.mxu0 0.0
        %4205 = vmatprep.subr.mxu0 0.0
        %4206 = vmatpush1.msra.mxu0 0.0
        %4207 = vmatprep.subr.mxu0 0.0
        %4208 = vmatpush1.msra.mxu0 0.0
        %4209 = vmatprep.subr.mxu0 0.0
        %4210 = vmatpush1.msra.mxu0 0.0
        %4211 = vmatprep.subr.mxu0 0.0
        %4212 = vmatpush1.msra.mxu0 0.0
        %4213 = vmatprep.subr.mxu0 0.0
        %4214 = vmatpush1.msra.mxu0 0.0
        %4215 = vmatprep.subr.mxu0 0.0
        %4216 = vmatpush1.msra.mxu0 0.0
        %4217 = vmatprep.subr.mxu0 0.0
        %4218 = vmatpush1.msra.mxu0 0.0
        %4219 = vmatprep.subr.mxu0 0.0
        %4220 = vmatpush1.msra.mxu0 0.0
        %4221 = vmatprep.subr.mxu0 0.0
        %4222 = vmatpush1.msra.mxu0 0.0
        %4223 = vmatprep.subr.mxu0 0.0
        %4224 = vmatpush1.msra.mxu0 0.0
        %4225 = vmatprep.subr.mxu0 0.0
        %4226 = vmatpush1.msra.mxu0 0.0
        %4227 = vmatprep.subr.mxu0 0.0
        %4228 = vmatpush1.msra.mxu0 0.0
        %4229 = vmatprep.subr.mxu0 0.0
        %4230 = vmatpush1.msra.mxu0 0.0
        %4231 = vmatprep.subr.mxu0 0.0
        %4232 = vmatpush1.msra.mxu0 0.0
        %4233 = vmatprep.subr.mxu0 0.0
        %4234 = vmatpush1.msra.mxu0 0.0
        %4235 = vmatprep.subr.mxu0 0.0
        %4236 = vmatpush1.msra.mxu0 0.0
        %4237 = vmatprep.subr.mxu0 0.0
        %4238 = vmatpush1.msra.mxu0 0.0
        %4239 = vmatprep.mubr.f32.mxu0 0.0
        %4240 = vmatmul.mubr.f32.gmra.mrb[0].mxu0 %v4152
        %v4241 = vpop.f32.mrb[0].mxu0
        %v4242 = vadd.f32 0.0, %v4241
        %v4243 = vpop.f32.mrb[0].mxu0
        %4244 = vmatprep.mubr.f32.mxu0 0.0
        %4245 = vmatmul.mubr.f32.gmra.mrb[0].mxu0 %v4155
        %v4246 = vpop.f32.mrb[0].mxu0
        %v4247 = vadd.f32 0.0, %v4246
        %v4248 = vpop.f32.mrb[0].mxu0
        %4249 = vmatprep.mubr.f32.mxu0 0.0
        %4250 = vmatmul.mubr.f32.gmra.mrb[0].mxu0 %v4158
        %v4251 = vpop.f32.mrb[0].mxu0
        %v4252 = vadd.f32 0.0, %v4251
        %v4253 = vpop.f32.mrb[0].mxu0
        %4254 = vmatprep.mubr.f32.mxu0 0.0
        %4255 = vmatmul.mubr.f32.gmra.mrb[0].mxu0 %v4161
        %v4256 = vpop.f32.mrb[0].mxu0
        %v4257 = vadd.f32 0.0, %v4256
        %v4258 = vpop.f32.mrb[0].mxu0
        %4259 = vmatprep.mubr.f32.mxu0 0.0
        %4260 = vmatmul.mubr.f32.gmra.mrb[0].mxu0 %v4164
        %v4261 = vpop.f32.mrb[0].mxu0
        %v4262 = vadd.f32 0.0, %v4261
        %v4263 = vpop.f32.mrb[0].mxu0
        %4264 = vmatprep.mubr.f32.mxu0 0.0
        %4265 = vmatmul.mubr.f32.gmra.mrb[0].mxu0 %v4167
        %v4266 = vpop.f32.mrb[0].mxu0
        %v4267 = vadd.f32 0.0, %v4266
        %v4268 = vpop.f32.mrb[0].mxu0
        %4269 = vmatprep.mubr.f32.mxu0 0.0
        %4270 = vmatmul.mubr.f32.gmra.mrb[0].mxu0 %v4170
        %v4271 = vpop.f32.mrb[0].mxu0
        %v4272 = vadd.f32 0.0, %v4271
        %v4273 = vpop.f32.mrb[0].mxu0
        %4274 = vmatprep.mubr.f32.mxu0 0.0
        %4275 = vmatmul.mubr.f32.gmra.mrb[0].mxu0 %v4173
        %v4276 = vpop.f32.mrb[0].mxu0
        %v4277 = vadd.f32 0.0, %v4276
        %v4278 = vpop.f32.mrb[0].mxu0
        %4279 = vdwg.mxu0
        %v4280 = vadd.f32 %v4092, %v4242
        %v4281 = vadd.f32 %v4097, %v4247
        %v4282 = vadd.f32 %v4102, %v4252
        %v4283 = vadd.f32 %v4107, %v4257
        %v4284 = vadd.f32 %v4112, %v4262
        %v4285 = vadd.f32 %v4117, %v4267
        %v4286 = vadd.f32 %v4122, %v4272
        %v4287 = vadd.f32 %v4127, %v4277
        %v4288 = vlaneseq
        %v4289 = vshrl.u32 %v4288, 7
        %v4290 = vsub.s32 0, %v4289
        %v4291 = vrot.slane %v3829, %v4290
        %v4292 = vadd.f32 %v4280, %v4291
        %v4293 = vadd.f32 %v4281, %v4291
        %v4294 = vadd.f32 %v4282, %v4291
        %v4295 = vadd.f32 %v4283, %v4291
        %v4296 = vadd.f32 %v4284, %v4291
        %v4297 = vadd.f32 %v4285, %v4291
        %v4298 = vadd.f32 %v4286, %v4291
        %v4299 = vadd.f32 %v4287, %v4291
        %v4300 = vsel %vm2012, %v4292, 0.0
        %v4301 = vsel %vm2012, %v4293, 0.0
        %v4302 = vadd.f32 %v4300, %v4301
        %v4303 = vsel %vm2012, %v4294, 0.0
        %v4304 = vadd.f32 %v4302, %v4303
        %v4305 = vsel %vm2012, %v4295, 0.0
        %v4306 = vadd.f32 %v4304, %v4305
        %v4307 = vsel %vm2012, %v4296, 0.0
        %v4308 = vadd.f32 %v4306, %v4307
        %v4309 = vsel %vm2012, %v4297, 0.0
        %v4310 = vadd.f32 %v4308, %v4309
        %v4311 = vsel %vm2012, %v4298, 0.0
        %v4312 = vadd.f32 %v4310, %v4311
        %v4313 = vsel %vm2012, %v4299, 0.0
        %v4314 = vadd.f32 %v4312, %v4313
        %v4315 = vrot.slane %v4314, 4
        %v4316 = vadd.f32 %v4314, %v4315
        %v4317 = vrot.slane %v4316, 2
        %v4318 = vadd.f32 %v4316, %v4317
        %v4319 = vrot.slane %v4318, 1
        %v4320 = vadd.f32 %v4318, %v4319
        %v4321 = vld [vmem:[%s6] sm:$0xff]
        %v4322 = vld [vmem:[%s6 + $0x8] sm:$0xff]
        %v4323 = vld [vmem:[%s6 + $0x10] sm:$0xff]
        %v4324 = vld [vmem:[%s6 + $0x18] sm:$0xff]
        %v4326 = vsel %vm2012, %v4320, 0
        %4328 = vmatprep.subr.mxu0 0.0
        %4329 = vmatpush1.msra.mxu0 %v4321
        %4330 = vmatprep.subr.mxu0 0.0
        %4331 = vmatpush1.msra.mxu0 %v4322
        %4332 = vmatprep.subr.mxu0 0.0
        %4333 = vmatpush1.msra.mxu0 %v4323
        %4334 = vmatprep.subr.mxu0 0.0
        %4335 = vmatpush1.msra.mxu0 %v4324
        %4336 = vmatprep.subr.mxu0 0.0
        %4337 = vmatpush1.msra.mxu0 0.0
        %4338 = vmatprep.subr.mxu0 0.0
        %4339 = vmatpush1.msra.mxu0 0.0
        %4340 = vmatprep.subr.mxu0 0.0
        %4341 = vmatpush1.msra.mxu0 0.0
        %4342 = vmatprep.subr.mxu0 0.0
        %4343 = vmatpush1.msra.mxu0 0.0
        %4344 = vmatprep.subr.mxu0 0.0
        %4345 = vmatpush1.msra.mxu0 0.0
        %4346 = vmatprep.subr.mxu0 0.0
        %4347 = vmatpush1.msra.mxu0 0.0
        %4348 = vmatprep.subr.mxu0 0.0
        %4349 = vmatpush1.msra.mxu0 0.0
        %4350 = vmatprep.subr.mxu0 0.0
        %4351 = vmatpush1.msra.mxu0 0.0
        %4352 = vmatprep.subr.mxu0 0.0
        %4353 = vmatpush1.msra.mxu0 0.0
        %4354 = vmatprep.subr.mxu0 0.0
        %4355 = vmatpush1.msra.mxu0 0.0
        %4356 = vmatprep.subr.mxu0 0.0
        %4357 = vmatpush1.msra.mxu0 0.0
        %4358 = vmatprep.subr.mxu0 0.0
        %4359 = vmatpush1.msra.mxu0 0.0
        %4360 = vmatprep.subr.mxu0 0.0
        %4361 = vmatpush1.msra.mxu0 0.0
        %4362 = vmatprep.subr.mxu0 0.0
        %4363 = vmatpush1.msra.mxu0 0.0
        %4364 = vmatprep.subr.mxu0 0.0
        %4365 = vmatpush1.msra.mxu0 0.0
        %4366 = vmatprep.subr.mxu0 0.0
        %4367 = vmatpush1.msra.mxu0 0.0
        %4368 = vmatprep.subr.mxu0 0.0
        %4369 = vmatpush1.msra.mxu0 0.0
        %4370 = vmatprep.subr.mxu0 0.0
        %4371 = vmatpush1.msra.mxu0 0.0
        %4372 = vmatprep.subr.mxu0 0.0
        %4373 = vmatpush1.msra.mxu0 0.0
        %4374 = vmatprep.subr.mxu0 0.0
        %4375 = vmatpush1.msra.mxu0 0.0
        %4376 = vmatprep.subr.mxu0 0.0
        %4377 = vmatpush1.msra.mxu0 0.0
        %4378 = vmatprep.subr.mxu0 0.0
        %4379 = vmatpush1.msra.mxu0 0.0
        %4380 = vmatprep.subr.mxu0 0.0
        %4381 = vmatpush1.msra.mxu0 0.0
        %4382 = vmatprep.subr.mxu0 0.0
        %4383 = vmatpush1.msra.mxu0 0.0
        %4384 = vmatprep.subr.mxu0 0.0
        %4385 = vmatpush1.msra.mxu0 0.0
        %4386 = vmatprep.subr.mxu0 0.0
        %4387 = vmatpush1.msra.mxu0 0.0
        %4388 = vmatprep.subr.mxu0 0.0
        %4389 = vmatpush1.msra.mxu0 0.0
        %4390 = vmatprep.subr.mxu0 0.0
        %4391 = vmatpush1.msra.mxu0 0.0
        %4392 = vmatprep.mubr.f32.mxu0 0.0
        %4393 = vmatmul.mubr.f32.gmra.mrb[0].mxu0 %v4326
        %v4394 = vpop.f32.mrb[0].mxu0
        %v4395 = vadd.f32 0.0, %v4394
        %v4396 = vpop.f32.mrb[0].mxu0
        %4397 = vdwg.mxu0
        %v4398 = vrcp.pop 128.0
        %v4399 = vmul.f32 %v4395, %v4398
        %v4400 = vlaneseq
        %v4401 = vshrl.u32 %v4400, 7
        %v4402 = vsub.s32 0, %v4401
        %v4403 = vrot.slane %v4399, %v4402
        %v4404 = vsub.f32 %v4292, %v4403
        %v4405 = vsub.f32 %v4293, %v4403
        %v4406 = vsub.f32 %v4294, %v4403
        %v4407 = vsub.f32 %v4295, %v4403
        %v4408 = vsub.f32 %v4296, %v4403
        %v4409 = vsub.f32 %v4297, %v4403
        %v4410 = vsub.f32 %v4298, %v4403
        %v4411 = vsub.f32 %v4299, %v4403
        %v4412 = vmul.f32 %v4404, %v4404
        %v4413 = vmul.f32 %v4405, %v4405
        %v4414 = vmul.f32 %v4406, %v4406
        %v4415 = vmul.f32 %v4407, %v4407
        %v4416 = vmul.f32 %v4408, %v4408
        %v4417 = vmul.f32 %v4409, %v4409
        %v4418 = vmul.f32 %v4410, %v4410
        %v4419 = vmul.f32 %v4411, %v4411
        %v4420 = vsel %vm2012, %v4412, 0.0
        %v4421 = vsel %vm2012, %v4413, 0.0
        %v4422 = vadd.f32 %v4420, %v4421
        %v4423 = vsel %vm2012, %v4414, 0.0
        %v4424 = vadd.f32 %v4422, %v4423
        %v4425 = vsel %vm2012, %v4415, 0.0
        %v4426 = vadd.f32 %v4424, %v4425
        %v4427 = vsel %vm2012, %v4416, 0.0
        %v4428 = vadd.f32 %v4426, %v4427
        %v4429 = vsel %vm2012, %v4417, 0.0
        %v4430 = vadd.f32 %v4428, %v4429
        %v4431 = vsel %vm2012, %v4418, 0.0
        %v4432 = vadd.f32 %v4430, %v4431
        %v4433 = vsel %vm2012, %v4419, 0.0
        %v4434 = vadd.f32 %v4432, %v4433
        %v4435 = vrot.slane %v4434, 4
        %v4436 = vadd.f32 %v4434, %v4435
        %v4437 = vrot.slane %v4436, 2
        %v4438 = vadd.f32 %v4436, %v4437
        %v4439 = vrot.slane %v4438, 1
        %v4440 = vadd.f32 %v4438, %v4439
        %v4442 = vsel %vm2012, %v4440, 0
        %4444 = vmatprep.subr.mxu0 0.0
        %4445 = vmatpush1.msra.mxu0 %v4321
        %4446 = vmatprep.subr.mxu0 0.0
        %4447 = vmatpush1.msra.mxu0 %v4322
        %4448 = vmatprep.subr.mxu0 0.0
        %4449 = vmatpush1.msra.mxu0 %v4323
        %4450 = vmatprep.subr.mxu0 0.0
        %4451 = vmatpush1.msra.mxu0 %v4324
        %4452 = vmatprep.subr.mxu0 0.0
        %4453 = vmatpush1.msra.mxu0 0.0
        %4454 = vmatprep.subr.mxu0 0.0
        %4455 = vmatpush1.msra.mxu0 0.0
        %4456 = vmatprep.subr.mxu0 0.0
        %4457 = vmatpush1.msra.mxu0 0.0
        %4458 = vmatprep.subr.mxu0 0.0
        %4459 = vmatpush1.msra.mxu0 0.0
        %4460 = vmatprep.subr.mxu0 0.0
        %4461 = vmatpush1.msra.mxu0 0.0
        %4462 = vmatprep.subr.mxu0 0.0
        %4463 = vmatpush1.msra.mxu0 0.0
        %4464 = vmatprep.subr.mxu0 0.0
        %4465 = vmatpush1.msra.mxu0 0.0
        %4466 = vmatprep.subr.mxu0 0.0
        %4467 = vmatpush1.msra.mxu0 0.0
        %4468 = vmatprep.subr.mxu0 0.0
        %4469 = vmatpush1.msra.mxu0 0.0
        %4470 = vmatprep.subr.mxu0 0.0
        %4471 = vmatpush1.msra.mxu0 0.0
        %4472 = vmatprep.subr.mxu0 0.0
        %4473 = vmatpush1.msra.mxu0 0.0
        %4474 = vmatprep.subr.mxu0 0.0
        %4475 = vmatpush1.msra.mxu0 0.0
        %4476 = vmatprep.subr.mxu0 0.0
        %4477 = vmatpush1.msra.mxu0 0.0
        %4478 = vmatprep.subr.mxu0 0.0
        %4479 = vmatpush1.msra.mxu0 0.0
        %4480 = vmatprep.subr.mxu0 0.0
        %4481 = vmatpush1.msra.mxu0 0.0
        %4482 = vmatprep.subr.mxu0 0.0
        %4483 = vmatpush1.msra.mxu0 0.0
        %4484 = vmatprep.subr.mxu0 0.0
        %4485 = vmatpush1.msra.mxu0 0.0
        %4486 = vmatprep.subr.mxu0 0.0
        %4487 = vmatpush1.msra.mxu0 0.0
        %4488 = vmatprep.subr.mxu0 0.0
        %4489 = vmatpush1.msra.mxu0 0.0
        %4490 = vmatprep.subr.mxu0 0.0
        %4491 = vmatpush1.msra.mxu0 0.0
        %4492 = vmatprep.subr.mxu0 0.0
        %4493 = vmatpush1.msra.mxu0 0.0
        %4494 = vmatprep.subr.mxu0 0.0
        %4495 = vmatpush1.msra.mxu0 0.0
        %4496 = vmatprep.subr.mxu0 0.0
        %4497 = vmatpush1.msra.mxu0 0.0
        %4498 = vmatprep.subr.mxu0 0.0
        %4499 = vmatpush1.msra.mxu0 0.0
        %4500 = vmatprep.subr.mxu0 0.0
        %4501 = vmatpush1.msra.mxu0 0.0
        %4502 = vmatprep.subr.mxu0 0.0
        %4503 = vmatpush1.msra.mxu0 0.0
        %4504 = vmatprep.subr.mxu0 0.0
        %4505 = vmatpush1.msra.mxu0 0.0
        %4506 = vmatprep.subr.mxu0 0.0
        %4507 = vmatpush1.msra.mxu0 0.0
        %4508 = vmatprep.mubr.f32.mxu0 0.0
        %4509 = vmatmul.mubr.f32.gmra.mrb[0].mxu0 %v4442
        %v4510 = vpop.f32.mrb[0].mxu0
        %v4511 = vadd.f32 0.0, %v4510
        %v4512 = vpop.f32.mrb[0].mxu0
        %4513 = vdwg.mxu0
        %v4514 = vmul.f32 %v4511, %v4398
        %v4515 = vadd.f32 %v4514, 1e-05
        %v4516 = vrsqrt.pop %v4515
        %v4517 = vlaneseq
        %v4518 = vshrl.u32 %v4517, 7
        %v4519 = vsub.s32 0, %v4518
        %v4520 = vrot.slane %v4516, %v4519
        %v4521 = vmul.f32 %v4404, %v4520
        %v4522 = vmul.f32 %v4405, %v4520
        %v4523 = vmul.f32 %v4406, %v4520
        %v4524 = vmul.f32 %v4407, %v4520
        %v4525 = vmul.f32 %v4408, %v4520
        %v4526 = vmul.f32 %v4409, %v4520
        %v4527 = vmul.f32 %v4410, %v4520
        %v4528 = vmul.f32 %v4411, %v4520
        %v4529 = vld [vmem:[%s4 + $0x2] sm:$0x1]
        %v4530 = vlaneseq
        %v4531 = vshrl.u32 %v4530, 7
        %v4532 = vsub.s32 0, %v4531
        %v4533 = vrot.slane %v4529, %v4532
        %v4534 = vmul.f32 %v4521, %v4533
        %v4535 = vmul.f32 %v4522, %v4533
        %v4536 = vmul.f32 %v4523, %v4533
        %v4537 = vmul.f32 %v4524, %v4533
        %v4538 = vmul.f32 %v4525, %v4533
        %v4539 = vmul.f32 %v4526, %v4533
        %v4540 = vmul.f32 %v4527, %v4533
        %v4541 = vmul.f32 %v4528, %v4533
        %v4542 = vld [vmem:[%s5 + $0x2] sm:$0x1]
        %v4543 = vlaneseq
        %v4544 = vshrl.u32 %v4543, 7
        %v4545 = vsub.s32 0, %v4544
        %v4546 = vrot.slane %v4542, %v4545
        %v4547 = vadd.f32 %v4534, %v4546
        %v4548 = vadd.f32 %v4535, %v4546
        %v4549 = vadd.f32 %v4536, %v4546
        %v4550 = vadd.f32 %v4537, %v4546
        %v4551 = vadd.f32 %v4538, %v4546
        %v4552 = vadd.f32 %v4539, %v4546
        %v4553 = vadd.f32 %v4540, %v4546
        %v4554 = vadd.f32 %v4541, %v4546
        %v4555 = vmul.f32 %v4547, 0.5
        %v4556 = vmul.f32 %v4548, 0.5
        %v4557 = vmul.f32 %v4549, 0.5
        %v4558 = vmul.f32 %v4550, 0.5
        %v4559 = vmul.f32 %v4551, 0.5
        %v4560 = vmul.f32 %v4552, 0.5
        %v4561 = vmul.f32 %v4553, 0.5
        %v4562 = vmul.f32 %v4554, 0.5
        %v4563 = vmul.f32 %v4547, 0.70710677
        %v4564 = vmul.f32 %v4548, 0.70710677
        %v4565 = vmul.f32 %v4549, 0.70710677
        %v4566 = vmul.f32 %v4550, 0.70710677
        %v4567 = vmul.f32 %v4551, 0.70710677
        %v4568 = vmul.f32 %v4552, 0.70710677
        %v4569 = vmul.f32 %v4553, 0.70710677
        %v4570 = vmul.f32 %v4554, 0.70710677
        %v4571 = verf.f32.pop %v4563
        %v4572 = verf.f32.pop %v4564
        %v4573 = verf.f32.pop %v4565
        %v4574 = verf.f32.pop %v4566
        %v4575 = verf.f32.pop %v4567
        %v4576 = verf.f32.pop %v4568
        %v4577 = verf.f32.pop %v4569
        %v4578 = verf.f32.pop %v4570
        %v4579 = vadd.f32 %v4571, 1.0
        %v4580 = vadd.f32 %v4572, 1.0
        %v4581 = vadd.f32 %v4573, 1.0
        %v4582 = vadd.f32 %v4574, 1.0
        %v4583 = vadd.f32 %v4575, 1.0
        %v4584 = vadd.f32 %v4576, 1.0
        %v4585 = vadd.f32 %v4577, 1.0
        %v4586 = vadd.f32 %v4578, 1.0
        %v4587 = vmul.f32 %v4555, %v4579
        %v4588 = vmul.f32 %v4556, %v4580
        %v4589 = vmul.f32 %v4557, %v4581
        %v4590 = vmul.f32 %v4558, %v4582
        %v4591 = vmul.f32 %v4559, %v4583
        %v4592 = vmul.f32 %v4560, %v4584
        %v4593 = vmul.f32 %v4561, %v4585
        %v4594 = vmul.f32 %v4562, %v4586
        %4595 = vst.msk [vmem:[#allocation2] sm:$0xff] %vm2012, 0.0
        %4596 = vst.msk [vmem:[#allocation2 + $0x8] sm:$0xff] %vm2012, %v4587
        %4597 = vst.msk [vmem:[#allocation2 + $0x10] sm:$0xff] %vm2012, %v4588
        %4598 = vst.msk [vmem:[#allocation2 + $0x18] sm:$0xff] %vm2012, %v4589
        %4599 = vst.msk [vmem:[#allocation2 + $0x20] sm:$0xff] %vm2012, %v4590
        %4600 = vst.msk [vmem:[#allocation2 + $0x28] sm:$0xff] %vm2012, %v4591
        %4601 = vst.msk [vmem:[#allocation2 + $0x30] sm:$0xff] %vm2012, %v4592
        %4602 = vst.msk [vmem:[#allocation2 + $0x38] sm:$0xff] %vm2012, %v4593
        %4603 = vst.msk [vmem:[#allocation2 + $0x40] sm:$0xff] %vm2012, %v4594
        %4604 = vst.msk [vmem:[#allocation2 + $0x48] sm:$0xff] %vm2012, 0.0
        %v4605 = vld [vmem:[%s3 + $0x3] sm:$0x1]
        %v4606 = vld [vmem:[%s2679] ss:$2 sm:$0xff]
        %v4607 = vld [vmem:[%s2681] ss:$2 sm:$0xff]
        %v4608 = vld [vmem:[%s2683] ss:$2 sm:$0xff]
        %v4609 = vld [vmem:[%s2685] ss:$2 sm:$0xff]
        %s4610 = scalar_lea.vmem %s2, 192
        %v4611 = vld [vmem:[%s4610] sm:$0xff]
        %v4612 = vld [vmem:[%s4610 + $0x8] sm:$0xff]
        %v4613 = vld [vmem:[%s4610 + $0x10] sm:$0xff]
        %v4614 = vld [vmem:[%s4610 + $0x18] sm:$0xff]
        %v4615 = vld [vmem:[%s2715] ss:$2 sm:$0xff]
        %v4616 = vld [vmem:[%s2717] ss:$2 sm:$0xff]
        %v4617 = vld [vmem:[%s2719] ss:$2 sm:$0xff]
        %v4618 = vld [vmem:[%s2721] ss:$2 sm:$0xff]
        %s4619 = scalar_lea.vmem %s2, 224
        %v4620 = vld [vmem:[%s4619] sm:$0xff]
        %v4621 = vld [vmem:[%s4619 + $0x8] sm:$0xff]
        %v4622 = vld [vmem:[%s4619 + $0x10] sm:$0xff]
        %v4623 = vld [vmem:[%s4619 + $0x18] sm:$0xff]
        %v4625 = vsel %vm2012, %v4615, 0
        %v4628 = vsel %vm2012, %v4616, 0
        %v4631 = vsel %vm2012, %v4617, 0
        %v4634 = vsel %vm2012, %v4618, 0
        %4636 = vmatprep.subr.mxu0 0.0
        %4637 = vmatpush1.msra.mxu0 %v4620
        %4638 = vmatprep.subr.mxu0 0.0
        %4639 = vmatpush1.msra.mxu0 %v4621
        %4640 = vmatprep.subr.mxu0 0.0
        %4641 = vmatpush1.msra.mxu0 %v4622
        %4642 = vmatprep.subr.mxu0 0.0
        %4643 = vmatpush1.msra.mxu0 %v4623
        %4644 = vmatprep.subr.mxu0 0.0
        %4645 = vmatpush1.msra.mxu0 0.0
        %4646 = vmatprep.subr.mxu0 0.0
        %4647 = vmatpush1.msra.mxu0 0.0
        %4648 = vmatprep.subr.mxu0 0.0
        %4649 = vmatpush1.msra.mxu0 0.0
        %4650 = vmatprep.subr.mxu0 0.0
        %4651 = vmatpush1.msra.mxu0 0.0
        %4652 = vmatprep.subr.mxu0 0.0
        %4653 = vmatpush1.msra.mxu0 0.0
        %4654 = vmatprep.subr.mxu0 0.0
        %4655 = vmatpush1.msra.mxu0 0.0
        %4656 = vmatprep.subr.mxu0 0.0
        %4657 = vmatpush1.msra.mxu0 0.0
        %4658 = vmatprep.subr.mxu0 0.0
        %4659 = vmatpush1.msra.mxu0 0.0
        %4660 = vmatprep.subr.mxu0 0.0
        %4661 = vmatpush1.msra.mxu0 0.0
        %4662 = vmatprep.subr.mxu0 0.0
        %4663 = vmatpush1.msra.mxu0 0.0
        %4664 = vmatprep.subr.mxu0 0.0
        %4665 = vmatpush1.msra.mxu0 0.0
        %4666 = vmatprep.subr.mxu0 0.0
        %4667 = vmatpush1.msra.mxu0 0.0
        %4668 = vmatprep.subr.mxu0 0.0
        %4669 = vmatpush1.msra.mxu0 0.0
        %4670 = vmatprep.subr.mxu0 0.0
        %4671 = vmatpush1.msra.mxu0 0.0
        %4672 = vmatprep.subr.mxu0 0.0
        %4673 = vmatpush1.msra.mxu0 0.0
        %4674 = vmatprep.subr.mxu0 0.0
        %4675 = vmatpush1.msra.mxu0 0.0
        %4676 = vmatprep.subr.mxu0 0.0
        %4677 = vmatpush1.msra.mxu0 0.0
        %4678 = vmatprep.subr.mxu0 0.0
        %4679 = vmatpush1.msra.mxu0 0.0
        %4680 = vmatprep.subr.mxu0 0.0
        %4681 = vmatpush1.msra.mxu0 0.0
        %4682 = vmatprep.subr.mxu0 0.0
        %4683 = vmatpush1.msra.mxu0 0.0
        %4684 = vmatprep.subr.mxu0 0.0
        %4685 = vmatpush1.msra.mxu0 0.0
        %4686 = vmatprep.subr.mxu0 0.0
        %4687 = vmatpush1.msra.mxu0 0.0
        %4688 = vmatprep.subr.mxu0 0.0
        %4689 = vmatpush1.msra.mxu0 0.0
        %4690 = vmatprep.subr.mxu0 0.0
        %4691 = vmatpush1.msra.mxu0 0.0
        %4692 = vmatprep.subr.mxu0 0.0
        %4693 = vmatpush1.msra.mxu0 0.0
        %4694 = vmatprep.subr.mxu0 0.0
        %4695 = vmatpush1.msra.mxu0 0.0
        %4696 = vmatprep.subr.mxu0 0.0
        %4697 = vmatpush1.msra.mxu0 0.0
        %4698 = vmatprep.subr.mxu0 0.0
        %4699 = vmatpush1.msra.mxu0 0.0
        %4700 = vmatprep.mubr.f32.mxu0 0.0
        %4701 = vmatmul.mubr.f32.gmra.mrb[0].mxu0 %v4625
        %v4702 = vpop.f32.mrb[0].mxu0
        %v4703 = vadd.f32 0.0, %v4702
        %v4704 = vpop.f32.mrb[0].mxu0
        %4705 = vmatprep.mubr.f32.mxu0 0.0
        %4706 = vmatmul.mubr.f32.gmra.mrb[0].mxu0 %v4628
        %v4707 = vpop.f32.mrb[0].mxu0
        %v4708 = vadd.f32 0.0, %v4707
        %v4709 = vpop.f32.mrb[0].mxu0
        %4710 = vmatprep.mubr.f32.mxu0 0.0
        %4711 = vmatmul.mubr.f32.gmra.mrb[0].mxu0 %v4631
        %v4712 = vpop.f32.mrb[0].mxu0
        %v4713 = vadd.f32 0.0, %v4712
        %v4714 = vpop.f32.mrb[0].mxu0
        %4715 = vmatprep.mubr.f32.mxu0 0.0
        %4716 = vmatmul.mubr.f32.gmra.mrb[0].mxu0 %v4634
        %v4717 = vpop.f32.mrb[0].mxu0
        %v4718 = vadd.f32 0.0, %v4717
        %v4719 = vpop.f32.mrb[0].mxu0
        %4720 = vdwg.mxu0
        %v4722 = vsel %vm2012, %v4606, 0
        %v4725 = vsel %vm2012, %v4607, 0
        %v4728 = vsel %vm2012, %v4608, 0
        %v4731 = vsel %vm2012, %v4609, 0
        %4733 = vmatprep.subr.mxu0 0.0
        %4734 = vmatpush1.msra.mxu0 %v4611
        %4735 = vmatprep.subr.mxu0 0.0
        %4736 = vmatpush1.msra.mxu0 %v4612
        %4737 = vmatprep.subr.mxu0 0.0
        %4738 = vmatpush1.msra.mxu0 %v4613
        %4739 = vmatprep.subr.mxu0 0.0
        %4740 = vmatpush1.msra.mxu0 %v4614
        %4741 = vmatprep.subr.mxu0 0.0
        %4742 = vmatpush1.msra.mxu0 0.0
        %4743 = vmatprep.subr.mxu0 0.0
        %4744 = vmatpush1.msra.mxu0 0.0
        %4745 = vmatprep.subr.mxu0 0.0
        %4746 = vmatpush1.msra.mxu0 0.0
        %4747 = vmatprep.subr.mxu0 0.0
        %4748 = vmatpush1.msra.mxu0 0.0
        %4749 = vmatprep.subr.mxu0 0.0
        %4750 = vmatpush1.msra.mxu0 0.0
        %4751 = vmatprep.subr.mxu0 0.0
        %4752 = vmatpush1.msra.mxu0 0.0
        %4753 = vmatprep.subr.mxu0 0.0
        %4754 = vmatpush1.msra.mxu0 0.0
        %4755 = vmatprep.subr.mxu0 0.0
        %4756 = vmatpush1.msra.mxu0 0.0
        %4757 = vmatprep.subr.mxu0 0.0
        %4758 = vmatpush1.msra.mxu0 0.0
        %4759 = vmatprep.subr.mxu0 0.0
        %4760 = vmatpush1.msra.mxu0 0.0
        %4761 = vmatprep.subr.mxu0 0.0
        %4762 = vmatpush1.msra.mxu0 0.0
        %4763 = vmatprep.subr.mxu0 0.0
        %4764 = vmatpush1.msra.mxu0 0.0
        %4765 = vmatprep.subr.mxu0 0.0
        %4766 = vmatpush1.msra.mxu0 0.0
        %4767 = vmatprep.subr.mxu0 0.0
        %4768 = vmatpush1.msra.mxu0 0.0
        %4769 = vmatprep.subr.mxu0 0.0
        %4770 = vmatpush1.msra.mxu0 0.0
        %4771 = vmatprep.subr.mxu0 0.0
        %4772 = vmatpush1.msra.mxu0 0.0
        %4773 = vmatprep.subr.mxu0 0.0
        %4774 = vmatpush1.msra.mxu0 0.0
        %4775 = vmatprep.subr.mxu0 0.0
        %4776 = vmatpush1.msra.mxu0 0.0
        %4777 = vmatprep.subr.mxu0 0.0
        %4778 = vmatpush1.msra.mxu0 0.0
        %4779 = vmatprep.subr.mxu0 0.0
        %4780 = vmatpush1.msra.mxu0 0.0
        %4781 = vmatprep.subr.mxu0 0.0
        %4782 = vmatpush1.msra.mxu0 0.0
        %4783 = vmatprep.subr.mxu0 0.0
        %4784 = vmatpush1.msra.mxu0 0.0
        %4785 = vmatprep.subr.mxu0 0.0
        %4786 = vmatpush1.msra.mxu0 0.0
        %4787 = vmatprep.subr.mxu0 0.0
        %4788 = vmatpush1.msra.mxu0 0.0
        %4789 = vmatprep.subr.mxu0 0.0
        %4790 = vmatpush1.msra.mxu0 0.0
        %4791 = vmatprep.subr.mxu0 0.0
        %4792 = vmatpush1.msra.mxu0 0.0
        %4793 = vmatprep.subr.mxu0 0.0
        %4794 = vmatpush1.msra.mxu0 0.0
        %4795 = vmatprep.subr.mxu0 0.0
        %4796 = vmatpush1.msra.mxu0 0.0
        %4797 = vmatprep.mubr.f32.mxu0 0.0
        %4798 = vmatmul.mubr.f32.gmra.mrb[0].mxu0 %v4722
        %v4799 = vpop.f32.mrb[0].mxu0
        %v4800 = vadd.f32 %v4703, %v4799
        %v4801 = vpop.f32.mrb[0].mxu0
        %4802 = vmatprep.mubr.f32.mxu0 0.0
        %4803 = vmatmul.mubr.f32.gmra.mrb[0].mxu0 %v4725
        %v4804 = vpop.f32.mrb[0].mxu0
        %v4805 = vadd.f32 %v4708, %v4804
        %v4806 = vpop.f32.mrb[0].mxu0
        %4807 = vmatprep.mubr.f32.mxu0 0.0
        %4808 = vmatmul.mubr.f32.gmra.mrb[0].mxu0 %v4728
        %v4809 = vpop.f32.mrb[0].mxu0
        %v4810 = vadd.f32 %v4713, %v4809
        %v4811 = vpop.f32.mrb[0].mxu0
        %4812 = vmatprep.mubr.f32.mxu0 0.0
        %4813 = vmatmul.mubr.f32.gmra.mrb[0].mxu0 %v4731
        %v4814 = vpop.f32.mrb[0].mxu0
        %v4815 = vadd.f32 %v4718, %v4814
        %v4816 = vpop.f32.mrb[0].mxu0
        %4817 = vdwg.mxu0
        %v4818 = vld [vmem:[%s3138] ss:$2 sm:$0xff]
        %v4819 = vld [vmem:[%s3140] ss:$2 sm:$0xff]
        %v4820 = vld [vmem:[%s3142] ss:$2 sm:$0xff]
        %v4821 = vld [vmem:[%s3144] ss:$2 sm:$0xff]
        %s4822 = scalar_lea.vmem %s2, 256
        %v4823 = vld [vmem:[%s4822] sm:$0xff]
        %v4824 = vld [vmem:[%s4822 + $0x8] sm:$0xff]
        %v4825 = vld [vmem:[%s4822 + $0x10] sm:$0xff]
        %v4826 = vld [vmem:[%s4822 + $0x18] sm:$0xff]
        %v4828 = vsel %vm2012, %v4818, 0
        %v4831 = vsel %vm2012, %v4819, 0
        %v4834 = vsel %vm2012, %v4820, 0
        %v4837 = vsel %vm2012, %v4821, 0
        %4839 = vmatprep.subr.mxu0 0.0
        %4840 = vmatpush1.msra.mxu0 %v4823
        %4841 = vmatprep.subr.mxu0 0.0
        %4842 = vmatpush1.msra.mxu0 %v4824
        %4843 = vmatprep.subr.mxu0 0.0
        %4844 = vmatpush1.msra.mxu0 %v4825
        %4845 = vmatprep.subr.mxu0 0.0
        %4846 = vmatpush1.msra.mxu0 %v4826
        %4847 = vmatprep.subr.mxu0 0.0
        %4848 = vmatpush1.msra.mxu0 0.0
        %4849 = vmatprep.subr.mxu0 0.0
        %4850 = vmatpush1.msra.mxu0 0.0
        %4851 = vmatprep.subr.mxu0 0.0
        %4852 = vmatpush1.msra.mxu0 0.0
        %4853 = vmatprep.subr.mxu0 0.0
        %4854 = vmatpush1.msra.mxu0 0.0
        %4855 = vmatprep.subr.mxu0 0.0
        %4856 = vmatpush1.msra.mxu0 0.0
        %4857 = vmatprep.subr.mxu0 0.0
        %4858 = vmatpush1.msra.mxu0 0.0
        %4859 = vmatprep.subr.mxu0 0.0
        %4860 = vmatpush1.msra.mxu0 0.0
        %4861 = vmatprep.subr.mxu0 0.0
        %4862 = vmatpush1.msra.mxu0 0.0
        %4863 = vmatprep.subr.mxu0 0.0
        %4864 = vmatpush1.msra.mxu0 0.0
        %4865 = vmatprep.subr.mxu0 0.0
        %4866 = vmatpush1.msra.mxu0 0.0
        %4867 = vmatprep.subr.mxu0 0.0
        %4868 = vmatpush1.msra.mxu0 0.0
        %4869 = vmatprep.subr.mxu0 0.0
        %4870 = vmatpush1.msra.mxu0 0.0
        %4871 = vmatprep.subr.mxu0 0.0
        %4872 = vmatpush1.msra.mxu0 0.0
        %4873 = vmatprep.subr.mxu0 0.0
        %4874 = vmatpush1.msra.mxu0 0.0
        %4875 = vmatprep.subr.mxu0 0.0
        %4876 = vmatpush1.msra.mxu0 0.0
        %4877 = vmatprep.subr.mxu0 0.0
        %4878 = vmatpush1.msra.mxu0 0.0
        %4879 = vmatprep.subr.mxu0 0.0
        %4880 = vmatpush1.msra.mxu0 0.0
        %4881 = vmatprep.subr.mxu0 0.0
        %4882 = vmatpush1.msra.mxu0 0.0
        %4883 = vmatprep.subr.mxu0 0.0
        %4884 = vmatpush1.msra.mxu0 0.0
        %4885 = vmatprep.subr.mxu0 0.0
        %4886 = vmatpush1.msra.mxu0 0.0
        %4887 = vmatprep.subr.mxu0 0.0
        %4888 = vmatpush1.msra.mxu0 0.0
        %4889 = vmatprep.subr.mxu0 0.0
        %4890 = vmatpush1.msra.mxu0 0.0
        %4891 = vmatprep.subr.mxu0 0.0
        %4892 = vmatpush1.msra.mxu0 0.0
        %4893 = vmatprep.subr.mxu0 0.0
        %4894 = vmatpush1.msra.mxu0 0.0
        %4895 = vmatprep.subr.mxu0 0.0
        %4896 = vmatpush1.msra.mxu0 0.0
        %4897 = vmatprep.subr.mxu0 0.0
        %4898 = vmatpush1.msra.mxu0 0.0
        %4899 = vmatprep.subr.mxu0 0.0
        %4900 = vmatpush1.msra.mxu0 0.0
        %4901 = vmatprep.subr.mxu0 0.0
        %4902 = vmatpush1.msra.mxu0 0.0
        %4903 = vmatprep.mubr.f32.mxu0 0.0
        %4904 = vmatmul.mubr.f32.gmra.mrb[0].mxu0 %v4828
        %v4905 = vpop.f32.mrb[0].mxu0
        %v4906 = vadd.f32 0.0, %v4905
        %v4907 = vpop.f32.mrb[0].mxu0
        %4908 = vmatprep.mubr.f32.mxu0 0.0
        %4909 = vmatmul.mubr.f32.gmra.mrb[0].mxu0 %v4831
        %v4910 = vpop.f32.mrb[0].mxu0
        %v4911 = vadd.f32 0.0, %v4910
        %v4912 = vpop.f32.mrb[0].mxu0
        %4913 = vmatprep.mubr.f32.mxu0 0.0
        %4914 = vmatmul.mubr.f32.gmra.mrb[0].mxu0 %v4834
        %v4915 = vpop.f32.mrb[0].mxu0
        %v4916 = vadd.f32 0.0, %v4915
        %v4917 = vpop.f32.mrb[0].mxu0
        %4918 = vmatprep.mubr.f32.mxu0 0.0
        %4919 = vmatmul.mubr.f32.gmra.mrb[0].mxu0 %v4837
        %v4920 = vpop.f32.mrb[0].mxu0
        %v4921 = vadd.f32 0.0, %v4920
        %v4922 = vpop.f32.mrb[0].mxu0
        %4923 = vdwg.mxu0
        %v4924 = vadd.f32 %v4800, %v4906
        %v4925 = vadd.f32 %v4805, %v4911
        %v4926 = vadd.f32 %v4810, %v4916
        %v4927 = vadd.f32 %v4815, %v4921
        %v4928 = vlaneseq
        %v4929 = vshrl.u32 %v4928, 7
        %v4930 = vsub.s32 0, %v4929
        %v4931 = vrot.slane %v4605, %v4930
        %v4932 = vadd.f32 %v4924, %v4931
        %v4933 = vadd.f32 %v4925, %v4931
        %v4934 = vadd.f32 %v4926, %v4931
        %v4935 = vadd.f32 %v4927, %v4931
        %v4936 = vsel %vm2012, %v4932, 0.0
        %v4937 = vsel %vm2012, %v4933, 0.0
        %v4938 = vadd.f32 %v4936, %v4937
        %v4939 = vsel %vm2012, %v4934, 0.0
        %v4940 = vadd.f32 %v4938, %v4939
        %v4941 = vsel %vm2012, %v4935, 0.0
        %v4942 = vadd.f32 %v4940, %v4941
        %v4943 = vrot.slane %v4942, 4
        %v4944 = vadd.f32 %v4942, %v4943
        %v4945 = vrot.slane %v4944, 2
        %v4946 = vadd.f32 %v4944, %v4945
        %v4947 = vrot.slane %v4946, 1
        %v4948 = vadd.f32 %v4946, %v4947
        %v4949 = vld [vmem:[%s6] sm:$0xff]
        %v4950 = vld [vmem:[%s6 + $0x8] sm:$0xff]
        %v4951 = vld [vmem:[%s6 + $0x10] sm:$0xff]
        %v4952 = vld [vmem:[%s6 + $0x18] sm:$0xff]
        %v4954 = vsel %vm2012, %v4948, 0
        %4956 = vmatprep.subr.mxu0 0.0
        %4957 = vmatpush1.msra.mxu0 %v4949
        %4958 = vmatprep.subr.mxu0 0.0
        %4959 = vmatpush1.msra.mxu0 %v4950
        %4960 = vmatprep.subr.mxu0 0.0
        %4961 = vmatpush1.msra.mxu0 %v4951
        %4962 = vmatprep.subr.mxu0 0.0
        %4963 = vmatpush1.msra.mxu0 %v4952
        %4964 = vmatprep.subr.mxu0 0.0
        %4965 = vmatpush1.msra.mxu0 0.0
        %4966 = vmatprep.subr.mxu0 0.0
        %4967 = vmatpush1.msra.mxu0 0.0
        %4968 = vmatprep.subr.mxu0 0.0
        %4969 = vmatpush1.msra.mxu0 0.0
        %4970 = vmatprep.subr.mxu0 0.0
        %4971 = vmatpush1.msra.mxu0 0.0
        %4972 = vmatprep.subr.mxu0 0.0
        %4973 = vmatpush1.msra.mxu0 0.0
        %4974 = vmatprep.subr.mxu0 0.0
        %4975 = vmatpush1.msra.mxu0 0.0
        %4976 = vmatprep.subr.mxu0 0.0
        %4977 = vmatpush1.msra.mxu0 0.0
        %4978 = vmatprep.subr.mxu0 0.0
        %4979 = vmatpush1.msra.mxu0 0.0
        %4980 = vmatprep.subr.mxu0 0.0
        %4981 = vmatpush1.msra.mxu0 0.0
        %4982 = vmatprep.subr.mxu0 0.0
        %4983 = vmatpush1.msra.mxu0 0.0
        %4984 = vmatprep.subr.mxu0 0.0
        %4985 = vmatpush1.msra.mxu0 0.0
        %4986 = vmatprep.subr.mxu0 0.0
        %4987 = vmatpush1.msra.mxu0 0.0
        %4988 = vmatprep.subr.mxu0 0.0
        %4989 = vmatpush1.msra.mxu0 0.0
        %4990 = vmatprep.subr.mxu0 0.0
        %4991 = vmatpush1.msra.mxu0 0.0
        %4992 = vmatprep.subr.mxu0 0.0
        %4993 = vmatpush1.msra.mxu0 0.0
        %4994 = vmatprep.subr.mxu0 0.0
        %4995 = vmatpush1.msra.mxu0 0.0
        %4996 = vmatprep.subr.mxu0 0.0
        %4997 = vmatpush1.msra.mxu0 0.0
        %4998 = vmatprep.subr.mxu0 0.0
        %4999 = vmatpush1.msra.mxu0 0.0
        %5000 = vmatprep.subr.mxu0 0.0
        %5001 = vmatpush1.msra.mxu0 0.0
        %5002 = vmatprep.subr.mxu0 0.0
        %5003 = vmatpush1.msra.mxu0 0.0
        %5004 = vmatprep.subr.mxu0 0.0
        %5005 = vmatpush1.msra.mxu0 0.0
        %5006 = vmatprep.subr.mxu0 0.0
        %5007 = vmatpush1.msra.mxu0 0.0
        %5008 = vmatprep.subr.mxu0 0.0
        %5009 = vmatpush1.msra.mxu0 0.0
        %5010 = vmatprep.subr.mxu0 0.0
        %5011 = vmatpush1.msra.mxu0 0.0
        %5012 = vmatprep.subr.mxu0 0.0
        %5013 = vmatpush1.msra.mxu0 0.0
        %5014 = vmatprep.subr.mxu0 0.0
        %5015 = vmatpush1.msra.mxu0 0.0
        %5016 = vmatprep.subr.mxu0 0.0
        %5017 = vmatpush1.msra.mxu0 0.0
        %5018 = vmatprep.subr.mxu0 0.0
        %5019 = vmatpush1.msra.mxu0 0.0
        %5020 = vmatprep.mubr.f32.mxu0 0.0
        %5021 = vmatmul.mubr.f32.gmra.mrb[0].mxu0 %v4954
        %v5022 = vpop.f32.mrb[0].mxu0
        %v5023 = vadd.f32 0.0, %v5022
        %v5024 = vpop.f32.mrb[0].mxu0
        %5025 = vdwg.mxu0
        %v5026 = vrcp.pop 64.0
        %v5027 = vmul.f32 %v5023, %v5026
        %v5028 = vlaneseq
        %v5029 = vshrl.u32 %v5028, 7
        %v5030 = vsub.s32 0, %v5029
        %v5031 = vrot.slane %v5027, %v5030
        %v5032 = vsub.f32 %v4932, %v5031
        %v5033 = vsub.f32 %v4933, %v5031
        %v5034 = vsub.f32 %v4934, %v5031
        %v5035 = vsub.f32 %v4935, %v5031
        %v5036 = vmul.f32 %v5032, %v5032
        %v5037 = vmul.f32 %v5033, %v5033
        %v5038 = vmul.f32 %v5034, %v5034
        %v5039 = vmul.f32 %v5035, %v5035
        %v5040 = vsel %vm2012, %v5036, 0.0
        %v5041 = vsel %vm2012, %v5037, 0.0
        %v5042 = vadd.f32 %v5040, %v5041
        %v5043 = vsel %vm2012, %v5038, 0.0
        %v5044 = vadd.f32 %v5042, %v5043
        %v5045 = vsel %vm2012, %v5039, 0.0
        %v5046 = vadd.f32 %v5044, %v5045
        %v5047 = vrot.slane %v5046, 4
        %v5048 = vadd.f32 %v5046, %v5047
        %v5049 = vrot.slane %v5048, 2
        %v5050 = vadd.f32 %v5048, %v5049
        %v5051 = vrot.slane %v5050, 1
        %v5052 = vadd.f32 %v5050, %v5051
        %v5054 = vsel %vm2012, %v5052, 0
        %5056 = vmatprep.subr.mxu0 0.0
        %5057 = vmatpush1.msra.mxu0 %v4949
        %5058 = vmatprep.subr.mxu0 0.0
        %5059 = vmatpush1.msra.mxu0 %v4950
        %5060 = vmatprep.subr.mxu0 0.0
        %5061 = vmatpush1.msra.mxu0 %v4951
        %5062 = vmatprep.subr.mxu0 0.0
        %5063 = vmatpush1.msra.mxu0 %v4952
        %5064 = vmatprep.subr.mxu0 0.0
        %5065 = vmatpush1.msra.mxu0 0.0
        %5066 = vmatprep.subr.mxu0 0.0
        %5067 = vmatpush1.msra.mxu0 0.0
        %5068 = vmatprep.subr.mxu0 0.0
        %5069 = vmatpush1.msra.mxu0 0.0
        %5070 = vmatprep.subr.mxu0 0.0
        %5071 = vmatpush1.msra.mxu0 0.0
        %5072 = vmatprep.subr.mxu0 0.0
        %5073 = vmatpush1.msra.mxu0 0.0
        %5074 = vmatprep.subr.mxu0 0.0
        %5075 = vmatpush1.msra.mxu0 0.0
        %5076 = vmatprep.subr.mxu0 0.0
        %5077 = vmatpush1.msra.mxu0 0.0
        %5078 = vmatprep.subr.mxu0 0.0
        %5079 = vmatpush1.msra.mxu0 0.0
        %5080 = vmatprep.subr.mxu0 0.0
        %5081 = vmatpush1.msra.mxu0 0.0
        %5082 = vmatprep.subr.mxu0 0.0
        %5083 = vmatpush1.msra.mxu0 0.0
        %5084 = vmatprep.subr.mxu0 0.0
        %5085 = vmatpush1.msra.mxu0 0.0
        %5086 = vmatprep.subr.mxu0 0.0
        %5087 = vmatpush1.msra.mxu0 0.0
        %5088 = vmatprep.subr.mxu0 0.0
        %5089 = vmatpush1.msra.mxu0 0.0
        %5090 = vmatprep.subr.mxu0 0.0
        %5091 = vmatpush1.msra.mxu0 0.0
        %5092 = vmatprep.subr.mxu0 0.0
        %5093 = vmatpush1.msra.mxu0 0.0
        %5094 = vmatprep.subr.mxu0 0.0
        %5095 = vmatpush1.msra.mxu0 0.0
        %5096 = vmatprep.subr.mxu0 0.0
        %5097 = vmatpush1.msra.mxu0 0.0
        %5098 = vmatprep.subr.mxu0 0.0
        %5099 = vmatpush1.msra.mxu0 0.0
        %5100 = vmatprep.subr.mxu0 0.0
        %5101 = vmatpush1.msra.mxu0 0.0
        %5102 = vmatprep.subr.mxu0 0.0
        %5103 = vmatpush1.msra.mxu0 0.0
        %5104 = vmatprep.subr.mxu0 0.0
        %5105 = vmatpush1.msra.mxu0 0.0
        %5106 = vmatprep.subr.mxu0 0.0
        %5107 = vmatpush1.msra.mxu0 0.0
        %5108 = vmatprep.subr.mxu0 0.0
        %5109 = vmatpush1.msra.mxu0 0.0
        %5110 = vmatprep.subr.mxu0 0.0
        %5111 = vmatpush1.msra.mxu0 0.0
        %5112 = vmatprep.subr.mxu0 0.0
        %5113 = vmatpush1.msra.mxu0 0.0
        %5114 = vmatprep.subr.mxu0 0.0
        %5115 = vmatpush1.msra.mxu0 0.0
        %5116 = vmatprep.subr.mxu0 0.0
        %5117 = vmatpush1.msra.mxu0 0.0
        %5118 = vmatprep.subr.mxu0 0.0
        %5119 = vmatpush1.msra.mxu0 0.0
        %5120 = vmatprep.mubr.f32.mxu0 0.0
        %5121 = vmatmul.mubr.f32.gmra.mrb[0].mxu0 %v5054
        %v5122 = vpop.f32.mrb[0].mxu0
        %v5123 = vadd.f32 0.0, %v5122
        %v5124 = vpop.f32.mrb[0].mxu0
        %5125 = vdwg.mxu0
        %v5126 = vmul.f32 %v5123, %v5026
        %v5127 = vadd.f32 %v5126, 1e-05
        %v5128 = vrsqrt.pop %v5127
        %v5129 = vlaneseq
        %v5130 = vshrl.u32 %v5129, 7
        %v5131 = vsub.s32 0, %v5130
        %v5132 = vrot.slane %v5128, %v5131
        %v5133 = vmul.f32 %v5032, %v5132
        %v5134 = vmul.f32 %v5033, %v5132
        %v5135 = vmul.f32 %v5034, %v5132
        %v5136 = vmul.f32 %v5035, %v5132
        %v5137 = vld [vmem:[%s4 + $0x3] sm:$0x1]
        %v5138 = vlaneseq
        %v5139 = vshrl.u32 %v5138, 7
        %v5140 = vsub.s32 0, %v5139
        %v5141 = vrot.slane %v5137, %v5140
        %v5142 = vmul.f32 %v5133, %v5141
        %v5143 = vmul.f32 %v5134, %v5141
        %v5144 = vmul.f32 %v5135, %v5141
        %v5145 = vmul.f32 %v5136, %v5141
        %v5146 = vld [vmem:[%s5 + $0x3] sm:$0x1]
        %v5147 = vlaneseq
        %v5148 = vshrl.u32 %v5147, 7
        %v5149 = vsub.s32 0, %v5148
        %v5150 = vrot.slane %v5146, %v5149
        %v5151 = vadd.f32 %v5142, %v5150
        %v5152 = vadd.f32 %v5143, %v5150
        %v5153 = vadd.f32 %v5144, %v5150
        %v5154 = vadd.f32 %v5145, %v5150
        %v5155 = vmul.f32 %v5151, 0.5
        %v5156 = vmul.f32 %v5152, 0.5
        %v5157 = vmul.f32 %v5153, 0.5
        %v5158 = vmul.f32 %v5154, 0.5
        %v5159 = vmul.f32 %v5151, 0.70710677
        %v5160 = vmul.f32 %v5152, 0.70710677
        %v5161 = vmul.f32 %v5153, 0.70710677
        %v5162 = vmul.f32 %v5154, 0.70710677
        %v5163 = verf.f32.pop %v5159
        %v5164 = verf.f32.pop %v5160
        %v5165 = verf.f32.pop %v5161
        %v5166 = verf.f32.pop %v5162
        %v5167 = vadd.f32 %v5163, 1.0
        %v5168 = vadd.f32 %v5164, 1.0
        %v5169 = vadd.f32 %v5165, 1.0
        %v5170 = vadd.f32 %v5166, 1.0
        %v5171 = vmul.f32 %v5155, %v5167
        %v5172 = vmul.f32 %v5156, %v5168
        %v5173 = vmul.f32 %v5157, %v5169
        %v5174 = vmul.f32 %v5158, %v5170
        %5175 = vst.msk [vmem:[#allocation3] sm:$0xff] %vm2012, 0.0
        %5176 = vst.msk [vmem:[#allocation3 + $0x8] sm:$0xff] %vm2012, %v5171
        %5177 = vst.msk [vmem:[#allocation3 + $0x10] sm:$0xff] %vm2012, %v5172
        %5178 = vst.msk [vmem:[#allocation3 + $0x18] sm:$0xff] %vm2012, %v5173
        %5179 = vst.msk [vmem:[#allocation3 + $0x20] sm:$0xff] %vm2012, %v5174
        %5180 = vst.msk [vmem:[#allocation3 + $0x28] sm:$0xff] %vm2012, 0.0
        %v5181 = vld [vmem:[%s3 + $0x4] sm:$0x1]
        %v5182 = vld [vmem:[%s3830] ss:$2 sm:$0xff]
        %v5183 = vld [vmem:[%s3832] ss:$2 sm:$0xff]
        %s5184 = scalar_lea.vmem %s2, 288
        %v5185 = vld [vmem:[%s5184] sm:$0xff]
        %v5186 = vld [vmem:[%s5184 + $0x8] sm:$0xff]
        %v5187 = vld [vmem:[%s5184 + $0x10] sm:$0xff]
        %v5188 = vld [vmem:[%s5184 + $0x18] sm:$0xff]
        %v5189 = vld [vmem:[%s3851] ss:$2 sm:$0xff]
        %v5190 = vld [vmem:[%s3853] ss:$2 sm:$0xff]
        %s5191 = scalar_lea.vmem %s2, 320
        %v5192 = vld [vmem:[%s5191] sm:$0xff]
        %v5193 = vld [vmem:[%s5191 + $0x8] sm:$0xff]
        %v5194 = vld [vmem:[%s5191 + $0x10] sm:$0xff]
        %v5195 = vld [vmem:[%s5191 + $0x18] sm:$0xff]
        %v5197 = vsel %vm2012, %v5189, 0
        %v5200 = vsel %vm2012, %v5190, 0
        %5202 = vmatprep.subr.mxu0 0.0
        %5203 = vmatpush1.msra.mxu0 %v5192
        %5204 = vmatprep.subr.mxu0 0.0
        %5205 = vmatpush1.msra.mxu0 %v5193
        %5206 = vmatprep.subr.mxu0 0.0
        %5207 = vmatpush1.msra.mxu0 %v5194
        %5208 = vmatprep.subr.mxu0 0.0
        %5209 = vmatpush1.msra.mxu0 %v5195
        %5210 = vmatprep.subr.mxu0 0.0
        %5211 = vmatpush1.msra.mxu0 0.0
        %5212 = vmatprep.subr.mxu0 0.0
        %5213 = vmatpush1.msra.mxu0 0.0
        %5214 = vmatprep.subr.mxu0 0.0
        %5215 = vmatpush1.msra.mxu0 0.0
        %5216 = vmatprep.subr.mxu0 0.0
        %5217 = vmatpush1.msra.mxu0 0.0
        %5218 = vmatprep.subr.mxu0 0.0
        %5219 = vmatpush1.msra.mxu0 0.0
        %5220 = vmatprep.subr.mxu0 0.0
        %5221 = vmatpush1.msra.mxu0 0.0
        %5222 = vmatprep.subr.mxu0 0.0
        %5223 = vmatpush1.msra.mxu0 0.0
        %5224 = vmatprep.subr.mxu0 0.0
        %5225 = vmatpush1.msra.mxu0 0.0
        %5226 = vmatprep.subr.mxu0 0.0
        %5227 = vmatpush1.msra.mxu0 0.0
        %5228 = vmatprep.subr.mxu0 0.0
        %5229 = vmatpush1.msra.mxu0 0.0
        %5230 = vmatprep.subr.mxu0 0.0
        %5231 = vmatpush1.msra.mxu0 0.0
        %5232 = vmatprep.subr.mxu0 0.0
        %5233 = vmatpush1.msra.mxu0 0.0
        %5234 = vmatprep.subr.mxu0 0.0
        %5235 = vmatpush1.msra.mxu0 0.0
        %5236 = vmatprep.subr.mxu0 0.0
        %5237 = vmatpush1.msra.mxu0 0.0
        %5238 = vmatprep.subr.mxu0 0.0
        %5239 = vmatpush1.msra.mxu0 0.0
        %5240 = vmatprep.subr.mxu0 0.0
        %5241 = vmatpush1.msra.mxu0 0.0
        %5242 = vmatprep.subr.mxu0 0.0
        %5243 = vmatpush1.msra.mxu0 0.0
        %5244 = vmatprep.subr.mxu0 0.0
        %5245 = vmatpush1.msra.mxu0 0.0
        %5246 = vmatprep.subr.mxu0 0.0
        %5247 = vmatpush1.msra.mxu0 0.0
        %5248 = vmatprep.subr.mxu0 0.0
        %5249 = vmatpush1.msra.mxu0 0.0
        %5250 = vmatprep.subr.mxu0 0.0
        %5251 = vmatpush1.msra.mxu0 0.0
        %5252 = vmatprep.subr.mxu0 0.0
        %5253 = vmatpush1.msra.mxu0 0.0
        %5254 = vmatprep.subr.mxu0 0.0
        %5255 = vmatpush1.msra.mxu0 0.0
        %5256 = vmatprep.subr.mxu0 0.0
        %5257 = vmatpush1.msra.mxu0 0.0
        %5258 = vmatprep.subr.mxu0 0.0
        %5259 = vmatpush1.msra.mxu0 0.0
        %5260 = vmatprep.subr.mxu0 0.0
        %5261 = vmatpush1.msra.mxu0 0.0
        %5262 = vmatprep.subr.mxu0 0.0
        %5263 = vmatpush1.msra.mxu0 0.0
        %5264 = vmatprep.subr.mxu0 0.0
        %5265 = vmatpush1.msra.mxu0 0.0
        %5266 = vmatprep.mubr.f32.mxu0 0.0
        %5267 = vmatmul.mubr.f32.gmra.mrb[0].mxu0 %v5197
        %v5268 = vpop.f32.mrb[0].mxu0
        %v5269 = vadd.f32 0.0, %v5268
        %v5270 = vpop.f32.mrb[0].mxu0
        %5271 = vmatprep.mubr.f32.mxu0 0.0
        %5272 = vmatmul.mubr.f32.gmra.mrb[0].mxu0 %v5200
        %v5273 = vpop.f32.mrb[0].mxu0
        %v5274 = vadd.f32 0.0, %v5273
        %v5275 = vpop.f32.mrb[0].mxu0
        %5276 = vdwg.mxu0
        %v5278 = vsel %vm2012, %v5182, 0
        %v5281 = vsel %vm2012, %v5183, 0
        %5283 = vmatprep.subr.mxu0 0.0
        %5284 = vmatpush1.msra.mxu0 %v5185
        %5285 = vmatprep.subr.mxu0 0.0
        %5286 = vmatpush1.msra.mxu0 %v5186
        %5287 = vmatprep.subr.mxu0 0.0
        %5288 = vmatpush1.msra.mxu0 %v5187
        %5289 = vmatprep.subr.mxu0 0.0
        %5290 = vmatpush1.msra.mxu0 %v5188
        %5291 = vmatprep.subr.mxu0 0.0
        %5292 = vmatpush1.msra.mxu0 0.0
        %5293 = vmatprep.subr.mxu0 0.0
        %5294 = vmatpush1.msra.mxu0 0.0
        %5295 = vmatprep.subr.mxu0 0.0
        %5296 = vmatpush1.msra.mxu0 0.0
        %5297 = vmatprep.subr.mxu0 0.0
        %5298 = vmatpush1.msra.mxu0 0.0
        %5299 = vmatprep.subr.mxu0 0.0
        %5300 = vmatpush1.msra.mxu0 0.0
        %5301 = vmatprep.subr.mxu0 0.0
        %5302 = vmatpush1.msra.mxu0 0.0
        %5303 = vmatprep.subr.mxu0 0.0
        %5304 = vmatpush1.msra.mxu0 0.0
        %5305 = vmatprep.subr.mxu0 0.0
        %5306 = vmatpush1.msra.mxu0 0.0
        %5307 = vmatprep.subr.mxu0 0.0
        %5308 = vmatpush1.msra.mxu0 0.0
        %5309 = vmatprep.subr.mxu0 0.0
        %5310 = vmatpush1.msra.mxu0 0.0
        %5311 = vmatprep.subr.mxu0 0.0
        %5312 = vmatpush1.msra.mxu0 0.0
        %5313 = vmatprep.subr.mxu0 0.0
        %5314 = vmatpush1.msra.mxu0 0.0
        %5315 = vmatprep.subr.mxu0 0.0
        %5316 = vmatpush1.msra.mxu0 0.0
        %5317 = vmatprep.subr.mxu0 0.0
        %5318 = vmatpush1.msra.mxu0 0.0
        %5319 = vmatprep.subr.mxu0 0.0
        %5320 = vmatpush1.msra.mxu0 0.0
        %5321 = vmatprep.subr.mxu0 0.0
        %5322 = vmatpush1.msra.mxu0 0.0
        %5323 = vmatprep.subr.mxu0 0.0
        %5324 = vmatpush1.msra.mxu0 0.0
        %5325 = vmatprep.subr.mxu0 0.0
        %5326 = vmatpush1.msra.mxu0 0.0
        %5327 = vmatprep.subr.mxu0 0.0
        %5328 = vmatpush1.msra.mxu0 0.0
        %5329 = vmatprep.subr.mxu0 0.0
        %5330 = vmatpush1.msra.mxu0 0.0
        %5331 = vmatprep.subr.mxu0 0.0
        %5332 = vmatpush1.msra.mxu0 0.0
        %5333 = vmatprep.subr.mxu0 0.0
        %5334 = vmatpush1.msra.mxu0 0.0
        %5335 = vmatprep.subr.mxu0 0.0
        %5336 = vmatpush1.msra.mxu0 0.0
        %5337 = vmatprep.subr.mxu0 0.0
        %5338 = vmatpush1.msra.mxu0 0.0
        %5339 = vmatprep.subr.mxu0 0.0
        %5340 = vmatpush1.msra.mxu0 0.0
        %5341 = vmatprep.subr.mxu0 0.0
        %5342 = vmatpush1.msra.mxu0 0.0
        %5343 = vmatprep.subr.mxu0 0.0
        %5344 = vmatpush1.msra.mxu0 0.0
        %5345 = vmatprep.subr.mxu0 0.0
        %5346 = vmatpush1.msra.mxu0 0.0
        %5347 = vmatprep.mubr.f32.mxu0 0.0
        %5348 = vmatmul.mubr.f32.gmra.mrb[0].mxu0 %v5278
        %v5349 = vpop.f32.mrb[0].mxu0
        %v5350 = vadd.f32 %v5269, %v5349
        %v5351 = vpop.f32.mrb[0].mxu0
        %5352 = vmatprep.mubr.f32.mxu0 0.0
        %5353 = vmatmul.mubr.f32.gmra.mrb[0].mxu0 %v5281
        %v5354 = vpop.f32.mrb[0].mxu0
        %v5355 = vadd.f32 %v5274, %v5354
        %v5356 = vpop.f32.mrb[0].mxu0
        %5357 = vdwg.mxu0
        %v5358 = vld [vmem:[%s4130] ss:$2 sm:$0xff]
        %v5359 = vld [vmem:[%s4132] ss:$2 sm:$0xff]
        %s5360 = scalar_lea.vmem %s2, 352
        %v5361 = vld [vmem:[%s5360] sm:$0xff]
        %v5362 = vld [vmem:[%s5360 + $0x8] sm:$0xff]
        %v5363 = vld [vmem:[%s5360 + $0x10] sm:$0xff]
        %v5364 = vld [vmem:[%s5360 + $0x18] sm:$0xff]
        %v5366 = vsel %vm2012, %v5358, 0
        %v5369 = vsel %vm2012, %v5359, 0
        %5371 = vmatprep.subr.mxu0 0.0
        %5372 = vmatpush1.msra.mxu0 %v5361
        %5373 = vmatprep.subr.mxu0 0.0
        %5374 = vmatpush1.msra.mxu0 %v5362
        %5375 = vmatprep.subr.mxu0 0.0
        %5376 = vmatpush1.msra.mxu0 %v5363
        %5377 = vmatprep.subr.mxu0 0.0
        %5378 = vmatpush1.msra.mxu0 %v5364
        %5379 = vmatprep.subr.mxu0 0.0
        %5380 = vmatpush1.msra.mxu0 0.0
        %5381 = vmatprep.subr.mxu0 0.0
        %5382 = vmatpush1.msra.mxu0 0.0
        %5383 = vmatprep.subr.mxu0 0.0
        %5384 = vmatpush1.msra.mxu0 0.0
        %5385 = vmatprep.subr.mxu0 0.0
        %5386 = vmatpush1.msra.mxu0 0.0
        %5387 = vmatprep.subr.mxu0 0.0
        %5388 = vmatpush1.msra.mxu0 0.0
        %5389 = vmatprep.subr.mxu0 0.0
        %5390 = vmatpush1.msra.mxu0 0.0
        %5391 = vmatprep.subr.mxu0 0.0
        %5392 = vmatpush1.msra.mxu0 0.0
        %5393 = vmatprep.subr.mxu0 0.0
        %5394 = vmatpush1.msra.mxu0 0.0
        %5395 = vmatprep.subr.mxu0 0.0
        %5396 = vmatpush1.msra.mxu0 0.0
        %5397 = vmatprep.subr.mxu0 0.0
        %5398 = vmatpush1.msra.mxu0 0.0
        %5399 = vmatprep.subr.mxu0 0.0
        %5400 = vmatpush1.msra.mxu0 0.0
        %5401 = vmatprep.subr.mxu0 0.0
        %5402 = vmatpush1.msra.mxu0 0.0
        %5403 = vmatprep.subr.mxu0 0.0
        %5404 = vmatpush1.msra.mxu0 0.0
        %5405 = vmatprep.subr.mxu0 0.0
        %5406 = vmatpush1.msra.mxu0 0.0
        %5407 = vmatprep.subr.mxu0 0.0
        %5408 = vmatpush1.msra.mxu0 0.0
        %5409 = vmatprep.subr.mxu0 0.0
        %5410 = vmatpush1.msra.mxu0 0.0
        %5411 = vmatprep.subr.mxu0 0.0
        %5412 = vmatpush1.msra.mxu0 0.0
        %5413 = vmatprep.subr.mxu0 0.0
        %5414 = vmatpush1.msra.mxu0 0.0
        %5415 = vmatprep.subr.mxu0 0.0
        %5416 = vmatpush1.msra.mxu0 0.0
        %5417 = vmatprep.subr.mxu0 0.0
        %5418 = vmatpush1.msra.mxu0 0.0
        %5419 = vmatprep.subr.mxu0 0.0
        %5420 = vmatpush1.msra.mxu0 0.0
        %5421 = vmatprep.subr.mxu0 0.0
        %5422 = vmatpush1.msra.mxu0 0.0
        %5423 = vmatprep.subr.mxu0 0.0
        %5424 = vmatpush1.msra.mxu0 0.0
        %5425 = vmatprep.subr.mxu0 0.0
        %5426 = vmatpush1.msra.mxu0 0.0
        %5427 = vmatprep.subr.mxu0 0.0
        %5428 = vmatpush1.msra.mxu0 0.0
        %5429 = vmatprep.subr.mxu0 0.0
        %5430 = vmatpush1.msra.mxu0 0.0
        %5431 = vmatprep.subr.mxu0 0.0
        %5432 = vmatpush1.msra.mxu0 0.0
        %5433 = vmatprep.subr.mxu0 0.0
        %5434 = vmatpush1.msra.mxu0 0.0
        %5435 = vmatprep.mubr.f32.mxu0 0.0
        %5436 = vmatmul.mubr.f32.gmra.mrb[0].mxu0 %v5366
        %v5437 = vpop.f32.mrb[0].mxu0
        %v5438 = vadd.f32 0.0, %v5437
        %v5439 = vpop.f32.mrb[0].mxu0
        %5440 = vmatprep.mubr.f32.mxu0 0.0
        %5441 = vmatmul.mubr.f32.gmra.mrb[0].mxu0 %v5369
        %v5442 = vpop.f32.mrb[0].mxu0
        %v5443 = vadd.f32 0.0, %v5442
        %v5444 = vpop.f32.mrb[0].mxu0
        %5445 = vdwg.mxu0
        %v5446 = vadd.f32 %v5350, %v5438
        %v5447 = vadd.f32 %v5355, %v5443
        %v5448 = vlaneseq
        %v5449 = vshrl.u32 %v5448, 7
        %v5450 = vsub.s32 0, %v5449
        %v5451 = vrot.slane %v5181, %v5450
        %v5452 = vadd.f32 %v5446, %v5451
        %v5453 = vadd.f32 %v5447, %v5451
        %v5454 = vsel %vm2012, %v5452, 0.0
        %v5455 = vsel %vm2012, %v5453, 0.0
        %v5456 = vadd.f32 %v5454, %v5455
        %v5457 = vrot.slane %v5456, 4
        %v5458 = vadd.f32 %v5456, %v5457
        %v5459 = vrot.slane %v5458, 2
        %v5460 = vadd.f32 %v5458, %v5459
        %v5461 = vrot.slane %v5460, 1
        %v5462 = vadd.f32 %v5460, %v5461
        %v5463 = vld [vmem:[%s6] sm:$0xff]
        %v5464 = vld [vmem:[%s6 + $0x8] sm:$0xff]
        %v5465 = vld [vmem:[%s6 + $0x10] sm:$0xff]
        %v5466 = vld [vmem:[%s6 + $0x18] sm:$0xff]
        %v5468 = vsel %vm2012, %v5462, 0
        %5470 = vmatprep.subr.mxu0 0.0
        %5471 = vmatpush1.msra.mxu0 %v5463
        %5472 = vmatprep.subr.mxu0 0.0
        %5473 = vmatpush1.msra.mxu0 %v5464
        %5474 = vmatprep.subr.mxu0 0.0
        %5475 = vmatpush1.msra.mxu0 %v5465
        %5476 = vmatprep.subr.mxu0 0.0
        %5477 = vmatpush1.msra.mxu0 %v5466
        %5478 = vmatprep.subr.mxu0 0.0
        %5479 = vmatpush1.msra.mxu0 0.0
        %5480 = vmatprep.subr.mxu0 0.0
        %5481 = vmatpush1.msra.mxu0 0.0
        %5482 = vmatprep.subr.mxu0 0.0
        %5483 = vmatpush1.msra.mxu0 0.0
        %5484 = vmatprep.subr.mxu0 0.0
        %5485 = vmatpush1.msra.mxu0 0.0
        %5486 = vmatprep.subr.mxu0 0.0
        %5487 = vmatpush1.msra.mxu0 0.0
        %5488 = vmatprep.subr.mxu0 0.0
        %5489 = vmatpush1.msra.mxu0 0.0
        %5490 = vmatprep.subr.mxu0 0.0
        %5491 = vmatpush1.msra.mxu0 0.0
        %5492 = vmatprep.subr.mxu0 0.0
        %5493 = vmatpush1.msra.mxu0 0.0
        %5494 = vmatprep.subr.mxu0 0.0
        %5495 = vmatpush1.msra.mxu0 0.0
        %5496 = vmatprep.subr.mxu0 0.0
        %5497 = vmatpush1.msra.mxu0 0.0
        %5498 = vmatprep.subr.mxu0 0.0
        %5499 = vmatpush1.msra.mxu0 0.0
        %5500 = vmatprep.subr.mxu0 0.0
        %5501 = vmatpush1.msra.mxu0 0.0
        %5502 = vmatprep.subr.mxu0 0.0
        %5503 = vmatpush1.msra.mxu0 0.0
        %5504 = vmatprep.subr.mxu0 0.0
        %5505 = vmatpush1.msra.mxu0 0.0
        %5506 = vmatprep.subr.mxu0 0.0
        %5507 = vmatpush1.msra.mxu0 0.0
        %5508 = vmatprep.subr.mxu0 0.0
        %5509 = vmatpush1.msra.mxu0 0.0
        %5510 = vmatprep.subr.mxu0 0.0
        %5511 = vmatpush1.msra.mxu0 0.0
        %5512 = vmatprep.subr.mxu0 0.0
        %5513 = vmatpush1.msra.mxu0 0.0
        %5514 = vmatprep.subr.mxu0 0.0
        %5515 = vmatpush1.msra.mxu0 0.0
        %5516 = vmatprep.subr.mxu0 0.0
        %5517 = vmatpush1.msra.mxu0 0.0
        %5518 = vmatprep.subr.mxu0 0.0
        %5519 = vmatpush1.msra.mxu0 0.0
        %5520 = vmatprep.subr.mxu0 0.0
        %5521 = vmatpush1.msra.mxu0 0.0
        %5522 = vmatprep.subr.mxu0 0.0
        %5523 = vmatpush1.msra.mxu0 0.0
        %5524 = vmatprep.subr.mxu0 0.0
        %5525 = vmatpush1.msra.mxu0 0.0
        %5526 = vmatprep.subr.mxu0 0.0
        %5527 = vmatpush1.msra.mxu0 0.0
        %5528 = vmatprep.subr.mxu0 0.0
        %5529 = vmatpush1.msra.mxu0 0.0
        %5530 = vmatprep.subr.mxu0 0.0
        %5531 = vmatpush1.msra.mxu0 0.0
        %5532 = vmatprep.subr.mxu0 0.0
        %5533 = vmatpush1.msra.mxu0 0.0
        %5534 = vmatprep.mubr.f32.mxu0 0.0
        %5535 = vmatmul.mubr.f32.gmra.mrb[0].mxu0 %v5468
        %v5536 = vpop.f32.mrb[0].mxu0
        %v5537 = vadd.f32 0.0, %v5536
        %v5538 = vpop.f32.mrb[0].mxu0
        %5539 = vdwg.mxu0
        %v5540 = vrcp.pop 32.0
        %v5541 = vmul.f32 %v5537, %v5540
        %v5542 = vlaneseq
        %v5543 = vshrl.u32 %v5542, 7
        %v5544 = vsub.s32 0, %v5543
        %v5545 = vrot.slane %v5541, %v5544
        %v5546 = vsub.f32 %v5452, %v5545
        %v5547 = vsub.f32 %v5453, %v5545
        %v5548 = vmul.f32 %v5546, %v5546
        %v5549 = vmul.f32 %v5547, %v5547
        %v5550 = vsel %vm2012, %v5548, 0.0
        %v5551 = vsel %vm2012, %v5549, 0.0
        %v5552 = vadd.f32 %v5550, %v5551
        %v5553 = vrot.slane %v5552, 4
        %v5554 = vadd.f32 %v5552, %v5553
        %v5555 = vrot.slane %v5554, 2
        %v5556 = vadd.f32 %v5554, %v5555
        %v5557 = vrot.slane %v5556, 1
        %v5558 = vadd.f32 %v5556, %v5557
        %v5560 = vsel %vm2012, %v5558, 0
        %5562 = vmatprep.subr.mxu0 0.0
        %5563 = vmatpush1.msra.mxu0 %v5463
        %5564 = vmatprep.subr.mxu0 0.0
        %5565 = vmatpush1.msra.mxu0 %v5464
        %5566 = vmatprep.subr.mxu0 0.0
        %5567 = vmatpush1.msra.mxu0 %v5465
        %5568 = vmatprep.subr.mxu0 0.0
        %5569 = vmatpush1.msra.mxu0 %v5466
        %5570 = vmatprep.subr.mxu0 0.0
        %5571 = vmatpush1.msra.mxu0 0.0
        %5572 = vmatprep.subr.mxu0 0.0
        %5573 = vmatpush1.msra.mxu0 0.0
        %5574 = vmatprep.subr.mxu0 0.0
        %5575 = vmatpush1.msra.mxu0 0.0
        %5576 = vmatprep.subr.mxu0 0.0
        %5577 = vmatpush1.msra.mxu0 0.0
        %5578 = vmatprep.subr.mxu0 0.0
        %5579 = vmatpush1.msra.mxu0 0.0
        %5580 = vmatprep.subr.mxu0 0.0
        %5581 = vmatpush1.msra.mxu0 0.0
        %5582 = vmatprep.subr.mxu0 0.0
        %5583 = vmatpush1.msra.mxu0 0.0
        %5584 = vmatprep.subr.mxu0 0.0
        %5585 = vmatpush1.msra.mxu0 0.0
        %5586 = vmatprep.subr.mxu0 0.0
        %5587 = vmatpush1.msra.mxu0 0.0
        %5588 = vmatprep.subr.mxu0 0.0
        %5589 = vmatpush1.msra.mxu0 0.0
        %5590 = vmatprep.subr.mxu0 0.0
        %5591 = vmatpush1.msra.mxu0 0.0
        %5592 = vmatprep.subr.mxu0 0.0
        %5593 = vmatpush1.msra.mxu0 0.0
        %5594 = vmatprep.subr.mxu0 0.0
        %5595 = vmatpush1.msra.mxu0 0.0
        %5596 = vmatprep.subr.mxu0 0.0
        %5597 = vmatpush1.msra.mxu0 0.0
        %5598 = vmatprep.subr.mxu0 0.0
        %5599 = vmatpush1.msra.mxu0 0.0
        %5600 = vmatprep.subr.mxu0 0.0
        %5601 = vmatpush1.msra.mxu0 0.0
        %5602 = vmatprep.subr.mxu0 0.0
        %5603 = vmatpush1.msra.mxu0 0.0
        %5604 = vmatprep.subr.mxu0 0.0
        %5605 = vmatpush1.msra.mxu0 0.0
        %5606 = vmatprep.subr.mxu0 0.0
        %5607 = vmatpush1.msra.mxu0 0.0
        %5608 = vmatprep.subr.mxu0 0.0
        %5609 = vmatpush1.msra.mxu0 0.0
        %5610 = vmatprep.subr.mxu0 0.0
        %5611 = vmatpush1.msra.mxu0 0.0
        %5612 = vmatprep.subr.mxu0 0.0
        %5613 = vmatpush1.msra.mxu0 0.0
        %5614 = vmatprep.subr.mxu0 0.0
        %5615 = vmatpush1.msra.mxu0 0.0
        %5616 = vmatprep.subr.mxu0 0.0
        %5617 = vmatpush1.msra.mxu0 0.0
        %5618 = vmatprep.subr.mxu0 0.0
        %5619 = vmatpush1.msra.mxu0 0.0
        %5620 = vmatprep.subr.mxu0 0.0
        %5621 = vmatpush1.msra.mxu0 0.0
        %5622 = vmatprep.subr.mxu0 0.0
        %5623 = vmatpush1.msra.mxu0 0.0
        %5624 = vmatprep.subr.mxu0 0.0
        %5625 = vmatpush1.msra.mxu0 0.0
        %5626 = vmatprep.mubr.f32.mxu0 0.0
        %5627 = vmatmul.mubr.f32.gmra.mrb[0].mxu0 %v5560
        %v5628 = vpop.f32.mrb[0].mxu0
        %v5629 = vadd.f32 0.0, %v5628
        %v5630 = vpop.f32.mrb[0].mxu0
        %5631 = vdwg.mxu0
        %v5632 = vmul.f32 %v5629, %v5540
        %v5633 = vadd.f32 %v5632, 1e-05
        %v5634 = vrsqrt.pop %v5633
        %v5635 = vlaneseq
        %v5636 = vshrl.u32 %v5635, 7
        %v5637 = vsub.s32 0, %v5636
        %v5638 = vrot.slane %v5634, %v5637
        %v5639 = vmul.f32 %v5546, %v5638
        %v5640 = vmul.f32 %v5547, %v5638
        %v5641 = vld [vmem:[%s4 + $0x4] sm:$0x1]
        %v5642 = vlaneseq
        %v5643 = vshrl.u32 %v5642, 7
        %v5644 = vsub.s32 0, %v5643
        %v5645 = vrot.slane %v5641, %v5644
        %v5646 = vmul.f32 %v5639, %v5645
        %v5647 = vmul.f32 %v5640, %v5645
        %v5648 = vld [vmem:[%s5 + $0x4] sm:$0x1]
        %v5649 = vlaneseq
        %v5650 = vshrl.u32 %v5649, 7
        %v5651 = vsub.s32 0, %v5650
        %v5652 = vrot.slane %v5648, %v5651
        %v5653 = vadd.f32 %v5646, %v5652
        %v5654 = vadd.f32 %v5647, %v5652
        %v5655 = vmul.f32 %v5653, 0.5
        %v5656 = vmul.f32 %v5654, 0.5
        %v5657 = vmul.f32 %v5653, 0.70710677
        %v5658 = vmul.f32 %v5654, 0.70710677
        %v5659 = verf.f32.pop %v5657
        %v5660 = verf.f32.pop %v5658
        %v5661 = vadd.f32 %v5659, 1.0
        %v5662 = vadd.f32 %v5660, 1.0
        %v5663 = vmul.f32 %v5655, %v5661
        %v5664 = vmul.f32 %v5656, %v5662
        %5665 = vst.msk [vmem:[#allocation2] sm:$0xff] %vm2012, 0.0
        %5666 = vst.msk [vmem:[#allocation2 + $0x8] sm:$0xff] %vm2012, %v5663
        %5667 = vst.msk [vmem:[#allocation2 + $0x10] sm:$0xff] %vm2012, %v5664
        %5668 = vst.msk [vmem:[#allocation2 + $0x18] sm:$0xff] %vm2012, 0.0
        %v5669 = vld [vmem:[%s3 + $0x5] sm:$0x1]
        %v5670 = vld [vmem:[%s2679] ss:$2 sm:$0xff]
        %s5671 = scalar_lea.vmem %s2, 384
        %v5672 = vld [vmem:[%s5671] sm:$0xff]
        %v5673 = vld [vmem:[%s5671 + $0x8] sm:$0xff]
        %v5674 = vld [vmem:[%s5671 + $0x10] sm:$0xff]
        %v5675 = vld [vmem:[%s5671 + $0x18] sm:$0xff]
        %v5676 = vld [vmem:[%s2715] ss:$2 sm:$0xff]
        %s5677 = scalar_lea.vmem %s2, 416
        %v5678 = vld [vmem:[%s5677] sm:$0xff]
        %v5679 = vld [vmem:[%s5677 + $0x8] sm:$0xff]
        %v5680 = vld [vmem:[%s5677 + $0x10] sm:$0xff]
        %v5681 = vld [vmem:[%s5677 + $0x18] sm:$0xff]
        %v5683 = vsel %vm2012, %v5676, 0
        %5685 = vmatprep.subr.mxu0 0.0
        %5686 = vmatpush1.msra.mxu0 %v5678
        %5687 = vmatprep.subr.mxu0 0.0
        %5688 = vmatpush1.msra.mxu0 %v5679
        %5689 = vmatprep.subr.mxu0 0.0
        %5690 = vmatpush1.msra.mxu0 %v5680
        %5691 = vmatprep.subr.mxu0 0.0
        %5692 = vmatpush1.msra.mxu0 %v5681
        %5693 = vmatprep.subr.mxu0 0.0
        %5694 = vmatpush1.msra.mxu0 0.0
        %5695 = vmatprep.subr.mxu0 0.0
        %5696 = vmatpush1.msra.mxu0 0.0
        %5697 = vmatprep.subr.mxu0 0.0
        %5698 = vmatpush1.msra.mxu0 0.0
        %5699 = vmatprep.subr.mxu0 0.0
        %5700 = vmatpush1.msra.mxu0 0.0
        %5701 = vmatprep.subr.mxu0 0.0
        %5702 = vmatpush1.msra.mxu0 0.0
        %5703 = vmatprep.subr.mxu0 0.0
        %5704 = vmatpush1.msra.mxu0 0.0
        %5705 = vmatprep.subr.mxu0 0.0
        %5706 = vmatpush1.msra.mxu0 0.0
        %5707 = vmatprep.subr.mxu0 0.0
        %5708 = vmatpush1.msra.mxu0 0.0
        %5709 = vmatprep.subr.mxu0 0.0
        %5710 = vmatpush1.msra.mxu0 0.0
        %5711 = vmatprep.subr.mxu0 0.0
        %5712 = vmatpush1.msra.mxu0 0.0
        %5713 = vmatprep.subr.mxu0 0.0
        %5714 = vmatpush1.msra.mxu0 0.0
        %5715 = vmatprep.subr.mxu0 0.0
        %5716 = vmatpush1.msra.mxu0 0.0
        %5717 = vmatprep.subr.mxu0 0.0
        %5718 = vmatpush1.msra.mxu0 0.0
        %5719 = vmatprep.subr.mxu0 0.0
        %5720 = vmatpush1.msra.mxu0 0.0
        %5721 = vmatprep.subr.mxu0 0.0
        %5722 = vmatpush1.msra.mxu0 0.0
        %5723 = vmatprep.subr.mxu0 0.0
        %5724 = vmatpush1.msra.mxu0 0.0
        %5725 = vmatprep.subr.mxu0 0.0
        %5726 = vmatpush1.msra.mxu0 0.0
        %5727 = vmatprep.subr.mxu0 0.0
        %5728 = vmatpush1.msra.mxu0 0.0
        %5729 = vmatprep.subr.mxu0 0.0
        %5730 = vmatpush1.msra.mxu0 0.0
        %5731 = vmatprep.subr.mxu0 0.0
        %5732 = vmatpush1.msra.mxu0 0.0
        %5733 = vmatprep.subr.mxu0 0.0
        %5734 = vmatpush1.msra.mxu0 0.0
        %5735 = vmatprep.subr.mxu0 0.0
        %5736 = vmatpush1.msra.mxu0 0.0
        %5737 = vmatprep.subr.mxu0 0.0
        %5738 = vmatpush1.msra.mxu0 0.0
        %5739 = vmatprep.subr.mxu0 0.0
        %5740 = vmatpush1.msra.mxu0 0.0
        %5741 = vmatprep.subr.mxu0 0.0
        %5742 = vmatpush1.msra.mxu0 0.0
        %5743 = vmatprep.subr.mxu0 0.0
        %5744 = vmatpush1.msra.mxu0 0.0
        %5745 = vmatprep.subr.mxu0 0.0
        %5746 = vmatpush1.msra.mxu0 0.0
        %5747 = vmatprep.subr.mxu0 0.0
        %5748 = vmatpush1.msra.mxu0 0.0
        %5749 = vmatprep.mubr.f32.mxu0 0.0
        %5750 = vmatmul.mubr.f32.gmra.mrb[0].mxu0 %v5683
        %v5751 = vpop.f32.mrb[0].mxu0
        %v5752 = vadd.f32 0.0, %v5751
        %v5753 = vpop.f32.mrb[0].mxu0
        %5754 = vdwg.mxu0
        %v5756 = vsel %vm2012, %v5670, 0
        %5758 = vmatprep.subr.mxu0 0.0
        %5759 = vmatpush1.msra.mxu0 %v5672
        %5760 = vmatprep.subr.mxu0 0.0
        %5761 = vmatpush1.msra.mxu0 %v5673
        %5762 = vmatprep.subr.mxu0 0.0
        %5763 = vmatpush1.msra.mxu0 %v5674
        %5764 = vmatprep.subr.mxu0 0.0
        %5765 = vmatpush1.msra.mxu0 %v5675
        %5766 = vmatprep.subr.mxu0 0.0
        %5767 = vmatpush1.msra.mxu0 0.0
        %5768 = vmatprep.subr.mxu0 0.0
        %5769 = vmatpush1.msra.mxu0 0.0
        %5770 = vmatprep.subr.mxu0 0.0
        %5771 = vmatpush1.msra.mxu0 0.0
        %5772 = vmatprep.subr.mxu0 0.0
        %5773 = vmatpush1.msra.mxu0 0.0
        %5774 = vmatprep.subr.mxu0 0.0
        %5775 = vmatpush1.msra.mxu0 0.0
        %5776 = vmatprep.subr.mxu0 0.0
        %5777 = vmatpush1.msra.mxu0 0.0
        %5778 = vmatprep.subr.mxu0 0.0
        %5779 = vmatpush1.msra.mxu0 0.0
        %5780 = vmatprep.subr.mxu0 0.0
        %5781 = vmatpush1.msra.mxu0 0.0
        %5782 = vmatprep.subr.mxu0 0.0
        %5783 = vmatpush1.msra.mxu0 0.0
        %5784 = vmatprep.subr.mxu0 0.0
        %5785 = vmatpush1.msra.mxu0 0.0
        %5786 = vmatprep.subr.mxu0 0.0
        %5787 = vmatpush1.msra.mxu0 0.0
        %5788 = vmatprep.subr.mxu0 0.0
        %5789 = vmatpush1.msra.mxu0 0.0
        %5790 = vmatprep.subr.mxu0 0.0
        %5791 = vmatpush1.msra.mxu0 0.0
        %5792 = vmatprep.subr.mxu0 0.0
        %5793 = vmatpush1.msra.mxu0 0.0
        %5794 = vmatprep.subr.mxu0 0.0
        %5795 = vmatpush1.msra.mxu0 0.0
        %5796 = vmatprep.subr.mxu0 0.0
        %5797 = vmatpush1.msra.mxu0 0.0
        %5798 = vmatprep.subr.mxu0 0.0
        %5799 = vmatpush1.msra.mxu0 0.0
        %5800 = vmatprep.subr.mxu0 0.0
        %5801 = vmatpush1.msra.mxu0 0.0
        %5802 = vmatprep.subr.mxu0 0.0
        %5803 = vmatpush1.msra.mxu0 0.0
        %5804 = vmatprep.subr.mxu0 0.0
        %5805 = vmatpush1.msra.mxu0 0.0
        %5806 = vmatprep.subr.mxu0 0.0
        %5807 = vmatpush1.msra.mxu0 0.0
        %5808 = vmatprep.subr.mxu0 0.0
        %5809 = vmatpush1.msra.mxu0 0.0
        %5810 = vmatprep.subr.mxu0 0.0
        %5811 = vmatpush1.msra.mxu0 0.0
        %5812 = vmatprep.subr.mxu0 0.0
        %5813 = vmatpush1.msra.mxu0 0.0
        %5814 = vmatprep.subr.mxu0 0.0
        %5815 = vmatpush1.msra.mxu0 0.0
        %5816 = vmatprep.subr.mxu0 0.0
        %5817 = vmatpush1.msra.mxu0 0.0
        %5818 = vmatprep.subr.mxu0 0.0
        %5819 = vmatpush1.msra.mxu0 0.0
        %5820 = vmatprep.subr.mxu0 0.0
        %5821 = vmatpush1.msra.mxu0 0.0
        %5822 = vmatprep.mubr.f32.mxu0 0.0
        %5823 = vmatmul.mubr.f32.gmra.mrb[0].mxu0 %v5756
        %v5824 = vpop.f32.mrb[0].mxu0
        %v5825 = vadd.f32 %v5752, %v5824
        %v5826 = vpop.f32.mrb[0].mxu0
        %5827 = vdwg.mxu0
        %v5828 = vld [vmem:[%s3138] ss:$2 sm:$0xff]
        %s5829 = scalar_lea.vmem %s2, 448
        %v5830 = vld [vmem:[%s5829] sm:$0xff]
        %v5831 = vld [vmem:[%s5829 + $0x8] sm:$0xff]
        %v5832 = vld [vmem:[%s5829 + $0x10] sm:$0xff]
        %v5833 = vld [vmem:[%s5829 + $0x18] sm:$0xff]
        %v5835 = vsel %vm2012, %v5828, 0
        %5837 = vmatprep.subr.mxu0 0.0
        %5838 = vmatpush1.msra.mxu0 %v5830
        %5839 = vmatprep.subr.mxu0 0.0
        %5840 = vmatpush1.msra.mxu0 %v5831
        %5841 = vmatprep.subr.mxu0 0.0
        %5842 = vmatpush1.msra.mxu0 %v5832
        %5843 = vmatprep.subr.mxu0 0.0
        %5844 = vmatpush1.msra.mxu0 %v5833
        %5845 = vmatprep.subr.mxu0 0.0
        %5846 = vmatpush1.msra.mxu0 0.0
        %5847 = vmatprep.subr.mxu0 0.0
        %5848 = vmatpush1.msra.mxu0 0.0
        %5849 = vmatprep.subr.mxu0 0.0
        %5850 = vmatpush1.msra.mxu0 0.0
        %5851 = vmatprep.subr.mxu0 0.0
        %5852 = vmatpush1.msra.mxu0 0.0
        %5853 = vmatprep.subr.mxu0 0.0
        %5854 = vmatpush1.msra.mxu0 0.0
        %5855 = vmatprep.subr.mxu0 0.0
        %5856 = vmatpush1.msra.mxu0 0.0
        %5857 = vmatprep.subr.mxu0 0.0
        %5858 = vmatpush1.msra.mxu0 0.0
        %5859 = vmatprep.subr.mxu0 0.0
        %5860 = vmatpush1.msra.mxu0 0.0
        %5861 = vmatprep.subr.mxu0 0.0
        %5862 = vmatpush1.msra.mxu0 0.0
        %5863 = vmatprep.subr.mxu0 0.0
        %5864 = vmatpush1.msra.mxu0 0.0
        %5865 = vmatprep.subr.mxu0 0.0
        %5866 = vmatpush1.msra.mxu0 0.0
        %5867 = vmatprep.subr.mxu0 0.0
        %5868 = vmatpush1.msra.mxu0 0.0
        %5869 = vmatprep.subr.mxu0 0.0
        %5870 = vmatpush1.msra.mxu0 0.0
        %5871 = vmatprep.subr.mxu0 0.0
        %5872 = vmatpush1.msra.mxu0 0.0
        %5873 = vmatprep.subr.mxu0 0.0
        %5874 = vmatpush1.msra.mxu0 0.0
        %5875 = vmatprep.subr.mxu0 0.0
        %5876 = vmatpush1.msra.mxu0 0.0
        %5877 = vmatprep.subr.mxu0 0.0
        %5878 = vmatpush1.msra.mxu0 0.0
        %5879 = vmatprep.subr.mxu0 0.0
        %5880 = vmatpush1.msra.mxu0 0.0
        %5881 = vmatprep.subr.mxu0 0.0
        %5882 = vmatpush1.msra.mxu0 0.0
        %5883 = vmatprep.subr.mxu0 0.0
        %5884 = vmatpush1.msra.mxu0 0.0
        %5885 = vmatprep.subr.mxu0 0.0
        %5886 = vmatpush1.msra.mxu0 0.0
        %5887 = vmatprep.subr.mxu0 0.0
        %5888 = vmatpush1.msra.mxu0 0.0
        %5889 = vmatprep.subr.mxu0 0.0
        %5890 = vmatpush1.msra.mxu0 0.0
        %5891 = vmatprep.subr.mxu0 0.0
        %5892 = vmatpush1.msra.mxu0 0.0
        %5893 = vmatprep.subr.mxu0 0.0
        %5894 = vmatpush1.msra.mxu0 0.0
        %5895 = vmatprep.subr.mxu0 0.0
        %5896 = vmatpush1.msra.mxu0 0.0
        %5897 = vmatprep.subr.mxu0 0.0
        %5898 = vmatpush1.msra.mxu0 0.0
        %5899 = vmatprep.subr.mxu0 0.0
        %5900 = vmatpush1.msra.mxu0 0.0
        %5901 = vmatprep.mubr.f32.mxu0 0.0
        %5902 = vmatmul.mubr.f32.gmra.mrb[0].mxu0 %v5835
        %v5903 = vpop.f32.mrb[0].mxu0
        %v5904 = vadd.f32 0.0, %v5903
        %v5905 = vpop.f32.mrb[0].mxu0
        %5906 = vdwg.mxu0
        %v5907 = vadd.f32 %v5825, %v5904
        %v5908 = vlaneseq
        %v5909 = vshrl.u32 %v5908, 7
        %v5910 = vsub.s32 0, %v5909
        %v5911 = vrot.slane %v5669, %v5910
        %v5912 = vadd.f32 %v5907, %v5911
        %v5913 = vsel %vm2012, %v5912, 0.0
        %v5914 = vrot.slane %v5913, 4
        %v5915 = vadd.f32 %v5913, %v5914
        %v5916 = vrot.slane %v5915, 2
        %v5917 = vadd.f32 %v5915, %v5916
        %v5918 = vrot.slane %v5917, 1
        %v5919 = vadd.f32 %v5917, %v5918
        %v5920 = vld [vmem:[%s6] sm:$0xff]
        %v5921 = vld [vmem:[%s6 + $0x8] sm:$0xff]
        %v5922 = vld [vmem:[%s6 + $0x10] sm:$0xff]
        %v5923 = vld [vmem:[%s6 + $0x18] sm:$0xff]
        %v5925 = vsel %vm2012, %v5919, 0
        %5927 = vmatprep.subr.mxu0 0.0
        %5928 = vmatpush1.msra.mxu0 %v5920
        %5929 = vmatprep.subr.mxu0 0.0
        %5930 = vmatpush1.msra.mxu0 %v5921
        %5931 = vmatprep.subr.mxu0 0.0
        %5932 = vmatpush1.msra.mxu0 %v5922
        %5933 = vmatprep.subr.mxu0 0.0
        %5934 = vmatpush1.msra.mxu0 %v5923
        %5935 = vmatprep.subr.mxu0 0.0
        %5936 = vmatpush1.msra.mxu0 0.0
        %5937 = vmatprep.subr.mxu0 0.0
        %5938 = vmatpush1.msra.mxu0 0.0
        %5939 = vmatprep.subr.mxu0 0.0
        %5940 = vmatpush1.msra.mxu0 0.0
        %5941 = vmatprep.subr.mxu0 0.0
        %5942 = vmatpush1.msra.mxu0 0.0
        %5943 = vmatprep.subr.mxu0 0.0
        %5944 = vmatpush1.msra.mxu0 0.0
        %5945 = vmatprep.subr.mxu0 0.0
        %5946 = vmatpush1.msra.mxu0 0.0
        %5947 = vmatprep.subr.mxu0 0.0
        %5948 = vmatpush1.msra.mxu0 0.0
        %5949 = vmatprep.subr.mxu0 0.0
        %5950 = vmatpush1.msra.mxu0 0.0
        %5951 = vmatprep.subr.mxu0 0.0
        %5952 = vmatpush1.msra.mxu0 0.0
        %5953 = vmatprep.subr.mxu0 0.0
        %5954 = vmatpush1.msra.mxu0 0.0
        %5955 = vmatprep.subr.mxu0 0.0
        %5956 = vmatpush1.msra.mxu0 0.0
        %5957 = vmatprep.subr.mxu0 0.0
        %5958 = vmatpush1.msra.mxu0 0.0
        %5959 = vmatprep.subr.mxu0 0.0
        %5960 = vmatpush1.msra.mxu0 0.0
        %5961 = vmatprep.subr.mxu0 0.0
        %5962 = vmatpush1.msra.mxu0 0.0
        %5963 = vmatprep.subr.mxu0 0.0
        %5964 = vmatpush1.msra.mxu0 0.0
        %5965 = vmatprep.subr.mxu0 0.0
        %5966 = vmatpush1.msra.mxu0 0.0
        %5967 = vmatprep.subr.mxu0 0.0
        %5968 = vmatpush1.msra.mxu0 0.0
        %5969 = vmatprep.subr.mxu0 0.0
        %5970 = vmatpush1.msra.mxu0 0.0
        %5971 = vmatprep.subr.mxu0 0.0
        %5972 = vmatpush1.msra.mxu0 0.0
        %5973 = vmatprep.subr.mxu0 0.0
        %5974 = vmatpush1.msra.mxu0 0.0
        %5975 = vmatprep.subr.mxu0 0.0
        %5976 = vmatpush1.msra.mxu0 0.0
        %5977 = vmatprep.subr.mxu0 0.0
        %5978 = vmatpush1.msra.mxu0 0.0
        %5979 = vmatprep.subr.mxu0 0.0
        %5980 = vmatpush1.msra.mxu0 0.0
        %5981 = vmatprep.subr.mxu0 0.0
        %5982 = vmatpush1.msra.mxu0 0.0
        %5983 = vmatprep.subr.mxu0 0.0
        %5984 = vmatpush1.msra.mxu0 0.0
        %5985 = vmatprep.subr.mxu0 0.0
        %5986 = vmatpush1.msra.mxu0 0.0
        %5987 = vmatprep.subr.mxu0 0.0
        %5988 = vmatpush1.msra.mxu0 0.0
        %5989 = vmatprep.subr.mxu0 0.0
        %5990 = vmatpush1.msra.mxu0 0.0
        %5991 = vmatprep.mubr.f32.mxu0 0.0
        %5992 = vmatmul.mubr.f32.gmra.mrb[0].mxu0 %v5925
        %v5993 = vpop.f32.mrb[0].mxu0
        %v5994 = vadd.f32 0.0, %v5993
        %v5995 = vpop.f32.mrb[0].mxu0
        %5996 = vdwg.mxu0
        %v5997 = vrcp.pop 16.0
        %v5998 = vmul.f32 %v5994, %v5997
        %v5999 = vlaneseq
        %v6000 = vshrl.u32 %v5999, 7
        %v6001 = vsub.s32 0, %v6000
        %v6002 = vrot.slane %v5998, %v6001
        %v6003 = vsub.f32 %v5912, %v6002
        %v6004 = vmul.f32 %v6003, %v6003
        %v6005 = vsel %vm2012, %v6004, 0.0
        %v6006 = vrot.slane %v6005, 4
        %v6007 = vadd.f32 %v6005, %v6006
        %v6008 = vrot.slane %v6007, 2
        %v6009 = vadd.f32 %v6007, %v6008
        %v6010 = vrot.slane %v6009, 1
        %v6011 = vadd.f32 %v6009, %v6010
        %v6013 = vsel %vm2012, %v6011, 0
        %6015 = vmatprep.subr.mxu0 0.0
        %6016 = vmatpush1.msra.mxu0 %v5920
        %6017 = vmatprep.subr.mxu0 0.0
        %6018 = vmatpush1.msra.mxu0 %v5921
        %6019 = vmatprep.subr.mxu0 0.0
        %6020 = vmatpush1.msra.mxu0 %v5922
        %6021 = vmatprep.subr.mxu0 0.0
        %6022 = vmatpush1.msra.mxu0 %v5923
        %6023 = vmatprep.subr.mxu0 0.0
        %6024 = vmatpush1.msra.mxu0 0.0
        %6025 = vmatprep.subr.mxu0 0.0
        %6026 = vmatpush1.msra.mxu0 0.0
        %6027 = vmatprep.subr.mxu0 0.0
        %6028 = vmatpush1.msra.mxu0 0.0
        %6029 = vmatprep.subr.mxu0 0.0
        %6030 = vmatpush1.msra.mxu0 0.0
        %6031 = vmatprep.subr.mxu0 0.0
        %6032 = vmatpush1.msra.mxu0 0.0
        %6033 = vmatprep.subr.mxu0 0.0
        %6034 = vmatpush1.msra.mxu0 0.0
        %6035 = vmatprep.subr.mxu0 0.0
        %6036 = vmatpush1.msra.mxu0 0.0
        %6037 = vmatprep.subr.mxu0 0.0
        %6038 = vmatpush1.msra.mxu0 0.0
        %6039 = vmatprep.subr.mxu0 0.0
        %6040 = vmatpush1.msra.mxu0 0.0
        %6041 = vmatprep.subr.mxu0 0.0
        %6042 = vmatpush1.msra.mxu0 0.0
        %6043 = vmatprep.subr.mxu0 0.0
        %6044 = vmatpush1.msra.mxu0 0.0
        %6045 = vmatprep.subr.mxu0 0.0
        %6046 = vmatpush1.msra.mxu0 0.0
        %6047 = vmatprep.subr.mxu0 0.0
        %6048 = vmatpush1.msra.mxu0 0.0
        %6049 = vmatprep.subr.mxu0 0.0
        %6050 = vmatpush1.msra.mxu0 0.0
        %6051 = vmatprep.subr.mxu0 0.0
        %6052 = vmatpush1.msra.mxu0 0.0
        %6053 = vmatprep.subr.mxu0 0.0
        %6054 = vmatpush1.msra.mxu0 0.0
        %6055 = vmatprep.subr.mxu0 0.0
        %6056 = vmatpush1.msra.mxu0 0.0
        %6057 = vmatprep.subr.mxu0 0.0
        %6058 = vmatpush1.msra.mxu0 0.0
        %6059 = vmatprep.subr.mxu0 0.0
        %6060 = vmatpush1.msra.mxu0 0.0
        %6061 = vmatprep.subr.mxu0 0.0
        %6062 = vmatpush1.msra.mxu0 0.0
        %6063 = vmatprep.subr.mxu0 0.0
        %6064 = vmatpush1.msra.mxu0 0.0
        %6065 = vmatprep.subr.mxu0 0.0
        %6066 = vmatpush1.msra.mxu0 0.0
        %6067 = vmatprep.subr.mxu0 0.0
        %6068 = vmatpush1.msra.mxu0 0.0
        %6069 = vmatprep.subr.mxu0 0.0
        %6070 = vmatpush1.msra.mxu0 0.0
        %6071 = vmatprep.subr.mxu0 0.0
        %6072 = vmatpush1.msra.mxu0 0.0
        %6073 = vmatprep.subr.mxu0 0.0
        %6074 = vmatpush1.msra.mxu0 0.0
        %6075 = vmatprep.subr.mxu0 0.0
        %6076 = vmatpush1.msra.mxu0 0.0
        %6077 = vmatprep.subr.mxu0 0.0
        %6078 = vmatpush1.msra.mxu0 0.0
        %6079 = vmatprep.mubr.f32.mxu0 0.0
        %6080 = vmatmul.mubr.f32.gmra.mrb[0].mxu0 %v6013
        %v6081 = vpop.f32.mrb[0].mxu0
        %v6082 = vadd.f32 0.0, %v6081
        %v6083 = vpop.f32.mrb[0].mxu0
        %6084 = vdwg.mxu0
        %v6085 = vmul.f32 %v6082, %v5997
        %v6086 = vadd.f32 %v6085, 1e-05
        %v6087 = vrsqrt.pop %v6086
        %v6088 = vlaneseq
        %v6089 = vshrl.u32 %v6088, 7
        %v6090 = vsub.s32 0, %v6089
        %v6091 = vrot.slane %v6087, %v6090
        %v6092 = vmul.f32 %v6003, %v6091
        %v6093 = vld [vmem:[%s4 + $0x5] sm:$0x1]
        %v6094 = vlaneseq
        %v6095 = vshrl.u32 %v6094, 7
        %v6096 = vsub.s32 0, %v6095
        %v6097 = vrot.slane %v6093, %v6096
        %v6098 = vmul.f32 %v6092, %v6097
        %v6099 = vld [vmem:[%s5 + $0x5] sm:$0x1]
        %v6100 = vlaneseq
        %v6101 = vshrl.u32 %v6100, 7
        %v6102 = vsub.s32 0, %v6101
        %v6103 = vrot.slane %v6099, %v6102
        %v6104 = vadd.f32 %v6098, %v6103
        %v6105 = vmul.f32 %v6104, 0.5
        %v6106 = vmul.f32 %v6104, 0.70710677
        %v6107 = verf.f32.pop %v6106
        %v6108 = vadd.f32 %v6107, 1.0
        %v6109 = vmul.f32 %v6105, %v6108
        %6110 = vst.msk [vmem:[#allocation4] sm:$0xff] %vm2012, 0.0
        %6111 = vst.msk [vmem:[#allocation4 + $0x8] sm:$0xff] %vm2012, 0.0
        %6112 = vst.msk [vmem:[#allocation4 + $0x10] sm:$0xff] %vm2012, 0.0
        %6113 = vst.msk [vmem:[#allocation4 + $0x18] sm:$0xff] %vm2012, 0.0
        %6114 = vst.msk [vmem:[#allocation4 + $0x20] sm:$0xff] %vm2012, 0.0
        %6115 = vst.msk [vmem:[#allocation4 + $0x10] sm:$0xff] %vm2012, %v6109
        %v6116 = vld [vmem:[#allocation4] sm:$0xff]
        %v6117 = vld [vmem:[#allocation4 + $0x8] sm:$0xff]
        %v6118 = vld [vmem:[#allocation4 + $0x10] sm:$0xff]
        %v6119 = vld [vmem:[#allocation4 + $0x18] sm:$0xff]
        %v6120 = vld [vmem:[#allocation4 + $0x20] sm:$0xff]
        %v6121 = vld [vmem:[%s7] sm:$0xff]
        %v6122 = vld [vmem:[%s7 + $0x8] sm:$0xff]
        %v6123 = vld [vmem:[%s7 + $0x10] sm:$0xff]
        %v6124 = vld [vmem:[%s7 + $0x18] sm:$0xff]
        %v6126 = vsel %vm2012, %v6116, 0
        %v6129 = vsel %vm2012, %v6117, 0
        %v6132 = vsel %vm2012, %v6118, 0
        %v6135 = vsel %vm2012, %v6119, 0
        %v6138 = vsel %vm2012, %v6120, 0
        %6140 = vmatprep.subr.mxu0 0.0
        %6141 = vmatpush1.msra.mxu0 %v6121
        %6142 = vmatprep.subr.mxu0 0.0
        %6143 = vmatpush1.msra.mxu0 %v6122
        %6144 = vmatprep.subr.mxu0 0.0
        %6145 = vmatpush1.msra.mxu0 %v6123
        %6146 = vmatprep.subr.mxu0 0.0
        %6147 = vmatpush1.msra.mxu0 %v6124
        %6148 = vmatprep.subr.mxu0 0.0
        %6149 = vmatpush1.msra.mxu0 0.0
        %6150 = vmatprep.subr.mxu0 0.0
        %6151 = vmatpush1.msra.mxu0 0.0
        %6152 = vmatprep.subr.mxu0 0.0
        %6153 = vmatpush1.msra.mxu0 0.0
        %6154 = vmatprep.subr.mxu0 0.0
        %6155 = vmatpush1.msra.mxu0 0.0
        %6156 = vmatprep.subr.mxu0 0.0
        %6157 = vmatpush1.msra.mxu0 0.0
        %6158 = vmatprep.subr.mxu0 0.0
        %6159 = vmatpush1.msra.mxu0 0.0
        %6160 = vmatprep.subr.mxu0 0.0
        %6161 = vmatpush1.msra.mxu0 0.0
        %6162 = vmatprep.subr.mxu0 0.0
        %6163 = vmatpush1.msra.mxu0 0.0
        %6164 = vmatprep.subr.mxu0 0.0
        %6165 = vmatpush1.msra.mxu0 0.0
        %6166 = vmatprep.subr.mxu0 0.0
        %6167 = vmatpush1.msra.mxu0 0.0
        %6168 = vmatprep.subr.mxu0 0.0
        %6169 = vmatpush1.msra.mxu0 0.0
        %6170 = vmatprep.subr.mxu0 0.0
        %6171 = vmatpush1.msra.mxu0 0.0
        %6172 = vmatprep.subr.mxu0 0.0
        %6173 = vmatpush1.msra.mxu0 0.0
        %6174 = vmatprep.subr.mxu0 0.0
        %6175 = vmatpush1.msra.mxu0 0.0
        %6176 = vmatprep.subr.mxu0 0.0
        %6177 = vmatpush1.msra.mxu0 0.0
        %6178 = vmatprep.subr.mxu0 0.0
        %6179 = vmatpush1.msra.mxu0 0.0
        %6180 = vmatprep.subr.mxu0 0.0
        %6181 = vmatpush1.msra.mxu0 0.0
        %6182 = vmatprep.subr.mxu0 0.0
        %6183 = vmatpush1.msra.mxu0 0.0
        %6184 = vmatprep.subr.mxu0 0.0
        %6185 = vmatpush1.msra.mxu0 0.0
        %6186 = vmatprep.subr.mxu0 0.0
        %6187 = vmatpush1.msra.mxu0 0.0
        %6188 = vmatprep.subr.mxu0 0.0
        %6189 = vmatpush1.msra.mxu0 0.0
        %6190 = vmatprep.subr.mxu0 0.0
        %6191 = vmatpush1.msra.mxu0 0.0
        %6192 = vmatprep.subr.mxu0 0.0
        %6193 = vmatpush1.msra.mxu0 0.0
        %6194 = vmatprep.subr.mxu0 0.0
        %6195 = vmatpush1.msra.mxu0 0.0
        %6196 = vmatprep.subr.mxu0 0.0
        %6197 = vmatpush1.msra.mxu0 0.0
        %6198 = vmatprep.subr.mxu0 0.0
        %6199 = vmatpush1.msra.mxu0 0.0
        %6200 = vmatprep.subr.mxu0 0.0
        %6201 = vmatpush1.msra.mxu0 0.0
        %6202 = vmatprep.subr.mxu0 0.0
        %6203 = vmatpush1.msra.mxu0 0.0
        %6204 = vmatprep.mubr.f32.mxu0 0.0
        %6205 = vmatmul.mubr.f32.gmra.mrb[0].mxu0 %v6126
        %v6206 = vpop.f32.mrb[0].mxu0
        %v6207 = vadd.f32 0.0, %v6206
        %v6208 = vpop.f32.mrb[0].mxu0
        %6209 = vmatprep.mubr.f32.mxu0 0.0
        %6210 = vmatmul.mubr.f32.gmra.mrb[0].mxu0 %v6129
        %v6211 = vpop.f32.mrb[0].mxu0
        %v6212 = vadd.f32 0.0, %v6211
        %v6213 = vpop.f32.mrb[0].mxu0
        %6214 = vmatprep.mubr.f32.mxu0 0.0
        %6215 = vmatmul.mubr.f32.gmra.mrb[0].mxu0 %v6132
        %v6216 = vpop.f32.mrb[0].mxu0
        %v6217 = vadd.f32 0.0, %v6216
        %v6218 = vpop.f32.mrb[0].mxu0
        %6219 = vmatprep.mubr.f32.mxu0 0.0
        %6220 = vmatmul.mubr.f32.gmra.mrb[0].mxu0 %v6135
        %v6221 = vpop.f32.mrb[0].mxu0
        %v6222 = vadd.f32 0.0, %v6221
        %v6223 = vpop.f32.mrb[0].mxu0
        %6224 = vmatprep.mubr.f32.mxu0 0.0
        %6225 = vmatmul.mubr.f32.gmra.mrb[0].mxu0 %v6138
        %v6226 = vpop.f32.mrb[0].mxu0
        %v6227 = vadd.f32 0.0, %v6226
        %v6228 = vpop.f32.mrb[0].mxu0
        %6229 = vdwg.mxu0
        %v6230 = vld [vmem:[%s8] sm:$0xff]
        %v6231 = vld [vmem:[%s8 + $0x8] sm:$0xff]
        %v6232 = vld [vmem:[%s8 + $0x10] sm:$0xff]
        %v6233 = vld [vmem:[%s8 + $0x18] sm:$0xff]
        %6234 = vmatprep.subr.mxu0 0.0
        %6235 = vmatpush1.msra.mxu0 %v6230
        %6236 = vmatprep.subr.mxu0 0.0
        %6237 = vmatpush1.msra.mxu0 %v6231
        %6238 = vmatprep.subr.mxu0 0.0
        %6239 = vmatpush1.msra.mxu0 %v6232
        %6240 = vmatprep.subr.mxu0 0.0
        %6241 = vmatpush1.msra.mxu0 %v6233
        %6242 = vmatprep.subr.mxu0 0.0
        %6243 = vmatpush1.msra.mxu0 0.0
        %6244 = vmatprep.subr.mxu0 0.0
        %6245 = vmatpush1.msra.mxu0 0.0
        %6246 = vmatprep.subr.mxu0 0.0
        %6247 = vmatpush1.msra.mxu0 0.0
        %6248 = vmatprep.subr.mxu0 0.0
        %6249 = vmatpush1.msra.mxu0 0.0
        %6250 = vmatprep.subr.mxu0 0.0
        %6251 = vmatpush1.msra.mxu0 0.0
        %6252 = vmatprep.subr.mxu0 0.0
        %6253 = vmatpush1.msra.mxu0 0.0
        %6254 = vmatprep.subr.mxu0 0.0
        %6255 = vmatpush1.msra.mxu0 0.0
        %6256 = vmatprep.subr.mxu0 0.0
        %6257 = vmatpush1.msra.mxu0 0.0
        %6258 = vmatprep.subr.mxu0 0.0
        %6259 = vmatpush1.msra.mxu0 0.0
        %6260 = vmatprep.subr.mxu0 0.0
        %6261 = vmatpush1.msra.mxu0 0.0
        %6262 = vmatprep.subr.mxu0 0.0
        %6263 = vmatpush1.msra.mxu0 0.0
        %6264 = vmatprep.subr.mxu0 0.0
        %6265 = vmatpush1.msra.mxu0 0.0
        %6266 = vmatprep.subr.mxu0 0.0
        %6267 = vmatpush1.msra.mxu0 0.0
        %6268 = vmatprep.subr.mxu0 0.0
        %6269 = vmatpush1.msra.mxu0 0.0
        %6270 = vmatprep.subr.mxu0 0.0
        %6271 = vmatpush1.msra.mxu0 0.0
        %6272 = vmatprep.subr.mxu0 0.0
        %6273 = vmatpush1.msra.mxu0 0.0
        %6274 = vmatprep.subr.mxu0 0.0
        %6275 = vmatpush1.msra.mxu0 0.0
        %6276 = vmatprep.subr.mxu0 0.0
        %6277 = vmatpush1.msra.mxu0 0.0
        %6278 = vmatprep.subr.mxu0 0.0
        %6279 = vmatpush1.msra.mxu0 0.0
        %6280 = vmatprep.subr.mxu0 0.0
        %6281 = vmatpush1.msra.mxu0 0.0
        %6282 = vmatprep.subr.mxu0 0.0
        %6283 = vmatpush1.msra.mxu0 0.0
        %6284 = vmatprep.subr.mxu0 0.0
        %6285 = vmatpush1.msra.mxu0 0.0
        %6286 = vmatprep.subr.mxu0 0.0
        %6287 = vmatpush1.msra.mxu0 0.0
        %6288 = vmatprep.subr.mxu0 0.0
        %6289 = vmatpush1.msra.mxu0 0.0
        %6290 = vmatprep.subr.mxu0 0.0
        %6291 = vmatpush1.msra.mxu0 0.0
        %6292 = vmatprep.subr.mxu0 0.0
        %6293 = vmatpush1.msra.mxu0 0.0
        %6294 = vmatprep.subr.mxu0 0.0
        %6295 = vmatpush1.msra.mxu0 0.0
        %6296 = vmatprep.subr.mxu0 0.0
        %6297 = vmatpush1.msra.mxu0 0.0
        %6298 = vmatprep.mubr.f32.mxu0 0.0
        %6299 = vmatmul.mubr.f32.gmra.mrb[0].mxu0 %v6126
        %v6300 = vpop.f32.mrb[0].mxu0
        %v6301 = vadd.f32 0.0, %v6300
        %v6302 = vpop.f32.mrb[0].mxu0
        %6303 = vmatprep.mubr.f32.mxu0 0.0
        %6304 = vmatmul.mubr.f32.gmra.mrb[0].mxu0 %v6129
        %v6305 = vpop.f32.mrb[0].mxu0
        %v6306 = vadd.f32 0.0, %v6305
        %v6307 = vpop.f32.mrb[0].mxu0
        %6308 = vmatprep.mubr.f32.mxu0 0.0
        %6309 = vmatmul.mubr.f32.gmra.mrb[0].mxu0 %v6132
        %v6310 = vpop.f32.mrb[0].mxu0
        %v6311 = vadd.f32 0.0, %v6310
        %v6312 = vpop.f32.mrb[0].mxu0
        %6313 = vmatprep.mubr.f32.mxu0 0.0
        %6314 = vmatmul.mubr.f32.gmra.mrb[0].mxu0 %v6135
        %v6315 = vpop.f32.mrb[0].mxu0
        %v6316 = vadd.f32 0.0, %v6315
        %v6317 = vpop.f32.mrb[0].mxu0
        %6318 = vmatprep.mubr.f32.mxu0 0.0
        %6319 = vmatmul.mubr.f32.gmra.mrb[0].mxu0 %v6138
        %v6320 = vpop.f32.mrb[0].mxu0
        %v6321 = vadd.f32 0.0, %v6320
        %v6322 = vpop.f32.mrb[0].mxu0
        %6323 = vdwg.mxu0
        %v6324 = vld [vmem:[%s11] sm:$0x1]
        %v6326 = vlaneseq
        %v6327 = vshrl.u32 %v6326, 7
        %v6328 = vsub.s32 0, %v6327
        %v6329 = vrot.slane %v6324, %v6328
        %v6331 = vadd.f32 %v6329, 0.0
        %v6332 = vld [vmem:[%s9] sm:$0x1]
        %v6333 = vlaneseq
        %v6334 = vshrl.u32 %v6333, 7
        %v6335 = vsub.s32 0, %v6334
        %v6336 = vrot.slane %v6332, %v6335
        %v6337 = vmul.f32 %v6207, %v6336
        %v6338 = vmul.f32 %v6212, %v6336
        %v6339 = vadd.f32 %v6331, %v6337
        %v6340 = vadd.f32 %v6331, %v6338
        %v6341 = vld [vmem:[%s10] sm:$0x1]
        %v6342 = vlaneseq
        %v6343 = vshrl.u32 %v6342, 7
        %v6344 = vsub.s32 0, %v6343
        %v6345 = vrot.slane %v6341, %v6344
        %v6346 = vmul.f32 %v6301, %v6345
        %v6347 = vmul.f32 %v6306, %v6345
        %v6348 = vadd.f32 %v6339, %v6346
        %v6349 = vadd.f32 %v6340, %v6347
        %v6350 = vld [vmem:[%s9 + $0x1] sm:$0x1]
        %v6351 = vlaneseq
        %v6352 = vshrl.u32 %v6351, 7
        %v6353 = vsub.s32 0, %v6352
        %v6354 = vrot.slane %v6350, %v6353
        %v6355 = vmul.f32 %v6207, %v6354
        %v6356 = vmul.f32 %v6212, %v6354
        %vm6359 = vcmask 1046528
        %v6360 = vrot.slane %v6355, 1
        %v6361 = vrot.slane %v6356, 1
        %v6362 = vsel %vm6359, %v6360, %v6361
        %v6365 = vadd.f32 %v6348, %v6362
        %v6366 = vadd.f32 %v6349, %v6361
        %v6367 = vld [vmem:[%s10 + $0x1] sm:$0x1]
        %v6368 = vlaneseq
        %v6369 = vshrl.u32 %v6368, 7
        %v6370 = vsub.s32 0, %v6369
        %v6371 = vrot.slane %v6367, %v6370
        %v6372 = vmul.f32 %v6301, %v6371
        %v6373 = vmul.f32 %v6306, %v6371
        %v6376 = vrot.slane %v6372, 1
        %v6377 = vrot.slane %v6373, 1
        %v6378 = vsel %vm6359, %v6376, %v6377
        %v6381 = vadd.f32 %v6365, %v6378
        %v6382 = vadd.f32 %v6366, %v6377
        %v6383 = vld [vmem:[%s9 + $0x2] sm:$0x1]
        %v6384 = vlaneseq
        %v6385 = vshrl.u32 %v6384, 7
        %v6386 = vsub.s32 0, %v6385
        %v6387 = vrot.slane %v6383, %v6386
        %v6388 = vmul.f32 %v6207, %v6387
        %v6389 = vmul.f32 %v6212, %v6387
        %vm6392 = vcmask 1045504
        %v6393 = vrot.slane %v6388, 2
        %v6394 = vrot.slane %v6389, 2
        %v6395 = vsel %vm6392, %v6393, %v6394
        %v6398 = vadd.f32 %v6381, %v6395
        %v6399 = vadd.f32 %v6382, %v6394
        %v6400 = vld [vmem:[%s10 + $0x2] sm:$0x1]
        %v6401 = vlaneseq
        %v6402 = vshrl.u32 %v6401, 7
        %v6403 = vsub.s32 0, %v6402
        %v6404 = vrot.slane %v6400, %v6403
        %v6405 = vmul.f32 %v6301, %v6404
        %v6406 = vmul.f32 %v6306, %v6404
        %v6409 = vrot.slane %v6405, 2
        %v6410 = vrot.slane %v6406, 2
        %v6411 = vsel %vm6392, %v6409, %v6410
        %v6414 = vadd.f32 %v6398, %v6411
        %v6415 = vadd.f32 %v6399, %v6410
        %v6416 = vld [vmem:[%s9 + $0x3] sm:$0x1]
        %v6417 = vlaneseq
        %v6418 = vshrl.u32 %v6417, 7
        %v6419 = vsub.s32 0, %v6418
        %v6420 = vrot.slane %v6416, %v6419
        %v6421 = vmul.f32 %v6207, %v6420
        %v6422 = vmul.f32 %v6212, %v6420
        %vm6425 = vcmask 1044480
        %v6426 = vrot.slane %v6421, 3
        %v6427 = vrot.slane %v6422, 3
        %v6428 = vsel %vm6425, %v6426, %v6427
        %v6431 = vadd.f32 %v6414, %v6428
        %v6432 = vadd.f32 %v6415, %v6427
        %v6433 = vld [vmem:[%s10 + $0x3] sm:$0x1]
        %v6434 = vlaneseq
        %v6435 = vshrl.u32 %v6434, 7
        %v6436 = vsub.s32 0, %v6435
        %v6437 = vrot.slane %v6433, %v6436
        %v6438 = vmul.f32 %v6301, %v6437
        %v6439 = vmul.f32 %v6306, %v6437
        %v6442 = vrot.slane %v6438, 3
        %v6443 = vrot.slane %v6439, 3
        %v6444 = vsel %vm6425, %v6442, %v6443
        %v6447 = vadd.f32 %v6431, %v6444
        %v6448 = vadd.f32 %v6432, %v6443
        %v6449 = vld [vmem:[%s9 + $0x4] sm:$0x1]
        %v6450 = vlaneseq
        %v6451 = vshrl.u32 %v6450, 7
        %v6452 = vsub.s32 0, %v6451
        %v6453 = vrot.slane %v6449, %v6452
        %v6454 = vmul.f32 %v6212, %v6453
        %v6456 = vrot.slane %v6454, 4
        %v6458 = vadd.f32 %v6447, %v6456
        %v6459 = vadd.f32 %v6448, %v6456
        %v6460 = vld [vmem:[%s10 + $0x4] sm:$0x1]
        %v6461 = vlaneseq
        %v6462 = vshrl.u32 %v6461, 7
        %v6463 = vsub.s32 0, %v6462
        %v6464 = vrot.slane %v6460, %v6463
        %v6465 = vmul.f32 %v6306, %v6464
        %v6467 = vrot.slane %v6465, 4
        %v6469 = vadd.f32 %v6458, %v6467
        %v6470 = vadd.f32 %v6459, %v6467
        %v6471 = vld [vmem:[%s9 + $0x5] sm:$0x1]
        %v6472 = vlaneseq
        %v6473 = vshrl.u32 %v6472, 7
        %v6474 = vsub.s32 0, %v6473
        %v6475 = vrot.slane %v6471, %v6474
        %v6476 = vmul.f32 %v6212, %v6475
        %v6477 = vmul.f32 %v6217, %v6475
        %vm6480 = vcmask 1042432
        %v6481 = vrot.slane %v6476, 5
        %v6482 = vrot.slane %v6477, 5
        %v6483 = vsel %vm6480, %v6481, %v6482
        %v6486 = vadd.f32 %v6469, %v6481
        %v6487 = vadd.f32 %v6470, %v6483
        %v6488 = vld [vmem:[%s10 + $0x5] sm:$0x1]
        %v6489 = vlaneseq
        %v6490 = vshrl.u32 %v6489, 7
        %v6491 = vsub.s32 0, %v6490
        %v6492 = vrot.slane %v6488, %v6491
        %v6493 = vmul.f32 %v6306, %v6492
        %v6494 = vmul.f32 %v6311, %v6492
        %v6497 = vrot.slane %v6493, 5
        %v6498 = vrot.slane %v6494, 5
        %v6499 = vsel %vm6480, %v6497, %v6498
        %v6502 = vadd.f32 %v6486, %v6497
        %v6503 = vadd.f32 %v6487, %v6499
        %v6504 = vld [vmem:[%s9 + $0x6] sm:$0x1]
        %v6505 = vlaneseq
        %v6506 = vshrl.u32 %v6505, 7
        %v6507 = vsub.s32 0, %v6506
        %v6508 = vrot.slane %v6504, %v6507
        %v6509 = vmul.f32 %v6212, %v6508
        %v6510 = vmul.f32 %v6217, %v6508
        %vm6513 = vcmask 1041408
        %v6514 = vrot.slane %v6509, 6
        %v6515 = vrot.slane %v6510, 6
        %v6516 = vsel %vm6513, %v6514, %v6515
        %v6519 = vadd.f32 %v6502, %v6514
        %v6520 = vadd.f32 %v6503, %v6516
        %v6521 = vld [vmem:[%s10 + $0x6] sm:$0x1]
        %v6522 = vlaneseq
        %v6523 = vshrl.u32 %v6522, 7
        %v6524 = vsub.s32 0, %v6523
        %v6525 = vrot.slane %v6521, %v6524
        %v6526 = vmul.f32 %v6306, %v6525
        %v6527 = vmul.f32 %v6311, %v6525
        %v6530 = vrot.slane %v6526, 6
        %v6531 = vrot.slane %v6527, 6
        %v6532 = vsel %vm6513, %v6530, %v6531
        %v6535 = vadd.f32 %v6519, %v6530
        %v6536 = vadd.f32 %v6520, %v6532
        %v6537 = vld [vmem:[%s9 + $0x7] sm:$0x1]
        %v6538 = vlaneseq
        %v6539 = vshrl.u32 %v6538, 7
        %v6540 = vsub.s32 0, %v6539
        %v6541 = vrot.slane %v6537, %v6540
        %v6542 = vmul.f32 %v6212, %v6541
        %v6543 = vmul.f32 %v6217, %v6541
        %vm6546 = vcmask 1040384
        %v6547 = vrot.slane %v6542, 7
        %v6548 = vrot.slane %v6543, 7
        %v6549 = vsel %vm6546, %v6547, %v6548
        %v6552 = vadd.f32 %v6535, %v6547
        %v6553 = vadd.f32 %v6536, %v6549
        %v6554 = vld [vmem:[%s10 + $0x7] sm:$0x1]
        %v6555 = vlaneseq
        %v6556 = vshrl.u32 %v6555, 7
        %v6557 = vsub.s32 0, %v6556
        %v6558 = vrot.slane %v6554, %v6557
        %v6559 = vmul.f32 %v6306, %v6558
        %v6560 = vmul.f32 %v6311, %v6558
        %v6563 = vrot.slane %v6559, 7
        %v6564 = vrot.slane %v6560, 7
        %v6565 = vsel %vm6546, %v6563, %v6564
        %v6568 = vadd.f32 %v6552, %v6563
        %v6569 = vadd.f32 %v6553, %v6565
        %v6570 = vld [vmem:[%s9 + $0x8] sm:$0x1]
        %v6571 = vlaneseq
        %v6572 = vshrl.u32 %v6571, 7
        %v6573 = vsub.s32 0, %v6572
        %v6574 = vrot.slane %v6570, %v6573
        %v6575 = vmul.f32 %v6212, %v6574
        %v6576 = vmul.f32 %v6217, %v6574
        %v6577 = vadd.f32 %v6568, %v6575
        %v6578 = vadd.f32 %v6569, %v6576
        %v6579 = vld [vmem:[%s10 + $0x8] sm:$0x1]
        %v6580 = vlaneseq
        %v6581 = vshrl.u32 %v6580, 7
        %v6582 = vsub.s32 0, %v6581
        %v6583 = vrot.slane %v6579, %v6582
        %v6584 = vmul.f32 %v6306, %v6583
        %v6585 = vmul.f32 %v6311, %v6583
        %v6586 = vadd.f32 %v6577, %v6584
        %v6587 = vadd.f32 %v6578, %v6585
        %v6588 = vld [vmem:[%s9 + $0x9] sm:$0x1]
        %v6589 = vlaneseq
        %v6590 = vshrl.u32 %v6589, 7
        %v6591 = vsub.s32 0, %v6590
        %v6592 = vrot.slane %v6588, %v6591
        %v6593 = vmul.f32 %v6212, %v6592
        %v6594 = vmul.f32 %v6217, %v6592
        %v6597 = vrot.slane %v6593, 1
        %v6598 = vrot.slane %v6594, 1
        %v6599 = vsel %vm6359, %v6597, %v6598
        %v6602 = vadd.f32 %v6586, %v6599
        %v6603 = vadd.f32 %v6587, %v6598
        %v6604 = vld [vmem:[%s10 + $0x9] sm:$0x1]
        %v6605 = vlaneseq
        %v6606 = vshrl.u32 %v6605, 7
        %v6607 = vsub.s32 0, %v6606
        %v6608 = vrot.slane %v6604, %v6607
        %v6609 = vmul.f32 %v6306, %v6608
        %v6610 = vmul.f32 %v6311, %v6608
        %v6613 = vrot.slane %v6609, 1
        %v6614 = vrot.slane %v6610, 1
        %v6615 = vsel %vm6359, %v6613, %v6614
        %v6618 = vadd.f32 %v6602, %v6615
        %v6619 = vadd.f32 %v6603, %v6614
        %v6620 = vld [vmem:[%s9 + $0xa] sm:$0x1]
        %v6621 = vlaneseq
        %v6622 = vshrl.u32 %v6621, 7
        %v6623 = vsub.s32 0, %v6622
        %v6624 = vrot.slane %v6620, %v6623
        %v6625 = vmul.f32 %v6212, %v6624
        %v6626 = vmul.f32 %v6217, %v6624
        %v6629 = vrot.slane %v6625, 2
        %v6630 = vrot.slane %v6626, 2
        %v6631 = vsel %vm6392, %v6629, %v6630
        %v6634 = vadd.f32 %v6618, %v6631
        %v6635 = vadd.f32 %v6619, %v6630
        %v6636 = vld [vmem:[%s10 + $0xa] sm:$0x1]
        %v6637 = vlaneseq
        %v6638 = vshrl.u32 %v6637, 7
        %v6639 = vsub.s32 0, %v6638
        %v6640 = vrot.slane %v6636, %v6639
        %v6641 = vmul.f32 %v6306, %v6640
        %v6642 = vmul.f32 %v6311, %v6640
        %v6645 = vrot.slane %v6641, 2
        %v6646 = vrot.slane %v6642, 2
        %v6647 = vsel %vm6392, %v6645, %v6646
        %v6650 = vadd.f32 %v6634, %v6647
        %v6651 = vadd.f32 %v6635, %v6646
        %v6652 = vld [vmem:[%s9 + $0xb] sm:$0x1]
        %v6653 = vlaneseq
        %v6654 = vshrl.u32 %v6653, 7
        %v6655 = vsub.s32 0, %v6654
        %v6656 = vrot.slane %v6652, %v6655
        %v6657 = vmul.f32 %v6212, %v6656
        %v6658 = vmul.f32 %v6217, %v6656
        %v6661 = vrot.slane %v6657, 3
        %v6662 = vrot.slane %v6658, 3
        %v6663 = vsel %vm6425, %v6661, %v6662
        %v6666 = vadd.f32 %v6650, %v6663
        %v6667 = vadd.f32 %v6651, %v6662
        %v6668 = vld [vmem:[%s10 + $0xb] sm:$0x1]
        %v6669 = vlaneseq
        %v6670 = vshrl.u32 %v6669, 7
        %v6671 = vsub.s32 0, %v6670
        %v6672 = vrot.slane %v6668, %v6671
        %v6673 = vmul.f32 %v6306, %v6672
        %v6674 = vmul.f32 %v6311, %v6672
        %v6677 = vrot.slane %v6673, 3
        %v6678 = vrot.slane %v6674, 3
        %v6679 = vsel %vm6425, %v6677, %v6678
        %v6682 = vadd.f32 %v6666, %v6679
        %v6683 = vadd.f32 %v6667, %v6678
        %v6684 = vld [vmem:[%s9 + $0xc] sm:$0x1]
        %v6685 = vlaneseq
        %v6686 = vshrl.u32 %v6685, 7
        %v6687 = vsub.s32 0, %v6686
        %v6688 = vrot.slane %v6684, %v6687
        %v6689 = vmul.f32 %v6217, %v6688
        %v6691 = vrot.slane %v6689, 4
        %v6693 = vadd.f32 %v6682, %v6691
        %v6694 = vadd.f32 %v6683, %v6691
        %v6695 = vld [vmem:[%s10 + $0xc] sm:$0x1]
        %v6696 = vlaneseq
        %v6697 = vshrl.u32 %v6696, 7
        %v6698 = vsub.s32 0, %v6697
        %v6699 = vrot.slane %v6695, %v6698
        %v6700 = vmul.f32 %v6311, %v6699
        %v6702 = vrot.slane %v6700, 4
        %v6704 = vadd.f32 %v6693, %v6702
        %v6705 = vadd.f32 %v6694, %v6702
        %v6706 = vld [vmem:[%s9 + $0xd] sm:$0x1]
        %v6707 = vlaneseq
        %v6708 = vshrl.u32 %v6707, 7
        %v6709 = vsub.s32 0, %v6708
        %v6710 = vrot.slane %v6706, %v6709
        %v6711 = vmul.f32 %v6217, %v6710
        %v6712 = vmul.f32 %v6222, %v6710
        %v6715 = vrot.slane %v6711, 5
        %v6716 = vrot.slane %v6712, 5
        %v6717 = vsel %vm6480, %v6715, %v6716
        %v6720 = vadd.f32 %v6704, %v6715
        %v6721 = vadd.f32 %v6705, %v6717
        %v6722 = vld [vmem:[%s10 + $0xd] sm:$0x1]
        %v6723 = vlaneseq
        %v6724 = vshrl.u32 %v6723, 7
        %v6725 = vsub.s32 0, %v6724
        %v6726 = vrot.slane %v6722, %v6725
        %v6727 = vmul.f32 %v6311, %v6726
        %v6728 = vmul.f32 %v6316, %v6726
        %v6731 = vrot.slane %v6727, 5
        %v6732 = vrot.slane %v6728, 5
        %v6733 = vsel %vm6480, %v6731, %v6732
        %v6736 = vadd.f32 %v6720, %v6731
        %v6737 = vadd.f32 %v6721, %v6733
        %v6738 = vld [vmem:[%s9 + $0xe] sm:$0x1]
        %v6739 = vlaneseq
        %v6740 = vshrl.u32 %v6739, 7
        %v6741 = vsub.s32 0, %v6740
        %v6742 = vrot.slane %v6738, %v6741
        %v6743 = vmul.f32 %v6217, %v6742
        %v6744 = vmul.f32 %v6222, %v6742
        %v6747 = vrot.slane %v6743, 6
        %v6748 = vrot.slane %v6744, 6
        %v6749 = vsel %vm6513, %v6747, %v6748
        %v6752 = vadd.f32 %v6736, %v6747
        %v6753 = vadd.f32 %v6737, %v6749
        %v6754 = vld [vmem:[%s10 + $0xe] sm:$0x1]
        %v6755 = vlaneseq
        %v6756 = vshrl.u32 %v6755, 7
        %v6757 = vsub.s32 0, %v6756
        %v6758 = vrot.slane %v6754, %v6757
        %v6759 = vmul.f32 %v6311, %v6758
        %v6760 = vmul.f32 %v6316, %v6758
        %v6763 = vrot.slane %v6759, 6
        %v6764 = vrot.slane %v6760, 6
        %v6765 = vsel %vm6513, %v6763, %v6764
        %v6768 = vadd.f32 %v6752, %v6763
        %v6769 = vadd.f32 %v6753, %v6765
        %v6770 = vld [vmem:[%s9 + $0xf] sm:$0x1]
        %v6771 = vlaneseq
        %v6772 = vshrl.u32 %v6771, 7
        %v6773 = vsub.s32 0, %v6772
        %v6774 = vrot.slane %v6770, %v6773
        %v6775 = vmul.f32 %v6217, %v6774
        %v6776 = vmul.f32 %v6222, %v6774
        %v6779 = vrot.slane %v6775, 7
        %v6780 = vrot.slane %v6776, 7
        %v6781 = vsel %vm6546, %v6779, %v6780
        %v6784 = vadd.f32 %v6768, %v6779
        %v6785 = vadd.f32 %v6769, %v6781
        %v6786 = vld [vmem:[%s10 + $0xf] sm:$0x1]
        %v6787 = vlaneseq
        %v6788 = vshrl.u32 %v6787, 7
        %v6789 = vsub.s32 0, %v6788
        %v6790 = vrot.slane %v6786, %v6789
        %v6791 = vmul.f32 %v6311, %v6790
        %v6792 = vmul.f32 %v6316, %v6790
        %v6795 = vrot.slane %v6791, 7
        %v6796 = vrot.slane %v6792, 7
        %v6797 = vsel %vm6546, %v6795, %v6796
        %v6800 = vadd.f32 %v6784, %v6795
        %v6801 = vadd.f32 %v6785, %v6797
        %v6802 = vld [vmem:[%s9 + $0x10] sm:$0x1]
        %v6803 = vlaneseq
        %v6804 = vshrl.u32 %v6803, 7
        %v6805 = vsub.s32 0, %v6804
        %v6806 = vrot.slane %v6802, %v6805
        %v6807 = vmul.f32 %v6217, %v6806
        %v6808 = vmul.f32 %v6222, %v6806
        %v6809 = vadd.f32 %v6800, %v6807
        %v6810 = vadd.f32 %v6801, %v6808
        %v6811 = vld [vmem:[%s10 + $0x10] sm:$0x1]
        %v6812 = vlaneseq
        %v6813 = vshrl.u32 %v6812, 7
        %v6814 = vsub.s32 0, %v6813
        %v6815 = vrot.slane %v6811, %v6814
        %v6816 = vmul.f32 %v6311, %v6815
        %v6817 = vmul.f32 %v6316, %v6815
        %v6818 = vadd.f32 %v6809, %v6816
        %v6819 = vadd.f32 %v6810, %v6817
        %v6820 = vld [vmem:[%s9 + $0x11] sm:$0x1]
        %v6821 = vlaneseq
        %v6822 = vshrl.u32 %v6821, 7
        %v6823 = vsub.s32 0, %v6822
        %v6824 = vrot.slane %v6820, %v6823
        %v6825 = vmul.f32 %v6217, %v6824
        %v6826 = vmul.f32 %v6222, %v6824
        %v6829 = vrot.slane %v6825, 1
        %v6830 = vrot.slane %v6826, 1
        %v6831 = vsel %vm6359, %v6829, %v6830
        %v6834 = vadd.f32 %v6818, %v6831
        %v6835 = vadd.f32 %v6819, %v6830
        %v6836 = vld [vmem:[%s10 + $0x11] sm:$0x1]
        %v6837 = vlaneseq
        %v6838 = vshrl.u32 %v6837, 7
        %v6839 = vsub.s32 0, %v6838
        %v6840 = vrot.slane %v6836, %v6839
        %v6841 = vmul.f32 %v6311, %v6840
        %v6842 = vmul.f32 %v6316, %v6840
        %v6845 = vrot.slane %v6841, 1
        %v6846 = vrot.slane %v6842, 1
        %v6847 = vsel %vm6359, %v6845, %v6846
        %v6850 = vadd.f32 %v6834, %v6847
        %v6851 = vadd.f32 %v6835, %v6846
        %v6852 = vld [vmem:[%s9 + $0x12] sm:$0x1]
        %v6853 = vlaneseq
        %v6854 = vshrl.u32 %v6853, 7
        %v6855 = vsub.s32 0, %v6854
        %v6856 = vrot.slane %v6852, %v6855
        %v6857 = vmul.f32 %v6217, %v6856
        %v6858 = vmul.f32 %v6222, %v6856
        %v6861 = vrot.slane %v6857, 2
        %v6862 = vrot.slane %v6858, 2
        %v6863 = vsel %vm6392, %v6861, %v6862
        %v6866 = vadd.f32 %v6850, %v6863
        %v6867 = vadd.f32 %v6851, %v6862
        %v6868 = vld [vmem:[%s10 + $0x12] sm:$0x1]
        %v6869 = vlaneseq
        %v6870 = vshrl.u32 %v6869, 7
        %v6871 = vsub.s32 0, %v6870
        %v6872 = vrot.slane %v6868, %v6871
        %v6873 = vmul.f32 %v6311, %v6872
        %v6874 = vmul.f32 %v6316, %v6872
        %v6877 = vrot.slane %v6873, 2
        %v6878 = vrot.slane %v6874, 2
        %v6879 = vsel %vm6392, %v6877, %v6878
        %v6882 = vadd.f32 %v6866, %v6879
        %v6883 = vadd.f32 %v6867, %v6878
        %v6884 = vld [vmem:[%s9 + $0x13] sm:$0x1]
        %v6885 = vlaneseq
        %v6886 = vshrl.u32 %v6885, 7
        %v6887 = vsub.s32 0, %v6886
        %v6888 = vrot.slane %v6884, %v6887
        %v6889 = vmul.f32 %v6217, %v6888
        %v6890 = vmul.f32 %v6222, %v6888
        %v6893 = vrot.slane %v6889, 3
        %v6894 = vrot.slane %v6890, 3
        %v6895 = vsel %vm6425, %v6893, %v6894
        %v6898 = vadd.f32 %v6882, %v6895
        %v6899 = vadd.f32 %v6883, %v6894
        %v6900 = vld [vmem:[%s10 + $0x13] sm:$0x1]
        %v6901 = vlaneseq
        %v6902 = vshrl.u32 %v6901, 7
        %v6903 = vsub.s32 0, %v6902
        %v6904 = vrot.slane %v6900, %v6903
        %v6905 = vmul.f32 %v6311, %v6904
        %v6906 = vmul.f32 %v6316, %v6904
        %v6909 = vrot.slane %v6905, 3
        %v6910 = vrot.slane %v6906, 3
        %v6911 = vsel %vm6425, %v6909, %v6910
        %v6914 = vadd.f32 %v6898, %v6911
        %v6915 = vadd.f32 %v6899, %v6910
        %v6916 = vld [vmem:[%s9 + $0x14] sm:$0x1]
        %v6917 = vlaneseq
        %v6918 = vshrl.u32 %v6917, 7
        %v6919 = vsub.s32 0, %v6918
        %v6920 = vrot.slane %v6916, %v6919
        %v6921 = vmul.f32 %v6222, %v6920
        %v6923 = vrot.slane %v6921, 4
        %v6925 = vadd.f32 %v6914, %v6923
        %v6926 = vadd.f32 %v6915, %v6923
        %v6927 = vld [vmem:[%s10 + $0x14] sm:$0x1]
        %v6928 = vlaneseq
        %v6929 = vshrl.u32 %v6928, 7
        %v6930 = vsub.s32 0, %v6929
        %v6931 = vrot.slane %v6927, %v6930
        %v6932 = vmul.f32 %v6316, %v6931
        %v6934 = vrot.slane %v6932, 4
        %v6936 = vadd.f32 %v6925, %v6934
        %v6937 = vadd.f32 %v6926, %v6934
        %v6938 = vld [vmem:[%s9 + $0x15] sm:$0x1]
        %v6939 = vlaneseq
        %v6940 = vshrl.u32 %v6939, 7
        %v6941 = vsub.s32 0, %v6940
        %v6942 = vrot.slane %v6938, %v6941
        %v6943 = vmul.f32 %v6222, %v6942
        %v6944 = vmul.f32 %v6227, %v6942
        %v6947 = vrot.slane %v6943, 5
        %v6948 = vrot.slane %v6944, 5
        %v6949 = vsel %vm6480, %v6947, %v6948
        %v6952 = vadd.f32 %v6936, %v6947
        %v6953 = vadd.f32 %v6937, %v6949
        %v6954 = vld [vmem:[%s10 + $0x15] sm:$0x1]
        %v6955 = vlaneseq
        %v6956 = vshrl.u32 %v6955, 7
        %v6957 = vsub.s32 0, %v6956
        %v6958 = vrot.slane %v6954, %v6957
        %v6959 = vmul.f32 %v6316, %v6958
        %v6960 = vmul.f32 %v6321, %v6958
        %v6963 = vrot.slane %v6959, 5
        %v6964 = vrot.slane %v6960, 5
        %v6965 = vsel %vm6480, %v6963, %v6964
        %v6968 = vadd.f32 %v6952, %v6963
        %v6969 = vadd.f32 %v6953, %v6965
        %v6970 = vld [vmem:[%s9 + $0x16] sm:$0x1]
        %v6971 = vlaneseq
        %v6972 = vshrl.u32 %v6971, 7
        %v6973 = vsub.s32 0, %v6972
        %v6974 = vrot.slane %v6970, %v6973
        %v6975 = vmul.f32 %v6222, %v6974
        %v6976 = vmul.f32 %v6227, %v6974
        %v6979 = vrot.slane %v6975, 6
        %v6980 = vrot.slane %v6976, 6
        %v6981 = vsel %vm6513, %v6979, %v6980
        %v6984 = vadd.f32 %v6968, %v6979
        %v6985 = vadd.f32 %v6969, %v6981
        %v6986 = vld [vmem:[%s10 + $0x16] sm:$0x1]
        %v6987 = vlaneseq
        %v6988 = vshrl.u32 %v6987, 7
        %v6989 = vsub.s32 0, %v6988
        %v6990 = vrot.slane %v6986, %v6989
        %v6991 = vmul.f32 %v6316, %v6990
        %v6992 = vmul.f32 %v6321, %v6990
        %v6995 = vrot.slane %v6991, 6
        %v6996 = vrot.slane %v6992, 6
        %v6997 = vsel %vm6513, %v6995, %v6996
        %v7000 = vadd.f32 %v6984, %v6995
        %v7001 = vadd.f32 %v6985, %v6997
        %v7002 = vld [vmem:[%s9 + $0x17] sm:$0x1]
        %v7003 = vlaneseq
        %v7004 = vshrl.u32 %v7003, 7
        %v7005 = vsub.s32 0, %v7004
        %v7006 = vrot.slane %v7002, %v7005
        %v7007 = vmul.f32 %v6222, %v7006
        %v7008 = vmul.f32 %v6227, %v7006
        %v7011 = vrot.slane %v7007, 7
        %v7012 = vrot.slane %v7008, 7
        %v7013 = vsel %vm6546, %v7011, %v7012
        %v7016 = vadd.f32 %v7000, %v7011
        %v7017 = vadd.f32 %v7001, %v7013
        %v7018 = vld [vmem:[%s10 + $0x17] sm:$0x1]
        %v7019 = vlaneseq
        %v7020 = vshrl.u32 %v7019, 7
        %v7021 = vsub.s32 0, %v7020
        %v7022 = vrot.slane %v7018, %v7021
        %v7023 = vmul.f32 %v6316, %v7022
        %v7024 = vmul.f32 %v6321, %v7022
        %v7027 = vrot.slane %v7023, 7
        %v7028 = vrot.slane %v7024, 7
        %v7029 = vsel %vm6546, %v7027, %v7028
        %v7032 = vadd.f32 %v7016, %v7027
        %v7033 = vadd.f32 %v7017, %v7029
        %v7034 = vld [vmem:[%s9 + $0x18] sm:$0x1]
        %v7035 = vlaneseq
        %v7036 = vshrl.u32 %v7035, 7
        %v7037 = vsub.s32 0, %v7036
        %v7038 = vrot.slane %v7034, %v7037
        %v7039 = vmul.f32 %v6222, %v7038
        %v7040 = vmul.f32 %v6227, %v7038
        %v7041 = vadd.f32 %v7032, %v7039
        %v7042 = vadd.f32 %v7033, %v7040
        %v7043 = vld [vmem:[%s10 + $0x18] sm:$0x1]
        %v7044 = vlaneseq
        %v7045 = vshrl.u32 %v7044, 7
        %v7046 = vsub.s32 0, %v7045
        %v7047 = vrot.slane %v7043, %v7046
        %v7048 = vmul.f32 %v6316, %v7047
        %v7049 = vmul.f32 %v6321, %v7047
        %v7050 = vadd.f32 %v7041, %v7048
        %v7051 = vadd.f32 %v7042, %v7049
        %v7052 = vmul.f32 %v7050, 0.5
        %v7053 = vmul.f32 %v7051, 0.5
        %v7054 = vmul.f32 %v7050, 0.70710677
        %v7055 = vmul.f32 %v7051, 0.70710677
        %v7056 = verf.f32.pop %v7054
        %v7057 = verf.f32.pop %v7055
        %v7058 = vadd.f32 %v7056, 1.0
        %v7059 = vadd.f32 %v7057, 1.0
        %v7060 = vmul.f32 %v7052, %v7058
        %v7061 = vmul.f32 %v7053, %v7059
        %v7064 = vrot.slane %v7060, 4
        %v7065 = vrot.slane %v7061, 4
        %v7066 = vsel %vm1001, %v7064, %v7065
        %v7068 = vadd.f32 %v6109, %v7066
        %v7069 = vsel %vm2012, %v7068, 0.0
        %7070 = vadd.xlane.f32.xlu0 %v7069
        %v7071 = vpop.xlane.xlu0 %7070
        %v7072 = vmul.f32 %v7071, %v5540
        %v7073 = vsub.f32 %v7068, %v7072
        %v7074 = vmul.f32 %v7073, %v7073
        %v7075 = vsel %vm2012, %v7074, 0.0
        %7076 = vadd.xlane.f32.xlu0 %v7075
        %v7077 = vpop.xlane.xlu0 %7076
        %v7078 = vmul.f32 %v7077, %v5540
        %v7079 = vadd.f32 %v7078, 1e-05
        %v7080 = vrsqrt.pop %v7079
        %v7081 = vmul.f32 %v7073, %v7080
        %v7082 = vld [vmem:[%s12] sm:$0x1]
        %v7084 = vlaneseq
        %v7085 = vshrl.u32 %v7084, 7
        %v7086 = vsub.s32 0, %v7085
        %v7087 = vrot.slane %v7082, %v7086
        %v7089 = vmul.f32 %v7081, %v7087
        %v7090 = vld [vmem:[%s13] sm:$0x1]
        %v7092 = vlaneseq
        %v7093 = vshrl.u32 %v7092, 7
        %v7094 = vsub.s32 0, %v7093
        %v7095 = vrot.slane %v7090, %v7094
        %v7097 = vadd.f32 %v7089, %v7095
        %v7098 = vld [vmem:[%s14] sm:$0xff]
        %v7099 = vld [vmem:[%s14 + $0x8] sm:$0xff]
        %v7100 = vld [vmem:[%s14 + $0x10] sm:$0xff]
        %v7101 = vld [vmem:[%s14 + $0x18] sm:$0xff]
        %v7102 = vld [vmem:[%s15] sm:$0x1]
        %v7104 = vlaneseq
        %v7105 = vshrl.u32 %v7104, 7
        %v7106 = vsub.s32 0, %v7105
        %v7107 = vrot.slane %v7102, %v7106
        %v7110 = vsel %vm2012, %v7097, 0
        %7112 = vmatprep.subr.mxu0 0.0
        %7113 = vmatpush1.msra.mxu0 %v7098
        %7114 = vmatprep.subr.mxu0 0.0
        %7115 = vmatpush1.msra.mxu0 %v7099
        %7116 = vmatprep.subr.mxu0 0.0
        %7117 = vmatpush1.msra.mxu0 %v7100
        %7118 = vmatprep.subr.mxu0 0.0
        %7119 = vmatpush1.msra.mxu0 %v7101
        %7120 = vmatprep.subr.mxu0 0.0
        %7121 = vmatpush1.msra.mxu0 0.0
        %7122 = vmatprep.subr.mxu0 0.0
        %7123 = vmatpush1.msra.mxu0 0.0
        %7124 = vmatprep.subr.mxu0 0.0
        %7125 = vmatpush1.msra.mxu0 0.0
        %7126 = vmatprep.subr.mxu0 0.0
        %7127 = vmatpush1.msra.mxu0 0.0
        %7128 = vmatprep.subr.mxu0 0.0
        %7129 = vmatpush1.msra.mxu0 0.0
        %7130 = vmatprep.subr.mxu0 0.0
        %7131 = vmatpush1.msra.mxu0 0.0
        %7132 = vmatprep.subr.mxu0 0.0
        %7133 = vmatpush1.msra.mxu0 0.0
        %7134 = vmatprep.subr.mxu0 0.0
        %7135 = vmatpush1.msra.mxu0 0.0
        %7136 = vmatprep.subr.mxu0 0.0
        %7137 = vmatpush1.msra.mxu0 0.0
        %7138 = vmatprep.subr.mxu0 0.0
        %7139 = vmatpush1.msra.mxu0 0.0
        %7140 = vmatprep.subr.mxu0 0.0
        %7141 = vmatpush1.msra.mxu0 0.0
        %7142 = vmatprep.subr.mxu0 0.0
        %7143 = vmatpush1.msra.mxu0 0.0
        %7144 = vmatprep.subr.mxu0 0.0
        %7145 = vmatpush1.msra.mxu0 0.0
        %7146 = vmatprep.subr.mxu0 0.0
        %7147 = vmatpush1.msra.mxu0 0.0
        %7148 = vmatprep.subr.mxu0 0.0
        %7149 = vmatpush1.msra.mxu0 0.0
        %7150 = vmatprep.subr.mxu0 0.0
        %7151 = vmatpush1.msra.mxu0 0.0
        %7152 = vmatprep.subr.mxu0 0.0
        %7153 = vmatpush1.msra.mxu0 0.0
        %7154 = vmatprep.subr.mxu0 0.0
        %7155 = vmatpush1.msra.mxu0 0.0
        %7156 = vmatprep.subr.mxu0 0.0
        %7157 = vmatpush1.msra.mxu0 0.0
        %7158 = vmatprep.subr.mxu0 0.0
        %7159 = vmatpush1.msra.mxu0 0.0
        %7160 = vmatprep.subr.mxu0 0.0
        %7161 = vmatpush1.msra.mxu0 0.0
        %7162 = vmatprep.subr.mxu0 0.0
        %7163 = vmatpush1.msra.mxu0 0.0
        %7164 = vmatprep.subr.mxu0 0.0
        %7165 = vmatpush1.msra.mxu0 0.0
        %7166 = vmatprep.subr.mxu0 0.0
        %7167 = vmatpush1.msra.mxu0 0.0
        %7168 = vmatprep.subr.mxu0 0.0
        %7169 = vmatpush1.msra.mxu0 0.0
        %7170 = vmatprep.subr.mxu0 0.0
        %7171 = vmatpush1.msra.mxu0 0.0
        %7172 = vmatprep.subr.mxu0 0.0
        %7173 = vmatpush1.msra.mxu0 0.0
        %7174 = vmatprep.subr.mxu0 0.0
        %7175 = vmatpush1.msra.mxu0 0.0
        %7176 = vmatprep.mubr.f32.mxu0 0.0
        %7177 = vmatmul.mubr.f32.gmra.mrb[0].mxu0 %v7110
        %v7178 = vpop.f32.mrb[0].mxu0
        %v7179 = vadd.f32 %v7107, %v7178
        %v7180 = vpop.f32.mrb[0].mxu0
        %7181 = vdwg.mxu0
        %v7182 = vld [vmem:[%s16] sm:$0xf]
        %vm7183 = vcmask 64512
        %v7185 = vsel %vm7183, %v7182, 0
        %7187 = vmatprep.subr.mxu0 0.0
        %7188 = vmatpush1.msra.mxu0 %v7179
        %7189 = vmatprep.subr.mxu0 0.0
        %7190 = vmatpush1.msra.mxu0 0.0
        %7191 = vmatprep.subr.mxu0 0.0
        %7192 = vmatpush1.msra.mxu0 0.0
        %7193 = vmatprep.subr.mxu0 0.0
        %7194 = vmatpush1.msra.mxu0 0.0
        %7195 = vmatprep.subr.mxu0 0.0
        %7196 = vmatpush1.msra.mxu0 0.0
        %7197 = vmatprep.subr.mxu0 0.0
        %7198 = vmatpush1.msra.mxu0 0.0
        %7199 = vmatprep.subr.mxu0 0.0
        %7200 = vmatpush1.msra.mxu0 0.0
        %7201 = vmatprep.subr.mxu0 0.0
        %7202 = vmatpush1.msra.mxu0 0.0
        %7203 = vmatprep.subr.mxu0 0.0
        %7204 = vmatpush1.msra.mxu0 0.0
        %7205 = vmatprep.subr.mxu0 0.0
        %7206 = vmatpush1.msra.mxu0 0.0
        %7207 = vmatprep.subr.mxu0 0.0
        %7208 = vmatpush1.msra.mxu0 0.0
        %7209 = vmatprep.subr.mxu0 0.0
        %7210 = vmatpush1.msra.mxu0 0.0
        %7211 = vmatprep.subr.mxu0 0.0
        %7212 = vmatpush1.msra.mxu0 0.0
        %7213 = vmatprep.subr.mxu0 0.0
        %7214 = vmatpush1.msra.mxu0 0.0
        %7215 = vmatprep.subr.mxu0 0.0
        %7216 = vmatpush1.msra.mxu0 0.0
        %7217 = vmatprep.subr.mxu0 0.0
        %7218 = vmatpush1.msra.mxu0 0.0
        %7219 = vmatprep.subr.mxu0 0.0
        %7220 = vmatpush1.msra.mxu0 0.0
        %7221 = vmatprep.subr.mxu0 0.0
        %7222 = vmatpush1.msra.mxu0 0.0
        %7223 = vmatprep.subr.mxu0 0.0
        %7224 = vmatpush1.msra.mxu0 0.0
        %7225 = vmatprep.subr.mxu0 0.0
        %7226 = vmatpush1.msra.mxu0 0.0
        %7227 = vmatprep.subr.mxu0 0.0
        %7228 = vmatpush1.msra.mxu0 0.0
        %7229 = vmatprep.subr.mxu0 0.0
        %7230 = vmatpush1.msra.mxu0 0.0
        %7231 = vmatprep.subr.mxu0 0.0
        %7232 = vmatpush1.msra.mxu0 0.0
        %7233 = vmatprep.subr.mxu0 0.0
        %7234 = vmatpush1.msra.mxu0 0.0
        %7235 = vmatprep.subr.mxu0 0.0
        %7236 = vmatpush1.msra.mxu0 0.0
        %7237 = vmatprep.subr.mxu0 0.0
        %7238 = vmatpush1.msra.mxu0 0.0
        %7239 = vmatprep.subr.mxu0 0.0
        %7240 = vmatpush1.msra.mxu0 0.0
        %7241 = vmatprep.subr.mxu0 0.0
        %7242 = vmatpush1.msra.mxu0 0.0
        %7243 = vmatprep.subr.mxu0 0.0
        %7244 = vmatpush1.msra.mxu0 0.0
        %7245 = vmatprep.subr.mxu0 0.0
        %7246 = vmatpush1.msra.mxu0 0.0
        %7247 = vmatprep.subr.mxu0 0.0
        %7248 = vmatpush1.msra.mxu0 0.0
        %7249 = vmatprep.subr.mxu0 0.0
        %7250 = vmatpush1.msra.mxu0 0.0
        %7251 = vmatprep.mubr.f32.mxu0 0.0
        %7252 = vmatmul.mubr.f32.gmra.mrb[0].mxu0 %v7185
        %v7253 = vpop.f32.mrb[0].mxu0
        %v7254 = vadd.f32 0.0, %v7253
        %v7255 = vpop.f32.mrb[0].mxu0
        %7256 = vdwg.mxu0
        %v7257 = vld [vmem:[%s17] sm:$0xff]
        %v7258 = vld [vmem:[%s17 + $0x8] sm:$0xff]
        %v7259 = vld [vmem:[%s17 + $0x10] sm:$0xff]
        %v7260 = vld [vmem:[%s17 + $0x18] sm:$0xff]
        %v7261 = vld [vmem:[%s17 + $0x20] sm:$0xff]
        %v7262 = vld [vmem:[%s17 + $0x28] sm:$0xff]
        %v7263 = vld [vmem:[%s17 + $0x30] sm:$0xff]
        %v7264 = vld [vmem:[%s17 + $0x38] sm:$0xff]
        %v7265 = vld [vmem:[%s17 + $0x40] sm:$0xff]
        %v7266 = vld [vmem:[%s17 + $0x48] sm:$0xff]
        %v7267 = vld [vmem:[%s17 + $0x50] sm:$0xff]
        %v7268 = vld [vmem:[%s17 + $0x58] sm:$0xff]
        %s7269 = scalar_lea.vmem %s17, 96
        %v7270 = vld [vmem:[%s7269] sm:$0xff]
        %v7271 = vld [vmem:[%s7269 + $0x8] sm:$0xff]
        %v7272 = vld [vmem:[%s7269 + $0x10] sm:$0xff]
        %v7273 = vld [vmem:[%s7269 + $0x18] sm:$0xff]
        %v7274 = vld [vmem:[%s7269 + $0x20] sm:$0xff]
        %v7275 = vld [vmem:[%s7269 + $0x28] sm:$0xff]
        %v7276 = vld [vmem:[%s7269 + $0x30] sm:$0xff]
        %v7277 = vld [vmem:[%s7269 + $0x38] sm:$0xff]
        %v7278 = vld [vmem:[%s7269 + $0x40] sm:$0xff]
        %v7279 = vld [vmem:[%s7269 + $0x48] sm:$0xff]
        %v7280 = vld [vmem:[%s7269 + $0x50] sm:$0xff]
        %v7281 = vld [vmem:[%s7269 + $0x58] sm:$0xff]
        %v7283 = vrot.slane %v7254, 1
        %vm7284 = vcmask 785408
        %v7285 = vsel %vm7284, %v7283, 0
        %7287 = vmatprep.subr.mxu0 0.0
        %7288 = vmatpush1.msra.mxu0 %v7270
        %7289 = vmatprep.subr.mxu0 0.0
        %7290 = vmatpush1.msra.mxu0 %v7271
        %7291 = vmatprep.subr.mxu0 0.0
        %7292 = vmatpush1.msra.mxu0 %v7272
        %7293 = vmatprep.subr.mxu0 0.0
        %7294 = vmatpush1.msra.mxu0 %v7273
        %7295 = vmatprep.subr.mxu0 0.0
        %7296 = vmatpush1.msra.mxu0 %v7274
        %7297 = vmatprep.subr.mxu0 0.0
        %7298 = vmatpush1.msra.mxu0 %v7275
        %7299 = vmatprep.subr.mxu0 0.0
        %7300 = vmatpush1.msra.mxu0 %v7276
        %7301 = vmatprep.subr.mxu0 0.0
        %7302 = vmatpush1.msra.mxu0 %v7277
        %7303 = vmatprep.subr.mxu0 0.0
        %7304 = vmatpush1.msra.mxu0 %v7278
        %7305 = vmatprep.subr.mxu0 0.0
        %7306 = vmatpush1.msra.mxu0 %v7279
        %7307 = vmatprep.subr.mxu0 0.0
        %7308 = vmatpush1.msra.mxu0 %v7280
        %7309 = vmatprep.subr.mxu0 0.0
        %7310 = vmatpush1.msra.mxu0 %v7281
        %7311 = vmatprep.subr.mxu0 0.0
        %7312 = vmatpush1.msra.mxu0 0.0
        %7313 = vmatprep.subr.mxu0 0.0
        %7314 = vmatpush1.msra.mxu0 0.0
        %7315 = vmatprep.subr.mxu0 0.0
        %7316 = vmatpush1.msra.mxu0 0.0
        %7317 = vmatprep.subr.mxu0 0.0
        %7318 = vmatpush1.msra.mxu0 0.0
        %7319 = vmatprep.subr.mxu0 0.0
        %7320 = vmatpush1.msra.mxu0 0.0
        %7321 = vmatprep.subr.mxu0 0.0
        %7322 = vmatpush1.msra.mxu0 0.0
        %7323 = vmatprep.subr.mxu0 0.0
        %7324 = vmatpush1.msra.mxu0 0.0
        %7325 = vmatprep.subr.mxu0 0.0
        %7326 = vmatpush1.msra.mxu0 0.0
        %7327 = vmatprep.subr.mxu0 0.0
        %7328 = vmatpush1.msra.mxu0 0.0
        %7329 = vmatprep.subr.mxu0 0.0
        %7330 = vmatpush1.msra.mxu0 0.0
        %7331 = vmatprep.subr.mxu0 0.0
        %7332 = vmatpush1.msra.mxu0 0.0
        %7333 = vmatprep.subr.mxu0 0.0
        %7334 = vmatpush1.msra.mxu0 0.0
        %7335 = vmatprep.subr.mxu0 0.0
        %7336 = vmatpush1.msra.mxu0 0.0
        %7337 = vmatprep.subr.mxu0 0.0
        %7338 = vmatpush1.msra.mxu0 0.0
        %7339 = vmatprep.subr.mxu0 0.0
        %7340 = vmatpush1.msra.mxu0 0.0
        %7341 = vmatprep.subr.mxu0 0.0
        %7342 = vmatpush1.msra.mxu0 0.0
        %7343 = vmatprep.subr.mxu0 0.0
        %7344 = vmatpush1.msra.mxu0 0.0
        %7345 = vmatprep.subr.mxu0 0.0
        %7346 = vmatpush1.msra.mxu0 0.0
        %7347 = vmatprep.subr.mxu0 0.0
        %7348 = vmatpush1.msra.mxu0 0.0
        %7349 = vmatprep.subr.mxu0 0.0
        %7350 = vmatpush1.msra.mxu0 0.0
        %7351 = vmatprep.mubr.f32.mxu0 0.0
        %7352 = vmatmul.mubr.f32.gmra.mrb[0].mxu0 %v7285
        %v7353 = vpop.f32.mrb[0].mxu0
        %v7354 = vadd.f32 0.0, %v7353
        %v7355 = vpop.f32.mrb[0].mxu0
        %7356 = vdwg.mxu0
        %v7357 = vsel %vm7284, %v7254, 0
        %7359 = vmatprep.subr.mxu0 0.0
        %7360 = vmatpush1.msra.mxu0 %v7257
        %7361 = vmatprep.subr.mxu0 0.0
        %7362 = vmatpush1.msra.mxu0 %v7258
        %7363 = vmatprep.subr.mxu0 0.0
        %7364 = vmatpush1.msra.mxu0 %v7259
        %7365 = vmatprep.subr.mxu0 0.0
        %7366 = vmatpush1.msra.mxu0 %v7260
        %7367 = vmatprep.subr.mxu0 0.0
        %7368 = vmatpush1.msra.mxu0 %v7261
        %7369 = vmatprep.subr.mxu0 0.0
        %7370 = vmatpush1.msra.mxu0 %v7262
        %7371 = vmatprep.subr.mxu0 0.0
        %7372 = vmatpush1.msra.mxu0 %v7263
        %7373 = vmatprep.subr.mxu0 0.0
        %7374 = vmatpush1.msra.mxu0 %v7264
        %7375 = vmatprep.subr.mxu0 0.0
        %7376 = vmatpush1.msra.mxu0 %v7265
        %7377 = vmatprep.subr.mxu0 0.0
        %7378 = vmatpush1.msra.mxu0 %v7266
        %7379 = vmatprep.subr.mxu0 0.0
        %7380 = vmatpush1.msra.mxu0 %v7267
        %7381 = vmatprep.subr.mxu0 0.0
        %7382 = vmatpush1.msra.mxu0 %v7268
        %7383 = vmatprep.subr.mxu0 0.0
        %7384 = vmatpush1.msra.mxu0 0.0
        %7385 = vmatprep.subr.mxu0 0.0
        %7386 = vmatpush1.msra.mxu0 0.0
        %7387 = vmatprep.subr.mxu0 0.0
        %7388 = vmatpush1.msra.mxu0 0.0
        %7389 = vmatprep.subr.mxu0 0.0
        %7390 = vmatpush1.msra.mxu0 0.0
        %7391 = vmatprep.subr.mxu0 0.0
        %7392 = vmatpush1.msra.mxu0 0.0
        %7393 = vmatprep.subr.mxu0 0.0
        %7394 = vmatpush1.msra.mxu0 0.0
        %7395 = vmatprep.subr.mxu0 0.0
        %7396 = vmatpush1.msra.mxu0 0.0
        %7397 = vmatprep.subr.mxu0 0.0
        %7398 = vmatpush1.msra.mxu0 0.0
        %7399 = vmatprep.subr.mxu0 0.0
        %7400 = vmatpush1.msra.mxu0 0.0
        %7401 = vmatprep.subr.mxu0 0.0
        %7402 = vmatpush1.msra.mxu0 0.0
        %7403 = vmatprep.subr.mxu0 0.0
        %7404 = vmatpush1.msra.mxu0 0.0
        %7405 = vmatprep.subr.mxu0 0.0
        %7406 = vmatpush1.msra.mxu0 0.0
        %7407 = vmatprep.subr.mxu0 0.0
        %7408 = vmatpush1.msra.mxu0 0.0
        %7409 = vmatprep.subr.mxu0 0.0
        %7410 = vmatpush1.msra.mxu0 0.0
        %7411 = vmatprep.subr.mxu0 0.0
        %7412 = vmatpush1.msra.mxu0 0.0
        %7413 = vmatprep.subr.mxu0 0.0
        %7414 = vmatpush1.msra.mxu0 0.0
        %7415 = vmatprep.subr.mxu0 0.0
        %7416 = vmatpush1.msra.mxu0 0.0
        %7417 = vmatprep.subr.mxu0 0.0
        %7418 = vmatpush1.msra.mxu0 0.0
        %7419 = vmatprep.subr.mxu0 0.0
        %7420 = vmatpush1.msra.mxu0 0.0
        %7421 = vmatprep.subr.mxu0 0.0
        %7422 = vmatpush1.msra.mxu0 0.0
        %7423 = vmatprep.mubr.f32.mxu0 0.0
        %7424 = vmatmul.mubr.f32.gmra.mrb[0].mxu0 %v7357
        %v7425 = vpop.f32.mrb[0].mxu0
        %v7426 = vadd.f32 %v7354, %v7425
        %v7427 = vpop.f32.mrb[0].mxu0
        %7428 = vdwg.mxu0
        %s7429 = scalar_lea.vmem %s17, 192
        %v7430 = vld [vmem:[%s7429] sm:$0xff]
        %v7431 = vld [vmem:[%s7429 + $0x8] sm:$0xff]
        %v7432 = vld [vmem:[%s7429 + $0x10] sm:$0xff]
        %v7433 = vld [vmem:[%s7429 + $0x18] sm:$0xff]
        %v7434 = vld [vmem:[%s7429 + $0x20] sm:$0xff]
        %v7435 = vld [vmem:[%s7429 + $0x28] sm:$0xff]
        %v7436 = vld [vmem:[%s7429 + $0x30] sm:$0xff]
        %v7437 = vld [vmem:[%s7429 + $0x38] sm:$0xff]
        %v7438 = vld [vmem:[%s7429 + $0x40] sm:$0xff]
        %v7439 = vld [vmem:[%s7429 + $0x48] sm:$0xff]
        %v7440 = vld [vmem:[%s7429 + $0x50] sm:$0xff]
        %v7441 = vld [vmem:[%s7429 + $0x58] sm:$0xff]
        %v7442 = vrot.slane %v7254, 2
        %v7443 = vsel %vm7284, %v7442, 0
        %7445 = vmatprep.subr.mxu0 0.0
        %7446 = vmatpush1.msra.mxu0 %v7430
        %7447 = vmatprep.subr.mxu0 0.0
        %7448 = vmatpush1.msra.mxu0 %v7431
        %7449 = vmatprep.subr.mxu0 0.0
        %7450 = vmatpush1.msra.mxu0 %v7432
        %7451 = vmatprep.subr.mxu0 0.0
        %7452 = vmatpush1.msra.mxu0 %v7433
        %7453 = vmatprep.subr.mxu0 0.0
        %7454 = vmatpush1.msra.mxu0 %v7434
        %7455 = vmatprep.subr.mxu0 0.0
        %7456 = vmatpush1.msra.mxu0 %v7435
        %7457 = vmatprep.subr.mxu0 0.0
        %7458 = vmatpush1.msra.mxu0 %v7436
        %7459 = vmatprep.subr.mxu0 0.0
        %7460 = vmatpush1.msra.mxu0 %v7437
        %7461 = vmatprep.subr.mxu0 0.0
        %7462 = vmatpush1.msra.mxu0 %v7438
        %7463 = vmatprep.subr.mxu0 0.0
        %7464 = vmatpush1.msra.mxu0 %v7439
        %7465 = vmatprep.subr.mxu0 0.0
        %7466 = vmatpush1.msra.mxu0 %v7440
        %7467 = vmatprep.subr.mxu0 0.0
        %7468 = vmatpush1.msra.mxu0 %v7441
        %7469 = vmatprep.subr.mxu0 0.0
        %7470 = vmatpush1.msra.mxu0 0.0
        %7471 = vmatprep.subr.mxu0 0.0
        %7472 = vmatpush1.msra.mxu0 0.0
        %7473 = vmatprep.subr.mxu0 0.0
        %7474 = vmatpush1.msra.mxu0 0.0
        %7475 = vmatprep.subr.mxu0 0.0
        %7476 = vmatpush1.msra.mxu0 0.0
        %7477 = vmatprep.subr.mxu0 0.0
        %7478 = vmatpush1.msra.mxu0 0.0
        %7479 = vmatprep.subr.mxu0 0.0
        %7480 = vmatpush1.msra.mxu0 0.0
        %7481 = vmatprep.subr.mxu0 0.0
        %7482 = vmatpush1.msra.mxu0 0.0
        %7483 = vmatprep.subr.mxu0 0.0
        %7484 = vmatpush1.msra.mxu0 0.0
        %7485 = vmatprep.subr.mxu0 0.0
        %7486 = vmatpush1.msra.mxu0 0.0
        %7487 = vmatprep.subr.mxu0 0.0
        %7488 = vmatpush1.msra.mxu0 0.0
        %7489 = vmatprep.subr.mxu0 0.0
        %7490 = vmatpush1.msra.mxu0 0.0
        %7491 = vmatprep.subr.mxu0 0.0
        %7492 = vmatpush1.msra.mxu0 0.0
        %7493 = vmatprep.subr.mxu0 0.0
        %7494 = vmatpush1.msra.mxu0 0.0
        %7495 = vmatprep.subr.mxu0 0.0
        %7496 = vmatpush1.msra.mxu0 0.0
        %7497 = vmatprep.subr.mxu0 0.0
        %7498 = vmatpush1.msra.mxu0 0.0
        %7499 = vmatprep.subr.mxu0 0.0
        %7500 = vmatpush1.msra.mxu0 0.0
        %7501 = vmatprep.subr.mxu0 0.0
        %7502 = vmatpush1.msra.mxu0 0.0
        %7503 = vmatprep.subr.mxu0 0.0
        %7504 = vmatpush1.msra.mxu0 0.0
        %7505 = vmatprep.subr.mxu0 0.0
        %7506 = vmatpush1.msra.mxu0 0.0
        %7507 = vmatprep.subr.mxu0 0.0
        %7508 = vmatpush1.msra.mxu0 0.0
        %7509 = vmatprep.mubr.f32.mxu0 0.0
        %7510 = vmatmul.mubr.f32.gmra.mrb[0].mxu0 %v7443
        %v7511 = vpop.f32.mrb[0].mxu0
        %v7512 = vadd.f32 0.0, %v7511
        %v7513 = vpop.f32.mrb[0].mxu0
        %7514 = vdwg.mxu0
        %v7515 = vadd.f32 %v7426, %v7512
        %s7516 = scalar_lea.vmem %s17, 288
        %v7517 = vld [vmem:[%s7516] sm:$0xff]
        %v7518 = vld [vmem:[%s7516 + $0x8] sm:$0xff]
        %v7519 = vld [vmem:[%s7516 + $0x10] sm:$0xff]
        %v7520 = vld [vmem:[%s7516 + $0x18] sm:$0xff]
        %v7521 = vld [vmem:[%s7516 + $0x20] sm:$0xff]
        %v7522 = vld [vmem:[%s7516 + $0x28] sm:$0xff]
        %v7523 = vld [vmem:[%s7516 + $0x30] sm:$0xff]
        %v7524 = vld [vmem:[%s7516 + $0x38] sm:$0xff]
        %v7525 = vld [vmem:[%s7516 + $0x40] sm:$0xff]
        %v7526 = vld [vmem:[%s7516 + $0x48] sm:$0xff]
        %v7527 = vld [vmem:[%s7516 + $0x50] sm:$0xff]
        %v7528 = vld [vmem:[%s7516 + $0x58] sm:$0xff]
        %v7529 = vrot.slane %v7254, 3
        %v7530 = vsel %vm7284, %v7529, 0
        %7532 = vmatprep.subr.mxu0 0.0
        %7533 = vmatpush1.msra.mxu0 %v7517
        %7534 = vmatprep.subr.mxu0 0.0
        %7535 = vmatpush1.msra.mxu0 %v7518
        %7536 = vmatprep.subr.mxu0 0.0
        %7537 = vmatpush1.msra.mxu0 %v7519
        %7538 = vmatprep.subr.mxu0 0.0
        %7539 = vmatpush1.msra.mxu0 %v7520
        %7540 = vmatprep.subr.mxu0 0.0
        %7541 = vmatpush1.msra.mxu0 %v7521
        %7542 = vmatprep.subr.mxu0 0.0
        %7543 = vmatpush1.msra.mxu0 %v7522
        %7544 = vmatprep.subr.mxu0 0.0
        %7545 = vmatpush1.msra.mxu0 %v7523
        %7546 = vmatprep.subr.mxu0 0.0
        %7547 = vmatpush1.msra.mxu0 %v7524
        %7548 = vmatprep.subr.mxu0 0.0
        %7549 = vmatpush1.msra.mxu0 %v7525
        %7550 = vmatprep.subr.mxu0 0.0
        %7551 = vmatpush1.msra.mxu0 %v7526
        %7552 = vmatprep.subr.mxu0 0.0
        %7553 = vmatpush1.msra.mxu0 %v7527
        %7554 = vmatprep.subr.mxu0 0.0
        %7555 = vmatpush1.msra.mxu0 %v7528
        %7556 = vmatprep.subr.mxu0 0.0
        %7557 = vmatpush1.msra.mxu0 0.0
        %7558 = vmatprep.subr.mxu0 0.0
        %7559 = vmatpush1.msra.mxu0 0.0
        %7560 = vmatprep.subr.mxu0 0.0
        %7561 = vmatpush1.msra.mxu0 0.0
        %7562 = vmatprep.subr.mxu0 0.0
        %7563 = vmatpush1.msra.mxu0 0.0
        %7564 = vmatprep.subr.mxu0 0.0
        %7565 = vmatpush1.msra.mxu0 0.0
        %7566 = vmatprep.subr.mxu0 0.0
        %7567 = vmatpush1.msra.mxu0 0.0
        %7568 = vmatprep.subr.mxu0 0.0
        %7569 = vmatpush1.msra.mxu0 0.0
        %7570 = vmatprep.subr.mxu0 0.0
        %7571 = vmatpush1.msra.mxu0 0.0
        %7572 = vmatprep.subr.mxu0 0.0
        %7573 = vmatpush1.msra.mxu0 0.0
        %7574 = vmatprep.subr.mxu0 0.0
        %7575 = vmatpush1.msra.mxu0 0.0
        %7576 = vmatprep.subr.mxu0 0.0
        %7577 = vmatpush1.msra.mxu0 0.0
        %7578 = vmatprep.subr.mxu0 0.0
        %7579 = vmatpush1.msra.mxu0 0.0
        %7580 = vmatprep.subr.mxu0 0.0
        %7581 = vmatpush1.msra.mxu0 0.0
        %7582 = vmatprep.subr.mxu0 0.0
        %7583 = vmatpush1.msra.mxu0 0.0
        %7584 = vmatprep.subr.mxu0 0.0
        %7585 = vmatpush1.msra.mxu0 0.0
        %7586 = vmatprep.subr.mxu0 0.0
        %7587 = vmatpush1.msra.mxu0 0.0
        %7588 = vmatprep.subr.mxu0 0.0
        %7589 = vmatpush1.msra.mxu0 0.0
        %7590 = vmatprep.subr.mxu0 0.0
        %7591 = vmatpush1.msra.mxu0 0.0
        %7592 = vmatprep.subr.mxu0 0.0
        %7593 = vmatpush1.msra.mxu0 0.0
        %7594 = vmatprep.subr.mxu0 0.0
        %7595 = vmatpush1.msra.mxu0 0.0
        %7596 = vmatprep.mubr.f32.mxu0 0.0
        %7597 = vmatmul.mubr.f32.gmra.mrb[0].mxu0 %v7530
        %v7598 = vpop.f32.mrb[0].mxu0
        %v7599 = vadd.f32 0.0, %v7598
        %v7600 = vpop.f32.mrb[0].mxu0
        %7601 = vdwg.mxu0
        %v7602 = vadd.f32 %v7515, %v7599
        %v7603 = vmax.f32 %v7602, 0.0
        %v7604 = vld [vmem:[%s18] sm:$0x1]
        %v7605 = vmul.f32 %v7603, %v7604
        %v7606 = vld [vmem:[%s19] sm:$0x1]
        %v7607 = vadd.f32 %v7605, %v7606
        %7608 = vst [vmem:[%s766] sm:$0x1] %v7607
        %v7609 = vld [vmem:[%s20] sm:$0xff]
        %v7610 = vld [vmem:[%s20 + $0x8] sm:$0xff]
        %v7611 = vld [vmem:[%s20 + $0x10] sm:$0xff]
        %v7612 = vld [vmem:[%s20 + $0x18] sm:$0xff]
        %v7613 = vld [vmem:[%s20 + $0x20] sm:$0xff]
        %v7614 = vld [vmem:[%s20 + $0x28] sm:$0xff]
        %v7615 = vld [vmem:[%s20 + $0x30] sm:$0xff]
        %v7616 = vld [vmem:[%s20 + $0x38] sm:$0xff]
        %v7617 = vld [vmem:[%s20 + $0x40] sm:$0xff]
        %v7618 = vld [vmem:[%s20 + $0x48] sm:$0xff]
        %v7619 = vld [vmem:[%s20 + $0x50] sm:$0xff]
        %v7620 = vld [vmem:[%s20 + $0x58] sm:$0xff]
        %v7621 = vld [vmem:[%s20 + $0x60] sm:$0xff]
        %v7622 = vld [vmem:[%s20 + $0x68] sm:$0xff]
        %v7623 = vld [vmem:[%s20 + $0x70] sm:$0xff]
        %v7624 = vld [vmem:[%s20 + $0x78] sm:$0xff]
        %v7625 = vld [vmem:[%s21] sm:$0x1]
        %7626 = vmatprep.subr.mxu0 0.0
        %7627 = vmatpush1.msra.mxu0 %v7609
        %7628 = vmatprep.subr.mxu0 0.0
        %7629 = vmatpush1.msra.mxu0 %v7610
        %7630 = vmatprep.subr.mxu0 0.0
        %7631 = vmatpush1.msra.mxu0 %v7611
        %7632 = vmatprep.subr.mxu0 0.0
        %7633 = vmatpush1.msra.mxu0 %v7612
        %7634 = vmatprep.subr.mxu0 0.0
        %7635 = vmatpush1.msra.mxu0 %v7613
        %7636 = vmatprep.subr.mxu0 0.0
        %7637 = vmatpush1.msra.mxu0 %v7614
        %7638 = vmatprep.subr.mxu0 0.0
        %7639 = vmatpush1.msra.mxu0 %v7615
        %7640 = vmatprep.subr.mxu0 0.0
        %7641 = vmatpush1.msra.mxu0 %v7616
        %7642 = vmatprep.subr.mxu0 0.0
        %7643 = vmatpush1.msra.mxu0 %v7617
        %7644 = vmatprep.subr.mxu0 0.0
        %7645 = vmatpush1.msra.mxu0 %v7618
        %7646 = vmatprep.subr.mxu0 0.0
        %7647 = vmatpush1.msra.mxu0 %v7619
        %7648 = vmatprep.subr.mxu0 0.0
        %7649 = vmatpush1.msra.mxu0 %v7620
        %7650 = vmatprep.subr.mxu0 0.0
        %7651 = vmatpush1.msra.mxu0 %v7621
        %7652 = vmatprep.subr.mxu0 0.0
        %7653 = vmatpush1.msra.mxu0 %v7622
        %7654 = vmatprep.subr.mxu0 0.0
        %7655 = vmatpush1.msra.mxu0 %v7623
        %7656 = vmatprep.subr.mxu0 0.0
        %7657 = vmatpush1.msra.mxu0 %v7624
        %7658 = vmatprep.subr.mxu0 0.0
        %7659 = vmatpush1.msra.mxu0 0.0
        %7660 = vmatprep.subr.mxu0 0.0
        %7661 = vmatpush1.msra.mxu0 0.0
        %7662 = vmatprep.subr.mxu0 0.0
        %7663 = vmatpush1.msra.mxu0 0.0
        %7664 = vmatprep.subr.mxu0 0.0
        %7665 = vmatpush1.msra.mxu0 0.0
        %7666 = vmatprep.subr.mxu0 0.0
        %7667 = vmatpush1.msra.mxu0 0.0
        %7668 = vmatprep.subr.mxu0 0.0
        %7669 = vmatpush1.msra.mxu0 0.0
        %7670 = vmatprep.subr.mxu0 0.0
        %7671 = vmatpush1.msra.mxu0 0.0
        %7672 = vmatprep.subr.mxu0 0.0
        %7673 = vmatpush1.msra.mxu0 0.0
        %7674 = vmatprep.subr.mxu0 0.0
        %7675 = vmatpush1.msra.mxu0 0.0
        %7676 = vmatprep.subr.mxu0 0.0
        %7677 = vmatpush1.msra.mxu0 0.0
        %7678 = vmatprep.subr.mxu0 0.0
        %7679 = vmatpush1.msra.mxu0 0.0
        %7680 = vmatprep.subr.mxu0 0.0
        %7681 = vmatpush1.msra.mxu0 0.0
        %7682 = vmatprep.subr.mxu0 0.0
        %7683 = vmatpush1.msra.mxu0 0.0
        %7684 = vmatprep.subr.mxu0 0.0
        %7685 = vmatpush1.msra.mxu0 0.0
        %7686 = vmatprep.subr.mxu0 0.0
        %7687 = vmatpush1.msra.mxu0 0.0
        %7688 = vmatprep.subr.mxu0 0.0
        %7689 = vmatpush1.msra.mxu0 0.0
        %7690 = vmatprep.mubr.f32.mxu0 0.0
        %7691 = vmatmul.mubr.f32.gmra.mrb[0].mxu0 %v7607
        %v7692 = vpop.f32.mrb[0].mxu0
        %v7693 = vadd.f32 %v7625, %v7692
        %v7694 = vpop.f32.mrb[0].mxu0
        %7695 = vdwg.mxu0
        %v7696 = vld [vmem:[%s22] sm:$0xff]
        %v7697 = vld [vmem:[%s22 + $0x8] sm:$0xff]
        %v7698 = vld [vmem:[%s22 + $0x10] sm:$0xff]
        %v7699 = vld [vmem:[%s22 + $0x18] sm:$0xff]
        %v7700 = vld [vmem:[%s22 + $0x20] sm:$0xff]
        %v7701 = vld [vmem:[%s22 + $0x28] sm:$0xff]
        %v7702 = vld [vmem:[%s22 + $0x30] sm:$0xff]
        %v7703 = vld [vmem:[%s22 + $0x38] sm:$0xff]
        %v7704 = vld [vmem:[%s23] sm:$0x1]
        %vm7705 = vcmask 523264
        %v7707 = vsel %vm7705, %v7693, 0
        %7709 = vmatprep.subr.mxu0 0.0
        %7710 = vmatpush1.msra.mxu0 %v7696
        %7711 = vmatprep.subr.mxu0 0.0
        %7712 = vmatpush1.msra.mxu0 %v7697
        %7713 = vmatprep.subr.mxu0 0.0
        %7714 = vmatpush1.msra.mxu0 %v7698
        %7715 = vmatprep.subr.mxu0 0.0
        %7716 = vmatpush1.msra.mxu0 %v7699
        %7717 = vmatprep.subr.mxu0 0.0
        %7718 = vmatpush1.msra.mxu0 %v7700
        %7719 = vmatprep.subr.mxu0 0.0
        %7720 = vmatpush1.msra.mxu0 %v7701
        %7721 = vmatprep.subr.mxu0 0.0
        %7722 = vmatpush1.msra.mxu0 %v7702
        %7723 = vmatprep.subr.mxu0 0.0
        %7724 = vmatpush1.msra.mxu0 %v7703
        %7725 = vmatprep.subr.mxu0 0.0
        %7726 = vmatpush1.msra.mxu0 0.0
        %7727 = vmatprep.subr.mxu0 0.0
        %7728 = vmatpush1.msra.mxu0 0.0
        %7729 = vmatprep.subr.mxu0 0.0
        %7730 = vmatpush1.msra.mxu0 0.0
        %7731 = vmatprep.subr.mxu0 0.0
        %7732 = vmatpush1.msra.mxu0 0.0
        %7733 = vmatprep.subr.mxu0 0.0
        %7734 = vmatpush1.msra.mxu0 0.0
        %7735 = vmatprep.subr.mxu0 0.0
        %7736 = vmatpush1.msra.mxu0 0.0
        %7737 = vmatprep.subr.mxu0 0.0
        %7738 = vmatpush1.msra.mxu0 0.0
        %7739 = vmatprep.subr.mxu0 0.0
        %7740 = vmatpush1.msra.mxu0 0.0
        %7741 = vmatprep.subr.mxu0 0.0
        %7742 = vmatpush1.msra.mxu0 0.0
        %7743 = vmatprep.subr.mxu0 0.0
        %7744 = vmatpush1.msra.mxu0 0.0
        %7745 = vmatprep.subr.mxu0 0.0
        %7746 = vmatpush1.msra.mxu0 0.0
        %7747 = vmatprep.subr.mxu0 0.0
        %7748 = vmatpush1.msra.mxu0 0.0
        %7749 = vmatprep.subr.mxu0 0.0
        %7750 = vmatpush1.msra.mxu0 0.0
        %7751 = vmatprep.subr.mxu0 0.0
        %7752 = vmatpush1.msra.mxu0 0.0
        %7753 = vmatprep.subr.mxu0 0.0
        %7754 = vmatpush1.msra.mxu0 0.0
        %7755 = vmatprep.subr.mxu0 0.0
        %7756 = vmatpush1.msra.mxu0 0.0
        %7757 = vmatprep.subr.mxu0 0.0
        %7758 = vmatpush1.msra.mxu0 0.0
        %7759 = vmatprep.subr.mxu0 0.0
        %7760 = vmatpush1.msra.mxu0 0.0
        %7761 = vmatprep.subr.mxu0 0.0
        %7762 = vmatpush1.msra.mxu0 0.0
        %7763 = vmatprep.subr.mxu0 0.0
        %7764 = vmatpush1.msra.mxu0 0.0
        %7765 = vmatprep.subr.mxu0 0.0
        %7766 = vmatpush1.msra.mxu0 0.0
        %7767 = vmatprep.subr.mxu0 0.0
        %7768 = vmatpush1.msra.mxu0 0.0
        %7769 = vmatprep.subr.mxu0 0.0
        %7770 = vmatpush1.msra.mxu0 0.0
        %7771 = vmatprep.subr.mxu0 0.0
        %7772 = vmatpush1.msra.mxu0 0.0
        %7773 = vmatprep.mubr.f32.mxu0 0.0
        %7774 = vmatmul.mubr.f32.gmra.mrb[0].mxu0 %v7707
        %v7775 = vpop.f32.mrb[0].mxu0
        %v7776 = vadd.f32 %v7704, %v7775
        %v7777 = vpop.f32.mrb[0].mxu0
        %7778 = vdwg.mxu0
        %vm7779 = vcmask 16384
        %7780 = vst.msk [vmem:[%s760] sm:$0x1] %vm7779, %v7776
        %s7781 = sand.u32 %s560, 1
        %s7782 = scalar_lea.sflag [#allocation6], %s7781
        %s7783 = sand.u32 %s560, 1
        %s7784 = scalar_lea.vmem [#allocation5], %s7783
        %s7785 = sand.u32 %s586, 1
        %s7786 = scalar_lea.sflag [#allocation8], %s7785
        %s7787 = sand.u32 %s586, 1
        %s7788 = scalar_lea.vmem [#allocation7], %s7787
        // Predicated region
        $region117: #{tpu_custom_call.1} parent=115 // pred_check
          %p7789 = pneg %p570
        $region118: #{tpu_custom_call.1} parent=115 // pred_check_branch
          %7791 = sbr.rel (%p7789) target = $region120
        $region119: #{tpu_custom_call.1} parent=115 // pred_region
          %s7793 = ssub.s32 16, 16
          %7794 = vsyncadd %s7782, %s7793
          %s7795 = smul.addr %s43, 16
          %s7796 = scalar_lea.hbm %s24, %s7795
          %s7798 = sshll.u32 %s7784, 4
          %s7799 = int_to_ptr.vmem [resolvable:$true] %s7798
          %7801 = dma.vmem_to_hbm [thread:$0]  %s7799, 16, %s7796, %s7782
        $region120: #{tpu_custom_call.1} parent=115 // pred_fallthru
          _
        // Predicated region
        $region121: #{tpu_custom_call.1} parent=115 // pred_check
          %p7802 = pneg %p596
        $region122: #{tpu_custom_call.1} parent=115 // pred_check_branch
          %7804 = sbr.rel (%p7802) target = $region124
        $region123: #{tpu_custom_call.1} parent=115 // pred_region
          %s7806 = ssub.s32 16, 16
          %7807 = vsyncadd %s7786, %s7806
          %s7808 = smul.addr %s43, 16
          %s7809 = scalar_lea.hbm %s25, %s7808
          %s7811 = sshll.u32 %s7788, 4
          %s7812 = int_to_ptr.vmem [resolvable:$true] %s7811
          %7814 = dma.vmem_to_hbm [thread:$0]  %s7812, 16, %s7809, %s7786
        $region124: #{tpu_custom_call.1} parent=115 // pred_fallthru
          _
      $region116: #{tpu_custom_call.1} parent=5 // pred_fallthru
        _
      %p7815 = scmp.le.s32.totalorder 2, %s38
      // Predicated region
      $region125: #{tpu_custom_call.1} parent=5 // pred_check
        %p7816 = pneg %p7815
      $region126: #{tpu_custom_call.1} parent=5 // pred_check_branch
        %7818 = sbr.rel (%p7816) target = $region128
      $region127: #{tpu_custom_call.1} parent=5 // pred_region
        %s7819 = ssub.s32 %s38, 2
        // Predicated region
        $region129: #{tpu_custom_call.1} parent=127 // pred_check
          %p7820 = pneg %p576
        $region130: #{tpu_custom_call.1} parent=127 // pred_check_branch
          %7822 = sbr.rel (%p7820) target = $region132
        $region131: #{tpu_custom_call.1} parent=127 // pred_region
          %s7823 = sand.u32 %s561, 1
          %s7824 = scalar_lea.sflag [#allocation6], %s7823
          %s7825 = sand.u32 %s561, 1
          %s7826 = scalar_lea.vmem [#allocation5], %s7825
          %7827 = dma.done %s7824, 16
        $region132: #{tpu_custom_call.1} parent=127 // pred_fallthru
          _
        // Predicated region
        $region133: #{tpu_custom_call.1} parent=127 // pred_check
          %p7828 = pneg %p602
        $region134: #{tpu_custom_call.1} parent=127 // pred_check_branch
          %7830 = sbr.rel (%p7828) target = $region136
        $region135: #{tpu_custom_call.1} parent=127 // pred_region
          %s7831 = sand.u32 %s587, 1
          %s7832 = scalar_lea.sflag [#allocation8], %s7831
          %s7833 = sand.u32 %s587, 1
          %s7834 = scalar_lea.vmem [#allocation7], %s7833
          %7835 = dma.done %s7832, 16
        $region136: #{tpu_custom_call.1} parent=127 // pred_fallthru
          _
      $region128: #{tpu_custom_call.1} parent=5 // pred_fallthru
        _
    $region6: #{tpu_custom_call.1} parent=1 // loop_footer
      %s42 = sadd.s32 1, %s38
    $region7: #{tpu_custom_call.1} parent=1 // loop_footer_branch
      %37 = sbr.rel target = $region3
    $region8: #{tpu_custom_call.1} parent=1 // loop_exit
      _
    %7836 = vsyncpa [#allocation6], 1
    %s7837 = scalar_lea.sflag [#allocation6], 1
    %7838 = vsyncpa %s7837, 1
    %7839 = vsyncpa [#allocation8], 1
    %s7840 = scalar_lea.sflag [#allocation8], 1
    %7841 = vsyncpa %s7840, 1

</llo_original>
